<compile_context>
chip_gen: v6e
topology: v6e:2x2x1
jax: 0.10.0
libtpu: 0.0.40
codegen_flags: <defaults>
</compile_context>

<pallas_src>
import functools
import math

import jax
import jax.numpy as jnp
from jax import lax
from jax.experimental import pallas as pl
from jax.experimental.pallas import tpu as pltpu

# ----------------------------- small synthetic config -----------------------
D_MODEL = 32
D_FFN = 64
N_HEADS = 4
N_LEVELS = 2
N_POINTS = 2
HEAD_DIM = D_MODEL // N_HEADS
LN_EPS = 1e-5

B = 2
LQ = 8
SPATIAL_SHAPES = ((8, 8), (4, 4))                  # (H_l, W_l) per level
LEVEL_START = (0, 64)
LEN_IN = sum(h * w for h, w in SPATIAL_SHAPES)     # 80


def _layer_norm(z, g, b, eps):
    mu = jnp.mean(z, axis=-1, keepdims=True)
    zc = z - mu
    var = jnp.mean(zc * zc, axis=-1, keepdims=True)
    return zc * lax.rsqrt(var + eps) * g + b


# ----------------------------- fused Pallas kernel ---------------------------
def decoder_layer_kernel(
        ref_ref, pos_ref, loc_ref, feat_ref,
        sa_wq, sa_wk, sa_wv, sa_bq, sa_bk, sa_bv, sa_wo, sa_bo,
        ln2_g, ln2_b,
        ca_wv, ca_bv, ca_woff, ca_boff, ca_wat, ca_bat, ca_wo, ca_bo,
        ln1_g, ln1_b,
        ffn_w1, ffn_b1, ffn_w2, ffn_b2, ln3_g, ln3_b,
        out_ref,
        *, n_heads, n_levels, n_points, spatial_shapes, level_start, eps):
    x = ref_ref[0]                                   # (Lq, D)
    pos = pos_ref[0]
    Lq, D = x.shape
    hd = D // n_heads
    scale = 1.0 / math.sqrt(hd)
    LP = n_levels * n_points

    # ---------------- 1) self attention: q = k = x + pos, v = x -------------
    qk_in = x + pos
    q = jnp.dot(qk_in, sa_wq[...], preferred_element_type=jnp.float32) + sa_bq[...]
    k = jnp.dot(qk_in, sa_wk[...], preferred_element_type=jnp.float32) + sa_bk[...]
    v = jnp.dot(x, sa_wv[...], preferred_element_type=jnp.float32) + sa_bv[...]

    sa = jnp.zeros((Lq, D), jnp.float32)
    for h in range(n_heads):
        qh = q[:, h * hd:(h + 1) * hd] * scale
        kh = k[:, h * hd:(h + 1) * hd]
        vh = v[:, h * hd:(h + 1) * hd]
        s = jnp.dot(qh, kh.T, preferred_element_type=jnp.float32)        # (Lq, Lq)
        s = s - jnp.max(s, axis=-1, keepdims=True)
        p = jnp.exp(s)
        p = p * pl.reciprocal(jnp.sum(p, axis=-1, keepdims=True), approx=True)
        oh = jnp.dot(p, vh, preferred_element_type=jnp.float32)          # (Lq, hd)
        # accumulate through the output projection -> no lane-axis concat
        sa = sa + jnp.dot(oh, sa_wo[h * hd:(h + 1) * hd, :],
                          preferred_element_type=jnp.float32)
    sa = sa + sa_bo[...]

    # ---------------- 2) ref2 = norm2(x + sa) --------------------------------
    ref2 = _layer_norm(x + sa, ln2_g[...], ln2_b[...], eps)

    # ---------------- 3) MSDeformAttn cross attention ------------------------
    q_ca = ref2 + pos
    feats = feat_ref[0]                              # (len_pad, D), zero-padded rows
    value = jnp.dot(feats, ca_wv[...], preferred_element_type=jnp.float32) + ca_bv[...]
    off = jnp.dot(q_ca, ca_woff[...], preferred_element_type=jnp.float32) + ca_boff[...]
    attn = jnp.dot(q_ca, ca_wat[...], preferred_element_type=jnp.float32) + ca_bat[...]
    loc = loc_ref[0]                                 # (Lq, n_levels*2) flattened (x, y)

    len_pad = feats.shape[0]
    col = lax.broadcasted_iota(jnp.int32, (Lq, len_pad), 1)   # hoisted, lane-dense

    # per-level sampling base in pixel coords (grid_sample, align_corners=False):
    #   xp = (rx + ox/Wl) * Wl - 0.5 = rx*Wl - 0.5 + ox
    bases = []
    for l, (Hl, Wl) in enumerate(spatial_shapes):
        rx = loc[:, 2 * l:2 * l + 1]
        ry = loc[:, 2 * l + 1:2 * l + 2]
        bases.append((rx * float(Wl) - 0.5, ry * float(Hl) - 0.5))

    ca = jnp.zeros((Lq, D), jnp.float32)
    for h in range(n_heads):
        # softmax over (levels * points) for this head
        logits = attn[:, h * LP:(h + 1) * LP]
        logits = logits - jnp.max(logits, axis=-1, keepdims=True)
        e = jnp.exp(logits)
        w = e * pl.reciprocal(jnp.sum(e, axis=-1, keepdims=True), approx=True)

        # one lane-padded interpolation matrix covering ALL levels for this head
        M = jnp.zeros((Lq, len_pad), jnp.float32)
        for l, (Hl, Wl) in enumerate(spatial_shapes):
            start = level_start[l]
            bx, by = bases[l]
            for p_ in range(n_points):
                idx = (h * n_levels + l) * n_points + p_
                ox = off[:, 2 * idx:2 * idx + 1]
                oy = off[:, 2 * idx + 1:2 * idx + 2]
                xp = bx + ox
                yp = by + oy
                x0 = jnp.floor(xp)
                y0 = jnp.floor(yp)
                wx1 = xp - x0
                wx0 = 1.0 - wx1
                wy1 = yp - y0
                wy0 = 1.0 - wy1
                x0i = x0.astype(jnp.int32)
                y0i = y0.astype(jnp.int32)
                x1i = x0i + 1
                y1i = y0i + 1
                aw = w[:, l * n_points + p_:l * n_points + p_ + 1]       # (Lq, 1)
                # TODO(synk): dense one-hot-matmul gather is only viable at this
                # synthetic size; at real DETR sizes switch to a DMA gather /
                # per-level emit_pipeline over global_feats (VMEM + flop blow-up).
                for yi, xi, wy, wx in ((y0i, x0i, wy0, wx0),
                                       (y0i, x1i, wy0, wx1),
                                       (y1i, x0i, wy1, wx0),
                                       (y1i, x1i, wy1, wx1)):
                    valid = (xi >= 0) & (xi <= Wl - 1) & (yi >= 0) & (yi <= Hl - 1)
                    flat = jnp.where(valid, start + yi * Wl + xi, -1)    # zero padding
                    M = M + jnp.where(col == flat, aw * wy * wx, 0.0)
        sampled = jnp.dot(M, value[:, h * hd:(h + 1) * hd],
                          preferred_element_type=jnp.float32)            # (Lq, hd)
        ca = ca + jnp.dot(sampled, ca_wo[h * hd:(h + 1) * hd, :],
                          preferred_element_type=jnp.float32)
    ca = ca + ca_bo[...]

    # ---------------- 4) ref3 = norm1(ref2 + ca) -----------------------------
    ref3 = _layer_norm(ref2 + ca, ln1_g[...], ln1_b[...], eps)

    # ---------------- 5) FFN + norm3 -----------------------------------------
    h1 = jnp.maximum(jnp.dot(ref3, ffn_w1[...], preferred_element_type=jnp.float32)
                     + ffn_b1[...], 0.0)
    t2 = jnp.dot(h1, ffn_w2[...], preferred_element_type=jnp.float32) + ffn_b2[...]
    out_ref[0] = _layer_norm(ref3 + t2, ln3_g[...], ln3_b[...], eps)


# ----------------------------- wrapper ---------------------------------------
_WEIGHT_KEYS = (
    "sa_wq", "sa_wk", "sa_wv", "sa_bq", "sa_bk", "sa_bv", "sa_wo", "sa_bo",
    "ln2_g", "ln2_b",
    "ca_wv", "ca_bv", "ca_woff", "ca_boff", "ca_wat", "ca_bat", "ca_wo", "ca_bo",
    "ln1_g", "ln1_b",
    "ffn_w1", "ffn_b1", "ffn_w2", "ffn_b2", "ln3_g", "ln3_b",
)


def decoder_layer_forward(params, ref, ref_pos, ref_loc, global_feats,
                          spatial_shapes, level_start_index):
    Bn, Lq, D = ref.shape
    L = len(spatial_shapes)
    len_in = global_feats.shape[1]
    len_pad = max(128, ((len_in + 127) // 128) * 128)   # lane-dense sampling matrix

    loc_flat = ref_loc.reshape(Bn, Lq, L * 2)
    feats_p = jnp.pad(global_feats, ((0, 0), (0, len_pad - len_in), (0, 0)))

    kernel = functools.partial(
        decoder_layer_kernel,
        n_heads=N_HEADS, n_levels=N_LEVELS, n_points=N_POINTS,
        spatial_shapes=tuple(spatial_shapes), level_start=tuple(level_start_index),
        eps=LN_EPS)

    def bspec(shape):                                    # per-batch-element block
        nd = len(shape)
        return pl.BlockSpec((1,) + tuple(shape), lambda b, _nd=nd: (b,) + (0,) * _nd)

    def wspec(shape):                                    # replicated weight block
        nd = len(shape)
        return pl.BlockSpec(tuple(shape), lambda b, _nd=nd: (0,) * _nd)

    in_specs = [bspec((Lq, D)), bspec((Lq, D)), bspec((Lq, L * 2)), bspec((len_pad, D))]
    in_specs += [wspec(params[k].shape) for k in _WEIGHT_KEYS]

    return pl.pallas_call(
        kernel,
        grid=(Bn,),
        in_specs=in_specs,
        out_specs=bspec((Lq, D)),
        out_shape=jax.ShapeDtypeStruct((Bn, Lq, D), jnp.float32),
        compiler_params=pltpu.CompilerParams(dimension_semantics=("parallel",)),
    )(ref, ref_pos, loc_flat, feats_p, *[params[k] for k in _WEIGHT_KEYS])


# ----------------------------- params / inputs -------------------------------
def init_params(key):
    ks = iter(jax.random.split(key, 40))

    def w(shape, scale=0.05):
        return jax.random.normal(next(ks), shape, jnp.float32) * scale

    D, F = D_MODEL, D_FFN
    HLP = N_HEADS * N_LEVELS * N_POINTS
    return {
        # self attention (weights stored pre-transposed (in, out); qkv pre-split)
        "sa_wq": w((D, D)), "sa_wk": w((D, D)), "sa_wv": w((D, D)),
        "sa_bq": jnp.zeros((1, D), jnp.float32),
        "sa_bk": jnp.zeros((1, D), jnp.float32),
        "sa_bv": jnp.zeros((1, D), jnp.float32),
        "sa_wo": w((D, D)), "sa_bo": jnp.zeros((1, D), jnp.float32),
        "ln2_g": jnp.ones((1, D), jnp.float32), "ln2_b": jnp.zeros((1, D), jnp.float32),
        # MSDeformAttn  # TODO(synk): the reference module uses a grid-direction init
        # for sampling_offsets; here all params are synthetic random (deterministic).
        "ca_wv": w((D, D)), "ca_bv": jnp.zeros((1, D), jnp.float32),
        "ca_woff": w((D, HLP * 2), 0.2), "ca_boff": w((1, HLP * 2), 0.2),
        "ca_wat": w((D, HLP)), "ca_bat": jnp.zeros((1, HLP), jnp.float32),
        "ca_wo": w((D, D)), "ca_bo": jnp.zeros((1, D), jnp.float32),
        "ln1_g": jnp.ones((1, D), jnp.float32), "ln1_b": jnp.zeros((1, D), jnp.float32),
        # FFN
        "ffn_w1": w((D, F)), "ffn_b1": jnp.zeros((1, F), jnp.float32),
        "ffn_w2": w((F, D)), "ffn_b2": jnp.zeros((1, D), jnp.float32),
        "ln3_g": jnp.ones((1, D), jnp.float32), "ln3_b": jnp.zeros((1, D), jnp.float32),
    }


if __name__ == "__main__":
    key = jax.random.PRNGKey(0)
    k_in, k_par = jax.random.split(key)
    k1, k2, k3, k4 = jax.random.split(k_in, 4)

    ref = jax.random.normal(k1, (B, LQ, D_MODEL), jnp.float32)
    ref_pos_embed = jax.random.normal(k2, (B, LQ, D_MODEL), jnp.float32)
    ref_loc = jax.random.uniform(k3, (B, LQ, N_LEVELS, 2), jnp.float32)   # (x, y) in [0,1]
    global_feats = jax.random.normal(k4, (B, LEN_IN, D_MODEL), jnp.float32)

    params = init_params(k_par)

    fwd = jax.jit(functools.partial(decoder_layer_forward,
                                    spatial_shapes=SPATIAL_SHAPES,
                                    level_start_index=LEVEL_START))
    out = fwd(params, ref, ref_pos_embed, ref_loc, global_feats)
    out = jax.block_until_ready(out)

    assert out.shape == (B, LQ, D_MODEL), out.shape
    assert bool(jnp.all(jnp.isfinite(out)))
    print("KERNEL_OK")
</pallas_src>

<mosaic_0001>
module attributes {stable_mosaic.version = 11 : i64} {
  func.func @decoder_layer_kernel(%arg0: i32, %arg1: memref<1x8x32xf32, #tpu.memory_space<vmem>>, %arg2: memref<1x8x32xf32, #tpu.memory_space<vmem>>, %arg3: memref<1x8x4xf32, #tpu.memory_space<vmem>>, %arg4: memref<1x128x32xf32, #tpu.memory_space<vmem>>, %arg5: memref<32x32xf32, #tpu.memory_space<vmem>>, %arg6: memref<32x32xf32, #tpu.memory_space<vmem>>, %arg7: memref<32x32xf32, #tpu.memory_space<vmem>>, %arg8: memref<1x32xf32, #tpu.memory_space<vmem>>, %arg9: memref<1x32xf32, #tpu.memory_space<vmem>>, %arg10: memref<1x32xf32, #tpu.memory_space<vmem>>, %arg11: memref<32x32xf32, #tpu.memory_space<vmem>>, %arg12: memref<1x32xf32, #tpu.memory_space<vmem>>, %arg13: memref<1x32xf32, #tpu.memory_space<vmem>>, %arg14: memref<1x32xf32, #tpu.memory_space<vmem>>, %arg15: memref<32x32xf32, #tpu.memory_space<vmem>>, %arg16: memref<1x32xf32, #tpu.memory_space<vmem>>, %arg17: memref<32x32xf32, #tpu.memory_space<vmem>>, %arg18: memref<1x32xf32, #tpu.memory_space<vmem>>, %arg19: memref<32x16xf32, #tpu.memory_space<vmem>>, %arg20: memref<1x16xf32, #tpu.memory_space<vmem>>, %arg21: memref<32x32xf32, #tpu.memory_space<vmem>>, %arg22: memref<1x32xf32, #tpu.memory_space<vmem>>, %arg23: memref<1x32xf32, #tpu.memory_space<vmem>>, %arg24: memref<1x32xf32, #tpu.memory_space<vmem>>, %arg25: memref<32x64xf32, #tpu.memory_space<vmem>>, %arg26: memref<1x64xf32, #tpu.memory_space<vmem>>, %arg27: memref<64x32xf32, #tpu.memory_space<vmem>>, %arg28: memref<1x32xf32, #tpu.memory_space<vmem>>, %arg29: memref<1x32xf32, #tpu.memory_space<vmem>>, %arg30: memref<1x32xf32, #tpu.memory_space<vmem>>, %arg31: memref<1x8x32xf32, #tpu.memory_space<vmem>>) attributes {dimension_semantics = [#tpu.dimension_semantics<parallel>], iteration_bounds = array<i64: 2>, scalar_prefetch = 0 : i64, scratch_operands = 0 : i64, tpu.core_type = #tpu.core_type<tc>, window_params = [{transform_indices = @transform_0, window_bounds = array<i64: 1, 8, 32>}, {transform_indices = @transform_1, window_bounds = array<i64: 1, 8, 32>}, {transform_indices = @transform_2, window_bounds = array<i64: 1, 8, 4>}, {transform_indices = @transform_3, window_bounds = array<i64: 1, 128, 32>}, {pipeline_mode = #tpu.pipeline_mode<synchronous>, transform_indices = @transform_4, window_bounds = array<i64: 32, 32>}, {pipeline_mode = #tpu.pipeline_mode<synchronous>, transform_indices = @transform_5, window_bounds = array<i64: 32, 32>}, {pipeline_mode = #tpu.pipeline_mode<synchronous>, transform_indices = @transform_6, window_bounds = array<i64: 32, 32>}, {pipeline_mode = #tpu.pipeline_mode<synchronous>, transform_indices = @transform_7, window_bounds = array<i64: 1, 32>}, {pipeline_mode = #tpu.pipeline_mode<synchronous>, transform_indices = @transform_8, window_bounds = array<i64: 1, 32>}, {pipeline_mode = #tpu.pipeline_mode<synchronous>, transform_indices = @transform_9, window_bounds = array<i64: 1, 32>}, {pipeline_mode = #tpu.pipeline_mode<synchronous>, transform_indices = @transform_10, window_bounds = array<i64: 32, 32>}, {pipeline_mode = #tpu.pipeline_mode<synchronous>, transform_indices = @transform_11, window_bounds = array<i64: 1, 32>}, {pipeline_mode = #tpu.pipeline_mode<synchronous>, transform_indices = @transform_12, window_bounds = array<i64: 1, 32>}, {pipeline_mode = #tpu.pipeline_mode<synchronous>, transform_indices = @transform_13, window_bounds = array<i64: 1, 32>}, {pipeline_mode = #tpu.pipeline_mode<synchronous>, transform_indices = @transform_14, window_bounds = array<i64: 32, 32>}, {pipeline_mode = #tpu.pipeline_mode<synchronous>, transform_indices = @transform_15, window_bounds = array<i64: 1, 32>}, {pipeline_mode = #tpu.pipeline_mode<synchronous>, transform_indices = @transform_16, window_bounds = array<i64: 32, 32>}, {pipeline_mode = #tpu.pipeline_mode<synchronous>, transform_indices = @transform_17, window_bounds = array<i64: 1, 32>}, {pipeline_mode = #tpu.pipeline_mode<synchronous>, transform_indices = @transform_18, window_bounds = array<i64: 32, 16>}, {pipeline_mode = #tpu.pipeline_mode<synchronous>, transform_indices = @transform_19, window_bounds = array<i64: 1, 16>}, {pipeline_mode = #tpu.pipeline_mode<synchronous>, transform_indices = @transform_20, window_bounds = array<i64: 32, 32>}, {pipeline_mode = #tpu.pipeline_mode<synchronous>, transform_indices = @transform_21, window_bounds = array<i64: 1, 32>}, {pipeline_mode = #tpu.pipeline_mode<synchronous>, transform_indices = @transform_22, window_bounds = array<i64: 1, 32>}, {pipeline_mode = #tpu.pipeline_mode<synchronous>, transform_indices = @transform_23, window_bounds = array<i64: 1, 32>}, {pipeline_mode = #tpu.pipeline_mode<synchronous>, transform_indices = @transform_24, window_bounds = array<i64: 32, 64>}, {pipeline_mode = #tpu.pipeline_mode<synchronous>, transform_indices = @transform_25, window_bounds = array<i64: 1, 64>}, {pipeline_mode = #tpu.pipeline_mode<synchronous>, transform_indices = @transform_26, window_bounds = array<i64: 64, 32>}, {pipeline_mode = #tpu.pipeline_mode<synchronous>, transform_indices = @transform_27, window_bounds = array<i64: 1, 32>}, {pipeline_mode = #tpu.pipeline_mode<synchronous>, transform_indices = @transform_28, window_bounds = array<i64: 1, 32>}, {pipeline_mode = #tpu.pipeline_mode<synchronous>, transform_indices = @transform_29, window_bounds = array<i64: 1, 32>}, {transform_indices = @transform_30, window_bounds = array<i64: 1, 8, 32>}]} {
    %c0 = arith.constant 0 : index
    %c0_0 = arith.constant 0 : index
    %c0_1 = arith.constant 0 : index
    %0 = vector.load %arg1[%c0, %c0_0, %c0_1] : memref<1x8x32xf32, #tpu.memory_space<vmem>>, vector<1x8x32xf32>
    %1 = vector.shape_cast %0 : vector<1x8x32xf32> to vector<8x32xf32>
    %c0_2 = arith.constant 0 : index
    %c0_3 = arith.constant 0 : index
    %c0_4 = arith.constant 0 : index
    %2 = vector.load %arg2[%c0_2, %c0_3, %c0_4] : memref<1x8x32xf32, #tpu.memory_space<vmem>>, vector<1x8x32xf32>
    %3 = vector.shape_cast %2 : vector<1x8x32xf32> to vector<8x32xf32>
    %4 = arith.addf %1, %3 : vector<8x32xf32>
    %c0_5 = arith.constant 0 : index
    %c0_6 = arith.constant 0 : index
    %5 = vector.load %arg5[%c0_5, %c0_6] : memref<32x32xf32, #tpu.memory_space<vmem>>, vector<32x32xf32>
    %cst = arith.constant dense<0.000000e+00> : vector<8x32xf32>
    %6 = tpu.matmul %4, %5, %cst {dimension_numbers = #tpu.dot_dimension_numbers<[1], [0], [0], [1], [0, 0, 1, 1], [], []>} : vector<8x32xf32>, vector<32x32xf32>, vector<8x32xf32> -> vector<8x32xf32>
    %c0_7 = arith.constant 0 : index
    %c0_8 = arith.constant 0 : index
    %7 = vector.load %arg8[%c0_7, %c0_8] : memref<1x32xf32, #tpu.memory_space<vmem>>, vector<1x32xf32>
    %8 = vector.broadcast %7 : vector<1x32xf32> to vector<8x32xf32>
    %9 = arith.addf %6, %8 : vector<8x32xf32>
    %c0_9 = arith.constant 0 : index
    %c0_10 = arith.constant 0 : index
    %10 = vector.load %arg6[%c0_9, %c0_10] : memref<32x32xf32, #tpu.memory_space<vmem>>, vector<32x32xf32>
    %cst_11 = arith.constant dense<0.000000e+00> : vector<8x32xf32>
    %11 = tpu.matmul %4, %10, %cst_11 {dimension_numbers = #tpu.dot_dimension_numbers<[1], [0], [0], [1], [0, 0, 1, 1], [], []>} : vector<8x32xf32>, vector<32x32xf32>, vector<8x32xf32> -> vector<8x32xf32>
    %c0_12 = arith.constant 0 : index
    %c0_13 = arith.constant 0 : index
    %12 = vector.load %arg9[%c0_12, %c0_13] : memref<1x32xf32, #tpu.memory_space<vmem>>, vector<1x32xf32>
    %13 = vector.broadcast %12 : vector<1x32xf32> to vector<8x32xf32>
    %14 = arith.addf %11, %13 : vector<8x32xf32>
    %c0_14 = arith.constant 0 : index
    %c0_15 = arith.constant 0 : index
    %15 = vector.load %arg7[%c0_14, %c0_15] : memref<32x32xf32, #tpu.memory_space<vmem>>, vector<32x32xf32>
    %cst_16 = arith.constant dense<0.000000e+00> : vector<8x32xf32>
    %16 = tpu.matmul %1, %15, %cst_16 {dimension_numbers = #tpu.dot_dimension_numbers<[1], [0], [0], [1], [0, 0, 1, 1], [], []>} : vector<8x32xf32>, vector<32x32xf32>, vector<8x32xf32> -> vector<8x32xf32>
    %c0_17 = arith.constant 0 : index
    %c0_18 = arith.constant 0 : index
    %17 = vector.load %arg10[%c0_17, %c0_18] : memref<1x32xf32, #tpu.memory_space<vmem>>, vector<1x32xf32>
    %18 = vector.broadcast %17 : vector<1x32xf32> to vector<8x32xf32>
    %19 = arith.addf %16, %18 : vector<8x32xf32>
    %cst_19 = arith.constant 0.000000e+00 : f32
    %20 = vector.broadcast %cst_19 : f32 to vector<8x32xf32>
    %21 = vector.extract_strided_slice %9 {offsets = [0, 0], sizes = [8, 8], strides = [1, 1]} : vector<8x32xf32> to vector<8x8xf32>
    %cst_20 = arith.constant 0.353553385 : f32
    %22 = vector.broadcast %cst_20 : f32 to vector<8x8xf32>
    %23 = arith.mulf %21, %22 : vector<8x8xf32>
    %24 = vector.extract_strided_slice %14 {offsets = [0, 0], sizes = [8, 8], strides = [1, 1]} : vector<8x32xf32> to vector<8x8xf32>
    %25 = vector.extract_strided_slice %19 {offsets = [0, 0], sizes = [8, 8], strides = [1, 1]} : vector<8x32xf32> to vector<8x8xf32>
    %26 = tpu.transpose %24, [1, 0] : vector<8x8xf32> -> vector<8x8xf32>
    %cst_21 = arith.constant dense<0.000000e+00> : vector<8x8xf32>
    %27 = tpu.matmul %23, %26, %cst_21 {dimension_numbers = #tpu.dot_dimension_numbers<[1], [0], [0], [1], [0, 0, 1, 1], [], []>} : vector<8x8xf32>, vector<8x8xf32>, vector<8x8xf32> -> vector<8x8xf32>
    %cst_22 = arith.constant dense<0xFF800000> : vector<8xf32>
    %28 = vector.multi_reduction <maximumf>, %27, %cst_22 [1] : vector<8x8xf32> to vector<8xf32>
    %29 = vector.shape_cast %28 : vector<8xf32> to vector<8x1xf32>
    %30 = vector.broadcast %29 : vector<8x1xf32> to vector<8x8xf32>
    %31 = arith.subf %27, %30 : vector<8x8xf32>
    %32 = math.exp %31 : vector<8x8xf32>
    %cst_23 = arith.constant dense<0.000000e+00> : vector<8xf32>
    %33 = vector.multi_reduction <add>, %32, %cst_23 [1] : vector<8x8xf32> to vector<8xf32>
    %34 = vector.shape_cast %33 : vector<8xf32> to vector<8x1xf32>
    %35 = tpu.reciprocal %34 {approx = true} : vector<8x1xf32> -> vector<8x1xf32>
    %36 = vector.broadcast %35 : vector<8x1xf32> to vector<8x8xf32>
    %37 = arith.mulf %32, %36 : vector<8x8xf32>
    %cst_24 = arith.constant dense<0.000000e+00> : vector<8x8xf32>
    %38 = tpu.matmul %37, %25, %cst_24 {dimension_numbers = #tpu.dot_dimension_numbers<[1], [0], [0], [1], [0, 0, 1, 1], [], []>} : vector<8x8xf32>, vector<8x8xf32>, vector<8x8xf32> -> vector<8x8xf32>
    %c0_25 = arith.constant 0 : index
    %c0_26 = arith.constant 0 : index
    %39 = vector.load %arg11[%c0_25, %c0_26] : memref<32x32xf32, #tpu.memory_space<vmem>>, vector<8x32xf32>
    %cst_27 = arith.constant dense<0.000000e+00> : vector<8x32xf32>
    %40 = tpu.matmul %38, %39, %cst_27 {dimension_numbers = #tpu.dot_dimension_numbers<[1], [0], [0], [1], [0, 0, 1, 1], [], []>} : vector<8x8xf32>, vector<8x32xf32>, vector<8x32xf32> -> vector<8x32xf32>
    %41 = arith.addf %20, %40 : vector<8x32xf32>
    %42 = vector.extract_strided_slice %9 {offsets = [0, 8], sizes = [8, 8], strides = [1, 1]} : vector<8x32xf32> to vector<8x8xf32>
    %cst_28 = arith.constant 0.353553385 : f32
    %43 = vector.broadcast %cst_28 : f32 to vector<8x8xf32>
    %44 = arith.mulf %42, %43 : vector<8x8xf32>
    %45 = vector.extract_strided_slice %14 {offsets = [0, 8], sizes = [8, 8], strides = [1, 1]} : vector<8x32xf32> to vector<8x8xf32>
    %46 = vector.extract_strided_slice %19 {offsets = [0, 8], sizes = [8, 8], strides = [1, 1]} : vector<8x32xf32> to vector<8x8xf32>
    %47 = tpu.transpose %45, [1, 0] : vector<8x8xf32> -> vector<8x8xf32>
    %cst_29 = arith.constant dense<0.000000e+00> : vector<8x8xf32>
    %48 = tpu.matmul %44, %47, %cst_29 {dimension_numbers = #tpu.dot_dimension_numbers<[1], [0], [0], [1], [0, 0, 1, 1], [], []>} : vector<8x8xf32>, vector<8x8xf32>, vector<8x8xf32> -> vector<8x8xf32>
    %cst_30 = arith.constant dense<0xFF800000> : vector<8xf32>
    %49 = vector.multi_reduction <maximumf>, %48, %cst_30 [1] : vector<8x8xf32> to vector<8xf32>
    %50 = vector.shape_cast %49 : vector<8xf32> to vector<8x1xf32>
    %51 = vector.broadcast %50 : vector<8x1xf32> to vector<8x8xf32>
    %52 = arith.subf %48, %51 : vector<8x8xf32>
    %53 = math.exp %52 : vector<8x8xf32>
    %cst_31 = arith.constant dense<0.000000e+00> : vector<8xf32>
    %54 = vector.multi_reduction <add>, %53, %cst_31 [1] : vector<8x8xf32> to vector<8xf32>
    %55 = vector.shape_cast %54 : vector<8xf32> to vector<8x1xf32>
    %56 = tpu.reciprocal %55 {approx = true} : vector<8x1xf32> -> vector<8x1xf32>
    %57 = vector.broadcast %56 : vector<8x1xf32> to vector<8x8xf32>
    %58 = arith.mulf %53, %57 : vector<8x8xf32>
    %cst_32 = arith.constant dense<0.000000e+00> : vector<8x8xf32>
    %59 = tpu.matmul %58, %46, %cst_32 {dimension_numbers = #tpu.dot_dimension_numbers<[1], [0], [0], [1], [0, 0, 1, 1], [], []>} : vector<8x8xf32>, vector<8x8xf32>, vector<8x8xf32> -> vector<8x8xf32>
    %c8 = arith.constant 8 : index
    %c0_33 = arith.constant 0 : index
    %60 = vector.load %arg11[%c8, %c0_33] : memref<32x32xf32, #tpu.memory_space<vmem>>, vector<8x32xf32>
    %cst_34 = arith.constant dense<0.000000e+00> : vector<8x32xf32>
    %61 = tpu.matmul %59, %60, %cst_34 {dimension_numbers = #tpu.dot_dimension_numbers<[1], [0], [0], [1], [0, 0, 1, 1], [], []>} : vector<8x8xf32>, vector<8x32xf32>, vector<8x32xf32> -> vector<8x32xf32>
    %62 = arith.addf %41, %61 : vector<8x32xf32>
    %63 = vector.extract_strided_slice %9 {offsets = [0, 16], sizes = [8, 8], strides = [1, 1]} : vector<8x32xf32> to vector<8x8xf32>
    %cst_35 = arith.constant 0.353553385 : f32
    %64 = vector.broadcast %cst_35 : f32 to vector<8x8xf32>
    %65 = arith.mulf %63, %64 : vector<8x8xf32>
    %66 = vector.extract_strided_slice %14 {offsets = [0, 16], sizes = [8, 8], strides = [1, 1]} : vector<8x32xf32> to vector<8x8xf32>
    %67 = vector.extract_strided_slice %19 {offsets = [0, 16], sizes = [8, 8], strides = [1, 1]} : vector<8x32xf32> to vector<8x8xf32>
    %68 = tpu.transpose %66, [1, 0] : vector<8x8xf32> -> vector<8x8xf32>
    %cst_36 = arith.constant dense<0.000000e+00> : vector<8x8xf32>
    %69 = tpu.matmul %65, %68, %cst_36 {dimension_numbers = #tpu.dot_dimension_numbers<[1], [0], [0], [1], [0, 0, 1, 1], [], []>} : vector<8x8xf32>, vector<8x8xf32>, vector<8x8xf32> -> vector<8x8xf32>
    %cst_37 = arith.constant dense<0xFF800000> : vector<8xf32>
    %70 = vector.multi_reduction <maximumf>, %69, %cst_37 [1] : vector<8x8xf32> to vector<8xf32>
    %71 = vector.shape_cast %70 : vector<8xf32> to vector<8x1xf32>
    %72 = vector.broadcast %71 : vector<8x1xf32> to vector<8x8xf32>
    %73 = arith.subf %69, %72 : vector<8x8xf32>
    %74 = math.exp %73 : vector<8x8xf32>
    %cst_38 = arith.constant dense<0.000000e+00> : vector<8xf32>
    %75 = vector.multi_reduction <add>, %74, %cst_38 [1] : vector<8x8xf32> to vector<8xf32>
    %76 = vector.shape_cast %75 : vector<8xf32> to vector<8x1xf32>
    %77 = tpu.reciprocal %76 {approx = true} : vector<8x1xf32> -> vector<8x1xf32>
    %78 = vector.broadcast %77 : vector<8x1xf32> to vector<8x8xf32>
    %79 = arith.mulf %74, %78 : vector<8x8xf32>
    %cst_39 = arith.constant dense<0.000000e+00> : vector<8x8xf32>
    %80 = tpu.matmul %79, %67, %cst_39 {dimension_numbers = #tpu.dot_dimension_numbers<[1], [0], [0], [1], [0, 0, 1, 1], [], []>} : vector<8x8xf32>, vector<8x8xf32>, vector<8x8xf32> -> vector<8x8xf32>
    %c16 = arith.constant 16 : index
    %c0_40 = arith.constant 0 : index
    %81 = vector.load %arg11[%c16, %c0_40] : memref<32x32xf32, #tpu.memory_space<vmem>>, vector<8x32xf32>
    %cst_41 = arith.constant dense<0.000000e+00> : vector<8x32xf32>
    %82 = tpu.matmul %80, %81, %cst_41 {dimension_numbers = #tpu.dot_dimension_numbers<[1], [0], [0], [1], [0, 0, 1, 1], [], []>} : vector<8x8xf32>, vector<8x32xf32>, vector<8x32xf32> -> vector<8x32xf32>
    %83 = arith.addf %62, %82 : vector<8x32xf32>
    %84 = vector.extract_strided_slice %9 {offsets = [0, 24], sizes = [8, 8], strides = [1, 1]} : vector<8x32xf32> to vector<8x8xf32>
    %cst_42 = arith.constant 0.353553385 : f32
    %85 = vector.broadcast %cst_42 : f32 to vector<8x8xf32>
    %86 = arith.mulf %84, %85 : vector<8x8xf32>
    %87 = vector.extract_strided_slice %14 {offsets = [0, 24], sizes = [8, 8], strides = [1, 1]} : vector<8x32xf32> to vector<8x8xf32>
    %88 = vector.extract_strided_slice %19 {offsets = [0, 24], sizes = [8, 8], strides = [1, 1]} : vector<8x32xf32> to vector<8x8xf32>
    %89 = tpu.transpose %87, [1, 0] : vector<8x8xf32> -> vector<8x8xf32>
    %cst_43 = arith.constant dense<0.000000e+00> : vector<8x8xf32>
    %90 = tpu.matmul %86, %89, %cst_43 {dimension_numbers = #tpu.dot_dimension_numbers<[1], [0], [0], [1], [0, 0, 1, 1], [], []>} : vector<8x8xf32>, vector<8x8xf32>, vector<8x8xf32> -> vector<8x8xf32>
    %cst_44 = arith.constant dense<0xFF800000> : vector<8xf32>
    %91 = vector.multi_reduction <maximumf>, %90, %cst_44 [1] : vector<8x8xf32> to vector<8xf32>
    %92 = vector.shape_cast %91 : vector<8xf32> to vector<8x1xf32>
    %93 = vector.broadcast %92 : vector<8x1xf32> to vector<8x8xf32>
    %94 = arith.subf %90, %93 : vector<8x8xf32>
    %95 = math.exp %94 : vector<8x8xf32>
    %cst_45 = arith.constant dense<0.000000e+00> : vector<8xf32>
    %96 = vector.multi_reduction <add>, %95, %cst_45 [1] : vector<8x8xf32> to vector<8xf32>
    %97 = vector.shape_cast %96 : vector<8xf32> to vector<8x1xf32>
    %98 = tpu.reciprocal %97 {approx = true} : vector<8x1xf32> -> vector<8x1xf32>
    %99 = vector.broadcast %98 : vector<8x1xf32> to vector<8x8xf32>
    %100 = arith.mulf %95, %99 : vector<8x8xf32>
    %cst_46 = arith.constant dense<0.000000e+00> : vector<8x8xf32>
    %101 = tpu.matmul %100, %88, %cst_46 {dimension_numbers = #tpu.dot_dimension_numbers<[1], [0], [0], [1], [0, 0, 1, 1], [], []>} : vector<8x8xf32>, vector<8x8xf32>, vector<8x8xf32> -> vector<8x8xf32>
    %c24 = arith.constant 24 : index
    %c0_47 = arith.constant 0 : index
    %102 = vector.load %arg11[%c24, %c0_47] : memref<32x32xf32, #tpu.memory_space<vmem>>, vector<8x32xf32>
    %cst_48 = arith.constant dense<0.000000e+00> : vector<8x32xf32>
    %103 = tpu.matmul %101, %102, %cst_48 {dimension_numbers = #tpu.dot_dimension_numbers<[1], [0], [0], [1], [0, 0, 1, 1], [], []>} : vector<8x8xf32>, vector<8x32xf32>, vector<8x32xf32> -> vector<8x32xf32>
    %104 = arith.addf %83, %103 : vector<8x32xf32>
    %c0_49 = arith.constant 0 : index
    %c0_50 = arith.constant 0 : index
    %105 = vector.load %arg12[%c0_49, %c0_50] : memref<1x32xf32, #tpu.memory_space<vmem>>, vector<1x32xf32>
    %106 = vector.broadcast %105 : vector<1x32xf32> to vector<8x32xf32>
    %107 = arith.addf %104, %106 : vector<8x32xf32>
    %108 = arith.addf %1, %107 : vector<8x32xf32>
    %c0_51 = arith.constant 0 : index
    %c0_52 = arith.constant 0 : index
    %109 = vector.load %arg13[%c0_51, %c0_52] : memref<1x32xf32, #tpu.memory_space<vmem>>, vector<1x32xf32>
    %c0_53 = arith.constant 0 : index
    %c0_54 = arith.constant 0 : index
    %110 = vector.load %arg14[%c0_53, %c0_54] : memref<1x32xf32, #tpu.memory_space<vmem>>, vector<1x32xf32>
    %cst_55 = arith.constant dense<0.000000e+00> : vector<8xf32>
    %111 = vector.multi_reduction <add>, %108, %cst_55 [1] : vector<8x32xf32> to vector<8xf32>
    %112 = vector.shape_cast %111 : vector<8xf32> to vector<8x1xf32>
    %cst_56 = arith.constant 3.200000e+01 : f32
    %113 = vector.broadcast %cst_56 : f32 to vector<8x1xf32>
    %114 = arith.divf %112, %113 : vector<8x1xf32>
    %115 = vector.broadcast %114 : vector<8x1xf32> to vector<8x32xf32>
    %116 = arith.subf %108, %115 : vector<8x32xf32>
    %117 = arith.mulf %116, %116 : vector<8x32xf32>
    %cst_57 = arith.constant dense<0.000000e+00> : vector<8xf32>
    %118 = vector.multi_reduction <add>, %117, %cst_57 [1] : vector<8x32xf32> to vector<8xf32>
    %119 = vector.shape_cast %118 : vector<8xf32> to vector<8x1xf32>
    %cst_58 = arith.constant 3.200000e+01 : f32
    %120 = vector.broadcast %cst_58 : f32 to vector<8x1xf32>
    %121 = arith.divf %119, %120 : vector<8x1xf32>
    %cst_59 = arith.constant 9.99999974E-6 : f32
    %122 = vector.broadcast %cst_59 : f32 to vector<8x1xf32>
    %123 = arith.addf %121, %122 : vector<8x1xf32>
    %124 = math.rsqrt %123 : vector<8x1xf32>
    %125 = vector.broadcast %124 : vector<8x1xf32> to vector<8x32xf32>
    %126 = arith.mulf %116, %125 : vector<8x32xf32>
    %127 = vector.broadcast %109 : vector<1x32xf32> to vector<8x32xf32>
    %128 = arith.mulf %126, %127 : vector<8x32xf32>
    %129 = vector.broadcast %110 : vector<1x32xf32> to vector<8x32xf32>
    %130 = arith.addf %128, %129 : vector<8x32xf32>
    %131 = arith.addf %130, %3 : vector<8x32xf32>
    %c0_60 = arith.constant 0 : index
    %c0_61 = arith.constant 0 : index
    %c0_62 = arith.constant 0 : index
    %132 = vector.load %arg4[%c0_60, %c0_61, %c0_62] : memref<1x128x32xf32, #tpu.memory_space<vmem>>, vector<1x128x32xf32>
    %133 = vector.shape_cast %132 : vector<1x128x32xf32> to vector<128x32xf32>
    %c0_63 = arith.constant 0 : index
    %c0_64 = arith.constant 0 : index
    %134 = vector.load %arg15[%c0_63, %c0_64] : memref<32x32xf32, #tpu.memory_space<vmem>>, vector<32x32xf32>
    %cst_65 = arith.constant dense<0.000000e+00> : vector<128x32xf32>
    %135 = tpu.matmul %133, %134, %cst_65 {dimension_numbers = #tpu.dot_dimension_numbers<[1], [0], [0], [1], [0, 0, 1, 1], [], []>} : vector<128x32xf32>, vector<32x32xf32>, vector<128x32xf32> -> vector<128x32xf32>
    %c0_66 = arith.constant 0 : index
    %c0_67 = arith.constant 0 : index
    %136 = vector.load %arg16[%c0_66, %c0_67] : memref<1x32xf32, #tpu.memory_space<vmem>>, vector<1x32xf32>
    %137 = vector.broadcast %136 : vector<1x32xf32> to vector<128x32xf32>
    %138 = arith.addf %135, %137 : vector<128x32xf32>
    %c0_68 = arith.constant 0 : index
    %c0_69 = arith.constant 0 : index
    %139 = vector.load %arg17[%c0_68, %c0_69] : memref<32x32xf32, #tpu.memory_space<vmem>>, vector<32x32xf32>
    %cst_70 = arith.constant dense<0.000000e+00> : vector<8x32xf32>
    %140 = tpu.matmul %131, %139, %cst_70 {dimension_numbers = #tpu.dot_dimension_numbers<[1], [0], [0], [1], [0, 0, 1, 1], [], []>} : vector<8x32xf32>, vector<32x32xf32>, vector<8x32xf32> -> vector<8x32xf32>
    %c0_71 = arith.constant 0 : index
    %c0_72 = arith.constant 0 : index
    %141 = vector.load %arg18[%c0_71, %c0_72] : memref<1x32xf32, #tpu.memory_space<vmem>>, vector<1x32xf32>
    %142 = vector.broadcast %141 : vector<1x32xf32> to vector<8x32xf32>
    %143 = arith.addf %140, %142 : vector<8x32xf32>
    %c0_73 = arith.constant 0 : index
    %c0_74 = arith.constant 0 : index
    %144 = vector.load %arg19[%c0_73, %c0_74] : memref<32x16xf32, #tpu.memory_space<vmem>>, vector<32x16xf32>
    %cst_75 = arith.constant dense<0.000000e+00> : vector<8x16xf32>
    %145 = tpu.matmul %131, %144, %cst_75 {dimension_numbers = #tpu.dot_dimension_numbers<[1], [0], [0], [1], [0, 0, 1, 1], [], []>} : vector<8x32xf32>, vector<32x16xf32>, vector<8x16xf32> -> vector<8x16xf32>
    %c0_76 = arith.constant 0 : index
    %c0_77 = arith.constant 0 : index
    %146 = vector.load %arg20[%c0_76, %c0_77] : memref<1x16xf32, #tpu.memory_space<vmem>>, vector<1x16xf32>
    %147 = vector.broadcast %146 : vector<1x16xf32> to vector<8x16xf32>
    %148 = arith.addf %145, %147 : vector<8x16xf32>
    %c0_78 = arith.constant 0 : index
    %c0_79 = arith.constant 0 : index
    %c0_80 = arith.constant 0 : index
    %149 = vector.load %arg3[%c0_78, %c0_79, %c0_80] : memref<1x8x4xf32, #tpu.memory_space<vmem>>, vector<1x8x4xf32>
    %150 = vector.shape_cast %149 : vector<1x8x4xf32> to vector<8x4xf32>
    %151 = tpu.iota {dimensions = array<i32: 1>} : vector<8x128xi32>
    %152 = vector.extract_strided_slice %150 {offsets = [0, 0], sizes = [8, 1], strides = [1, 1]} : vector<8x4xf32> to vector<8x1xf32>
    %153 = vector.extract_strided_slice %150 {offsets = [0, 1], sizes = [8, 1], strides = [1, 1]} : vector<8x4xf32> to vector<8x1xf32>
    %cst_81 = arith.constant 8.000000e+00 : f32
    %154 = vector.broadcast %cst_81 : f32 to vector<8x1xf32>
    %155 = arith.mulf %152, %154 : vector<8x1xf32>
    %cst_82 = arith.constant 5.000000e-01 : f32
    %156 = vector.broadcast %cst_82 : f32 to vector<8x1xf32>
    %157 = arith.subf %155, %156 : vector<8x1xf32>
    %cst_83 = arith.constant 8.000000e+00 : f32
    %158 = vector.broadcast %cst_83 : f32 to vector<8x1xf32>
    %159 = arith.mulf %153, %158 : vector<8x1xf32>
    %cst_84 = arith.constant 5.000000e-01 : f32
    %160 = vector.broadcast %cst_84 : f32 to vector<8x1xf32>
    %161 = arith.subf %159, %160 : vector<8x1xf32>
    %162 = vector.extract_strided_slice %150 {offsets = [0, 2], sizes = [8, 1], strides = [1, 1]} : vector<8x4xf32> to vector<8x1xf32>
    %163 = vector.extract_strided_slice %150 {offsets = [0, 3], sizes = [8, 1], strides = [1, 1]} : vector<8x4xf32> to vector<8x1xf32>
    %cst_85 = arith.constant 4.000000e+00 : f32
    %164 = vector.broadcast %cst_85 : f32 to vector<8x1xf32>
    %165 = arith.mulf %162, %164 : vector<8x1xf32>
    %cst_86 = arith.constant 5.000000e-01 : f32
    %166 = vector.broadcast %cst_86 : f32 to vector<8x1xf32>
    %167 = arith.subf %165, %166 : vector<8x1xf32>
    %cst_87 = arith.constant 4.000000e+00 : f32
    %168 = vector.broadcast %cst_87 : f32 to vector<8x1xf32>
    %169 = arith.mulf %163, %168 : vector<8x1xf32>
    %cst_88 = arith.constant 5.000000e-01 : f32
    %170 = vector.broadcast %cst_88 : f32 to vector<8x1xf32>
    %171 = arith.subf %169, %170 : vector<8x1xf32>
    %cst_89 = arith.constant 0.000000e+00 : f32
    %172 = vector.broadcast %cst_89 : f32 to vector<8x32xf32>
    %173 = vector.extract_strided_slice %148 {offsets = [0, 0], sizes = [8, 4], strides = [1, 1]} : vector<8x16xf32> to vector<8x4xf32>
    %cst_90 = arith.constant dense<0xFF800000> : vector<8xf32>
    %174 = vector.multi_reduction <maximumf>, %173, %cst_90 [1] : vector<8x4xf32> to vector<8xf32>
    %175 = vector.shape_cast %174 : vector<8xf32> to vector<8x1xf32>
    %176 = vector.broadcast %175 : vector<8x1xf32> to vector<8x4xf32>
    %177 = arith.subf %173, %176 : vector<8x4xf32>
    %178 = math.exp %177 : vector<8x4xf32>
    %cst_91 = arith.constant dense<0.000000e+00> : vector<8xf32>
    %179 = vector.multi_reduction <add>, %178, %cst_91 [1] : vector<8x4xf32> to vector<8xf32>
    %180 = vector.shape_cast %179 : vector<8xf32> to vector<8x1xf32>
    %181 = tpu.reciprocal %180 {approx = true} : vector<8x1xf32> -> vector<8x1xf32>
    %182 = vector.broadcast %181 : vector<8x1xf32> to vector<8x4xf32>
    %183 = arith.mulf %178, %182 : vector<8x4xf32>
    %cst_92 = arith.constant 0.000000e+00 : f32
    %184 = vector.broadcast %cst_92 : f32 to vector<8x128xf32>
    %185 = vector.extract_strided_slice %143 {offsets = [0, 0], sizes = [8, 1], strides = [1, 1]} : vector<8x32xf32> to vector<8x1xf32>
    %186 = vector.extract_strided_slice %143 {offsets = [0, 1], sizes = [8, 1], strides = [1, 1]} : vector<8x32xf32> to vector<8x1xf32>
    %187 = arith.addf %157, %185 : vector<8x1xf32>
    %188 = arith.addf %161, %186 : vector<8x1xf32>
    %189 = math.floor %187 : vector<8x1xf32>
    %190 = math.floor %188 : vector<8x1xf32>
    %191 = arith.subf %187, %189 : vector<8x1xf32>
    %cst_93 = arith.constant 1.000000e+00 : f32
    %192 = vector.broadcast %cst_93 : f32 to vector<8x1xf32>
    %193 = arith.subf %192, %191 : vector<8x1xf32>
    %194 = arith.subf %188, %190 : vector<8x1xf32>
    %cst_94 = arith.constant 1.000000e+00 : f32
    %195 = vector.broadcast %cst_94 : f32 to vector<8x1xf32>
    %196 = arith.subf %195, %194 : vector<8x1xf32>
    %197 = arith.fptosi %189 : vector<8x1xf32> to vector<8x1xi32>
    %198 = arith.fptosi %190 : vector<8x1xf32> to vector<8x1xi32>
    %c1_i32 = arith.constant 1 : i32
    %199 = vector.broadcast %c1_i32 : i32 to vector<8x1xi32>
    %200 = arith.addi %197, %199 : vector<8x1xi32>
    %c1_i32_95 = arith.constant 1 : i32
    %201 = vector.broadcast %c1_i32_95 : i32 to vector<8x1xi32>
    %202 = arith.addi %198, %201 : vector<8x1xi32>
    %203 = vector.extract_strided_slice %183 {offsets = [0, 0], sizes = [8, 1], strides = [1, 1]} : vector<8x4xf32> to vector<8x1xf32>
    %c0_i32 = arith.constant 0 : i32
    %204 = vector.broadcast %c0_i32 : i32 to vector<8x1xi32>
    %205 = arith.cmpi sge, %197, %204 : vector<8x1xi32>
    %c7_i32 = arith.constant 7 : i32
    %206 = vector.broadcast %c7_i32 : i32 to vector<8x1xi32>
    %207 = arith.cmpi sle, %197, %206 : vector<8x1xi32>
    %208 = arith.andi %205, %207 : vector<8x1xi1>
    %c0_i32_96 = arith.constant 0 : i32
    %209 = vector.broadcast %c0_i32_96 : i32 to vector<8x1xi32>
    %210 = arith.cmpi sge, %198, %209 : vector<8x1xi32>
    %211 = arith.andi %208, %210 : vector<8x1xi1>
    %c7_i32_97 = arith.constant 7 : i32
    %212 = vector.broadcast %c7_i32_97 : i32 to vector<8x1xi32>
    %213 = arith.cmpi sle, %198, %212 : vector<8x1xi32>
    %214 = arith.andi %211, %213 : vector<8x1xi1>
    %c8_i32 = arith.constant 8 : i32
    %215 = vector.broadcast %c8_i32 : i32 to vector<8x1xi32>
    %216 = arith.muli %198, %215 : vector<8x1xi32>
    %c0_i32_98 = arith.constant 0 : i32
    %217 = vector.broadcast %c0_i32_98 : i32 to vector<8x1xi32>
    %218 = arith.addi %217, %216 : vector<8x1xi32>
    %219 = arith.addi %218, %197 : vector<8x1xi32>
    %c-1_i32 = arith.constant -1 : i32
    %220 = vector.broadcast %c-1_i32 : i32 to vector<8x1xi32>
    %221 = arith.select %214, %219, %220 : vector<8x1xi1>, vector<8x1xi32>
    %222 = vector.broadcast %221 : vector<8x1xi32> to vector<8x128xi32>
    %223 = arith.cmpi eq, %151, %222 : vector<8x128xi32>
    %224 = arith.mulf %203, %196 : vector<8x1xf32>
    %225 = arith.mulf %224, %193 : vector<8x1xf32>
    %cst_99 = arith.constant 0.000000e+00 : f32
    %226 = vector.shape_cast %225 : vector<8x1xf32> to vector<8x1xf32>
    %227 = vector.broadcast %226 : vector<8x1xf32> to vector<8x128xf32>
    %228 = vector.broadcast %cst_99 : f32 to vector<8x128xf32>
    %229 = arith.select %223, %227, %228 : vector<8x128xi1>, vector<8x128xf32>
    %230 = arith.addf %184, %229 : vector<8x128xf32>
    %c0_i32_100 = arith.constant 0 : i32
    %231 = vector.broadcast %c0_i32_100 : i32 to vector<8x1xi32>
    %232 = arith.cmpi sge, %200, %231 : vector<8x1xi32>
    %c7_i32_101 = arith.constant 7 : i32
    %233 = vector.broadcast %c7_i32_101 : i32 to vector<8x1xi32>
    %234 = arith.cmpi sle, %200, %233 : vector<8x1xi32>
    %235 = arith.andi %232, %234 : vector<8x1xi1>
    %c0_i32_102 = arith.constant 0 : i32
    %236 = vector.broadcast %c0_i32_102 : i32 to vector<8x1xi32>
    %237 = arith.cmpi sge, %198, %236 : vector<8x1xi32>
    %238 = arith.andi %235, %237 : vector<8x1xi1>
    %c7_i32_103 = arith.constant 7 : i32
    %239 = vector.broadcast %c7_i32_103 : i32 to vector<8x1xi32>
    %240 = arith.cmpi sle, %198, %239 : vector<8x1xi32>
    %241 = arith.andi %238, %240 : vector<8x1xi1>
    %c8_i32_104 = arith.constant 8 : i32
    %242 = vector.broadcast %c8_i32_104 : i32 to vector<8x1xi32>
    %243 = arith.muli %198, %242 : vector<8x1xi32>
    %c0_i32_105 = arith.constant 0 : i32
    %244 = vector.broadcast %c0_i32_105 : i32 to vector<8x1xi32>
    %245 = arith.addi %244, %243 : vector<8x1xi32>
    %246 = arith.addi %245, %200 : vector<8x1xi32>
    %c-1_i32_106 = arith.constant -1 : i32
    %247 = vector.broadcast %c-1_i32_106 : i32 to vector<8x1xi32>
    %248 = arith.select %241, %246, %247 : vector<8x1xi1>, vector<8x1xi32>
    %249 = vector.broadcast %248 : vector<8x1xi32> to vector<8x128xi32>
    %250 = arith.cmpi eq, %151, %249 : vector<8x128xi32>
    %251 = arith.mulf %203, %196 : vector<8x1xf32>
    %252 = arith.mulf %251, %191 : vector<8x1xf32>
    %cst_107 = arith.constant 0.000000e+00 : f32
    %253 = vector.shape_cast %252 : vector<8x1xf32> to vector<8x1xf32>
    %254 = vector.broadcast %253 : vector<8x1xf32> to vector<8x128xf32>
    %255 = vector.broadcast %cst_107 : f32 to vector<8x128xf32>
    %256 = arith.select %250, %254, %255 : vector<8x128xi1>, vector<8x128xf32>
    %257 = arith.addf %230, %256 : vector<8x128xf32>
    %c0_i32_108 = arith.constant 0 : i32
    %258 = vector.broadcast %c0_i32_108 : i32 to vector<8x1xi32>
    %259 = arith.cmpi sge, %197, %258 : vector<8x1xi32>
    %c7_i32_109 = arith.constant 7 : i32
    %260 = vector.broadcast %c7_i32_109 : i32 to vector<8x1xi32>
    %261 = arith.cmpi sle, %197, %260 : vector<8x1xi32>
    %262 = arith.andi %259, %261 : vector<8x1xi1>
    %c0_i32_110 = arith.constant 0 : i32
    %263 = vector.broadcast %c0_i32_110 : i32 to vector<8x1xi32>
    %264 = arith.cmpi sge, %202, %263 : vector<8x1xi32>
    %265 = arith.andi %262, %264 : vector<8x1xi1>
    %c7_i32_111 = arith.constant 7 : i32
    %266 = vector.broadcast %c7_i32_111 : i32 to vector<8x1xi32>
    %267 = arith.cmpi sle, %202, %266 : vector<8x1xi32>
    %268 = arith.andi %265, %267 : vector<8x1xi1>
    %c8_i32_112 = arith.constant 8 : i32
    %269 = vector.broadcast %c8_i32_112 : i32 to vector<8x1xi32>
    %270 = arith.muli %202, %269 : vector<8x1xi32>
    %c0_i32_113 = arith.constant 0 : i32
    %271 = vector.broadcast %c0_i32_113 : i32 to vector<8x1xi32>
    %272 = arith.addi %271, %270 : vector<8x1xi32>
    %273 = arith.addi %272, %197 : vector<8x1xi32>
    %c-1_i32_114 = arith.constant -1 : i32
    %274 = vector.broadcast %c-1_i32_114 : i32 to vector<8x1xi32>
    %275 = arith.select %268, %273, %274 : vector<8x1xi1>, vector<8x1xi32>
    %276 = vector.broadcast %275 : vector<8x1xi32> to vector<8x128xi32>
    %277 = arith.cmpi eq, %151, %276 : vector<8x128xi32>
    %278 = arith.mulf %203, %194 : vector<8x1xf32>
    %279 = arith.mulf %278, %193 : vector<8x1xf32>
    %cst_115 = arith.constant 0.000000e+00 : f32
    %280 = vector.shape_cast %279 : vector<8x1xf32> to vector<8x1xf32>
    %281 = vector.broadcast %280 : vector<8x1xf32> to vector<8x128xf32>
    %282 = vector.broadcast %cst_115 : f32 to vector<8x128xf32>
    %283 = arith.select %277, %281, %282 : vector<8x128xi1>, vector<8x128xf32>
    %284 = arith.addf %257, %283 : vector<8x128xf32>
    %c0_i32_116 = arith.constant 0 : i32
    %285 = vector.broadcast %c0_i32_116 : i32 to vector<8x1xi32>
    %286 = arith.cmpi sge, %200, %285 : vector<8x1xi32>
    %c7_i32_117 = arith.constant 7 : i32
    %287 = vector.broadcast %c7_i32_117 : i32 to vector<8x1xi32>
    %288 = arith.cmpi sle, %200, %287 : vector<8x1xi32>
    %289 = arith.andi %286, %288 : vector<8x1xi1>
    %c0_i32_118 = arith.constant 0 : i32
    %290 = vector.broadcast %c0_i32_118 : i32 to vector<8x1xi32>
    %291 = arith.cmpi sge, %202, %290 : vector<8x1xi32>
    %292 = arith.andi %289, %291 : vector<8x1xi1>
    %c7_i32_119 = arith.constant 7 : i32
    %293 = vector.broadcast %c7_i32_119 : i32 to vector<8x1xi32>
    %294 = arith.cmpi sle, %202, %293 : vector<8x1xi32>
    %295 = arith.andi %292, %294 : vector<8x1xi1>
    %c8_i32_120 = arith.constant 8 : i32
    %296 = vector.broadcast %c8_i32_120 : i32 to vector<8x1xi32>
    %297 = arith.muli %202, %296 : vector<8x1xi32>
    %c0_i32_121 = arith.constant 0 : i32
    %298 = vector.broadcast %c0_i32_121 : i32 to vector<8x1xi32>
    %299 = arith.addi %298, %297 : vector<8x1xi32>
    %300 = arith.addi %299, %200 : vector<8x1xi32>
    %c-1_i32_122 = arith.constant -1 : i32
    %301 = vector.broadcast %c-1_i32_122 : i32 to vector<8x1xi32>
    %302 = arith.select %295, %300, %301 : vector<8x1xi1>, vector<8x1xi32>
    %303 = vector.broadcast %302 : vector<8x1xi32> to vector<8x128xi32>
    %304 = arith.cmpi eq, %151, %303 : vector<8x128xi32>
    %305 = arith.mulf %203, %194 : vector<8x1xf32>
    %306 = arith.mulf %305, %191 : vector<8x1xf32>
    %cst_123 = arith.constant 0.000000e+00 : f32
    %307 = vector.shape_cast %306 : vector<8x1xf32> to vector<8x1xf32>
    %308 = vector.broadcast %307 : vector<8x1xf32> to vector<8x128xf32>
    %309 = vector.broadcast %cst_123 : f32 to vector<8x128xf32>
    %310 = arith.select %304, %308, %309 : vector<8x128xi1>, vector<8x128xf32>
    %311 = arith.addf %284, %310 : vector<8x128xf32>
    %312 = vector.extract_strided_slice %143 {offsets = [0, 2], sizes = [8, 1], strides = [1, 1]} : vector<8x32xf32> to vector<8x1xf32>
    %313 = vector.extract_strided_slice %143 {offsets = [0, 3], sizes = [8, 1], strides = [1, 1]} : vector<8x32xf32> to vector<8x1xf32>
    %314 = arith.addf %157, %312 : vector<8x1xf32>
    %315 = arith.addf %161, %313 : vector<8x1xf32>
    %316 = math.floor %314 : vector<8x1xf32>
    %317 = math.floor %315 : vector<8x1xf32>
    %318 = arith.subf %314, %316 : vector<8x1xf32>
    %cst_124 = arith.constant 1.000000e+00 : f32
    %319 = vector.broadcast %cst_124 : f32 to vector<8x1xf32>
    %320 = arith.subf %319, %318 : vector<8x1xf32>
    %321 = arith.subf %315, %317 : vector<8x1xf32>
    %cst_125 = arith.constant 1.000000e+00 : f32
    %322 = vector.broadcast %cst_125 : f32 to vector<8x1xf32>
    %323 = arith.subf %322, %321 : vector<8x1xf32>
    %324 = arith.fptosi %316 : vector<8x1xf32> to vector<8x1xi32>
    %325 = arith.fptosi %317 : vector<8x1xf32> to vector<8x1xi32>
    %c1_i32_126 = arith.constant 1 : i32
    %326 = vector.broadcast %c1_i32_126 : i32 to vector<8x1xi32>
    %327 = arith.addi %324, %326 : vector<8x1xi32>
    %c1_i32_127 = arith.constant 1 : i32
    %328 = vector.broadcast %c1_i32_127 : i32 to vector<8x1xi32>
    %329 = arith.addi %325, %328 : vector<8x1xi32>
    %330 = vector.extract_strided_slice %183 {offsets = [0, 1], sizes = [8, 1], strides = [1, 1]} : vector<8x4xf32> to vector<8x1xf32>
    %c0_i32_128 = arith.constant 0 : i32
    %331 = vector.broadcast %c0_i32_128 : i32 to vector<8x1xi32>
    %332 = arith.cmpi sge, %324, %331 : vector<8x1xi32>
    %c7_i32_129 = arith.constant 7 : i32
    %333 = vector.broadcast %c7_i32_129 : i32 to vector<8x1xi32>
    %334 = arith.cmpi sle, %324, %333 : vector<8x1xi32>
    %335 = arith.andi %332, %334 : vector<8x1xi1>
    %c0_i32_130 = arith.constant 0 : i32
    %336 = vector.broadcast %c0_i32_130 : i32 to vector<8x1xi32>
    %337 = arith.cmpi sge, %325, %336 : vector<8x1xi32>
    %338 = arith.andi %335, %337 : vector<8x1xi1>
    %c7_i32_131 = arith.constant 7 : i32
    %339 = vector.broadcast %c7_i32_131 : i32 to vector<8x1xi32>
    %340 = arith.cmpi sle, %325, %339 : vector<8x1xi32>
    %341 = arith.andi %338, %340 : vector<8x1xi1>
    %c8_i32_132 = arith.constant 8 : i32
    %342 = vector.broadcast %c8_i32_132 : i32 to vector<8x1xi32>
    %343 = arith.muli %325, %342 : vector<8x1xi32>
    %c0_i32_133 = arith.constant 0 : i32
    %344 = vector.broadcast %c0_i32_133 : i32 to vector<8x1xi32>
    %345 = arith.addi %344, %343 : vector<8x1xi32>
    %346 = arith.addi %345, %324 : vector<8x1xi32>
    %c-1_i32_134 = arith.constant -1 : i32
    %347 = vector.broadcast %c-1_i32_134 : i32 to vector<8x1xi32>
    %348 = arith.select %341, %346, %347 : vector<8x1xi1>, vector<8x1xi32>
    %349 = vector.broadcast %348 : vector<8x1xi32> to vector<8x128xi32>
    %350 = arith.cmpi eq, %151, %349 : vector<8x128xi32>
    %351 = arith.mulf %330, %323 : vector<8x1xf32>
    %352 = arith.mulf %351, %320 : vector<8x1xf32>
    %cst_135 = arith.constant 0.000000e+00 : f32
    %353 = vector.shape_cast %352 : vector<8x1xf32> to vector<8x1xf32>
    %354 = vector.broadcast %353 : vector<8x1xf32> to vector<8x128xf32>
    %355 = vector.broadcast %cst_135 : f32 to vector<8x128xf32>
    %356 = arith.select %350, %354, %355 : vector<8x128xi1>, vector<8x128xf32>
    %357 = arith.addf %311, %356 : vector<8x128xf32>
    %c0_i32_136 = arith.constant 0 : i32
    %358 = vector.broadcast %c0_i32_136 : i32 to vector<8x1xi32>
    %359 = arith.cmpi sge, %327, %358 : vector<8x1xi32>
    %c7_i32_137 = arith.constant 7 : i32
    %360 = vector.broadcast %c7_i32_137 : i32 to vector<8x1xi32>
    %361 = arith.cmpi sle, %327, %360 : vector<8x1xi32>
    %362 = arith.andi %359, %361 : vector<8x1xi1>
    %c0_i32_138 = arith.constant 0 : i32
    %363 = vector.broadcast %c0_i32_138 : i32 to vector<8x1xi32>
    %364 = arith.cmpi sge, %325, %363 : vector<8x1xi32>
    %365 = arith.andi %362, %364 : vector<8x1xi1>
    %c7_i32_139 = arith.constant 7 : i32
    %366 = vector.broadcast %c7_i32_139 : i32 to vector<8x1xi32>
    %367 = arith.cmpi sle, %325, %366 : vector<8x1xi32>
    %368 = arith.andi %365, %367 : vector<8x1xi1>
    %c8_i32_140 = arith.constant 8 : i32
    %369 = vector.broadcast %c8_i32_140 : i32 to vector<8x1xi32>
    %370 = arith.muli %325, %369 : vector<8x1xi32>
    %c0_i32_141 = arith.constant 0 : i32
    %371 = vector.broadcast %c0_i32_141 : i32 to vector<8x1xi32>
    %372 = arith.addi %371, %370 : vector<8x1xi32>
    %373 = arith.addi %372, %327 : vector<8x1xi32>
    %c-1_i32_142 = arith.constant -1 : i32
    %374 = vector.broadcast %c-1_i32_142 : i32 to vector<8x1xi32>
    %375 = arith.select %368, %373, %374 : vector<8x1xi1>, vector<8x1xi32>
    %376 = vector.broadcast %375 : vector<8x1xi32> to vector<8x128xi32>
    %377 = arith.cmpi eq, %151, %376 : vector<8x128xi32>
    %378 = arith.mulf %330, %323 : vector<8x1xf32>
    %379 = arith.mulf %378, %318 : vector<8x1xf32>
    %cst_143 = arith.constant 0.000000e+00 : f32
    %380 = vector.shape_cast %379 : vector<8x1xf32> to vector<8x1xf32>
    %381 = vector.broadcast %380 : vector<8x1xf32> to vector<8x128xf32>
    %382 = vector.broadcast %cst_143 : f32 to vector<8x128xf32>
    %383 = arith.select %377, %381, %382 : vector<8x128xi1>, vector<8x128xf32>
    %384 = arith.addf %357, %383 : vector<8x128xf32>
    %c0_i32_144 = arith.constant 0 : i32
    %385 = vector.broadcast %c0_i32_144 : i32 to vector<8x1xi32>
    %386 = arith.cmpi sge, %324, %385 : vector<8x1xi32>
    %c7_i32_145 = arith.constant 7 : i32
    %387 = vector.broadcast %c7_i32_145 : i32 to vector<8x1xi32>
    %388 = arith.cmpi sle, %324, %387 : vector<8x1xi32>
    %389 = arith.andi %386, %388 : vector<8x1xi1>
    %c0_i32_146 = arith.constant 0 : i32
    %390 = vector.broadcast %c0_i32_146 : i32 to vector<8x1xi32>
    %391 = arith.cmpi sge, %329, %390 : vector<8x1xi32>
    %392 = arith.andi %389, %391 : vector<8x1xi1>
    %c7_i32_147 = arith.constant 7 : i32
    %393 = vector.broadcast %c7_i32_147 : i32 to vector<8x1xi32>
    %394 = arith.cmpi sle, %329, %393 : vector<8x1xi32>
    %395 = arith.andi %392, %394 : vector<8x1xi1>
    %c8_i32_148 = arith.constant 8 : i32
    %396 = vector.broadcast %c8_i32_148 : i32 to vector<8x1xi32>
    %397 = arith.muli %329, %396 : vector<8x1xi32>
    %c0_i32_149 = arith.constant 0 : i32
    %398 = vector.broadcast %c0_i32_149 : i32 to vector<8x1xi32>
    %399 = arith.addi %398, %397 : vector<8x1xi32>
    %400 = arith.addi %399, %324 : vector<8x1xi32>
    %c-1_i32_150 = arith.constant -1 : i32
    %401 = vector.broadcast %c-1_i32_150 : i32 to vector<8x1xi32>
    %402 = arith.select %395, %400, %401 : vector<8x1xi1>, vector<8x1xi32>
    %403 = vector.broadcast %402 : vector<8x1xi32> to vector<8x128xi32>
    %404 = arith.cmpi eq, %151, %403 : vector<8x128xi32>
    %405 = arith.mulf %330, %321 : vector<8x1xf32>
    %406 = arith.mulf %405, %320 : vector<8x1xf32>
    %cst_151 = arith.constant 0.000000e+00 : f32
    %407 = vector.shape_cast %406 : vector<8x1xf32> to vector<8x1xf32>
    %408 = vector.broadcast %407 : vector<8x1xf32> to vector<8x128xf32>
    %409 = vector.broadcast %cst_151 : f32 to vector<8x128xf32>
    %410 = arith.select %404, %408, %409 : vector<8x128xi1>, vector<8x128xf32>
    %411 = arith.addf %384, %410 : vector<8x128xf32>
    %c0_i32_152 = arith.constant 0 : i32
    %412 = vector.broadcast %c0_i32_152 : i32 to vector<8x1xi32>
    %413 = arith.cmpi sge, %327, %412 : vector<8x1xi32>
    %c7_i32_153 = arith.constant 7 : i32
    %414 = vector.broadcast %c7_i32_153 : i32 to vector<8x1xi32>
    %415 = arith.cmpi sle, %327, %414 : vector<8x1xi32>
    %416 = arith.andi %413, %415 : vector<8x1xi1>
    %c0_i32_154 = arith.constant 0 : i32
    %417 = vector.broadcast %c0_i32_154 : i32 to vector<8x1xi32>
    %418 = arith.cmpi sge, %329, %417 : vector<8x1xi32>
    %419 = arith.andi %416, %418 : vector<8x1xi1>
    %c7_i32_155 = arith.constant 7 : i32
    %420 = vector.broadcast %c7_i32_155 : i32 to vector<8x1xi32>
    %421 = arith.cmpi sle, %329, %420 : vector<8x1xi32>
    %422 = arith.andi %419, %421 : vector<8x1xi1>
    %c8_i32_156 = arith.constant 8 : i32
    %423 = vector.broadcast %c8_i32_156 : i32 to vector<8x1xi32>
    %424 = arith.muli %329, %423 : vector<8x1xi32>
    %c0_i32_157 = arith.constant 0 : i32
    %425 = vector.broadcast %c0_i32_157 : i32 to vector<8x1xi32>
    %426 = arith.addi %425, %424 : vector<8x1xi32>
    %427 = arith.addi %426, %327 : vector<8x1xi32>
    %c-1_i32_158 = arith.constant -1 : i32
    %428 = vector.broadcast %c-1_i32_158 : i32 to vector<8x1xi32>
    %429 = arith.select %422, %427, %428 : vector<8x1xi1>, vector<8x1xi32>
    %430 = vector.broadcast %429 : vector<8x1xi32> to vector<8x128xi32>
    %431 = arith.cmpi eq, %151, %430 : vector<8x128xi32>
    %432 = arith.mulf %330, %321 : vector<8x1xf32>
    %433 = arith.mulf %432, %318 : vector<8x1xf32>
    %cst_159 = arith.constant 0.000000e+00 : f32
    %434 = vector.shape_cast %433 : vector<8x1xf32> to vector<8x1xf32>
    %435 = vector.broadcast %434 : vector<8x1xf32> to vector<8x128xf32>
    %436 = vector.broadcast %cst_159 : f32 to vector<8x128xf32>
    %437 = arith.select %431, %435, %436 : vector<8x128xi1>, vector<8x128xf32>
    %438 = arith.addf %411, %437 : vector<8x128xf32>
    %439 = vector.extract_strided_slice %143 {offsets = [0, 4], sizes = [8, 1], strides = [1, 1]} : vector<8x32xf32> to vector<8x1xf32>
    %440 = vector.extract_strided_slice %143 {offsets = [0, 5], sizes = [8, 1], strides = [1, 1]} : vector<8x32xf32> to vector<8x1xf32>
    %441 = arith.addf %167, %439 : vector<8x1xf32>
    %442 = arith.addf %171, %440 : vector<8x1xf32>
    %443 = math.floor %441 : vector<8x1xf32>
    %444 = math.floor %442 : vector<8x1xf32>
    %445 = arith.subf %441, %443 : vector<8x1xf32>
    %cst_160 = arith.constant 1.000000e+00 : f32
    %446 = vector.broadcast %cst_160 : f32 to vector<8x1xf32>
    %447 = arith.subf %446, %445 : vector<8x1xf32>
    %448 = arith.subf %442, %444 : vector<8x1xf32>
    %cst_161 = arith.constant 1.000000e+00 : f32
    %449 = vector.broadcast %cst_161 : f32 to vector<8x1xf32>
    %450 = arith.subf %449, %448 : vector<8x1xf32>
    %451 = arith.fptosi %443 : vector<8x1xf32> to vector<8x1xi32>
    %452 = arith.fptosi %444 : vector<8x1xf32> to vector<8x1xi32>
    %c1_i32_162 = arith.constant 1 : i32
    %453 = vector.broadcast %c1_i32_162 : i32 to vector<8x1xi32>
    %454 = arith.addi %451, %453 : vector<8x1xi32>
    %c1_i32_163 = arith.constant 1 : i32
    %455 = vector.broadcast %c1_i32_163 : i32 to vector<8x1xi32>
    %456 = arith.addi %452, %455 : vector<8x1xi32>
    %457 = vector.extract_strided_slice %183 {offsets = [0, 2], sizes = [8, 1], strides = [1, 1]} : vector<8x4xf32> to vector<8x1xf32>
    %c0_i32_164 = arith.constant 0 : i32
    %458 = vector.broadcast %c0_i32_164 : i32 to vector<8x1xi32>
    %459 = arith.cmpi sge, %451, %458 : vector<8x1xi32>
    %c3_i32 = arith.constant 3 : i32
    %460 = vector.broadcast %c3_i32 : i32 to vector<8x1xi32>
    %461 = arith.cmpi sle, %451, %460 : vector<8x1xi32>
    %462 = arith.andi %459, %461 : vector<8x1xi1>
    %c0_i32_165 = arith.constant 0 : i32
    %463 = vector.broadcast %c0_i32_165 : i32 to vector<8x1xi32>
    %464 = arith.cmpi sge, %452, %463 : vector<8x1xi32>
    %465 = arith.andi %462, %464 : vector<8x1xi1>
    %c3_i32_166 = arith.constant 3 : i32
    %466 = vector.broadcast %c3_i32_166 : i32 to vector<8x1xi32>
    %467 = arith.cmpi sle, %452, %466 : vector<8x1xi32>
    %468 = arith.andi %465, %467 : vector<8x1xi1>
    %c4_i32 = arith.constant 4 : i32
    %469 = vector.broadcast %c4_i32 : i32 to vector<8x1xi32>
    %470 = arith.muli %452, %469 : vector<8x1xi32>
    %c64_i32 = arith.constant 64 : i32
    %471 = vector.broadcast %c64_i32 : i32 to vector<8x1xi32>
    %472 = arith.addi %471, %470 : vector<8x1xi32>
    %473 = arith.addi %472, %451 : vector<8x1xi32>
    %c-1_i32_167 = arith.constant -1 : i32
    %474 = vector.broadcast %c-1_i32_167 : i32 to vector<8x1xi32>
    %475 = arith.select %468, %473, %474 : vector<8x1xi1>, vector<8x1xi32>
    %476 = vector.broadcast %475 : vector<8x1xi32> to vector<8x128xi32>
    %477 = arith.cmpi eq, %151, %476 : vector<8x128xi32>
    %478 = arith.mulf %457, %450 : vector<8x1xf32>
    %479 = arith.mulf %478, %447 : vector<8x1xf32>
    %cst_168 = arith.constant 0.000000e+00 : f32
    %480 = vector.shape_cast %479 : vector<8x1xf32> to vector<8x1xf32>
    %481 = vector.broadcast %480 : vector<8x1xf32> to vector<8x128xf32>
    %482 = vector.broadcast %cst_168 : f32 to vector<8x128xf32>
    %483 = arith.select %477, %481, %482 : vector<8x128xi1>, vector<8x128xf32>
    %484 = arith.addf %438, %483 : vector<8x128xf32>
    %c0_i32_169 = arith.constant 0 : i32
    %485 = vector.broadcast %c0_i32_169 : i32 to vector<8x1xi32>
    %486 = arith.cmpi sge, %454, %485 : vector<8x1xi32>
    %c3_i32_170 = arith.constant 3 : i32
    %487 = vector.broadcast %c3_i32_170 : i32 to vector<8x1xi32>
    %488 = arith.cmpi sle, %454, %487 : vector<8x1xi32>
    %489 = arith.andi %486, %488 : vector<8x1xi1>
    %c0_i32_171 = arith.constant 0 : i32
    %490 = vector.broadcast %c0_i32_171 : i32 to vector<8x1xi32>
    %491 = arith.cmpi sge, %452, %490 : vector<8x1xi32>
    %492 = arith.andi %489, %491 : vector<8x1xi1>
    %c3_i32_172 = arith.constant 3 : i32
    %493 = vector.broadcast %c3_i32_172 : i32 to vector<8x1xi32>
    %494 = arith.cmpi sle, %452, %493 : vector<8x1xi32>
    %495 = arith.andi %492, %494 : vector<8x1xi1>
    %c4_i32_173 = arith.constant 4 : i32
    %496 = vector.broadcast %c4_i32_173 : i32 to vector<8x1xi32>
    %497 = arith.muli %452, %496 : vector<8x1xi32>
    %c64_i32_174 = arith.constant 64 : i32
    %498 = vector.broadcast %c64_i32_174 : i32 to vector<8x1xi32>
    %499 = arith.addi %498, %497 : vector<8x1xi32>
    %500 = arith.addi %499, %454 : vector<8x1xi32>
    %c-1_i32_175 = arith.constant -1 : i32
    %501 = vector.broadcast %c-1_i32_175 : i32 to vector<8x1xi32>
    %502 = arith.select %495, %500, %501 : vector<8x1xi1>, vector<8x1xi32>
    %503 = vector.broadcast %502 : vector<8x1xi32> to vector<8x128xi32>
    %504 = arith.cmpi eq, %151, %503 : vector<8x128xi32>
    %505 = arith.mulf %457, %450 : vector<8x1xf32>
    %506 = arith.mulf %505, %445 : vector<8x1xf32>
    %cst_176 = arith.constant 0.000000e+00 : f32
    %507 = vector.shape_cast %506 : vector<8x1xf32> to vector<8x1xf32>
    %508 = vector.broadcast %507 : vector<8x1xf32> to vector<8x128xf32>
    %509 = vector.broadcast %cst_176 : f32 to vector<8x128xf32>
    %510 = arith.select %504, %508, %509 : vector<8x128xi1>, vector<8x128xf32>
    %511 = arith.addf %484, %510 : vector<8x128xf32>
    %c0_i32_177 = arith.constant 0 : i32
    %512 = vector.broadcast %c0_i32_177 : i32 to vector<8x1xi32>
    %513 = arith.cmpi sge, %451, %512 : vector<8x1xi32>
    %c3_i32_178 = arith.constant 3 : i32
    %514 = vector.broadcast %c3_i32_178 : i32 to vector<8x1xi32>
    %515 = arith.cmpi sle, %451, %514 : vector<8x1xi32>
    %516 = arith.andi %513, %515 : vector<8x1xi1>
    %c0_i32_179 = arith.constant 0 : i32
    %517 = vector.broadcast %c0_i32_179 : i32 to vector<8x1xi32>
    %518 = arith.cmpi sge, %456, %517 : vector<8x1xi32>
    %519 = arith.andi %516, %518 : vector<8x1xi1>
    %c3_i32_180 = arith.constant 3 : i32
    %520 = vector.broadcast %c3_i32_180 : i32 to vector<8x1xi32>
    %521 = arith.cmpi sle, %456, %520 : vector<8x1xi32>
    %522 = arith.andi %519, %521 : vector<8x1xi1>
    %c4_i32_181 = arith.constant 4 : i32
    %523 = vector.broadcast %c4_i32_181 : i32 to vector<8x1xi32>
    %524 = arith.muli %456, %523 : vector<8x1xi32>
    %c64_i32_182 = arith.constant 64 : i32
    %525 = vector.broadcast %c64_i32_182 : i32 to vector<8x1xi32>
    %526 = arith.addi %525, %524 : vector<8x1xi32>
    %527 = arith.addi %526, %451 : vector<8x1xi32>
    %c-1_i32_183 = arith.constant -1 : i32
    %528 = vector.broadcast %c-1_i32_183 : i32 to vector<8x1xi32>
    %529 = arith.select %522, %527, %528 : vector<8x1xi1>, vector<8x1xi32>
    %530 = vector.broadcast %529 : vector<8x1xi32> to vector<8x128xi32>
    %531 = arith.cmpi eq, %151, %530 : vector<8x128xi32>
    %532 = arith.mulf %457, %448 : vector<8x1xf32>
    %533 = arith.mulf %532, %447 : vector<8x1xf32>
    %cst_184 = arith.constant 0.000000e+00 : f32
    %534 = vector.shape_cast %533 : vector<8x1xf32> to vector<8x1xf32>
    %535 = vector.broadcast %534 : vector<8x1xf32> to vector<8x128xf32>
    %536 = vector.broadcast %cst_184 : f32 to vector<8x128xf32>
    %537 = arith.select %531, %535, %536 : vector<8x128xi1>, vector<8x128xf32>
    %538 = arith.addf %511, %537 : vector<8x128xf32>
    %c0_i32_185 = arith.constant 0 : i32
    %539 = vector.broadcast %c0_i32_185 : i32 to vector<8x1xi32>
    %540 = arith.cmpi sge, %454, %539 : vector<8x1xi32>
    %c3_i32_186 = arith.constant 3 : i32
    %541 = vector.broadcast %c3_i32_186 : i32 to vector<8x1xi32>
    %542 = arith.cmpi sle, %454, %541 : vector<8x1xi32>
    %543 = arith.andi %540, %542 : vector<8x1xi1>
    %c0_i32_187 = arith.constant 0 : i32
    %544 = vector.broadcast %c0_i32_187 : i32 to vector<8x1xi32>
    %545 = arith.cmpi sge, %456, %544 : vector<8x1xi32>
    %546 = arith.andi %543, %545 : vector<8x1xi1>
    %c3_i32_188 = arith.constant 3 : i32
    %547 = vector.broadcast %c3_i32_188 : i32 to vector<8x1xi32>
    %548 = arith.cmpi sle, %456, %547 : vector<8x1xi32>
    %549 = arith.andi %546, %548 : vector<8x1xi1>
    %c4_i32_189 = arith.constant 4 : i32
    %550 = vector.broadcast %c4_i32_189 : i32 to vector<8x1xi32>
    %551 = arith.muli %456, %550 : vector<8x1xi32>
    %c64_i32_190 = arith.constant 64 : i32
    %552 = vector.broadcast %c64_i32_190 : i32 to vector<8x1xi32>
    %553 = arith.addi %552, %551 : vector<8x1xi32>
    %554 = arith.addi %553, %454 : vector<8x1xi32>
    %c-1_i32_191 = arith.constant -1 : i32
    %555 = vector.broadcast %c-1_i32_191 : i32 to vector<8x1xi32>
    %556 = arith.select %549, %554, %555 : vector<8x1xi1>, vector<8x1xi32>
    %557 = vector.broadcast %556 : vector<8x1xi32> to vector<8x128xi32>
    %558 = arith.cmpi eq, %151, %557 : vector<8x128xi32>
    %559 = arith.mulf %457, %448 : vector<8x1xf32>
    %560 = arith.mulf %559, %445 : vector<8x1xf32>
    %cst_192 = arith.constant 0.000000e+00 : f32
    %561 = vector.shape_cast %560 : vector<8x1xf32> to vector<8x1xf32>
    %562 = vector.broadcast %561 : vector<8x1xf32> to vector<8x128xf32>
    %563 = vector.broadcast %cst_192 : f32 to vector<8x128xf32>
    %564 = arith.select %558, %562, %563 : vector<8x128xi1>, vector<8x128xf32>
    %565 = arith.addf %538, %564 : vector<8x128xf32>
    %566 = vector.extract_strided_slice %143 {offsets = [0, 6], sizes = [8, 1], strides = [1, 1]} : vector<8x32xf32> to vector<8x1xf32>
    %567 = vector.extract_strided_slice %143 {offsets = [0, 7], sizes = [8, 1], strides = [1, 1]} : vector<8x32xf32> to vector<8x1xf32>
    %568 = arith.addf %167, %566 : vector<8x1xf32>
    %569 = arith.addf %171, %567 : vector<8x1xf32>
    %570 = math.floor %568 : vector<8x1xf32>
    %571 = math.floor %569 : vector<8x1xf32>
    %572 = arith.subf %568, %570 : vector<8x1xf32>
    %cst_193 = arith.constant 1.000000e+00 : f32
    %573 = vector.broadcast %cst_193 : f32 to vector<8x1xf32>
    %574 = arith.subf %573, %572 : vector<8x1xf32>
    %575 = arith.subf %569, %571 : vector<8x1xf32>
    %cst_194 = arith.constant 1.000000e+00 : f32
    %576 = vector.broadcast %cst_194 : f32 to vector<8x1xf32>
    %577 = arith.subf %576, %575 : vector<8x1xf32>
    %578 = arith.fptosi %570 : vector<8x1xf32> to vector<8x1xi32>
    %579 = arith.fptosi %571 : vector<8x1xf32> to vector<8x1xi32>
    %c1_i32_195 = arith.constant 1 : i32
    %580 = vector.broadcast %c1_i32_195 : i32 to vector<8x1xi32>
    %581 = arith.addi %578, %580 : vector<8x1xi32>
    %c1_i32_196 = arith.constant 1 : i32
    %582 = vector.broadcast %c1_i32_196 : i32 to vector<8x1xi32>
    %583 = arith.addi %579, %582 : vector<8x1xi32>
    %584 = vector.extract_strided_slice %183 {offsets = [0, 3], sizes = [8, 1], strides = [1, 1]} : vector<8x4xf32> to vector<8x1xf32>
    %c0_i32_197 = arith.constant 0 : i32
    %585 = vector.broadcast %c0_i32_197 : i32 to vector<8x1xi32>
    %586 = arith.cmpi sge, %578, %585 : vector<8x1xi32>
    %c3_i32_198 = arith.constant 3 : i32
    %587 = vector.broadcast %c3_i32_198 : i32 to vector<8x1xi32>
    %588 = arith.cmpi sle, %578, %587 : vector<8x1xi32>
    %589 = arith.andi %586, %588 : vector<8x1xi1>
    %c0_i32_199 = arith.constant 0 : i32
    %590 = vector.broadcast %c0_i32_199 : i32 to vector<8x1xi32>
    %591 = arith.cmpi sge, %579, %590 : vector<8x1xi32>
    %592 = arith.andi %589, %591 : vector<8x1xi1>
    %c3_i32_200 = arith.constant 3 : i32
    %593 = vector.broadcast %c3_i32_200 : i32 to vector<8x1xi32>
    %594 = arith.cmpi sle, %579, %593 : vector<8x1xi32>
    %595 = arith.andi %592, %594 : vector<8x1xi1>
    %c4_i32_201 = arith.constant 4 : i32
    %596 = vector.broadcast %c4_i32_201 : i32 to vector<8x1xi32>
    %597 = arith.muli %579, %596 : vector<8x1xi32>
    %c64_i32_202 = arith.constant 64 : i32
    %598 = vector.broadcast %c64_i32_202 : i32 to vector<8x1xi32>
    %599 = arith.addi %598, %597 : vector<8x1xi32>
    %600 = arith.addi %599, %578 : vector<8x1xi32>
    %c-1_i32_203 = arith.constant -1 : i32
    %601 = vector.broadcast %c-1_i32_203 : i32 to vector<8x1xi32>
    %602 = arith.select %595, %600, %601 : vector<8x1xi1>, vector<8x1xi32>
    %603 = vector.broadcast %602 : vector<8x1xi32> to vector<8x128xi32>
    %604 = arith.cmpi eq, %151, %603 : vector<8x128xi32>
    %605 = arith.mulf %584, %577 : vector<8x1xf32>
    %606 = arith.mulf %605, %574 : vector<8x1xf32>
    %cst_204 = arith.constant 0.000000e+00 : f32
    %607 = vector.shape_cast %606 : vector<8x1xf32> to vector<8x1xf32>
    %608 = vector.broadcast %607 : vector<8x1xf32> to vector<8x128xf32>
    %609 = vector.broadcast %cst_204 : f32 to vector<8x128xf32>
    %610 = arith.select %604, %608, %609 : vector<8x128xi1>, vector<8x128xf32>
    %611 = arith.addf %565, %610 : vector<8x128xf32>
    %c0_i32_205 = arith.constant 0 : i32
    %612 = vector.broadcast %c0_i32_205 : i32 to vector<8x1xi32>
    %613 = arith.cmpi sge, %581, %612 : vector<8x1xi32>
    %c3_i32_206 = arith.constant 3 : i32
    %614 = vector.broadcast %c3_i32_206 : i32 to vector<8x1xi32>
    %615 = arith.cmpi sle, %581, %614 : vector<8x1xi32>
    %616 = arith.andi %613, %615 : vector<8x1xi1>
    %c0_i32_207 = arith.constant 0 : i32
    %617 = vector.broadcast %c0_i32_207 : i32 to vector<8x1xi32>
    %618 = arith.cmpi sge, %579, %617 : vector<8x1xi32>
    %619 = arith.andi %616, %618 : vector<8x1xi1>
    %c3_i32_208 = arith.constant 3 : i32
    %620 = vector.broadcast %c3_i32_208 : i32 to vector<8x1xi32>
    %621 = arith.cmpi sle, %579, %620 : vector<8x1xi32>
    %622 = arith.andi %619, %621 : vector<8x1xi1>
    %c4_i32_209 = arith.constant 4 : i32
    %623 = vector.broadcast %c4_i32_209 : i32 to vector<8x1xi32>
    %624 = arith.muli %579, %623 : vector<8x1xi32>
    %c64_i32_210 = arith.constant 64 : i32
    %625 = vector.broadcast %c64_i32_210 : i32 to vector<8x1xi32>
    %626 = arith.addi %625, %624 : vector<8x1xi32>
    %627 = arith.addi %626, %581 : vector<8x1xi32>
    %c-1_i32_211 = arith.constant -1 : i32
    %628 = vector.broadcast %c-1_i32_211 : i32 to vector<8x1xi32>
    %629 = arith.select %622, %627, %628 : vector<8x1xi1>, vector<8x1xi32>
    %630 = vector.broadcast %629 : vector<8x1xi32> to vector<8x128xi32>
    %631 = arith.cmpi eq, %151, %630 : vector<8x128xi32>
    %632 = arith.mulf %584, %577 : vector<8x1xf32>
    %633 = arith.mulf %632, %572 : vector<8x1xf32>
    %cst_212 = arith.constant 0.000000e+00 : f32
    %634 = vector.shape_cast %633 : vector<8x1xf32> to vector<8x1xf32>
    %635 = vector.broadcast %634 : vector<8x1xf32> to vector<8x128xf32>
    %636 = vector.broadcast %cst_212 : f32 to vector<8x128xf32>
    %637 = arith.select %631, %635, %636 : vector<8x128xi1>, vector<8x128xf32>
    %638 = arith.addf %611, %637 : vector<8x128xf32>
    %c0_i32_213 = arith.constant 0 : i32
    %639 = vector.broadcast %c0_i32_213 : i32 to vector<8x1xi32>
    %640 = arith.cmpi sge, %578, %639 : vector<8x1xi32>
    %c3_i32_214 = arith.constant 3 : i32
    %641 = vector.broadcast %c3_i32_214 : i32 to vector<8x1xi32>
    %642 = arith.cmpi sle, %578, %641 : vector<8x1xi32>
    %643 = arith.andi %640, %642 : vector<8x1xi1>
    %c0_i32_215 = arith.constant 0 : i32
    %644 = vector.broadcast %c0_i32_215 : i32 to vector<8x1xi32>
    %645 = arith.cmpi sge, %583, %644 : vector<8x1xi32>
    %646 = arith.andi %643, %645 : vector<8x1xi1>
    %c3_i32_216 = arith.constant 3 : i32
    %647 = vector.broadcast %c3_i32_216 : i32 to vector<8x1xi32>
    %648 = arith.cmpi sle, %583, %647 : vector<8x1xi32>
    %649 = arith.andi %646, %648 : vector<8x1xi1>
    %c4_i32_217 = arith.constant 4 : i32
    %650 = vector.broadcast %c4_i32_217 : i32 to vector<8x1xi32>
    %651 = arith.muli %583, %650 : vector<8x1xi32>
    %c64_i32_218 = arith.constant 64 : i32
    %652 = vector.broadcast %c64_i32_218 : i32 to vector<8x1xi32>
    %653 = arith.addi %652, %651 : vector<8x1xi32>
    %654 = arith.addi %653, %578 : vector<8x1xi32>
    %c-1_i32_219 = arith.constant -1 : i32
    %655 = vector.broadcast %c-1_i32_219 : i32 to vector<8x1xi32>
    %656 = arith.select %649, %654, %655 : vector<8x1xi1>, vector<8x1xi32>
    %657 = vector.broadcast %656 : vector<8x1xi32> to vector<8x128xi32>
    %658 = arith.cmpi eq, %151, %657 : vector<8x128xi32>
    %659 = arith.mulf %584, %575 : vector<8x1xf32>
    %660 = arith.mulf %659, %574 : vector<8x1xf32>
    %cst_220 = arith.constant 0.000000e+00 : f32
    %661 = vector.shape_cast %660 : vector<8x1xf32> to vector<8x1xf32>
    %662 = vector.broadcast %661 : vector<8x1xf32> to vector<8x128xf32>
    %663 = vector.broadcast %cst_220 : f32 to vector<8x128xf32>
    %664 = arith.select %658, %662, %663 : vector<8x128xi1>, vector<8x128xf32>
    %665 = arith.addf %638, %664 : vector<8x128xf32>
    %c0_i32_221 = arith.constant 0 : i32
    %666 = vector.broadcast %c0_i32_221 : i32 to vector<8x1xi32>
    %667 = arith.cmpi sge, %581, %666 : vector<8x1xi32>
    %c3_i32_222 = arith.constant 3 : i32
    %668 = vector.broadcast %c3_i32_222 : i32 to vector<8x1xi32>
    %669 = arith.cmpi sle, %581, %668 : vector<8x1xi32>
    %670 = arith.andi %667, %669 : vector<8x1xi1>
    %c0_i32_223 = arith.constant 0 : i32
    %671 = vector.broadcast %c0_i32_223 : i32 to vector<8x1xi32>
    %672 = arith.cmpi sge, %583, %671 : vector<8x1xi32>
    %673 = arith.andi %670, %672 : vector<8x1xi1>
    %c3_i32_224 = arith.constant 3 : i32
    %674 = vector.broadcast %c3_i32_224 : i32 to vector<8x1xi32>
    %675 = arith.cmpi sle, %583, %674 : vector<8x1xi32>
    %676 = arith.andi %673, %675 : vector<8x1xi1>
    %c4_i32_225 = arith.constant 4 : i32
    %677 = vector.broadcast %c4_i32_225 : i32 to vector<8x1xi32>
    %678 = arith.muli %583, %677 : vector<8x1xi32>
    %c64_i32_226 = arith.constant 64 : i32
    %679 = vector.broadcast %c64_i32_226 : i32 to vector<8x1xi32>
    %680 = arith.addi %679, %678 : vector<8x1xi32>
    %681 = arith.addi %680, %581 : vector<8x1xi32>
    %c-1_i32_227 = arith.constant -1 : i32
    %682 = vector.broadcast %c-1_i32_227 : i32 to vector<8x1xi32>
    %683 = arith.select %676, %681, %682 : vector<8x1xi1>, vector<8x1xi32>
    %684 = vector.broadcast %683 : vector<8x1xi32> to vector<8x128xi32>
    %685 = arith.cmpi eq, %151, %684 : vector<8x128xi32>
    %686 = arith.mulf %584, %575 : vector<8x1xf32>
    %687 = arith.mulf %686, %572 : vector<8x1xf32>
    %cst_228 = arith.constant 0.000000e+00 : f32
    %688 = vector.shape_cast %687 : vector<8x1xf32> to vector<8x1xf32>
    %689 = vector.broadcast %688 : vector<8x1xf32> to vector<8x128xf32>
    %690 = vector.broadcast %cst_228 : f32 to vector<8x128xf32>
    %691 = arith.select %685, %689, %690 : vector<8x128xi1>, vector<8x128xf32>
    %692 = arith.addf %665, %691 : vector<8x128xf32>
    %693 = vector.extract_strided_slice %138 {offsets = [0, 0], sizes = [128, 8], strides = [1, 1]} : vector<128x32xf32> to vector<128x8xf32>
    %cst_229 = arith.constant dense<0.000000e+00> : vector<8x8xf32>
    %694 = tpu.matmul %692, %693, %cst_229 {dimension_numbers = #tpu.dot_dimension_numbers<[1], [0], [0], [1], [0, 0, 1, 1], [], []>} : vector<8x128xf32>, vector<128x8xf32>, vector<8x8xf32> -> vector<8x8xf32>
    %c0_230 = arith.constant 0 : index
    %c0_231 = arith.constant 0 : index
    %695 = vector.load %arg21[%c0_230, %c0_231] : memref<32x32xf32, #tpu.memory_space<vmem>>, vector<8x32xf32>
    %cst_232 = arith.constant dense<0.000000e+00> : vector<8x32xf32>
    %696 = tpu.matmul %694, %695, %cst_232 {dimension_numbers = #tpu.dot_dimension_numbers<[1], [0], [0], [1], [0, 0, 1, 1], [], []>} : vector<8x8xf32>, vector<8x32xf32>, vector<8x32xf32> -> vector<8x32xf32>
    %697 = arith.addf %172, %696 : vector<8x32xf32>
    %698 = vector.extract_strided_slice %148 {offsets = [0, 4], sizes = [8, 4], strides = [1, 1]} : vector<8x16xf32> to vector<8x4xf32>
    %cst_233 = arith.constant dense<0xFF800000> : vector<8xf32>
    %699 = vector.multi_reduction <maximumf>, %698, %cst_233 [1] : vector<8x4xf32> to vector<8xf32>
    %700 = vector.shape_cast %699 : vector<8xf32> to vector<8x1xf32>
    %701 = vector.broadcast %700 : vector<8x1xf32> to vector<8x4xf32>
    %702 = arith.subf %698, %701 : vector<8x4xf32>
    %703 = math.exp %702 : vector<8x4xf32>
    %cst_234 = arith.constant dense<0.000000e+00> : vector<8xf32>
    %704 = vector.multi_reduction <add>, %703, %cst_234 [1] : vector<8x4xf32> to vector<8xf32>
    %705 = vector.shape_cast %704 : vector<8xf32> to vector<8x1xf32>
    %706 = tpu.reciprocal %705 {approx = true} : vector<8x1xf32> -> vector<8x1xf32>
    %707 = vector.broadcast %706 : vector<8x1xf32> to vector<8x4xf32>
    %708 = arith.mulf %703, %707 : vector<8x4xf32>
    %cst_235 = arith.constant 0.000000e+00 : f32
    %709 = vector.broadcast %cst_235 : f32 to vector<8x128xf32>
    %710 = vector.extract_strided_slice %143 {offsets = [0, 8], sizes = [8, 1], strides = [1, 1]} : vector<8x32xf32> to vector<8x1xf32>
    %711 = vector.extract_strided_slice %143 {offsets = [0, 9], sizes = [8, 1], strides = [1, 1]} : vector<8x32xf32> to vector<8x1xf32>
    %712 = arith.addf %157, %710 : vector<8x1xf32>
    %713 = arith.addf %161, %711 : vector<8x1xf32>
    %714 = math.floor %712 : vector<8x1xf32>
    %715 = math.floor %713 : vector<8x1xf32>
    %716 = arith.subf %712, %714 : vector<8x1xf32>
    %cst_236 = arith.constant 1.000000e+00 : f32
    %717 = vector.broadcast %cst_236 : f32 to vector<8x1xf32>
    %718 = arith.subf %717, %716 : vector<8x1xf32>
    %719 = arith.subf %713, %715 : vector<8x1xf32>
    %cst_237 = arith.constant 1.000000e+00 : f32
    %720 = vector.broadcast %cst_237 : f32 to vector<8x1xf32>
    %721 = arith.subf %720, %719 : vector<8x1xf32>
    %722 = arith.fptosi %714 : vector<8x1xf32> to vector<8x1xi32>
    %723 = arith.fptosi %715 : vector<8x1xf32> to vector<8x1xi32>
    %c1_i32_238 = arith.constant 1 : i32
    %724 = vector.broadcast %c1_i32_238 : i32 to vector<8x1xi32>
    %725 = arith.addi %722, %724 : vector<8x1xi32>
    %c1_i32_239 = arith.constant 1 : i32
    %726 = vector.broadcast %c1_i32_239 : i32 to vector<8x1xi32>
    %727 = arith.addi %723, %726 : vector<8x1xi32>
    %728 = vector.extract_strided_slice %708 {offsets = [0, 0], sizes = [8, 1], strides = [1, 1]} : vector<8x4xf32> to vector<8x1xf32>
    %c0_i32_240 = arith.constant 0 : i32
    %729 = vector.broadcast %c0_i32_240 : i32 to vector<8x1xi32>
    %730 = arith.cmpi sge, %722, %729 : vector<8x1xi32>
    %c7_i32_241 = arith.constant 7 : i32
    %731 = vector.broadcast %c7_i32_241 : i32 to vector<8x1xi32>
    %732 = arith.cmpi sle, %722, %731 : vector<8x1xi32>
    %733 = arith.andi %730, %732 : vector<8x1xi1>
    %c0_i32_242 = arith.constant 0 : i32
    %734 = vector.broadcast %c0_i32_242 : i32 to vector<8x1xi32>
    %735 = arith.cmpi sge, %723, %734 : vector<8x1xi32>
    %736 = arith.andi %733, %735 : vector<8x1xi1>
    %c7_i32_243 = arith.constant 7 : i32
    %737 = vector.broadcast %c7_i32_243 : i32 to vector<8x1xi32>
    %738 = arith.cmpi sle, %723, %737 : vector<8x1xi32>
    %739 = arith.andi %736, %738 : vector<8x1xi1>
    %c8_i32_244 = arith.constant 8 : i32
    %740 = vector.broadcast %c8_i32_244 : i32 to vector<8x1xi32>
    %741 = arith.muli %723, %740 : vector<8x1xi32>
    %c0_i32_245 = arith.constant 0 : i32
    %742 = vector.broadcast %c0_i32_245 : i32 to vector<8x1xi32>
    %743 = arith.addi %742, %741 : vector<8x1xi32>
    %744 = arith.addi %743, %722 : vector<8x1xi32>
    %c-1_i32_246 = arith.constant -1 : i32
    %745 = vector.broadcast %c-1_i32_246 : i32 to vector<8x1xi32>
    %746 = arith.select %739, %744, %745 : vector<8x1xi1>, vector<8x1xi32>
    %747 = vector.broadcast %746 : vector<8x1xi32> to vector<8x128xi32>
    %748 = arith.cmpi eq, %151, %747 : vector<8x128xi32>
    %749 = arith.mulf %728, %721 : vector<8x1xf32>
    %750 = arith.mulf %749, %718 : vector<8x1xf32>
    %cst_247 = arith.constant 0.000000e+00 : f32
    %751 = vector.shape_cast %750 : vector<8x1xf32> to vector<8x1xf32>
    %752 = vector.broadcast %751 : vector<8x1xf32> to vector<8x128xf32>
    %753 = vector.broadcast %cst_247 : f32 to vector<8x128xf32>
    %754 = arith.select %748, %752, %753 : vector<8x128xi1>, vector<8x128xf32>
    %755 = arith.addf %709, %754 : vector<8x128xf32>
    %c0_i32_248 = arith.constant 0 : i32
    %756 = vector.broadcast %c0_i32_248 : i32 to vector<8x1xi32>
    %757 = arith.cmpi sge, %725, %756 : vector<8x1xi32>
    %c7_i32_249 = arith.constant 7 : i32
    %758 = vector.broadcast %c7_i32_249 : i32 to vector<8x1xi32>
    %759 = arith.cmpi sle, %725, %758 : vector<8x1xi32>
    %760 = arith.andi %757, %759 : vector<8x1xi1>
    %c0_i32_250 = arith.constant 0 : i32
    %761 = vector.broadcast %c0_i32_250 : i32 to vector<8x1xi32>
    %762 = arith.cmpi sge, %723, %761 : vector<8x1xi32>
    %763 = arith.andi %760, %762 : vector<8x1xi1>
    %c7_i32_251 = arith.constant 7 : i32
    %764 = vector.broadcast %c7_i32_251 : i32 to vector<8x1xi32>
    %765 = arith.cmpi sle, %723, %764 : vector<8x1xi32>
    %766 = arith.andi %763, %765 : vector<8x1xi1>
    %c8_i32_252 = arith.constant 8 : i32
    %767 = vector.broadcast %c8_i32_252 : i32 to vector<8x1xi32>
    %768 = arith.muli %723, %767 : vector<8x1xi32>
    %c0_i32_253 = arith.constant 0 : i32
    %769 = vector.broadcast %c0_i32_253 : i32 to vector<8x1xi32>
    %770 = arith.addi %769, %768 : vector<8x1xi32>
    %771 = arith.addi %770, %725 : vector<8x1xi32>
    %c-1_i32_254 = arith.constant -1 : i32
    %772 = vector.broadcast %c-1_i32_254 : i32 to vector<8x1xi32>
    %773 = arith.select %766, %771, %772 : vector<8x1xi1>, vector<8x1xi32>
    %774 = vector.broadcast %773 : vector<8x1xi32> to vector<8x128xi32>
    %775 = arith.cmpi eq, %151, %774 : vector<8x128xi32>
    %776 = arith.mulf %728, %721 : vector<8x1xf32>
    %777 = arith.mulf %776, %716 : vector<8x1xf32>
    %cst_255 = arith.constant 0.000000e+00 : f32
    %778 = vector.shape_cast %777 : vector<8x1xf32> to vector<8x1xf32>
    %779 = vector.broadcast %778 : vector<8x1xf32> to vector<8x128xf32>
    %780 = vector.broadcast %cst_255 : f32 to vector<8x128xf32>
    %781 = arith.select %775, %779, %780 : vector<8x128xi1>, vector<8x128xf32>
    %782 = arith.addf %755, %781 : vector<8x128xf32>
    %c0_i32_256 = arith.constant 0 : i32
    %783 = vector.broadcast %c0_i32_256 : i32 to vector<8x1xi32>
    %784 = arith.cmpi sge, %722, %783 : vector<8x1xi32>
    %c7_i32_257 = arith.constant 7 : i32
    %785 = vector.broadcast %c7_i32_257 : i32 to vector<8x1xi32>
    %786 = arith.cmpi sle, %722, %785 : vector<8x1xi32>
    %787 = arith.andi %784, %786 : vector<8x1xi1>
    %c0_i32_258 = arith.constant 0 : i32
    %788 = vector.broadcast %c0_i32_258 : i32 to vector<8x1xi32>
    %789 = arith.cmpi sge, %727, %788 : vector<8x1xi32>
    %790 = arith.andi %787, %789 : vector<8x1xi1>
    %c7_i32_259 = arith.constant 7 : i32
    %791 = vector.broadcast %c7_i32_259 : i32 to vector<8x1xi32>
    %792 = arith.cmpi sle, %727, %791 : vector<8x1xi32>
    %793 = arith.andi %790, %792 : vector<8x1xi1>
    %c8_i32_260 = arith.constant 8 : i32
    %794 = vector.broadcast %c8_i32_260 : i32 to vector<8x1xi32>
    %795 = arith.muli %727, %794 : vector<8x1xi32>
    %c0_i32_261 = arith.constant 0 : i32
    %796 = vector.broadcast %c0_i32_261 : i32 to vector<8x1xi32>
    %797 = arith.addi %796, %795 : vector<8x1xi32>
    %798 = arith.addi %797, %722 : vector<8x1xi32>
    %c-1_i32_262 = arith.constant -1 : i32
    %799 = vector.broadcast %c-1_i32_262 : i32 to vector<8x1xi32>
    %800 = arith.select %793, %798, %799 : vector<8x1xi1>, vector<8x1xi32>
    %801 = vector.broadcast %800 : vector<8x1xi32> to vector<8x128xi32>
    %802 = arith.cmpi eq, %151, %801 : vector<8x128xi32>
    %803 = arith.mulf %728, %719 : vector<8x1xf32>
    %804 = arith.mulf %803, %718 : vector<8x1xf32>
    %cst_263 = arith.constant 0.000000e+00 : f32
    %805 = vector.shape_cast %804 : vector<8x1xf32> to vector<8x1xf32>
    %806 = vector.broadcast %805 : vector<8x1xf32> to vector<8x128xf32>
    %807 = vector.broadcast %cst_263 : f32 to vector<8x128xf32>
    %808 = arith.select %802, %806, %807 : vector<8x128xi1>, vector<8x128xf32>
    %809 = arith.addf %782, %808 : vector<8x128xf32>
    %c0_i32_264 = arith.constant 0 : i32
    %810 = vector.broadcast %c0_i32_264 : i32 to vector<8x1xi32>
    %811 = arith.cmpi sge, %725, %810 : vector<8x1xi32>
    %c7_i32_265 = arith.constant 7 : i32
    %812 = vector.broadcast %c7_i32_265 : i32 to vector<8x1xi32>
    %813 = arith.cmpi sle, %725, %812 : vector<8x1xi32>
    %814 = arith.andi %811, %813 : vector<8x1xi1>
    %c0_i32_266 = arith.constant 0 : i32
    %815 = vector.broadcast %c0_i32_266 : i32 to vector<8x1xi32>
    %816 = arith.cmpi sge, %727, %815 : vector<8x1xi32>
    %817 = arith.andi %814, %816 : vector<8x1xi1>
    %c7_i32_267 = arith.constant 7 : i32
    %818 = vector.broadcast %c7_i32_267 : i32 to vector<8x1xi32>
    %819 = arith.cmpi sle, %727, %818 : vector<8x1xi32>
    %820 = arith.andi %817, %819 : vector<8x1xi1>
    %c8_i32_268 = arith.constant 8 : i32
    %821 = vector.broadcast %c8_i32_268 : i32 to vector<8x1xi32>
    %822 = arith.muli %727, %821 : vector<8x1xi32>
    %c0_i32_269 = arith.constant 0 : i32
    %823 = vector.broadcast %c0_i32_269 : i32 to vector<8x1xi32>
    %824 = arith.addi %823, %822 : vector<8x1xi32>
    %825 = arith.addi %824, %725 : vector<8x1xi32>
    %c-1_i32_270 = arith.constant -1 : i32
    %826 = vector.broadcast %c-1_i32_270 : i32 to vector<8x1xi32>
    %827 = arith.select %820, %825, %826 : vector<8x1xi1>, vector<8x1xi32>
    %828 = vector.broadcast %827 : vector<8x1xi32> to vector<8x128xi32>
    %829 = arith.cmpi eq, %151, %828 : vector<8x128xi32>
    %830 = arith.mulf %728, %719 : vector<8x1xf32>
    %831 = arith.mulf %830, %716 : vector<8x1xf32>
    %cst_271 = arith.constant 0.000000e+00 : f32
    %832 = vector.shape_cast %831 : vector<8x1xf32> to vector<8x1xf32>
    %833 = vector.broadcast %832 : vector<8x1xf32> to vector<8x128xf32>
    %834 = vector.broadcast %cst_271 : f32 to vector<8x128xf32>
    %835 = arith.select %829, %833, %834 : vector<8x128xi1>, vector<8x128xf32>
    %836 = arith.addf %809, %835 : vector<8x128xf32>
    %837 = vector.extract_strided_slice %143 {offsets = [0, 10], sizes = [8, 1], strides = [1, 1]} : vector<8x32xf32> to vector<8x1xf32>
    %838 = vector.extract_strided_slice %143 {offsets = [0, 11], sizes = [8, 1], strides = [1, 1]} : vector<8x32xf32> to vector<8x1xf32>
    %839 = arith.addf %157, %837 : vector<8x1xf32>
    %840 = arith.addf %161, %838 : vector<8x1xf32>
    %841 = math.floor %839 : vector<8x1xf32>
    %842 = math.floor %840 : vector<8x1xf32>
    %843 = arith.subf %839, %841 : vector<8x1xf32>
    %cst_272 = arith.constant 1.000000e+00 : f32
    %844 = vector.broadcast %cst_272 : f32 to vector<8x1xf32>
    %845 = arith.subf %844, %843 : vector<8x1xf32>
    %846 = arith.subf %840, %842 : vector<8x1xf32>
    %cst_273 = arith.constant 1.000000e+00 : f32
    %847 = vector.broadcast %cst_273 : f32 to vector<8x1xf32>
    %848 = arith.subf %847, %846 : vector<8x1xf32>
    %849 = arith.fptosi %841 : vector<8x1xf32> to vector<8x1xi32>
    %850 = arith.fptosi %842 : vector<8x1xf32> to vector<8x1xi32>
    %c1_i32_274 = arith.constant 1 : i32
    %851 = vector.broadcast %c1_i32_274 : i32 to vector<8x1xi32>
    %852 = arith.addi %849, %851 : vector<8x1xi32>
    %c1_i32_275 = arith.constant 1 : i32
    %853 = vector.broadcast %c1_i32_275 : i32 to vector<8x1xi32>
    %854 = arith.addi %850, %853 : vector<8x1xi32>
    %855 = vector.extract_strided_slice %708 {offsets = [0, 1], sizes = [8, 1], strides = [1, 1]} : vector<8x4xf32> to vector<8x1xf32>
    %c0_i32_276 = arith.constant 0 : i32
    %856 = vector.broadcast %c0_i32_276 : i32 to vector<8x1xi32>
    %857 = arith.cmpi sge, %849, %856 : vector<8x1xi32>
    %c7_i32_277 = arith.constant 7 : i32
    %858 = vector.broadcast %c7_i32_277 : i32 to vector<8x1xi32>
    %859 = arith.cmpi sle, %849, %858 : vector<8x1xi32>
    %860 = arith.andi %857, %859 : vector<8x1xi1>
    %c0_i32_278 = arith.constant 0 : i32
    %861 = vector.broadcast %c0_i32_278 : i32 to vector<8x1xi32>
    %862 = arith.cmpi sge, %850, %861 : vector<8x1xi32>
    %863 = arith.andi %860, %862 : vector<8x1xi1>
    %c7_i32_279 = arith.constant 7 : i32
    %864 = vector.broadcast %c7_i32_279 : i32 to vector<8x1xi32>
    %865 = arith.cmpi sle, %850, %864 : vector<8x1xi32>
    %866 = arith.andi %863, %865 : vector<8x1xi1>
    %c8_i32_280 = arith.constant 8 : i32
    %867 = vector.broadcast %c8_i32_280 : i32 to vector<8x1xi32>
    %868 = arith.muli %850, %867 : vector<8x1xi32>
    %c0_i32_281 = arith.constant 0 : i32
    %869 = vector.broadcast %c0_i32_281 : i32 to vector<8x1xi32>
    %870 = arith.addi %869, %868 : vector<8x1xi32>
    %871 = arith.addi %870, %849 : vector<8x1xi32>
    %c-1_i32_282 = arith.constant -1 : i32
    %872 = vector.broadcast %c-1_i32_282 : i32 to vector<8x1xi32>
    %873 = arith.select %866, %871, %872 : vector<8x1xi1>, vector<8x1xi32>
    %874 = vector.broadcast %873 : vector<8x1xi32> to vector<8x128xi32>
    %875 = arith.cmpi eq, %151, %874 : vector<8x128xi32>
    %876 = arith.mulf %855, %848 : vector<8x1xf32>
    %877 = arith.mulf %876, %845 : vector<8x1xf32>
    %cst_283 = arith.constant 0.000000e+00 : f32
    %878 = vector.shape_cast %877 : vector<8x1xf32> to vector<8x1xf32>
    %879 = vector.broadcast %878 : vector<8x1xf32> to vector<8x128xf32>
    %880 = vector.broadcast %cst_283 : f32 to vector<8x128xf32>
    %881 = arith.select %875, %879, %880 : vector<8x128xi1>, vector<8x128xf32>
    %882 = arith.addf %836, %881 : vector<8x128xf32>
    %c0_i32_284 = arith.constant 0 : i32
    %883 = vector.broadcast %c0_i32_284 : i32 to vector<8x1xi32>
    %884 = arith.cmpi sge, %852, %883 : vector<8x1xi32>
    %c7_i32_285 = arith.constant 7 : i32
    %885 = vector.broadcast %c7_i32_285 : i32 to vector<8x1xi32>
    %886 = arith.cmpi sle, %852, %885 : vector<8x1xi32>
    %887 = arith.andi %884, %886 : vector<8x1xi1>
    %c0_i32_286 = arith.constant 0 : i32
    %888 = vector.broadcast %c0_i32_286 : i32 to vector<8x1xi32>
    %889 = arith.cmpi sge, %850, %888 : vector<8x1xi32>
    %890 = arith.andi %887, %889 : vector<8x1xi1>
    %c7_i32_287 = arith.constant 7 : i32
    %891 = vector.broadcast %c7_i32_287 : i32 to vector<8x1xi32>
    %892 = arith.cmpi sle, %850, %891 : vector<8x1xi32>
    %893 = arith.andi %890, %892 : vector<8x1xi1>
    %c8_i32_288 = arith.constant 8 : i32
    %894 = vector.broadcast %c8_i32_288 : i32 to vector<8x1xi32>
    %895 = arith.muli %850, %894 : vector<8x1xi32>
    %c0_i32_289 = arith.constant 0 : i32
    %896 = vector.broadcast %c0_i32_289 : i32 to vector<8x1xi32>
    %897 = arith.addi %896, %895 : vector<8x1xi32>
    %898 = arith.addi %897, %852 : vector<8x1xi32>
    %c-1_i32_290 = arith.constant -1 : i32
    %899 = vector.broadcast %c-1_i32_290 : i32 to vector<8x1xi32>
    %900 = arith.select %893, %898, %899 : vector<8x1xi1>, vector<8x1xi32>
    %901 = vector.broadcast %900 : vector<8x1xi32> to vector<8x128xi32>
    %902 = arith.cmpi eq, %151, %901 : vector<8x128xi32>
    %903 = arith.mulf %855, %848 : vector<8x1xf32>
    %904 = arith.mulf %903, %843 : vector<8x1xf32>
    %cst_291 = arith.constant 0.000000e+00 : f32
    %905 = vector.shape_cast %904 : vector<8x1xf32> to vector<8x1xf32>
    %906 = vector.broadcast %905 : vector<8x1xf32> to vector<8x128xf32>
    %907 = vector.broadcast %cst_291 : f32 to vector<8x128xf32>
    %908 = arith.select %902, %906, %907 : vector<8x128xi1>, vector<8x128xf32>
    %909 = arith.addf %882, %908 : vector<8x128xf32>
    %c0_i32_292 = arith.constant 0 : i32
    %910 = vector.broadcast %c0_i32_292 : i32 to vector<8x1xi32>
    %911 = arith.cmpi sge, %849, %910 : vector<8x1xi32>
    %c7_i32_293 = arith.constant 7 : i32
    %912 = vector.broadcast %c7_i32_293 : i32 to vector<8x1xi32>
    %913 = arith.cmpi sle, %849, %912 : vector<8x1xi32>
    %914 = arith.andi %911, %913 : vector<8x1xi1>
    %c0_i32_294 = arith.constant 0 : i32
    %915 = vector.broadcast %c0_i32_294 : i32 to vector<8x1xi32>
    %916 = arith.cmpi sge, %854, %915 : vector<8x1xi32>
    %917 = arith.andi %914, %916 : vector<8x1xi1>
    %c7_i32_295 = arith.constant 7 : i32
    %918 = vector.broadcast %c7_i32_295 : i32 to vector<8x1xi32>
    %919 = arith.cmpi sle, %854, %918 : vector<8x1xi32>
    %920 = arith.andi %917, %919 : vector<8x1xi1>
    %c8_i32_296 = arith.constant 8 : i32
    %921 = vector.broadcast %c8_i32_296 : i32 to vector<8x1xi32>
    %922 = arith.muli %854, %921 : vector<8x1xi32>
    %c0_i32_297 = arith.constant 0 : i32
    %923 = vector.broadcast %c0_i32_297 : i32 to vector<8x1xi32>
    %924 = arith.addi %923, %922 : vector<8x1xi32>
    %925 = arith.addi %924, %849 : vector<8x1xi32>
    %c-1_i32_298 = arith.constant -1 : i32
    %926 = vector.broadcast %c-1_i32_298 : i32 to vector<8x1xi32>
    %927 = arith.select %920, %925, %926 : vector<8x1xi1>, vector<8x1xi32>
    %928 = vector.broadcast %927 : vector<8x1xi32> to vector<8x128xi32>
    %929 = arith.cmpi eq, %151, %928 : vector<8x128xi32>
    %930 = arith.mulf %855, %846 : vector<8x1xf32>
    %931 = arith.mulf %930, %845 : vector<8x1xf32>
    %cst_299 = arith.constant 0.000000e+00 : f32
    %932 = vector.shape_cast %931 : vector<8x1xf32> to vector<8x1xf32>
    %933 = vector.broadcast %932 : vector<8x1xf32> to vector<8x128xf32>
    %934 = vector.broadcast %cst_299 : f32 to vector<8x128xf32>
    %935 = arith.select %929, %933, %934 : vector<8x128xi1>, vector<8x128xf32>
    %936 = arith.addf %909, %935 : vector<8x128xf32>
    %c0_i32_300 = arith.constant 0 : i32
    %937 = vector.broadcast %c0_i32_300 : i32 to vector<8x1xi32>
    %938 = arith.cmpi sge, %852, %937 : vector<8x1xi32>
    %c7_i32_301 = arith.constant 7 : i32
    %939 = vector.broadcast %c7_i32_301 : i32 to vector<8x1xi32>
    %940 = arith.cmpi sle, %852, %939 : vector<8x1xi32>
    %941 = arith.andi %938, %940 : vector<8x1xi1>
    %c0_i32_302 = arith.constant 0 : i32
    %942 = vector.broadcast %c0_i32_302 : i32 to vector<8x1xi32>
    %943 = arith.cmpi sge, %854, %942 : vector<8x1xi32>
    %944 = arith.andi %941, %943 : vector<8x1xi1>
    %c7_i32_303 = arith.constant 7 : i32
    %945 = vector.broadcast %c7_i32_303 : i32 to vector<8x1xi32>
    %946 = arith.cmpi sle, %854, %945 : vector<8x1xi32>
    %947 = arith.andi %944, %946 : vector<8x1xi1>
    %c8_i32_304 = arith.constant 8 : i32
    %948 = vector.broadcast %c8_i32_304 : i32 to vector<8x1xi32>
    %949 = arith.muli %854, %948 : vector<8x1xi32>
    %c0_i32_305 = arith.constant 0 : i32
    %950 = vector.broadcast %c0_i32_305 : i32 to vector<8x1xi32>
    %951 = arith.addi %950, %949 : vector<8x1xi32>
    %952 = arith.addi %951, %852 : vector<8x1xi32>
    %c-1_i32_306 = arith.constant -1 : i32
    %953 = vector.broadcast %c-1_i32_306 : i32 to vector<8x1xi32>
    %954 = arith.select %947, %952, %953 : vector<8x1xi1>, vector<8x1xi32>
    %955 = vector.broadcast %954 : vector<8x1xi32> to vector<8x128xi32>
    %956 = arith.cmpi eq, %151, %955 : vector<8x128xi32>
    %957 = arith.mulf %855, %846 : vector<8x1xf32>
    %958 = arith.mulf %957, %843 : vector<8x1xf32>
    %cst_307 = arith.constant 0.000000e+00 : f32
    %959 = vector.shape_cast %958 : vector<8x1xf32> to vector<8x1xf32>
    %960 = vector.broadcast %959 : vector<8x1xf32> to vector<8x128xf32>
    %961 = vector.broadcast %cst_307 : f32 to vector<8x128xf32>
    %962 = arith.select %956, %960, %961 : vector<8x128xi1>, vector<8x128xf32>
    %963 = arith.addf %936, %962 : vector<8x128xf32>
    %964 = vector.extract_strided_slice %143 {offsets = [0, 12], sizes = [8, 1], strides = [1, 1]} : vector<8x32xf32> to vector<8x1xf32>
    %965 = vector.extract_strided_slice %143 {offsets = [0, 13], sizes = [8, 1], strides = [1, 1]} : vector<8x32xf32> to vector<8x1xf32>
    %966 = arith.addf %167, %964 : vector<8x1xf32>
    %967 = arith.addf %171, %965 : vector<8x1xf32>
    %968 = math.floor %966 : vector<8x1xf32>
    %969 = math.floor %967 : vector<8x1xf32>
    %970 = arith.subf %966, %968 : vector<8x1xf32>
    %cst_308 = arith.constant 1.000000e+00 : f32
    %971 = vector.broadcast %cst_308 : f32 to vector<8x1xf32>
    %972 = arith.subf %971, %970 : vector<8x1xf32>
    %973 = arith.subf %967, %969 : vector<8x1xf32>
    %cst_309 = arith.constant 1.000000e+00 : f32
    %974 = vector.broadcast %cst_309 : f32 to vector<8x1xf32>
    %975 = arith.subf %974, %973 : vector<8x1xf32>
    %976 = arith.fptosi %968 : vector<8x1xf32> to vector<8x1xi32>
    %977 = arith.fptosi %969 : vector<8x1xf32> to vector<8x1xi32>
    %c1_i32_310 = arith.constant 1 : i32
    %978 = vector.broadcast %c1_i32_310 : i32 to vector<8x1xi32>
    %979 = arith.addi %976, %978 : vector<8x1xi32>
    %c1_i32_311 = arith.constant 1 : i32
    %980 = vector.broadcast %c1_i32_311 : i32 to vector<8x1xi32>
    %981 = arith.addi %977, %980 : vector<8x1xi32>
    %982 = vector.extract_strided_slice %708 {offsets = [0, 2], sizes = [8, 1], strides = [1, 1]} : vector<8x4xf32> to vector<8x1xf32>
    %c0_i32_312 = arith.constant 0 : i32
    %983 = vector.broadcast %c0_i32_312 : i32 to vector<8x1xi32>
    %984 = arith.cmpi sge, %976, %983 : vector<8x1xi32>
    %c3_i32_313 = arith.constant 3 : i32
    %985 = vector.broadcast %c3_i32_313 : i32 to vector<8x1xi32>
    %986 = arith.cmpi sle, %976, %985 : vector<8x1xi32>
    %987 = arith.andi %984, %986 : vector<8x1xi1>
    %c0_i32_314 = arith.constant 0 : i32
    %988 = vector.broadcast %c0_i32_314 : i32 to vector<8x1xi32>
    %989 = arith.cmpi sge, %977, %988 : vector<8x1xi32>
    %990 = arith.andi %987, %989 : vector<8x1xi1>
    %c3_i32_315 = arith.constant 3 : i32
    %991 = vector.broadcast %c3_i32_315 : i32 to vector<8x1xi32>
    %992 = arith.cmpi sle, %977, %991 : vector<8x1xi32>
    %993 = arith.andi %990, %992 : vector<8x1xi1>
    %c4_i32_316 = arith.constant 4 : i32
    %994 = vector.broadcast %c4_i32_316 : i32 to vector<8x1xi32>
    %995 = arith.muli %977, %994 : vector<8x1xi32>
    %c64_i32_317 = arith.constant 64 : i32
    %996 = vector.broadcast %c64_i32_317 : i32 to vector<8x1xi32>
    %997 = arith.addi %996, %995 : vector<8x1xi32>
    %998 = arith.addi %997, %976 : vector<8x1xi32>
    %c-1_i32_318 = arith.constant -1 : i32
    %999 = vector.broadcast %c-1_i32_318 : i32 to vector<8x1xi32>
    %1000 = arith.select %993, %998, %999 : vector<8x1xi1>, vector<8x1xi32>
    %1001 = vector.broadcast %1000 : vector<8x1xi32> to vector<8x128xi32>
    %1002 = arith.cmpi eq, %151, %1001 : vector<8x128xi32>
    %1003 = arith.mulf %982, %975 : vector<8x1xf32>
    %1004 = arith.mulf %1003, %972 : vector<8x1xf32>
    %cst_319 = arith.constant 0.000000e+00 : f32
    %1005 = vector.shape_cast %1004 : vector<8x1xf32> to vector<8x1xf32>
    %1006 = vector.broadcast %1005 : vector<8x1xf32> to vector<8x128xf32>
    %1007 = vector.broadcast %cst_319 : f32 to vector<8x128xf32>
    %1008 = arith.select %1002, %1006, %1007 : vector<8x128xi1>, vector<8x128xf32>
    %1009 = arith.addf %963, %1008 : vector<8x128xf32>
    %c0_i32_320 = arith.constant 0 : i32
    %1010 = vector.broadcast %c0_i32_320 : i32 to vector<8x1xi32>
    %1011 = arith.cmpi sge, %979, %1010 : vector<8x1xi32>
    %c3_i32_321 = arith.constant 3 : i32
    %1012 = vector.broadcast %c3_i32_321 : i32 to vector<8x1xi32>
    %1013 = arith.cmpi sle, %979, %1012 : vector<8x1xi32>
    %1014 = arith.andi %1011, %1013 : vector<8x1xi1>
    %c0_i32_322 = arith.constant 0 : i32
    %1015 = vector.broadcast %c0_i32_322 : i32 to vector<8x1xi32>
    %1016 = arith.cmpi sge, %977, %1015 : vector<8x1xi32>
    %1017 = arith.andi %1014, %1016 : vector<8x1xi1>
    %c3_i32_323 = arith.constant 3 : i32
    %1018 = vector.broadcast %c3_i32_323 : i32 to vector<8x1xi32>
    %1019 = arith.cmpi sle, %977, %1018 : vector<8x1xi32>
    %1020 = arith.andi %1017, %1019 : vector<8x1xi1>
    %c4_i32_324 = arith.constant 4 : i32
    %1021 = vector.broadcast %c4_i32_324 : i32 to vector<8x1xi32>
    %1022 = arith.muli %977, %1021 : vector<8x1xi32>
    %c64_i32_325 = arith.constant 64 : i32
    %1023 = vector.broadcast %c64_i32_325 : i32 to vector<8x1xi32>
    %1024 = arith.addi %1023, %1022 : vector<8x1xi32>
    %1025 = arith.addi %1024, %979 : vector<8x1xi32>
    %c-1_i32_326 = arith.constant -1 : i32
    %1026 = vector.broadcast %c-1_i32_326 : i32 to vector<8x1xi32>
    %1027 = arith.select %1020, %1025, %1026 : vector<8x1xi1>, vector<8x1xi32>
    %1028 = vector.broadcast %1027 : vector<8x1xi32> to vector<8x128xi32>
    %1029 = arith.cmpi eq, %151, %1028 : vector<8x128xi32>
    %1030 = arith.mulf %982, %975 : vector<8x1xf32>
    %1031 = arith.mulf %1030, %970 : vector<8x1xf32>
    %cst_327 = arith.constant 0.000000e+00 : f32
    %1032 = vector.shape_cast %1031 : vector<8x1xf32> to vector<8x1xf32>
    %1033 = vector.broadcast %1032 : vector<8x1xf32> to vector<8x128xf32>
    %1034 = vector.broadcast %cst_327 : f32 to vector<8x128xf32>
    %1035 = arith.select %1029, %1033, %1034 : vector<8x128xi1>, vector<8x128xf32>
    %1036 = arith.addf %1009, %1035 : vector<8x128xf32>
    %c0_i32_328 = arith.constant 0 : i32
    %1037 = vector.broadcast %c0_i32_328 : i32 to vector<8x1xi32>
    %1038 = arith.cmpi sge, %976, %1037 : vector<8x1xi32>
    %c3_i32_329 = arith.constant 3 : i32
    %1039 = vector.broadcast %c3_i32_329 : i32 to vector<8x1xi32>
    %1040 = arith.cmpi sle, %976, %1039 : vector<8x1xi32>
    %1041 = arith.andi %1038, %1040 : vector<8x1xi1>
    %c0_i32_330 = arith.constant 0 : i32
    %1042 = vector.broadcast %c0_i32_330 : i32 to vector<8x1xi32>
    %1043 = arith.cmpi sge, %981, %1042 : vector<8x1xi32>
    %1044 = arith.andi %1041, %1043 : vector<8x1xi1>
    %c3_i32_331 = arith.constant 3 : i32
    %1045 = vector.broadcast %c3_i32_331 : i32 to vector<8x1xi32>
    %1046 = arith.cmpi sle, %981, %1045 : vector<8x1xi32>
    %1047 = arith.andi %1044, %1046 : vector<8x1xi1>
    %c4_i32_332 = arith.constant 4 : i32
    %1048 = vector.broadcast %c4_i32_332 : i32 to vector<8x1xi32>
    %1049 = arith.muli %981, %1048 : vector<8x1xi32>
    %c64_i32_333 = arith.constant 64 : i32
    %1050 = vector.broadcast %c64_i32_333 : i32 to vector<8x1xi32>
    %1051 = arith.addi %1050, %1049 : vector<8x1xi32>
    %1052 = arith.addi %1051, %976 : vector<8x1xi32>
    %c-1_i32_334 = arith.constant -1 : i32
    %1053 = vector.broadcast %c-1_i32_334 : i32 to vector<8x1xi32>
    %1054 = arith.select %1047, %1052, %1053 : vector<8x1xi1>, vector<8x1xi32>
    %1055 = vector.broadcast %1054 : vector<8x1xi32> to vector<8x128xi32>
    %1056 = arith.cmpi eq, %151, %1055 : vector<8x128xi32>
    %1057 = arith.mulf %982, %973 : vector<8x1xf32>
    %1058 = arith.mulf %1057, %972 : vector<8x1xf32>
    %cst_335 = arith.constant 0.000000e+00 : f32
    %1059 = vector.shape_cast %1058 : vector<8x1xf32> to vector<8x1xf32>
    %1060 = vector.broadcast %1059 : vector<8x1xf32> to vector<8x128xf32>
    %1061 = vector.broadcast %cst_335 : f32 to vector<8x128xf32>
    %1062 = arith.select %1056, %1060, %1061 : vector<8x128xi1>, vector<8x128xf32>
    %1063 = arith.addf %1036, %1062 : vector<8x128xf32>
    %c0_i32_336 = arith.constant 0 : i32
    %1064 = vector.broadcast %c0_i32_336 : i32 to vector<8x1xi32>
    %1065 = arith.cmpi sge, %979, %1064 : vector<8x1xi32>
    %c3_i32_337 = arith.constant 3 : i32
    %1066 = vector.broadcast %c3_i32_337 : i32 to vector<8x1xi32>
    %1067 = arith.cmpi sle, %979, %1066 : vector<8x1xi32>
    %1068 = arith.andi %1065, %1067 : vector<8x1xi1>
    %c0_i32_338 = arith.constant 0 : i32
    %1069 = vector.broadcast %c0_i32_338 : i32 to vector<8x1xi32>
    %1070 = arith.cmpi sge, %981, %1069 : vector<8x1xi32>
    %1071 = arith.andi %1068, %1070 : vector<8x1xi1>
    %c3_i32_339 = arith.constant 3 : i32
    %1072 = vector.broadcast %c3_i32_339 : i32 to vector<8x1xi32>
    %1073 = arith.cmpi sle, %981, %1072 : vector<8x1xi32>
    %1074 = arith.andi %1071, %1073 : vector<8x1xi1>
    %c4_i32_340 = arith.constant 4 : i32
    %1075 = vector.broadcast %c4_i32_340 : i32 to vector<8x1xi32>
    %1076 = arith.muli %981, %1075 : vector<8x1xi32>
    %c64_i32_341 = arith.constant 64 : i32
    %1077 = vector.broadcast %c64_i32_341 : i32 to vector<8x1xi32>
    %1078 = arith.addi %1077, %1076 : vector<8x1xi32>
    %1079 = arith.addi %1078, %979 : vector<8x1xi32>
    %c-1_i32_342 = arith.constant -1 : i32
    %1080 = vector.broadcast %c-1_i32_342 : i32 to vector<8x1xi32>
    %1081 = arith.select %1074, %1079, %1080 : vector<8x1xi1>, vector<8x1xi32>
    %1082 = vector.broadcast %1081 : vector<8x1xi32> to vector<8x128xi32>
    %1083 = arith.cmpi eq, %151, %1082 : vector<8x128xi32>
    %1084 = arith.mulf %982, %973 : vector<8x1xf32>
    %1085 = arith.mulf %1084, %970 : vector<8x1xf32>
    %cst_343 = arith.constant 0.000000e+00 : f32
    %1086 = vector.shape_cast %1085 : vector<8x1xf32> to vector<8x1xf32>
    %1087 = vector.broadcast %1086 : vector<8x1xf32> to vector<8x128xf32>
    %1088 = vector.broadcast %cst_343 : f32 to vector<8x128xf32>
    %1089 = arith.select %1083, %1087, %1088 : vector<8x128xi1>, vector<8x128xf32>
    %1090 = arith.addf %1063, %1089 : vector<8x128xf32>
    %1091 = vector.extract_strided_slice %143 {offsets = [0, 14], sizes = [8, 1], strides = [1, 1]} : vector<8x32xf32> to vector<8x1xf32>
    %1092 = vector.extract_strided_slice %143 {offsets = [0, 15], sizes = [8, 1], strides = [1, 1]} : vector<8x32xf32> to vector<8x1xf32>
    %1093 = arith.addf %167, %1091 : vector<8x1xf32>
    %1094 = arith.addf %171, %1092 : vector<8x1xf32>
    %1095 = math.floor %1093 : vector<8x1xf32>
    %1096 = math.floor %1094 : vector<8x1xf32>
    %1097 = arith.subf %1093, %1095 : vector<8x1xf32>
    %cst_344 = arith.constant 1.000000e+00 : f32
    %1098 = vector.broadcast %cst_344 : f32 to vector<8x1xf32>
    %1099 = arith.subf %1098, %1097 : vector<8x1xf32>
    %1100 = arith.subf %1094, %1096 : vector<8x1xf32>
    %cst_345 = arith.constant 1.000000e+00 : f32
    %1101 = vector.broadcast %cst_345 : f32 to vector<8x1xf32>
    %1102 = arith.subf %1101, %1100 : vector<8x1xf32>
    %1103 = arith.fptosi %1095 : vector<8x1xf32> to vector<8x1xi32>
    %1104 = arith.fptosi %1096 : vector<8x1xf32> to vector<8x1xi32>
    %c1_i32_346 = arith.constant 1 : i32
    %1105 = vector.broadcast %c1_i32_346 : i32 to vector<8x1xi32>
    %1106 = arith.addi %1103, %1105 : vector<8x1xi32>
    %c1_i32_347 = arith.constant 1 : i32
    %1107 = vector.broadcast %c1_i32_347 : i32 to vector<8x1xi32>
    %1108 = arith.addi %1104, %1107 : vector<8x1xi32>
    %1109 = vector.extract_strided_slice %708 {offsets = [0, 3], sizes = [8, 1], strides = [1, 1]} : vector<8x4xf32> to vector<8x1xf32>
    %c0_i32_348 = arith.constant 0 : i32
    %1110 = vector.broadcast %c0_i32_348 : i32 to vector<8x1xi32>
    %1111 = arith.cmpi sge, %1103, %1110 : vector<8x1xi32>
    %c3_i32_349 = arith.constant 3 : i32
    %1112 = vector.broadcast %c3_i32_349 : i32 to vector<8x1xi32>
    %1113 = arith.cmpi sle, %1103, %1112 : vector<8x1xi32>
    %1114 = arith.andi %1111, %1113 : vector<8x1xi1>
    %c0_i32_350 = arith.constant 0 : i32
    %1115 = vector.broadcast %c0_i32_350 : i32 to vector<8x1xi32>
    %1116 = arith.cmpi sge, %1104, %1115 : vector<8x1xi32>
    %1117 = arith.andi %1114, %1116 : vector<8x1xi1>
    %c3_i32_351 = arith.constant 3 : i32
    %1118 = vector.broadcast %c3_i32_351 : i32 to vector<8x1xi32>
    %1119 = arith.cmpi sle, %1104, %1118 : vector<8x1xi32>
    %1120 = arith.andi %1117, %1119 : vector<8x1xi1>
    %c4_i32_352 = arith.constant 4 : i32
    %1121 = vector.broadcast %c4_i32_352 : i32 to vector<8x1xi32>
    %1122 = arith.muli %1104, %1121 : vector<8x1xi32>
    %c64_i32_353 = arith.constant 64 : i32
    %1123 = vector.broadcast %c64_i32_353 : i32 to vector<8x1xi32>
    %1124 = arith.addi %1123, %1122 : vector<8x1xi32>
    %1125 = arith.addi %1124, %1103 : vector<8x1xi32>
    %c-1_i32_354 = arith.constant -1 : i32
    %1126 = vector.broadcast %c-1_i32_354 : i32 to vector<8x1xi32>
    %1127 = arith.select %1120, %1125, %1126 : vector<8x1xi1>, vector<8x1xi32>
    %1128 = vector.broadcast %1127 : vector<8x1xi32> to vector<8x128xi32>
    %1129 = arith.cmpi eq, %151, %1128 : vector<8x128xi32>
    %1130 = arith.mulf %1109, %1102 : vector<8x1xf32>
    %1131 = arith.mulf %1130, %1099 : vector<8x1xf32>
    %cst_355 = arith.constant 0.000000e+00 : f32
    %1132 = vector.shape_cast %1131 : vector<8x1xf32> to vector<8x1xf32>
    %1133 = vector.broadcast %1132 : vector<8x1xf32> to vector<8x128xf32>
    %1134 = vector.broadcast %cst_355 : f32 to vector<8x128xf32>
    %1135 = arith.select %1129, %1133, %1134 : vector<8x128xi1>, vector<8x128xf32>
    %1136 = arith.addf %1090, %1135 : vector<8x128xf32>
    %c0_i32_356 = arith.constant 0 : i32
    %1137 = vector.broadcast %c0_i32_356 : i32 to vector<8x1xi32>
    %1138 = arith.cmpi sge, %1106, %1137 : vector<8x1xi32>
    %c3_i32_357 = arith.constant 3 : i32
    %1139 = vector.broadcast %c3_i32_357 : i32 to vector<8x1xi32>
    %1140 = arith.cmpi sle, %1106, %1139 : vector<8x1xi32>
    %1141 = arith.andi %1138, %1140 : vector<8x1xi1>
    %c0_i32_358 = arith.constant 0 : i32
    %1142 = vector.broadcast %c0_i32_358 : i32 to vector<8x1xi32>
    %1143 = arith.cmpi sge, %1104, %1142 : vector<8x1xi32>
    %1144 = arith.andi %1141, %1143 : vector<8x1xi1>
    %c3_i32_359 = arith.constant 3 : i32
    %1145 = vector.broadcast %c3_i32_359 : i32 to vector<8x1xi32>
    %1146 = arith.cmpi sle, %1104, %1145 : vector<8x1xi32>
    %1147 = arith.andi %1144, %1146 : vector<8x1xi1>
    %c4_i32_360 = arith.constant 4 : i32
    %1148 = vector.broadcast %c4_i32_360 : i32 to vector<8x1xi32>
    %1149 = arith.muli %1104, %1148 : vector<8x1xi32>
    %c64_i32_361 = arith.constant 64 : i32
    %1150 = vector.broadcast %c64_i32_361 : i32 to vector<8x1xi32>
    %1151 = arith.addi %1150, %1149 : vector<8x1xi32>
    %1152 = arith.addi %1151, %1106 : vector<8x1xi32>
    %c-1_i32_362 = arith.constant -1 : i32
    %1153 = vector.broadcast %c-1_i32_362 : i32 to vector<8x1xi32>
    %1154 = arith.select %1147, %1152, %1153 : vector<8x1xi1>, vector<8x1xi32>
    %1155 = vector.broadcast %1154 : vector<8x1xi32> to vector<8x128xi32>
    %1156 = arith.cmpi eq, %151, %1155 : vector<8x128xi32>
    %1157 = arith.mulf %1109, %1102 : vector<8x1xf32>
    %1158 = arith.mulf %1157, %1097 : vector<8x1xf32>
    %cst_363 = arith.constant 0.000000e+00 : f32
    %1159 = vector.shape_cast %1158 : vector<8x1xf32> to vector<8x1xf32>
    %1160 = vector.broadcast %1159 : vector<8x1xf32> to vector<8x128xf32>
    %1161 = vector.broadcast %cst_363 : f32 to vector<8x128xf32>
    %1162 = arith.select %1156, %1160, %1161 : vector<8x128xi1>, vector<8x128xf32>
    %1163 = arith.addf %1136, %1162 : vector<8x128xf32>
    %c0_i32_364 = arith.constant 0 : i32
    %1164 = vector.broadcast %c0_i32_364 : i32 to vector<8x1xi32>
    %1165 = arith.cmpi sge, %1103, %1164 : vector<8x1xi32>
    %c3_i32_365 = arith.constant 3 : i32
    %1166 = vector.broadcast %c3_i32_365 : i32 to vector<8x1xi32>
    %1167 = arith.cmpi sle, %1103, %1166 : vector<8x1xi32>
    %1168 = arith.andi %1165, %1167 : vector<8x1xi1>
    %c0_i32_366 = arith.constant 0 : i32
    %1169 = vector.broadcast %c0_i32_366 : i32 to vector<8x1xi32>
    %1170 = arith.cmpi sge, %1108, %1169 : vector<8x1xi32>
    %1171 = arith.andi %1168, %1170 : vector<8x1xi1>
    %c3_i32_367 = arith.constant 3 : i32
    %1172 = vector.broadcast %c3_i32_367 : i32 to vector<8x1xi32>
    %1173 = arith.cmpi sle, %1108, %1172 : vector<8x1xi32>
    %1174 = arith.andi %1171, %1173 : vector<8x1xi1>
    %c4_i32_368 = arith.constant 4 : i32
    %1175 = vector.broadcast %c4_i32_368 : i32 to vector<8x1xi32>
    %1176 = arith.muli %1108, %1175 : vector<8x1xi32>
    %c64_i32_369 = arith.constant 64 : i32
    %1177 = vector.broadcast %c64_i32_369 : i32 to vector<8x1xi32>
    %1178 = arith.addi %1177, %1176 : vector<8x1xi32>
    %1179 = arith.addi %1178, %1103 : vector<8x1xi32>
    %c-1_i32_370 = arith.constant -1 : i32
    %1180 = vector.broadcast %c-1_i32_370 : i32 to vector<8x1xi32>
    %1181 = arith.select %1174, %1179, %1180 : vector<8x1xi1>, vector<8x1xi32>
    %1182 = vector.broadcast %1181 : vector<8x1xi32> to vector<8x128xi32>
    %1183 = arith.cmpi eq, %151, %1182 : vector<8x128xi32>
    %1184 = arith.mulf %1109, %1100 : vector<8x1xf32>
    %1185 = arith.mulf %1184, %1099 : vector<8x1xf32>
    %cst_371 = arith.constant 0.000000e+00 : f32
    %1186 = vector.shape_cast %1185 : vector<8x1xf32> to vector<8x1xf32>
    %1187 = vector.broadcast %1186 : vector<8x1xf32> to vector<8x128xf32>
    %1188 = vector.broadcast %cst_371 : f32 to vector<8x128xf32>
    %1189 = arith.select %1183, %1187, %1188 : vector<8x128xi1>, vector<8x128xf32>
    %1190 = arith.addf %1163, %1189 : vector<8x128xf32>
    %c0_i32_372 = arith.constant 0 : i32
    %1191 = vector.broadcast %c0_i32_372 : i32 to vector<8x1xi32>
    %1192 = arith.cmpi sge, %1106, %1191 : vector<8x1xi32>
    %c3_i32_373 = arith.constant 3 : i32
    %1193 = vector.broadcast %c3_i32_373 : i32 to vector<8x1xi32>
    %1194 = arith.cmpi sle, %1106, %1193 : vector<8x1xi32>
    %1195 = arith.andi %1192, %1194 : vector<8x1xi1>
    %c0_i32_374 = arith.constant 0 : i32
    %1196 = vector.broadcast %c0_i32_374 : i32 to vector<8x1xi32>
    %1197 = arith.cmpi sge, %1108, %1196 : vector<8x1xi32>
    %1198 = arith.andi %1195, %1197 : vector<8x1xi1>
    %c3_i32_375 = arith.constant 3 : i32
    %1199 = vector.broadcast %c3_i32_375 : i32 to vector<8x1xi32>
    %1200 = arith.cmpi sle, %1108, %1199 : vector<8x1xi32>
    %1201 = arith.andi %1198, %1200 : vector<8x1xi1>
    %c4_i32_376 = arith.constant 4 : i32
    %1202 = vector.broadcast %c4_i32_376 : i32 to vector<8x1xi32>
    %1203 = arith.muli %1108, %1202 : vector<8x1xi32>
    %c64_i32_377 = arith.constant 64 : i32
    %1204 = vector.broadcast %c64_i32_377 : i32 to vector<8x1xi32>
    %1205 = arith.addi %1204, %1203 : vector<8x1xi32>
    %1206 = arith.addi %1205, %1106 : vector<8x1xi32>
    %c-1_i32_378 = arith.constant -1 : i32
    %1207 = vector.broadcast %c-1_i32_378 : i32 to vector<8x1xi32>
    %1208 = arith.select %1201, %1206, %1207 : vector<8x1xi1>, vector<8x1xi32>
    %1209 = vector.broadcast %1208 : vector<8x1xi32> to vector<8x128xi32>
    %1210 = arith.cmpi eq, %151, %1209 : vector<8x128xi32>
    %1211 = arith.mulf %1109, %1100 : vector<8x1xf32>
    %1212 = arith.mulf %1211, %1097 : vector<8x1xf32>
    %cst_379 = arith.constant 0.000000e+00 : f32
    %1213 = vector.shape_cast %1212 : vector<8x1xf32> to vector<8x1xf32>
    %1214 = vector.broadcast %1213 : vector<8x1xf32> to vector<8x128xf32>
    %1215 = vector.broadcast %cst_379 : f32 to vector<8x128xf32>
    %1216 = arith.select %1210, %1214, %1215 : vector<8x128xi1>, vector<8x128xf32>
    %1217 = arith.addf %1190, %1216 : vector<8x128xf32>
    %1218 = vector.extract_strided_slice %138 {offsets = [0, 8], sizes = [128, 8], strides = [1, 1]} : vector<128x32xf32> to vector<128x8xf32>
    %cst_380 = arith.constant dense<0.000000e+00> : vector<8x8xf32>
    %1219 = tpu.matmul %1217, %1218, %cst_380 {dimension_numbers = #tpu.dot_dimension_numbers<[1], [0], [0], [1], [0, 0, 1, 1], [], []>} : vector<8x128xf32>, vector<128x8xf32>, vector<8x8xf32> -> vector<8x8xf32>
    %c8_381 = arith.constant 8 : index
    %c0_382 = arith.constant 0 : index
    %1220 = vector.load %arg21[%c8_381, %c0_382] : memref<32x32xf32, #tpu.memory_space<vmem>>, vector<8x32xf32>
    %cst_383 = arith.constant dense<0.000000e+00> : vector<8x32xf32>
    %1221 = tpu.matmul %1219, %1220, %cst_383 {dimension_numbers = #tpu.dot_dimension_numbers<[1], [0], [0], [1], [0, 0, 1, 1], [], []>} : vector<8x8xf32>, vector<8x32xf32>, vector<8x32xf32> -> vector<8x32xf32>
    %1222 = arith.addf %697, %1221 : vector<8x32xf32>
    %1223 = vector.extract_strided_slice %148 {offsets = [0, 8], sizes = [8, 4], strides = [1, 1]} : vector<8x16xf32> to vector<8x4xf32>
    %cst_384 = arith.constant dense<0xFF800000> : vector<8xf32>
    %1224 = vector.multi_reduction <maximumf>, %1223, %cst_384 [1] : vector<8x4xf32> to vector<8xf32>
    %1225 = vector.shape_cast %1224 : vector<8xf32> to vector<8x1xf32>
    %1226 = vector.broadcast %1225 : vector<8x1xf32> to vector<8x4xf32>
    %1227 = arith.subf %1223, %1226 : vector<8x4xf32>
    %1228 = math.exp %1227 : vector<8x4xf32>
    %cst_385 = arith.constant dense<0.000000e+00> : vector<8xf32>
    %1229 = vector.multi_reduction <add>, %1228, %cst_385 [1] : vector<8x4xf32> to vector<8xf32>
    %1230 = vector.shape_cast %1229 : vector<8xf32> to vector<8x1xf32>
    %1231 = tpu.reciprocal %1230 {approx = true} : vector<8x1xf32> -> vector<8x1xf32>
    %1232 = vector.broadcast %1231 : vector<8x1xf32> to vector<8x4xf32>
    %1233 = arith.mulf %1228, %1232 : vector<8x4xf32>
    %cst_386 = arith.constant 0.000000e+00 : f32
    %1234 = vector.broadcast %cst_386 : f32 to vector<8x128xf32>
    %1235 = vector.extract_strided_slice %143 {offsets = [0, 16], sizes = [8, 1], strides = [1, 1]} : vector<8x32xf32> to vector<8x1xf32>
    %1236 = vector.extract_strided_slice %143 {offsets = [0, 17], sizes = [8, 1], strides = [1, 1]} : vector<8x32xf32> to vector<8x1xf32>
    %1237 = arith.addf %157, %1235 : vector<8x1xf32>
    %1238 = arith.addf %161, %1236 : vector<8x1xf32>
    %1239 = math.floor %1237 : vector<8x1xf32>
    %1240 = math.floor %1238 : vector<8x1xf32>
    %1241 = arith.subf %1237, %1239 : vector<8x1xf32>
    %cst_387 = arith.constant 1.000000e+00 : f32
    %1242 = vector.broadcast %cst_387 : f32 to vector<8x1xf32>
    %1243 = arith.subf %1242, %1241 : vector<8x1xf32>
    %1244 = arith.subf %1238, %1240 : vector<8x1xf32>
    %cst_388 = arith.constant 1.000000e+00 : f32
    %1245 = vector.broadcast %cst_388 : f32 to vector<8x1xf32>
    %1246 = arith.subf %1245, %1244 : vector<8x1xf32>
    %1247 = arith.fptosi %1239 : vector<8x1xf32> to vector<8x1xi32>
    %1248 = arith.fptosi %1240 : vector<8x1xf32> to vector<8x1xi32>
    %c1_i32_389 = arith.constant 1 : i32
    %1249 = vector.broadcast %c1_i32_389 : i32 to vector<8x1xi32>
    %1250 = arith.addi %1247, %1249 : vector<8x1xi32>
    %c1_i32_390 = arith.constant 1 : i32
    %1251 = vector.broadcast %c1_i32_390 : i32 to vector<8x1xi32>
    %1252 = arith.addi %1248, %1251 : vector<8x1xi32>
    %1253 = vector.extract_strided_slice %1233 {offsets = [0, 0], sizes = [8, 1], strides = [1, 1]} : vector<8x4xf32> to vector<8x1xf32>
    %c0_i32_391 = arith.constant 0 : i32
    %1254 = vector.broadcast %c0_i32_391 : i32 to vector<8x1xi32>
    %1255 = arith.cmpi sge, %1247, %1254 : vector<8x1xi32>
    %c7_i32_392 = arith.constant 7 : i32
    %1256 = vector.broadcast %c7_i32_392 : i32 to vector<8x1xi32>
    %1257 = arith.cmpi sle, %1247, %1256 : vector<8x1xi32>
    %1258 = arith.andi %1255, %1257 : vector<8x1xi1>
    %c0_i32_393 = arith.constant 0 : i32
    %1259 = vector.broadcast %c0_i32_393 : i32 to vector<8x1xi32>
    %1260 = arith.cmpi sge, %1248, %1259 : vector<8x1xi32>
    %1261 = arith.andi %1258, %1260 : vector<8x1xi1>
    %c7_i32_394 = arith.constant 7 : i32
    %1262 = vector.broadcast %c7_i32_394 : i32 to vector<8x1xi32>
    %1263 = arith.cmpi sle, %1248, %1262 : vector<8x1xi32>
    %1264 = arith.andi %1261, %1263 : vector<8x1xi1>
    %c8_i32_395 = arith.constant 8 : i32
    %1265 = vector.broadcast %c8_i32_395 : i32 to vector<8x1xi32>
    %1266 = arith.muli %1248, %1265 : vector<8x1xi32>
    %c0_i32_396 = arith.constant 0 : i32
    %1267 = vector.broadcast %c0_i32_396 : i32 to vector<8x1xi32>
    %1268 = arith.addi %1267, %1266 : vector<8x1xi32>
    %1269 = arith.addi %1268, %1247 : vector<8x1xi32>
    %c-1_i32_397 = arith.constant -1 : i32
    %1270 = vector.broadcast %c-1_i32_397 : i32 to vector<8x1xi32>
    %1271 = arith.select %1264, %1269, %1270 : vector<8x1xi1>, vector<8x1xi32>
    %1272 = vector.broadcast %1271 : vector<8x1xi32> to vector<8x128xi32>
    %1273 = arith.cmpi eq, %151, %1272 : vector<8x128xi32>
    %1274 = arith.mulf %1253, %1246 : vector<8x1xf32>
    %1275 = arith.mulf %1274, %1243 : vector<8x1xf32>
    %cst_398 = arith.constant 0.000000e+00 : f32
    %1276 = vector.shape_cast %1275 : vector<8x1xf32> to vector<8x1xf32>
    %1277 = vector.broadcast %1276 : vector<8x1xf32> to vector<8x128xf32>
    %1278 = vector.broadcast %cst_398 : f32 to vector<8x128xf32>
    %1279 = arith.select %1273, %1277, %1278 : vector<8x128xi1>, vector<8x128xf32>
    %1280 = arith.addf %1234, %1279 : vector<8x128xf32>
    %c0_i32_399 = arith.constant 0 : i32
    %1281 = vector.broadcast %c0_i32_399 : i32 to vector<8x1xi32>
    %1282 = arith.cmpi sge, %1250, %1281 : vector<8x1xi32>
    %c7_i32_400 = arith.constant 7 : i32
    %1283 = vector.broadcast %c7_i32_400 : i32 to vector<8x1xi32>
    %1284 = arith.cmpi sle, %1250, %1283 : vector<8x1xi32>
    %1285 = arith.andi %1282, %1284 : vector<8x1xi1>
    %c0_i32_401 = arith.constant 0 : i32
    %1286 = vector.broadcast %c0_i32_401 : i32 to vector<8x1xi32>
    %1287 = arith.cmpi sge, %1248, %1286 : vector<8x1xi32>
    %1288 = arith.andi %1285, %1287 : vector<8x1xi1>
    %c7_i32_402 = arith.constant 7 : i32
    %1289 = vector.broadcast %c7_i32_402 : i32 to vector<8x1xi32>
    %1290 = arith.cmpi sle, %1248, %1289 : vector<8x1xi32>
    %1291 = arith.andi %1288, %1290 : vector<8x1xi1>
    %c8_i32_403 = arith.constant 8 : i32
    %1292 = vector.broadcast %c8_i32_403 : i32 to vector<8x1xi32>
    %1293 = arith.muli %1248, %1292 : vector<8x1xi32>
    %c0_i32_404 = arith.constant 0 : i32
    %1294 = vector.broadcast %c0_i32_404 : i32 to vector<8x1xi32>
    %1295 = arith.addi %1294, %1293 : vector<8x1xi32>
    %1296 = arith.addi %1295, %1250 : vector<8x1xi32>
    %c-1_i32_405 = arith.constant -1 : i32
    %1297 = vector.broadcast %c-1_i32_405 : i32 to vector<8x1xi32>
    %1298 = arith.select %1291, %1296, %1297 : vector<8x1xi1>, vector<8x1xi32>
    %1299 = vector.broadcast %1298 : vector<8x1xi32> to vector<8x128xi32>
    %1300 = arith.cmpi eq, %151, %1299 : vector<8x128xi32>
    %1301 = arith.mulf %1253, %1246 : vector<8x1xf32>
    %1302 = arith.mulf %1301, %1241 : vector<8x1xf32>
    %cst_406 = arith.constant 0.000000e+00 : f32
    %1303 = vector.shape_cast %1302 : vector<8x1xf32> to vector<8x1xf32>
    %1304 = vector.broadcast %1303 : vector<8x1xf32> to vector<8x128xf32>
    %1305 = vector.broadcast %cst_406 : f32 to vector<8x128xf32>
    %1306 = arith.select %1300, %1304, %1305 : vector<8x128xi1>, vector<8x128xf32>
    %1307 = arith.addf %1280, %1306 : vector<8x128xf32>
    %c0_i32_407 = arith.constant 0 : i32
    %1308 = vector.broadcast %c0_i32_407 : i32 to vector<8x1xi32>
    %1309 = arith.cmpi sge, %1247, %1308 : vector<8x1xi32>
    %c7_i32_408 = arith.constant 7 : i32
    %1310 = vector.broadcast %c7_i32_408 : i32 to vector<8x1xi32>
    %1311 = arith.cmpi sle, %1247, %1310 : vector<8x1xi32>
    %1312 = arith.andi %1309, %1311 : vector<8x1xi1>
    %c0_i32_409 = arith.constant 0 : i32
    %1313 = vector.broadcast %c0_i32_409 : i32 to vector<8x1xi32>
    %1314 = arith.cmpi sge, %1252, %1313 : vector<8x1xi32>
    %1315 = arith.andi %1312, %1314 : vector<8x1xi1>
    %c7_i32_410 = arith.constant 7 : i32
    %1316 = vector.broadcast %c7_i32_410 : i32 to vector<8x1xi32>
    %1317 = arith.cmpi sle, %1252, %1316 : vector<8x1xi32>
    %1318 = arith.andi %1315, %1317 : vector<8x1xi1>
    %c8_i32_411 = arith.constant 8 : i32
    %1319 = vector.broadcast %c8_i32_411 : i32 to vector<8x1xi32>
    %1320 = arith.muli %1252, %1319 : vector<8x1xi32>
    %c0_i32_412 = arith.constant 0 : i32
    %1321 = vector.broadcast %c0_i32_412 : i32 to vector<8x1xi32>
    %1322 = arith.addi %1321, %1320 : vector<8x1xi32>
    %1323 = arith.addi %1322, %1247 : vector<8x1xi32>
    %c-1_i32_413 = arith.constant -1 : i32
    %1324 = vector.broadcast %c-1_i32_413 : i32 to vector<8x1xi32>
    %1325 = arith.select %1318, %1323, %1324 : vector<8x1xi1>, vector<8x1xi32>
    %1326 = vector.broadcast %1325 : vector<8x1xi32> to vector<8x128xi32>
    %1327 = arith.cmpi eq, %151, %1326 : vector<8x128xi32>
    %1328 = arith.mulf %1253, %1244 : vector<8x1xf32>
    %1329 = arith.mulf %1328, %1243 : vector<8x1xf32>
    %cst_414 = arith.constant 0.000000e+00 : f32
    %1330 = vector.shape_cast %1329 : vector<8x1xf32> to vector<8x1xf32>
    %1331 = vector.broadcast %1330 : vector<8x1xf32> to vector<8x128xf32>
    %1332 = vector.broadcast %cst_414 : f32 to vector<8x128xf32>
    %1333 = arith.select %1327, %1331, %1332 : vector<8x128xi1>, vector<8x128xf32>
    %1334 = arith.addf %1307, %1333 : vector<8x128xf32>
    %c0_i32_415 = arith.constant 0 : i32
    %1335 = vector.broadcast %c0_i32_415 : i32 to vector<8x1xi32>
    %1336 = arith.cmpi sge, %1250, %1335 : vector<8x1xi32>
    %c7_i32_416 = arith.constant 7 : i32
    %1337 = vector.broadcast %c7_i32_416 : i32 to vector<8x1xi32>
    %1338 = arith.cmpi sle, %1250, %1337 : vector<8x1xi32>
    %1339 = arith.andi %1336, %1338 : vector<8x1xi1>
    %c0_i32_417 = arith.constant 0 : i32
    %1340 = vector.broadcast %c0_i32_417 : i32 to vector<8x1xi32>
    %1341 = arith.cmpi sge, %1252, %1340 : vector<8x1xi32>
    %1342 = arith.andi %1339, %1341 : vector<8x1xi1>
    %c7_i32_418 = arith.constant 7 : i32
    %1343 = vector.broadcast %c7_i32_418 : i32 to vector<8x1xi32>
    %1344 = arith.cmpi sle, %1252, %1343 : vector<8x1xi32>
    %1345 = arith.andi %1342, %1344 : vector<8x1xi1>
    %c8_i32_419 = arith.constant 8 : i32
    %1346 = vector.broadcast %c8_i32_419 : i32 to vector<8x1xi32>
    %1347 = arith.muli %1252, %1346 : vector<8x1xi32>
    %c0_i32_420 = arith.constant 0 : i32
    %1348 = vector.broadcast %c0_i32_420 : i32 to vector<8x1xi32>
    %1349 = arith.addi %1348, %1347 : vector<8x1xi32>
    %1350 = arith.addi %1349, %1250 : vector<8x1xi32>
    %c-1_i32_421 = arith.constant -1 : i32
    %1351 = vector.broadcast %c-1_i32_421 : i32 to vector<8x1xi32>
    %1352 = arith.select %1345, %1350, %1351 : vector<8x1xi1>, vector<8x1xi32>
    %1353 = vector.broadcast %1352 : vector<8x1xi32> to vector<8x128xi32>
    %1354 = arith.cmpi eq, %151, %1353 : vector<8x128xi32>
    %1355 = arith.mulf %1253, %1244 : vector<8x1xf32>
    %1356 = arith.mulf %1355, %1241 : vector<8x1xf32>
    %cst_422 = arith.constant 0.000000e+00 : f32
    %1357 = vector.shape_cast %1356 : vector<8x1xf32> to vector<8x1xf32>
    %1358 = vector.broadcast %1357 : vector<8x1xf32> to vector<8x128xf32>
    %1359 = vector.broadcast %cst_422 : f32 to vector<8x128xf32>
    %1360 = arith.select %1354, %1358, %1359 : vector<8x128xi1>, vector<8x128xf32>
    %1361 = arith.addf %1334, %1360 : vector<8x128xf32>
    %1362 = vector.extract_strided_slice %143 {offsets = [0, 18], sizes = [8, 1], strides = [1, 1]} : vector<8x32xf32> to vector<8x1xf32>
    %1363 = vector.extract_strided_slice %143 {offsets = [0, 19], sizes = [8, 1], strides = [1, 1]} : vector<8x32xf32> to vector<8x1xf32>
    %1364 = arith.addf %157, %1362 : vector<8x1xf32>
    %1365 = arith.addf %161, %1363 : vector<8x1xf32>
    %1366 = math.floor %1364 : vector<8x1xf32>
    %1367 = math.floor %1365 : vector<8x1xf32>
    %1368 = arith.subf %1364, %1366 : vector<8x1xf32>
    %cst_423 = arith.constant 1.000000e+00 : f32
    %1369 = vector.broadcast %cst_423 : f32 to vector<8x1xf32>
    %1370 = arith.subf %1369, %1368 : vector<8x1xf32>
    %1371 = arith.subf %1365, %1367 : vector<8x1xf32>
    %cst_424 = arith.constant 1.000000e+00 : f32
    %1372 = vector.broadcast %cst_424 : f32 to vector<8x1xf32>
    %1373 = arith.subf %1372, %1371 : vector<8x1xf32>
    %1374 = arith.fptosi %1366 : vector<8x1xf32> to vector<8x1xi32>
    %1375 = arith.fptosi %1367 : vector<8x1xf32> to vector<8x1xi32>
    %c1_i32_425 = arith.constant 1 : i32
    %1376 = vector.broadcast %c1_i32_425 : i32 to vector<8x1xi32>
    %1377 = arith.addi %1374, %1376 : vector<8x1xi32>
    %c1_i32_426 = arith.constant 1 : i32
    %1378 = vector.broadcast %c1_i32_426 : i32 to vector<8x1xi32>
    %1379 = arith.addi %1375, %1378 : vector<8x1xi32>
    %1380 = vector.extract_strided_slice %1233 {offsets = [0, 1], sizes = [8, 1], strides = [1, 1]} : vector<8x4xf32> to vector<8x1xf32>
    %c0_i32_427 = arith.constant 0 : i32
    %1381 = vector.broadcast %c0_i32_427 : i32 to vector<8x1xi32>
    %1382 = arith.cmpi sge, %1374, %1381 : vector<8x1xi32>
    %c7_i32_428 = arith.constant 7 : i32
    %1383 = vector.broadcast %c7_i32_428 : i32 to vector<8x1xi32>
    %1384 = arith.cmpi sle, %1374, %1383 : vector<8x1xi32>
    %1385 = arith.andi %1382, %1384 : vector<8x1xi1>
    %c0_i32_429 = arith.constant 0 : i32
    %1386 = vector.broadcast %c0_i32_429 : i32 to vector<8x1xi32>
    %1387 = arith.cmpi sge, %1375, %1386 : vector<8x1xi32>
    %1388 = arith.andi %1385, %1387 : vector<8x1xi1>
    %c7_i32_430 = arith.constant 7 : i32
    %1389 = vector.broadcast %c7_i32_430 : i32 to vector<8x1xi32>
    %1390 = arith.cmpi sle, %1375, %1389 : vector<8x1xi32>
    %1391 = arith.andi %1388, %1390 : vector<8x1xi1>
    %c8_i32_431 = arith.constant 8 : i32
    %1392 = vector.broadcast %c8_i32_431 : i32 to vector<8x1xi32>
    %1393 = arith.muli %1375, %1392 : vector<8x1xi32>
    %c0_i32_432 = arith.constant 0 : i32
    %1394 = vector.broadcast %c0_i32_432 : i32 to vector<8x1xi32>
    %1395 = arith.addi %1394, %1393 : vector<8x1xi32>
    %1396 = arith.addi %1395, %1374 : vector<8x1xi32>
    %c-1_i32_433 = arith.constant -1 : i32
    %1397 = vector.broadcast %c-1_i32_433 : i32 to vector<8x1xi32>
    %1398 = arith.select %1391, %1396, %1397 : vector<8x1xi1>, vector<8x1xi32>
    %1399 = vector.broadcast %1398 : vector<8x1xi32> to vector<8x128xi32>
    %1400 = arith.cmpi eq, %151, %1399 : vector<8x128xi32>
    %1401 = arith.mulf %1380, %1373 : vector<8x1xf32>
    %1402 = arith.mulf %1401, %1370 : vector<8x1xf32>
    %cst_434 = arith.constant 0.000000e+00 : f32
    %1403 = vector.shape_cast %1402 : vector<8x1xf32> to vector<8x1xf32>
    %1404 = vector.broadcast %1403 : vector<8x1xf32> to vector<8x128xf32>
    %1405 = vector.broadcast %cst_434 : f32 to vector<8x128xf32>
    %1406 = arith.select %1400, %1404, %1405 : vector<8x128xi1>, vector<8x128xf32>
    %1407 = arith.addf %1361, %1406 : vector<8x128xf32>
    %c0_i32_435 = arith.constant 0 : i32
    %1408 = vector.broadcast %c0_i32_435 : i32 to vector<8x1xi32>
    %1409 = arith.cmpi sge, %1377, %1408 : vector<8x1xi32>
    %c7_i32_436 = arith.constant 7 : i32
    %1410 = vector.broadcast %c7_i32_436 : i32 to vector<8x1xi32>
    %1411 = arith.cmpi sle, %1377, %1410 : vector<8x1xi32>
    %1412 = arith.andi %1409, %1411 : vector<8x1xi1>
    %c0_i32_437 = arith.constant 0 : i32
    %1413 = vector.broadcast %c0_i32_437 : i32 to vector<8x1xi32>
    %1414 = arith.cmpi sge, %1375, %1413 : vector<8x1xi32>
    %1415 = arith.andi %1412, %1414 : vector<8x1xi1>
    %c7_i32_438 = arith.constant 7 : i32
    %1416 = vector.broadcast %c7_i32_438 : i32 to vector<8x1xi32>
    %1417 = arith.cmpi sle, %1375, %1416 : vector<8x1xi32>
    %1418 = arith.andi %1415, %1417 : vector<8x1xi1>
    %c8_i32_439 = arith.constant 8 : i32
    %1419 = vector.broadcast %c8_i32_439 : i32 to vector<8x1xi32>
    %1420 = arith.muli %1375, %1419 : vector<8x1xi32>
    %c0_i32_440 = arith.constant 0 : i32
    %1421 = vector.broadcast %c0_i32_440 : i32 to vector<8x1xi32>
    %1422 = arith.addi %1421, %1420 : vector<8x1xi32>
    %1423 = arith.addi %1422, %1377 : vector<8x1xi32>
    %c-1_i32_441 = arith.constant -1 : i32
    %1424 = vector.broadcast %c-1_i32_441 : i32 to vector<8x1xi32>
    %1425 = arith.select %1418, %1423, %1424 : vector<8x1xi1>, vector<8x1xi32>
    %1426 = vector.broadcast %1425 : vector<8x1xi32> to vector<8x128xi32>
    %1427 = arith.cmpi eq, %151, %1426 : vector<8x128xi32>
    %1428 = arith.mulf %1380, %1373 : vector<8x1xf32>
    %1429 = arith.mulf %1428, %1368 : vector<8x1xf32>
    %cst_442 = arith.constant 0.000000e+00 : f32
    %1430 = vector.shape_cast %1429 : vector<8x1xf32> to vector<8x1xf32>
    %1431 = vector.broadcast %1430 : vector<8x1xf32> to vector<8x128xf32>
    %1432 = vector.broadcast %cst_442 : f32 to vector<8x128xf32>
    %1433 = arith.select %1427, %1431, %1432 : vector<8x128xi1>, vector<8x128xf32>
    %1434 = arith.addf %1407, %1433 : vector<8x128xf32>
    %c0_i32_443 = arith.constant 0 : i32
    %1435 = vector.broadcast %c0_i32_443 : i32 to vector<8x1xi32>
    %1436 = arith.cmpi sge, %1374, %1435 : vector<8x1xi32>
    %c7_i32_444 = arith.constant 7 : i32
    %1437 = vector.broadcast %c7_i32_444 : i32 to vector<8x1xi32>
    %1438 = arith.cmpi sle, %1374, %1437 : vector<8x1xi32>
    %1439 = arith.andi %1436, %1438 : vector<8x1xi1>
    %c0_i32_445 = arith.constant 0 : i32
    %1440 = vector.broadcast %c0_i32_445 : i32 to vector<8x1xi32>
    %1441 = arith.cmpi sge, %1379, %1440 : vector<8x1xi32>
    %1442 = arith.andi %1439, %1441 : vector<8x1xi1>
    %c7_i32_446 = arith.constant 7 : i32
    %1443 = vector.broadcast %c7_i32_446 : i32 to vector<8x1xi32>
    %1444 = arith.cmpi sle, %1379, %1443 : vector<8x1xi32>
    %1445 = arith.andi %1442, %1444 : vector<8x1xi1>
    %c8_i32_447 = arith.constant 8 : i32
    %1446 = vector.broadcast %c8_i32_447 : i32 to vector<8x1xi32>
    %1447 = arith.muli %1379, %1446 : vector<8x1xi32>
    %c0_i32_448 = arith.constant 0 : i32
    %1448 = vector.broadcast %c0_i32_448 : i32 to vector<8x1xi32>
    %1449 = arith.addi %1448, %1447 : vector<8x1xi32>
    %1450 = arith.addi %1449, %1374 : vector<8x1xi32>
    %c-1_i32_449 = arith.constant -1 : i32
    %1451 = vector.broadcast %c-1_i32_449 : i32 to vector<8x1xi32>
    %1452 = arith.select %1445, %1450, %1451 : vector<8x1xi1>, vector<8x1xi32>
    %1453 = vector.broadcast %1452 : vector<8x1xi32> to vector<8x128xi32>
    %1454 = arith.cmpi eq, %151, %1453 : vector<8x128xi32>
    %1455 = arith.mulf %1380, %1371 : vector<8x1xf32>
    %1456 = arith.mulf %1455, %1370 : vector<8x1xf32>
    %cst_450 = arith.constant 0.000000e+00 : f32
    %1457 = vector.shape_cast %1456 : vector<8x1xf32> to vector<8x1xf32>
    %1458 = vector.broadcast %1457 : vector<8x1xf32> to vector<8x128xf32>
    %1459 = vector.broadcast %cst_450 : f32 to vector<8x128xf32>
    %1460 = arith.select %1454, %1458, %1459 : vector<8x128xi1>, vector<8x128xf32>
    %1461 = arith.addf %1434, %1460 : vector<8x128xf32>
    %c0_i32_451 = arith.constant 0 : i32
    %1462 = vector.broadcast %c0_i32_451 : i32 to vector<8x1xi32>
    %1463 = arith.cmpi sge, %1377, %1462 : vector<8x1xi32>
    %c7_i32_452 = arith.constant 7 : i32
    %1464 = vector.broadcast %c7_i32_452 : i32 to vector<8x1xi32>
    %1465 = arith.cmpi sle, %1377, %1464 : vector<8x1xi32>
    %1466 = arith.andi %1463, %1465 : vector<8x1xi1>
    %c0_i32_453 = arith.constant 0 : i32
    %1467 = vector.broadcast %c0_i32_453 : i32 to vector<8x1xi32>
    %1468 = arith.cmpi sge, %1379, %1467 : vector<8x1xi32>
    %1469 = arith.andi %1466, %1468 : vector<8x1xi1>
    %c7_i32_454 = arith.constant 7 : i32
    %1470 = vector.broadcast %c7_i32_454 : i32 to vector<8x1xi32>
    %1471 = arith.cmpi sle, %1379, %1470 : vector<8x1xi32>
    %1472 = arith.andi %1469, %1471 : vector<8x1xi1>
    %c8_i32_455 = arith.constant 8 : i32
    %1473 = vector.broadcast %c8_i32_455 : i32 to vector<8x1xi32>
    %1474 = arith.muli %1379, %1473 : vector<8x1xi32>
    %c0_i32_456 = arith.constant 0 : i32
    %1475 = vector.broadcast %c0_i32_456 : i32 to vector<8x1xi32>
    %1476 = arith.addi %1475, %1474 : vector<8x1xi32>
    %1477 = arith.addi %1476, %1377 : vector<8x1xi32>
    %c-1_i32_457 = arith.constant -1 : i32
    %1478 = vector.broadcast %c-1_i32_457 : i32 to vector<8x1xi32>
    %1479 = arith.select %1472, %1477, %1478 : vector<8x1xi1>, vector<8x1xi32>
    %1480 = vector.broadcast %1479 : vector<8x1xi32> to vector<8x128xi32>
    %1481 = arith.cmpi eq, %151, %1480 : vector<8x128xi32>
    %1482 = arith.mulf %1380, %1371 : vector<8x1xf32>
    %1483 = arith.mulf %1482, %1368 : vector<8x1xf32>
    %cst_458 = arith.constant 0.000000e+00 : f32
    %1484 = vector.shape_cast %1483 : vector<8x1xf32> to vector<8x1xf32>
    %1485 = vector.broadcast %1484 : vector<8x1xf32> to vector<8x128xf32>
    %1486 = vector.broadcast %cst_458 : f32 to vector<8x128xf32>
    %1487 = arith.select %1481, %1485, %1486 : vector<8x128xi1>, vector<8x128xf32>
    %1488 = arith.addf %1461, %1487 : vector<8x128xf32>
    %1489 = vector.extract_strided_slice %143 {offsets = [0, 20], sizes = [8, 1], strides = [1, 1]} : vector<8x32xf32> to vector<8x1xf32>
    %1490 = vector.extract_strided_slice %143 {offsets = [0, 21], sizes = [8, 1], strides = [1, 1]} : vector<8x32xf32> to vector<8x1xf32>
    %1491 = arith.addf %167, %1489 : vector<8x1xf32>
    %1492 = arith.addf %171, %1490 : vector<8x1xf32>
    %1493 = math.floor %1491 : vector<8x1xf32>
    %1494 = math.floor %1492 : vector<8x1xf32>
    %1495 = arith.subf %1491, %1493 : vector<8x1xf32>
    %cst_459 = arith.constant 1.000000e+00 : f32
    %1496 = vector.broadcast %cst_459 : f32 to vector<8x1xf32>
    %1497 = arith.subf %1496, %1495 : vector<8x1xf32>
    %1498 = arith.subf %1492, %1494 : vector<8x1xf32>
    %cst_460 = arith.constant 1.000000e+00 : f32
    %1499 = vector.broadcast %cst_460 : f32 to vector<8x1xf32>
    %1500 = arith.subf %1499, %1498 : vector<8x1xf32>
    %1501 = arith.fptosi %1493 : vector<8x1xf32> to vector<8x1xi32>
    %1502 = arith.fptosi %1494 : vector<8x1xf32> to vector<8x1xi32>
    %c1_i32_461 = arith.constant 1 : i32
    %1503 = vector.broadcast %c1_i32_461 : i32 to vector<8x1xi32>
    %1504 = arith.addi %1501, %1503 : vector<8x1xi32>
    %c1_i32_462 = arith.constant 1 : i32
    %1505 = vector.broadcast %c1_i32_462 : i32 to vector<8x1xi32>
    %1506 = arith.addi %1502, %1505 : vector<8x1xi32>
    %1507 = vector.extract_strided_slice %1233 {offsets = [0, 2], sizes = [8, 1], strides = [1, 1]} : vector<8x4xf32> to vector<8x1xf32>
    %c0_i32_463 = arith.constant 0 : i32
    %1508 = vector.broadcast %c0_i32_463 : i32 to vector<8x1xi32>
    %1509 = arith.cmpi sge, %1501, %1508 : vector<8x1xi32>
    %c3_i32_464 = arith.constant 3 : i32
    %1510 = vector.broadcast %c3_i32_464 : i32 to vector<8x1xi32>
    %1511 = arith.cmpi sle, %1501, %1510 : vector<8x1xi32>
    %1512 = arith.andi %1509, %1511 : vector<8x1xi1>
    %c0_i32_465 = arith.constant 0 : i32
    %1513 = vector.broadcast %c0_i32_465 : i32 to vector<8x1xi32>
    %1514 = arith.cmpi sge, %1502, %1513 : vector<8x1xi32>
    %1515 = arith.andi %1512, %1514 : vector<8x1xi1>
    %c3_i32_466 = arith.constant 3 : i32
    %1516 = vector.broadcast %c3_i32_466 : i32 to vector<8x1xi32>
    %1517 = arith.cmpi sle, %1502, %1516 : vector<8x1xi32>
    %1518 = arith.andi %1515, %1517 : vector<8x1xi1>
    %c4_i32_467 = arith.constant 4 : i32
    %1519 = vector.broadcast %c4_i32_467 : i32 to vector<8x1xi32>
    %1520 = arith.muli %1502, %1519 : vector<8x1xi32>
    %c64_i32_468 = arith.constant 64 : i32
    %1521 = vector.broadcast %c64_i32_468 : i32 to vector<8x1xi32>
    %1522 = arith.addi %1521, %1520 : vector<8x1xi32>
    %1523 = arith.addi %1522, %1501 : vector<8x1xi32>
    %c-1_i32_469 = arith.constant -1 : i32
    %1524 = vector.broadcast %c-1_i32_469 : i32 to vector<8x1xi32>
    %1525 = arith.select %1518, %1523, %1524 : vector<8x1xi1>, vector<8x1xi32>
    %1526 = vector.broadcast %1525 : vector<8x1xi32> to vector<8x128xi32>
    %1527 = arith.cmpi eq, %151, %1526 : vector<8x128xi32>
    %1528 = arith.mulf %1507, %1500 : vector<8x1xf32>
    %1529 = arith.mulf %1528, %1497 : vector<8x1xf32>
    %cst_470 = arith.constant 0.000000e+00 : f32
    %1530 = vector.shape_cast %1529 : vector<8x1xf32> to vector<8x1xf32>
    %1531 = vector.broadcast %1530 : vector<8x1xf32> to vector<8x128xf32>
    %1532 = vector.broadcast %cst_470 : f32 to vector<8x128xf32>
    %1533 = arith.select %1527, %1531, %1532 : vector<8x128xi1>, vector<8x128xf32>
    %1534 = arith.addf %1488, %1533 : vector<8x128xf32>
    %c0_i32_471 = arith.constant 0 : i32
    %1535 = vector.broadcast %c0_i32_471 : i32 to vector<8x1xi32>
    %1536 = arith.cmpi sge, %1504, %1535 : vector<8x1xi32>
    %c3_i32_472 = arith.constant 3 : i32
    %1537 = vector.broadcast %c3_i32_472 : i32 to vector<8x1xi32>
    %1538 = arith.cmpi sle, %1504, %1537 : vector<8x1xi32>
    %1539 = arith.andi %1536, %1538 : vector<8x1xi1>
    %c0_i32_473 = arith.constant 0 : i32
    %1540 = vector.broadcast %c0_i32_473 : i32 to vector<8x1xi32>
    %1541 = arith.cmpi sge, %1502, %1540 : vector<8x1xi32>
    %1542 = arith.andi %1539, %1541 : vector<8x1xi1>
    %c3_i32_474 = arith.constant 3 : i32
    %1543 = vector.broadcast %c3_i32_474 : i32 to vector<8x1xi32>
    %1544 = arith.cmpi sle, %1502, %1543 : vector<8x1xi32>
    %1545 = arith.andi %1542, %1544 : vector<8x1xi1>
    %c4_i32_475 = arith.constant 4 : i32
    %1546 = vector.broadcast %c4_i32_475 : i32 to vector<8x1xi32>
    %1547 = arith.muli %1502, %1546 : vector<8x1xi32>
    %c64_i32_476 = arith.constant 64 : i32
    %1548 = vector.broadcast %c64_i32_476 : i32 to vector<8x1xi32>
    %1549 = arith.addi %1548, %1547 : vector<8x1xi32>
    %1550 = arith.addi %1549, %1504 : vector<8x1xi32>
    %c-1_i32_477 = arith.constant -1 : i32
    %1551 = vector.broadcast %c-1_i32_477 : i32 to vector<8x1xi32>
    %1552 = arith.select %1545, %1550, %1551 : vector<8x1xi1>, vector<8x1xi32>
    %1553 = vector.broadcast %1552 : vector<8x1xi32> to vector<8x128xi32>
    %1554 = arith.cmpi eq, %151, %1553 : vector<8x128xi32>
    %1555 = arith.mulf %1507, %1500 : vector<8x1xf32>
    %1556 = arith.mulf %1555, %1495 : vector<8x1xf32>
    %cst_478 = arith.constant 0.000000e+00 : f32
    %1557 = vector.shape_cast %1556 : vector<8x1xf32> to vector<8x1xf32>
    %1558 = vector.broadcast %1557 : vector<8x1xf32> to vector<8x128xf32>
    %1559 = vector.broadcast %cst_478 : f32 to vector<8x128xf32>
    %1560 = arith.select %1554, %1558, %1559 : vector<8x128xi1>, vector<8x128xf32>
    %1561 = arith.addf %1534, %1560 : vector<8x128xf32>
    %c0_i32_479 = arith.constant 0 : i32
    %1562 = vector.broadcast %c0_i32_479 : i32 to vector<8x1xi32>
    %1563 = arith.cmpi sge, %1501, %1562 : vector<8x1xi32>
    %c3_i32_480 = arith.constant 3 : i32
    %1564 = vector.broadcast %c3_i32_480 : i32 to vector<8x1xi32>
    %1565 = arith.cmpi sle, %1501, %1564 : vector<8x1xi32>
    %1566 = arith.andi %1563, %1565 : vector<8x1xi1>
    %c0_i32_481 = arith.constant 0 : i32
    %1567 = vector.broadcast %c0_i32_481 : i32 to vector<8x1xi32>
    %1568 = arith.cmpi sge, %1506, %1567 : vector<8x1xi32>
    %1569 = arith.andi %1566, %1568 : vector<8x1xi1>
    %c3_i32_482 = arith.constant 3 : i32
    %1570 = vector.broadcast %c3_i32_482 : i32 to vector<8x1xi32>
    %1571 = arith.cmpi sle, %1506, %1570 : vector<8x1xi32>
    %1572 = arith.andi %1569, %1571 : vector<8x1xi1>
    %c4_i32_483 = arith.constant 4 : i32
    %1573 = vector.broadcast %c4_i32_483 : i32 to vector<8x1xi32>
    %1574 = arith.muli %1506, %1573 : vector<8x1xi32>
    %c64_i32_484 = arith.constant 64 : i32
    %1575 = vector.broadcast %c64_i32_484 : i32 to vector<8x1xi32>
    %1576 = arith.addi %1575, %1574 : vector<8x1xi32>
    %1577 = arith.addi %1576, %1501 : vector<8x1xi32>
    %c-1_i32_485 = arith.constant -1 : i32
    %1578 = vector.broadcast %c-1_i32_485 : i32 to vector<8x1xi32>
    %1579 = arith.select %1572, %1577, %1578 : vector<8x1xi1>, vector<8x1xi32>
    %1580 = vector.broadcast %1579 : vector<8x1xi32> to vector<8x128xi32>
    %1581 = arith.cmpi eq, %151, %1580 : vector<8x128xi32>
    %1582 = arith.mulf %1507, %1498 : vector<8x1xf32>
    %1583 = arith.mulf %1582, %1497 : vector<8x1xf32>
    %cst_486 = arith.constant 0.000000e+00 : f32
    %1584 = vector.shape_cast %1583 : vector<8x1xf32> to vector<8x1xf32>
    %1585 = vector.broadcast %1584 : vector<8x1xf32> to vector<8x128xf32>
    %1586 = vector.broadcast %cst_486 : f32 to vector<8x128xf32>
    %1587 = arith.select %1581, %1585, %1586 : vector<8x128xi1>, vector<8x128xf32>
    %1588 = arith.addf %1561, %1587 : vector<8x128xf32>
    %c0_i32_487 = arith.constant 0 : i32
    %1589 = vector.broadcast %c0_i32_487 : i32 to vector<8x1xi32>
    %1590 = arith.cmpi sge, %1504, %1589 : vector<8x1xi32>
    %c3_i32_488 = arith.constant 3 : i32
    %1591 = vector.broadcast %c3_i32_488 : i32 to vector<8x1xi32>
    %1592 = arith.cmpi sle, %1504, %1591 : vector<8x1xi32>
    %1593 = arith.andi %1590, %1592 : vector<8x1xi1>
    %c0_i32_489 = arith.constant 0 : i32
    %1594 = vector.broadcast %c0_i32_489 : i32 to vector<8x1xi32>
    %1595 = arith.cmpi sge, %1506, %1594 : vector<8x1xi32>
    %1596 = arith.andi %1593, %1595 : vector<8x1xi1>
    %c3_i32_490 = arith.constant 3 : i32
    %1597 = vector.broadcast %c3_i32_490 : i32 to vector<8x1xi32>
    %1598 = arith.cmpi sle, %1506, %1597 : vector<8x1xi32>
    %1599 = arith.andi %1596, %1598 : vector<8x1xi1>
    %c4_i32_491 = arith.constant 4 : i32
    %1600 = vector.broadcast %c4_i32_491 : i32 to vector<8x1xi32>
    %1601 = arith.muli %1506, %1600 : vector<8x1xi32>
    %c64_i32_492 = arith.constant 64 : i32
    %1602 = vector.broadcast %c64_i32_492 : i32 to vector<8x1xi32>
    %1603 = arith.addi %1602, %1601 : vector<8x1xi32>
    %1604 = arith.addi %1603, %1504 : vector<8x1xi32>
    %c-1_i32_493 = arith.constant -1 : i32
    %1605 = vector.broadcast %c-1_i32_493 : i32 to vector<8x1xi32>
    %1606 = arith.select %1599, %1604, %1605 : vector<8x1xi1>, vector<8x1xi32>
    %1607 = vector.broadcast %1606 : vector<8x1xi32> to vector<8x128xi32>
    %1608 = arith.cmpi eq, %151, %1607 : vector<8x128xi32>
    %1609 = arith.mulf %1507, %1498 : vector<8x1xf32>
    %1610 = arith.mulf %1609, %1495 : vector<8x1xf32>
    %cst_494 = arith.constant 0.000000e+00 : f32
    %1611 = vector.shape_cast %1610 : vector<8x1xf32> to vector<8x1xf32>
    %1612 = vector.broadcast %1611 : vector<8x1xf32> to vector<8x128xf32>
    %1613 = vector.broadcast %cst_494 : f32 to vector<8x128xf32>
    %1614 = arith.select %1608, %1612, %1613 : vector<8x128xi1>, vector<8x128xf32>
    %1615 = arith.addf %1588, %1614 : vector<8x128xf32>
    %1616 = vector.extract_strided_slice %143 {offsets = [0, 22], sizes = [8, 1], strides = [1, 1]} : vector<8x32xf32> to vector<8x1xf32>
    %1617 = vector.extract_strided_slice %143 {offsets = [0, 23], sizes = [8, 1], strides = [1, 1]} : vector<8x32xf32> to vector<8x1xf32>
    %1618 = arith.addf %167, %1616 : vector<8x1xf32>
    %1619 = arith.addf %171, %1617 : vector<8x1xf32>
    %1620 = math.floor %1618 : vector<8x1xf32>
    %1621 = math.floor %1619 : vector<8x1xf32>
    %1622 = arith.subf %1618, %1620 : vector<8x1xf32>
    %cst_495 = arith.constant 1.000000e+00 : f32
    %1623 = vector.broadcast %cst_495 : f32 to vector<8x1xf32>
    %1624 = arith.subf %1623, %1622 : vector<8x1xf32>
    %1625 = arith.subf %1619, %1621 : vector<8x1xf32>
    %cst_496 = arith.constant 1.000000e+00 : f32
    %1626 = vector.broadcast %cst_496 : f32 to vector<8x1xf32>
    %1627 = arith.subf %1626, %1625 : vector<8x1xf32>
    %1628 = arith.fptosi %1620 : vector<8x1xf32> to vector<8x1xi32>
    %1629 = arith.fptosi %1621 : vector<8x1xf32> to vector<8x1xi32>
    %c1_i32_497 = arith.constant 1 : i32
    %1630 = vector.broadcast %c1_i32_497 : i32 to vector<8x1xi32>
    %1631 = arith.addi %1628, %1630 : vector<8x1xi32>
    %c1_i32_498 = arith.constant 1 : i32
    %1632 = vector.broadcast %c1_i32_498 : i32 to vector<8x1xi32>
    %1633 = arith.addi %1629, %1632 : vector<8x1xi32>
    %1634 = vector.extract_strided_slice %1233 {offsets = [0, 3], sizes = [8, 1], strides = [1, 1]} : vector<8x4xf32> to vector<8x1xf32>
    %c0_i32_499 = arith.constant 0 : i32
    %1635 = vector.broadcast %c0_i32_499 : i32 to vector<8x1xi32>
    %1636 = arith.cmpi sge, %1628, %1635 : vector<8x1xi32>
    %c3_i32_500 = arith.constant 3 : i32
    %1637 = vector.broadcast %c3_i32_500 : i32 to vector<8x1xi32>
    %1638 = arith.cmpi sle, %1628, %1637 : vector<8x1xi32>
    %1639 = arith.andi %1636, %1638 : vector<8x1xi1>
    %c0_i32_501 = arith.constant 0 : i32
    %1640 = vector.broadcast %c0_i32_501 : i32 to vector<8x1xi32>
    %1641 = arith.cmpi sge, %1629, %1640 : vector<8x1xi32>
    %1642 = arith.andi %1639, %1641 : vector<8x1xi1>
    %c3_i32_502 = arith.constant 3 : i32
    %1643 = vector.broadcast %c3_i32_502 : i32 to vector<8x1xi32>
    %1644 = arith.cmpi sle, %1629, %1643 : vector<8x1xi32>
    %1645 = arith.andi %1642, %1644 : vector<8x1xi1>
    %c4_i32_503 = arith.constant 4 : i32
    %1646 = vector.broadcast %c4_i32_503 : i32 to vector<8x1xi32>
    %1647 = arith.muli %1629, %1646 : vector<8x1xi32>
    %c64_i32_504 = arith.constant 64 : i32
    %1648 = vector.broadcast %c64_i32_504 : i32 to vector<8x1xi32>
    %1649 = arith.addi %1648, %1647 : vector<8x1xi32>
    %1650 = arith.addi %1649, %1628 : vector<8x1xi32>
    %c-1_i32_505 = arith.constant -1 : i32
    %1651 = vector.broadcast %c-1_i32_505 : i32 to vector<8x1xi32>
    %1652 = arith.select %1645, %1650, %1651 : vector<8x1xi1>, vector<8x1xi32>
    %1653 = vector.broadcast %1652 : vector<8x1xi32> to vector<8x128xi32>
    %1654 = arith.cmpi eq, %151, %1653 : vector<8x128xi32>
    %1655 = arith.mulf %1634, %1627 : vector<8x1xf32>
    %1656 = arith.mulf %1655, %1624 : vector<8x1xf32>
    %cst_506 = arith.constant 0.000000e+00 : f32
    %1657 = vector.shape_cast %1656 : vector<8x1xf32> to vector<8x1xf32>
    %1658 = vector.broadcast %1657 : vector<8x1xf32> to vector<8x128xf32>
    %1659 = vector.broadcast %cst_506 : f32 to vector<8x128xf32>
    %1660 = arith.select %1654, %1658, %1659 : vector<8x128xi1>, vector<8x128xf32>
    %1661 = arith.addf %1615, %1660 : vector<8x128xf32>
    %c0_i32_507 = arith.constant 0 : i32
    %1662 = vector.broadcast %c0_i32_507 : i32 to vector<8x1xi32>
    %1663 = arith.cmpi sge, %1631, %1662 : vector<8x1xi32>
    %c3_i32_508 = arith.constant 3 : i32
    %1664 = vector.broadcast %c3_i32_508 : i32 to vector<8x1xi32>
    %1665 = arith.cmpi sle, %1631, %1664 : vector<8x1xi32>
    %1666 = arith.andi %1663, %1665 : vector<8x1xi1>
    %c0_i32_509 = arith.constant 0 : i32
    %1667 = vector.broadcast %c0_i32_509 : i32 to vector<8x1xi32>
    %1668 = arith.cmpi sge, %1629, %1667 : vector<8x1xi32>
    %1669 = arith.andi %1666, %1668 : vector<8x1xi1>
    %c3_i32_510 = arith.constant 3 : i32
    %1670 = vector.broadcast %c3_i32_510 : i32 to vector<8x1xi32>
    %1671 = arith.cmpi sle, %1629, %1670 : vector<8x1xi32>
    %1672 = arith.andi %1669, %1671 : vector<8x1xi1>
    %c4_i32_511 = arith.constant 4 : i32
    %1673 = vector.broadcast %c4_i32_511 : i32 to vector<8x1xi32>
    %1674 = arith.muli %1629, %1673 : vector<8x1xi32>
    %c64_i32_512 = arith.constant 64 : i32
    %1675 = vector.broadcast %c64_i32_512 : i32 to vector<8x1xi32>
    %1676 = arith.addi %1675, %1674 : vector<8x1xi32>
    %1677 = arith.addi %1676, %1631 : vector<8x1xi32>
    %c-1_i32_513 = arith.constant -1 : i32
    %1678 = vector.broadcast %c-1_i32_513 : i32 to vector<8x1xi32>
    %1679 = arith.select %1672, %1677, %1678 : vector<8x1xi1>, vector<8x1xi32>
    %1680 = vector.broadcast %1679 : vector<8x1xi32> to vector<8x128xi32>
    %1681 = arith.cmpi eq, %151, %1680 : vector<8x128xi32>
    %1682 = arith.mulf %1634, %1627 : vector<8x1xf32>
    %1683 = arith.mulf %1682, %1622 : vector<8x1xf32>
    %cst_514 = arith.constant 0.000000e+00 : f32
    %1684 = vector.shape_cast %1683 : vector<8x1xf32> to vector<8x1xf32>
    %1685 = vector.broadcast %1684 : vector<8x1xf32> to vector<8x128xf32>
    %1686 = vector.broadcast %cst_514 : f32 to vector<8x128xf32>
    %1687 = arith.select %1681, %1685, %1686 : vector<8x128xi1>, vector<8x128xf32>
    %1688 = arith.addf %1661, %1687 : vector<8x128xf32>
    %c0_i32_515 = arith.constant 0 : i32
    %1689 = vector.broadcast %c0_i32_515 : i32 to vector<8x1xi32>
    %1690 = arith.cmpi sge, %1628, %1689 : vector<8x1xi32>
    %c3_i32_516 = arith.constant 3 : i32
    %1691 = vector.broadcast %c3_i32_516 : i32 to vector<8x1xi32>
    %1692 = arith.cmpi sle, %1628, %1691 : vector<8x1xi32>
    %1693 = arith.andi %1690, %1692 : vector<8x1xi1>
    %c0_i32_517 = arith.constant 0 : i32
    %1694 = vector.broadcast %c0_i32_517 : i32 to vector<8x1xi32>
    %1695 = arith.cmpi sge, %1633, %1694 : vector<8x1xi32>
    %1696 = arith.andi %1693, %1695 : vector<8x1xi1>
    %c3_i32_518 = arith.constant 3 : i32
    %1697 = vector.broadcast %c3_i32_518 : i32 to vector<8x1xi32>
    %1698 = arith.cmpi sle, %1633, %1697 : vector<8x1xi32>
    %1699 = arith.andi %1696, %1698 : vector<8x1xi1>
    %c4_i32_519 = arith.constant 4 : i32
    %1700 = vector.broadcast %c4_i32_519 : i32 to vector<8x1xi32>
    %1701 = arith.muli %1633, %1700 : vector<8x1xi32>
    %c64_i32_520 = arith.constant 64 : i32
    %1702 = vector.broadcast %c64_i32_520 : i32 to vector<8x1xi32>
    %1703 = arith.addi %1702, %1701 : vector<8x1xi32>
    %1704 = arith.addi %1703, %1628 : vector<8x1xi32>
    %c-1_i32_521 = arith.constant -1 : i32
    %1705 = vector.broadcast %c-1_i32_521 : i32 to vector<8x1xi32>
    %1706 = arith.select %1699, %1704, %1705 : vector<8x1xi1>, vector<8x1xi32>
    %1707 = vector.broadcast %1706 : vector<8x1xi32> to vector<8x128xi32>
    %1708 = arith.cmpi eq, %151, %1707 : vector<8x128xi32>
    %1709 = arith.mulf %1634, %1625 : vector<8x1xf32>
    %1710 = arith.mulf %1709, %1624 : vector<8x1xf32>
    %cst_522 = arith.constant 0.000000e+00 : f32
    %1711 = vector.shape_cast %1710 : vector<8x1xf32> to vector<8x1xf32>
    %1712 = vector.broadcast %1711 : vector<8x1xf32> to vector<8x128xf32>
    %1713 = vector.broadcast %cst_522 : f32 to vector<8x128xf32>
    %1714 = arith.select %1708, %1712, %1713 : vector<8x128xi1>, vector<8x128xf32>
    %1715 = arith.addf %1688, %1714 : vector<8x128xf32>
    %c0_i32_523 = arith.constant 0 : i32
    %1716 = vector.broadcast %c0_i32_523 : i32 to vector<8x1xi32>
    %1717 = arith.cmpi sge, %1631, %1716 : vector<8x1xi32>
    %c3_i32_524 = arith.constant 3 : i32
    %1718 = vector.broadcast %c3_i32_524 : i32 to vector<8x1xi32>
    %1719 = arith.cmpi sle, %1631, %1718 : vector<8x1xi32>
    %1720 = arith.andi %1717, %1719 : vector<8x1xi1>
    %c0_i32_525 = arith.constant 0 : i32
    %1721 = vector.broadcast %c0_i32_525 : i32 to vector<8x1xi32>
    %1722 = arith.cmpi sge, %1633, %1721 : vector<8x1xi32>
    %1723 = arith.andi %1720, %1722 : vector<8x1xi1>
    %c3_i32_526 = arith.constant 3 : i32
    %1724 = vector.broadcast %c3_i32_526 : i32 to vector<8x1xi32>
    %1725 = arith.cmpi sle, %1633, %1724 : vector<8x1xi32>
    %1726 = arith.andi %1723, %1725 : vector<8x1xi1>
    %c4_i32_527 = arith.constant 4 : i32
    %1727 = vector.broadcast %c4_i32_527 : i32 to vector<8x1xi32>
    %1728 = arith.muli %1633, %1727 : vector<8x1xi32>
    %c64_i32_528 = arith.constant 64 : i32
    %1729 = vector.broadcast %c64_i32_528 : i32 to vector<8x1xi32>
    %1730 = arith.addi %1729, %1728 : vector<8x1xi32>
    %1731 = arith.addi %1730, %1631 : vector<8x1xi32>
    %c-1_i32_529 = arith.constant -1 : i32
    %1732 = vector.broadcast %c-1_i32_529 : i32 to vector<8x1xi32>
    %1733 = arith.select %1726, %1731, %1732 : vector<8x1xi1>, vector<8x1xi32>
    %1734 = vector.broadcast %1733 : vector<8x1xi32> to vector<8x128xi32>
    %1735 = arith.cmpi eq, %151, %1734 : vector<8x128xi32>
    %1736 = arith.mulf %1634, %1625 : vector<8x1xf32>
    %1737 = arith.mulf %1736, %1622 : vector<8x1xf32>
    %cst_530 = arith.constant 0.000000e+00 : f32
    %1738 = vector.shape_cast %1737 : vector<8x1xf32> to vector<8x1xf32>
    %1739 = vector.broadcast %1738 : vector<8x1xf32> to vector<8x128xf32>
    %1740 = vector.broadcast %cst_530 : f32 to vector<8x128xf32>
    %1741 = arith.select %1735, %1739, %1740 : vector<8x128xi1>, vector<8x128xf32>
    %1742 = arith.addf %1715, %1741 : vector<8x128xf32>
    %1743 = vector.extract_strided_slice %138 {offsets = [0, 16], sizes = [128, 8], strides = [1, 1]} : vector<128x32xf32> to vector<128x8xf32>
    %cst_531 = arith.constant dense<0.000000e+00> : vector<8x8xf32>
    %1744 = tpu.matmul %1742, %1743, %cst_531 {dimension_numbers = #tpu.dot_dimension_numbers<[1], [0], [0], [1], [0, 0, 1, 1], [], []>} : vector<8x128xf32>, vector<128x8xf32>, vector<8x8xf32> -> vector<8x8xf32>
    %c16_532 = arith.constant 16 : index
    %c0_533 = arith.constant 0 : index
    %1745 = vector.load %arg21[%c16_532, %c0_533] : memref<32x32xf32, #tpu.memory_space<vmem>>, vector<8x32xf32>
    %cst_534 = arith.constant dense<0.000000e+00> : vector<8x32xf32>
    %1746 = tpu.matmul %1744, %1745, %cst_534 {dimension_numbers = #tpu.dot_dimension_numbers<[1], [0], [0], [1], [0, 0, 1, 1], [], []>} : vector<8x8xf32>, vector<8x32xf32>, vector<8x32xf32> -> vector<8x32xf32>
    %1747 = arith.addf %1222, %1746 : vector<8x32xf32>
    %1748 = vector.extract_strided_slice %148 {offsets = [0, 12], sizes = [8, 4], strides = [1, 1]} : vector<8x16xf32> to vector<8x4xf32>
    %cst_535 = arith.constant dense<0xFF800000> : vector<8xf32>
    %1749 = vector.multi_reduction <maximumf>, %1748, %cst_535 [1] : vector<8x4xf32> to vector<8xf32>
    %1750 = vector.shape_cast %1749 : vector<8xf32> to vector<8x1xf32>
    %1751 = vector.broadcast %1750 : vector<8x1xf32> to vector<8x4xf32>
    %1752 = arith.subf %1748, %1751 : vector<8x4xf32>
    %1753 = math.exp %1752 : vector<8x4xf32>
    %cst_536 = arith.constant dense<0.000000e+00> : vector<8xf32>
    %1754 = vector.multi_reduction <add>, %1753, %cst_536 [1] : vector<8x4xf32> to vector<8xf32>
    %1755 = vector.shape_cast %1754 : vector<8xf32> to vector<8x1xf32>
    %1756 = tpu.reciprocal %1755 {approx = true} : vector<8x1xf32> -> vector<8x1xf32>
    %1757 = vector.broadcast %1756 : vector<8x1xf32> to vector<8x4xf32>
    %1758 = arith.mulf %1753, %1757 : vector<8x4xf32>
    %cst_537 = arith.constant 0.000000e+00 : f32
    %1759 = vector.broadcast %cst_537 : f32 to vector<8x128xf32>
    %1760 = vector.extract_strided_slice %143 {offsets = [0, 24], sizes = [8, 1], strides = [1, 1]} : vector<8x32xf32> to vector<8x1xf32>
    %1761 = vector.extract_strided_slice %143 {offsets = [0, 25], sizes = [8, 1], strides = [1, 1]} : vector<8x32xf32> to vector<8x1xf32>
    %1762 = arith.addf %157, %1760 : vector<8x1xf32>
    %1763 = arith.addf %161, %1761 : vector<8x1xf32>
    %1764 = math.floor %1762 : vector<8x1xf32>
    %1765 = math.floor %1763 : vector<8x1xf32>
    %1766 = arith.subf %1762, %1764 : vector<8x1xf32>
    %cst_538 = arith.constant 1.000000e+00 : f32
    %1767 = vector.broadcast %cst_538 : f32 to vector<8x1xf32>
    %1768 = arith.subf %1767, %1766 : vector<8x1xf32>
    %1769 = arith.subf %1763, %1765 : vector<8x1xf32>
    %cst_539 = arith.constant 1.000000e+00 : f32
    %1770 = vector.broadcast %cst_539 : f32 to vector<8x1xf32>
    %1771 = arith.subf %1770, %1769 : vector<8x1xf32>
    %1772 = arith.fptosi %1764 : vector<8x1xf32> to vector<8x1xi32>
    %1773 = arith.fptosi %1765 : vector<8x1xf32> to vector<8x1xi32>
    %c1_i32_540 = arith.constant 1 : i32
    %1774 = vector.broadcast %c1_i32_540 : i32 to vector<8x1xi32>
    %1775 = arith.addi %1772, %1774 : vector<8x1xi32>
    %c1_i32_541 = arith.constant 1 : i32
    %1776 = vector.broadcast %c1_i32_541 : i32 to vector<8x1xi32>
    %1777 = arith.addi %1773, %1776 : vector<8x1xi32>
    %1778 = vector.extract_strided_slice %1758 {offsets = [0, 0], sizes = [8, 1], strides = [1, 1]} : vector<8x4xf32> to vector<8x1xf32>
    %c0_i32_542 = arith.constant 0 : i32
    %1779 = vector.broadcast %c0_i32_542 : i32 to vector<8x1xi32>
    %1780 = arith.cmpi sge, %1772, %1779 : vector<8x1xi32>
    %c7_i32_543 = arith.constant 7 : i32
    %1781 = vector.broadcast %c7_i32_543 : i32 to vector<8x1xi32>
    %1782 = arith.cmpi sle, %1772, %1781 : vector<8x1xi32>
    %1783 = arith.andi %1780, %1782 : vector<8x1xi1>
    %c0_i32_544 = arith.constant 0 : i32
    %1784 = vector.broadcast %c0_i32_544 : i32 to vector<8x1xi32>
    %1785 = arith.cmpi sge, %1773, %1784 : vector<8x1xi32>
    %1786 = arith.andi %1783, %1785 : vector<8x1xi1>
    %c7_i32_545 = arith.constant 7 : i32
    %1787 = vector.broadcast %c7_i32_545 : i32 to vector<8x1xi32>
    %1788 = arith.cmpi sle, %1773, %1787 : vector<8x1xi32>
    %1789 = arith.andi %1786, %1788 : vector<8x1xi1>
    %c8_i32_546 = arith.constant 8 : i32
    %1790 = vector.broadcast %c8_i32_546 : i32 to vector<8x1xi32>
    %1791 = arith.muli %1773, %1790 : vector<8x1xi32>
    %c0_i32_547 = arith.constant 0 : i32
    %1792 = vector.broadcast %c0_i32_547 : i32 to vector<8x1xi32>
    %1793 = arith.addi %1792, %1791 : vector<8x1xi32>
    %1794 = arith.addi %1793, %1772 : vector<8x1xi32>
    %c-1_i32_548 = arith.constant -1 : i32
    %1795 = vector.broadcast %c-1_i32_548 : i32 to vector<8x1xi32>
    %1796 = arith.select %1789, %1794, %1795 : vector<8x1xi1>, vector<8x1xi32>
    %1797 = vector.broadcast %1796 : vector<8x1xi32> to vector<8x128xi32>
    %1798 = arith.cmpi eq, %151, %1797 : vector<8x128xi32>
    %1799 = arith.mulf %1778, %1771 : vector<8x1xf32>
    %1800 = arith.mulf %1799, %1768 : vector<8x1xf32>
    %cst_549 = arith.constant 0.000000e+00 : f32
    %1801 = vector.shape_cast %1800 : vector<8x1xf32> to vector<8x1xf32>
    %1802 = vector.broadcast %1801 : vector<8x1xf32> to vector<8x128xf32>
    %1803 = vector.broadcast %cst_549 : f32 to vector<8x128xf32>
    %1804 = arith.select %1798, %1802, %1803 : vector<8x128xi1>, vector<8x128xf32>
    %1805 = arith.addf %1759, %1804 : vector<8x128xf32>
    %c0_i32_550 = arith.constant 0 : i32
    %1806 = vector.broadcast %c0_i32_550 : i32 to vector<8x1xi32>
    %1807 = arith.cmpi sge, %1775, %1806 : vector<8x1xi32>
    %c7_i32_551 = arith.constant 7 : i32
    %1808 = vector.broadcast %c7_i32_551 : i32 to vector<8x1xi32>
    %1809 = arith.cmpi sle, %1775, %1808 : vector<8x1xi32>
    %1810 = arith.andi %1807, %1809 : vector<8x1xi1>
    %c0_i32_552 = arith.constant 0 : i32
    %1811 = vector.broadcast %c0_i32_552 : i32 to vector<8x1xi32>
    %1812 = arith.cmpi sge, %1773, %1811 : vector<8x1xi32>
    %1813 = arith.andi %1810, %1812 : vector<8x1xi1>
    %c7_i32_553 = arith.constant 7 : i32
    %1814 = vector.broadcast %c7_i32_553 : i32 to vector<8x1xi32>
    %1815 = arith.cmpi sle, %1773, %1814 : vector<8x1xi32>
    %1816 = arith.andi %1813, %1815 : vector<8x1xi1>
    %c8_i32_554 = arith.constant 8 : i32
    %1817 = vector.broadcast %c8_i32_554 : i32 to vector<8x1xi32>
    %1818 = arith.muli %1773, %1817 : vector<8x1xi32>
    %c0_i32_555 = arith.constant 0 : i32
    %1819 = vector.broadcast %c0_i32_555 : i32 to vector<8x1xi32>
    %1820 = arith.addi %1819, %1818 : vector<8x1xi32>
    %1821 = arith.addi %1820, %1775 : vector<8x1xi32>
    %c-1_i32_556 = arith.constant -1 : i32
    %1822 = vector.broadcast %c-1_i32_556 : i32 to vector<8x1xi32>
    %1823 = arith.select %1816, %1821, %1822 : vector<8x1xi1>, vector<8x1xi32>
    %1824 = vector.broadcast %1823 : vector<8x1xi32> to vector<8x128xi32>
    %1825 = arith.cmpi eq, %151, %1824 : vector<8x128xi32>
    %1826 = arith.mulf %1778, %1771 : vector<8x1xf32>
    %1827 = arith.mulf %1826, %1766 : vector<8x1xf32>
    %cst_557 = arith.constant 0.000000e+00 : f32
    %1828 = vector.shape_cast %1827 : vector<8x1xf32> to vector<8x1xf32>
    %1829 = vector.broadcast %1828 : vector<8x1xf32> to vector<8x128xf32>
    %1830 = vector.broadcast %cst_557 : f32 to vector<8x128xf32>
    %1831 = arith.select %1825, %1829, %1830 : vector<8x128xi1>, vector<8x128xf32>
    %1832 = arith.addf %1805, %1831 : vector<8x128xf32>
    %c0_i32_558 = arith.constant 0 : i32
    %1833 = vector.broadcast %c0_i32_558 : i32 to vector<8x1xi32>
    %1834 = arith.cmpi sge, %1772, %1833 : vector<8x1xi32>
    %c7_i32_559 = arith.constant 7 : i32
    %1835 = vector.broadcast %c7_i32_559 : i32 to vector<8x1xi32>
    %1836 = arith.cmpi sle, %1772, %1835 : vector<8x1xi32>
    %1837 = arith.andi %1834, %1836 : vector<8x1xi1>
    %c0_i32_560 = arith.constant 0 : i32
    %1838 = vector.broadcast %c0_i32_560 : i32 to vector<8x1xi32>
    %1839 = arith.cmpi sge, %1777, %1838 : vector<8x1xi32>
    %1840 = arith.andi %1837, %1839 : vector<8x1xi1>
    %c7_i32_561 = arith.constant 7 : i32
    %1841 = vector.broadcast %c7_i32_561 : i32 to vector<8x1xi32>
    %1842 = arith.cmpi sle, %1777, %1841 : vector<8x1xi32>
    %1843 = arith.andi %1840, %1842 : vector<8x1xi1>
    %c8_i32_562 = arith.constant 8 : i32
    %1844 = vector.broadcast %c8_i32_562 : i32 to vector<8x1xi32>
    %1845 = arith.muli %1777, %1844 : vector<8x1xi32>
    %c0_i32_563 = arith.constant 0 : i32
    %1846 = vector.broadcast %c0_i32_563 : i32 to vector<8x1xi32>
    %1847 = arith.addi %1846, %1845 : vector<8x1xi32>
    %1848 = arith.addi %1847, %1772 : vector<8x1xi32>
    %c-1_i32_564 = arith.constant -1 : i32
    %1849 = vector.broadcast %c-1_i32_564 : i32 to vector<8x1xi32>
    %1850 = arith.select %1843, %1848, %1849 : vector<8x1xi1>, vector<8x1xi32>
    %1851 = vector.broadcast %1850 : vector<8x1xi32> to vector<8x128xi32>
    %1852 = arith.cmpi eq, %151, %1851 : vector<8x128xi32>
    %1853 = arith.mulf %1778, %1769 : vector<8x1xf32>
    %1854 = arith.mulf %1853, %1768 : vector<8x1xf32>
    %cst_565 = arith.constant 0.000000e+00 : f32
    %1855 = vector.shape_cast %1854 : vector<8x1xf32> to vector<8x1xf32>
    %1856 = vector.broadcast %1855 : vector<8x1xf32> to vector<8x128xf32>
    %1857 = vector.broadcast %cst_565 : f32 to vector<8x128xf32>
    %1858 = arith.select %1852, %1856, %1857 : vector<8x128xi1>, vector<8x128xf32>
    %1859 = arith.addf %1832, %1858 : vector<8x128xf32>
    %c0_i32_566 = arith.constant 0 : i32
    %1860 = vector.broadcast %c0_i32_566 : i32 to vector<8x1xi32>
    %1861 = arith.cmpi sge, %1775, %1860 : vector<8x1xi32>
    %c7_i32_567 = arith.constant 7 : i32
    %1862 = vector.broadcast %c7_i32_567 : i32 to vector<8x1xi32>
    %1863 = arith.cmpi sle, %1775, %1862 : vector<8x1xi32>
    %1864 = arith.andi %1861, %1863 : vector<8x1xi1>
    %c0_i32_568 = arith.constant 0 : i32
    %1865 = vector.broadcast %c0_i32_568 : i32 to vector<8x1xi32>
    %1866 = arith.cmpi sge, %1777, %1865 : vector<8x1xi32>
    %1867 = arith.andi %1864, %1866 : vector<8x1xi1>
    %c7_i32_569 = arith.constant 7 : i32
    %1868 = vector.broadcast %c7_i32_569 : i32 to vector<8x1xi32>
    %1869 = arith.cmpi sle, %1777, %1868 : vector<8x1xi32>
    %1870 = arith.andi %1867, %1869 : vector<8x1xi1>
    %c8_i32_570 = arith.constant 8 : i32
    %1871 = vector.broadcast %c8_i32_570 : i32 to vector<8x1xi32>
    %1872 = arith.muli %1777, %1871 : vector<8x1xi32>
    %c0_i32_571 = arith.constant 0 : i32
    %1873 = vector.broadcast %c0_i32_571 : i32 to vector<8x1xi32>
    %1874 = arith.addi %1873, %1872 : vector<8x1xi32>
    %1875 = arith.addi %1874, %1775 : vector<8x1xi32>
    %c-1_i32_572 = arith.constant -1 : i32
    %1876 = vector.broadcast %c-1_i32_572 : i32 to vector<8x1xi32>
    %1877 = arith.select %1870, %1875, %1876 : vector<8x1xi1>, vector<8x1xi32>
    %1878 = vector.broadcast %1877 : vector<8x1xi32> to vector<8x128xi32>
    %1879 = arith.cmpi eq, %151, %1878 : vector<8x128xi32>
    %1880 = arith.mulf %1778, %1769 : vector<8x1xf32>
    %1881 = arith.mulf %1880, %1766 : vector<8x1xf32>
    %cst_573 = arith.constant 0.000000e+00 : f32
    %1882 = vector.shape_cast %1881 : vector<8x1xf32> to vector<8x1xf32>
    %1883 = vector.broadcast %1882 : vector<8x1xf32> to vector<8x128xf32>
    %1884 = vector.broadcast %cst_573 : f32 to vector<8x128xf32>
    %1885 = arith.select %1879, %1883, %1884 : vector<8x128xi1>, vector<8x128xf32>
    %1886 = arith.addf %1859, %1885 : vector<8x128xf32>
    %1887 = vector.extract_strided_slice %143 {offsets = [0, 26], sizes = [8, 1], strides = [1, 1]} : vector<8x32xf32> to vector<8x1xf32>
    %1888 = vector.extract_strided_slice %143 {offsets = [0, 27], sizes = [8, 1], strides = [1, 1]} : vector<8x32xf32> to vector<8x1xf32>
    %1889 = arith.addf %157, %1887 : vector<8x1xf32>
    %1890 = arith.addf %161, %1888 : vector<8x1xf32>
    %1891 = math.floor %1889 : vector<8x1xf32>
    %1892 = math.floor %1890 : vector<8x1xf32>
    %1893 = arith.subf %1889, %1891 : vector<8x1xf32>
    %cst_574 = arith.constant 1.000000e+00 : f32
    %1894 = vector.broadcast %cst_574 : f32 to vector<8x1xf32>
    %1895 = arith.subf %1894, %1893 : vector<8x1xf32>
    %1896 = arith.subf %1890, %1892 : vector<8x1xf32>
    %cst_575 = arith.constant 1.000000e+00 : f32
    %1897 = vector.broadcast %cst_575 : f32 to vector<8x1xf32>
    %1898 = arith.subf %1897, %1896 : vector<8x1xf32>
    %1899 = arith.fptosi %1891 : vector<8x1xf32> to vector<8x1xi32>
    %1900 = arith.fptosi %1892 : vector<8x1xf32> to vector<8x1xi32>
    %c1_i32_576 = arith.constant 1 : i32
    %1901 = vector.broadcast %c1_i32_576 : i32 to vector<8x1xi32>
    %1902 = arith.addi %1899, %1901 : vector<8x1xi32>
    %c1_i32_577 = arith.constant 1 : i32
    %1903 = vector.broadcast %c1_i32_577 : i32 to vector<8x1xi32>
    %1904 = arith.addi %1900, %1903 : vector<8x1xi32>
    %1905 = vector.extract_strided_slice %1758 {offsets = [0, 1], sizes = [8, 1], strides = [1, 1]} : vector<8x4xf32> to vector<8x1xf32>
    %c0_i32_578 = arith.constant 0 : i32
    %1906 = vector.broadcast %c0_i32_578 : i32 to vector<8x1xi32>
    %1907 = arith.cmpi sge, %1899, %1906 : vector<8x1xi32>
    %c7_i32_579 = arith.constant 7 : i32
    %1908 = vector.broadcast %c7_i32_579 : i32 to vector<8x1xi32>
    %1909 = arith.cmpi sle, %1899, %1908 : vector<8x1xi32>
    %1910 = arith.andi %1907, %1909 : vector<8x1xi1>
    %c0_i32_580 = arith.constant 0 : i32
    %1911 = vector.broadcast %c0_i32_580 : i32 to vector<8x1xi32>
    %1912 = arith.cmpi sge, %1900, %1911 : vector<8x1xi32>
    %1913 = arith.andi %1910, %1912 : vector<8x1xi1>
    %c7_i32_581 = arith.constant 7 : i32
    %1914 = vector.broadcast %c7_i32_581 : i32 to vector<8x1xi32>
    %1915 = arith.cmpi sle, %1900, %1914 : vector<8x1xi32>
    %1916 = arith.andi %1913, %1915 : vector<8x1xi1>
    %c8_i32_582 = arith.constant 8 : i32
    %1917 = vector.broadcast %c8_i32_582 : i32 to vector<8x1xi32>
    %1918 = arith.muli %1900, %1917 : vector<8x1xi32>
    %c0_i32_583 = arith.constant 0 : i32
    %1919 = vector.broadcast %c0_i32_583 : i32 to vector<8x1xi32>
    %1920 = arith.addi %1919, %1918 : vector<8x1xi32>
    %1921 = arith.addi %1920, %1899 : vector<8x1xi32>
    %c-1_i32_584 = arith.constant -1 : i32
    %1922 = vector.broadcast %c-1_i32_584 : i32 to vector<8x1xi32>
    %1923 = arith.select %1916, %1921, %1922 : vector<8x1xi1>, vector<8x1xi32>
    %1924 = vector.broadcast %1923 : vector<8x1xi32> to vector<8x128xi32>
    %1925 = arith.cmpi eq, %151, %1924 : vector<8x128xi32>
    %1926 = arith.mulf %1905, %1898 : vector<8x1xf32>
    %1927 = arith.mulf %1926, %1895 : vector<8x1xf32>
    %cst_585 = arith.constant 0.000000e+00 : f32
    %1928 = vector.shape_cast %1927 : vector<8x1xf32> to vector<8x1xf32>
    %1929 = vector.broadcast %1928 : vector<8x1xf32> to vector<8x128xf32>
    %1930 = vector.broadcast %cst_585 : f32 to vector<8x128xf32>
    %1931 = arith.select %1925, %1929, %1930 : vector<8x128xi1>, vector<8x128xf32>
    %1932 = arith.addf %1886, %1931 : vector<8x128xf32>
    %c0_i32_586 = arith.constant 0 : i32
    %1933 = vector.broadcast %c0_i32_586 : i32 to vector<8x1xi32>
    %1934 = arith.cmpi sge, %1902, %1933 : vector<8x1xi32>
    %c7_i32_587 = arith.constant 7 : i32
    %1935 = vector.broadcast %c7_i32_587 : i32 to vector<8x1xi32>
    %1936 = arith.cmpi sle, %1902, %1935 : vector<8x1xi32>
    %1937 = arith.andi %1934, %1936 : vector<8x1xi1>
    %c0_i32_588 = arith.constant 0 : i32
    %1938 = vector.broadcast %c0_i32_588 : i32 to vector<8x1xi32>
    %1939 = arith.cmpi sge, %1900, %1938 : vector<8x1xi32>
    %1940 = arith.andi %1937, %1939 : vector<8x1xi1>
    %c7_i32_589 = arith.constant 7 : i32
    %1941 = vector.broadcast %c7_i32_589 : i32 to vector<8x1xi32>
    %1942 = arith.cmpi sle, %1900, %1941 : vector<8x1xi32>
    %1943 = arith.andi %1940, %1942 : vector<8x1xi1>
    %c8_i32_590 = arith.constant 8 : i32
    %1944 = vector.broadcast %c8_i32_590 : i32 to vector<8x1xi32>
    %1945 = arith.muli %1900, %1944 : vector<8x1xi32>
    %c0_i32_591 = arith.constant 0 : i32
    %1946 = vector.broadcast %c0_i32_591 : i32 to vector<8x1xi32>
    %1947 = arith.addi %1946, %1945 : vector<8x1xi32>
    %1948 = arith.addi %1947, %1902 : vector<8x1xi32>
    %c-1_i32_592 = arith.constant -1 : i32
    %1949 = vector.broadcast %c-1_i32_592 : i32 to vector<8x1xi32>
    %1950 = arith.select %1943, %1948, %1949 : vector<8x1xi1>, vector<8x1xi32>
    %1951 = vector.broadcast %1950 : vector<8x1xi32> to vector<8x128xi32>
    %1952 = arith.cmpi eq, %151, %1951 : vector<8x128xi32>
    %1953 = arith.mulf %1905, %1898 : vector<8x1xf32>
    %1954 = arith.mulf %1953, %1893 : vector<8x1xf32>
    %cst_593 = arith.constant 0.000000e+00 : f32
    %1955 = vector.shape_cast %1954 : vector<8x1xf32> to vector<8x1xf32>
    %1956 = vector.broadcast %1955 : vector<8x1xf32> to vector<8x128xf32>
    %1957 = vector.broadcast %cst_593 : f32 to vector<8x128xf32>
    %1958 = arith.select %1952, %1956, %1957 : vector<8x128xi1>, vector<8x128xf32>
    %1959 = arith.addf %1932, %1958 : vector<8x128xf32>
    %c0_i32_594 = arith.constant 0 : i32
    %1960 = vector.broadcast %c0_i32_594 : i32 to vector<8x1xi32>
    %1961 = arith.cmpi sge, %1899, %1960 : vector<8x1xi32>
    %c7_i32_595 = arith.constant 7 : i32
    %1962 = vector.broadcast %c7_i32_595 : i32 to vector<8x1xi32>
    %1963 = arith.cmpi sle, %1899, %1962 : vector<8x1xi32>
    %1964 = arith.andi %1961, %1963 : vector<8x1xi1>
    %c0_i32_596 = arith.constant 0 : i32
    %1965 = vector.broadcast %c0_i32_596 : i32 to vector<8x1xi32>
    %1966 = arith.cmpi sge, %1904, %1965 : vector<8x1xi32>
    %1967 = arith.andi %1964, %1966 : vector<8x1xi1>
    %c7_i32_597 = arith.constant 7 : i32
    %1968 = vector.broadcast %c7_i32_597 : i32 to vector<8x1xi32>
    %1969 = arith.cmpi sle, %1904, %1968 : vector<8x1xi32>
    %1970 = arith.andi %1967, %1969 : vector<8x1xi1>
    %c8_i32_598 = arith.constant 8 : i32
    %1971 = vector.broadcast %c8_i32_598 : i32 to vector<8x1xi32>
    %1972 = arith.muli %1904, %1971 : vector<8x1xi32>
    %c0_i32_599 = arith.constant 0 : i32
    %1973 = vector.broadcast %c0_i32_599 : i32 to vector<8x1xi32>
    %1974 = arith.addi %1973, %1972 : vector<8x1xi32>
    %1975 = arith.addi %1974, %1899 : vector<8x1xi32>
    %c-1_i32_600 = arith.constant -1 : i32
    %1976 = vector.broadcast %c-1_i32_600 : i32 to vector<8x1xi32>
    %1977 = arith.select %1970, %1975, %1976 : vector<8x1xi1>, vector<8x1xi32>
    %1978 = vector.broadcast %1977 : vector<8x1xi32> to vector<8x128xi32>
    %1979 = arith.cmpi eq, %151, %1978 : vector<8x128xi32>
    %1980 = arith.mulf %1905, %1896 : vector<8x1xf32>
    %1981 = arith.mulf %1980, %1895 : vector<8x1xf32>
    %cst_601 = arith.constant 0.000000e+00 : f32
    %1982 = vector.shape_cast %1981 : vector<8x1xf32> to vector<8x1xf32>
    %1983 = vector.broadcast %1982 : vector<8x1xf32> to vector<8x128xf32>
    %1984 = vector.broadcast %cst_601 : f32 to vector<8x128xf32>
    %1985 = arith.select %1979, %1983, %1984 : vector<8x128xi1>, vector<8x128xf32>
    %1986 = arith.addf %1959, %1985 : vector<8x128xf32>
    %c0_i32_602 = arith.constant 0 : i32
    %1987 = vector.broadcast %c0_i32_602 : i32 to vector<8x1xi32>
    %1988 = arith.cmpi sge, %1902, %1987 : vector<8x1xi32>
    %c7_i32_603 = arith.constant 7 : i32
    %1989 = vector.broadcast %c7_i32_603 : i32 to vector<8x1xi32>
    %1990 = arith.cmpi sle, %1902, %1989 : vector<8x1xi32>
    %1991 = arith.andi %1988, %1990 : vector<8x1xi1>
    %c0_i32_604 = arith.constant 0 : i32
    %1992 = vector.broadcast %c0_i32_604 : i32 to vector<8x1xi32>
    %1993 = arith.cmpi sge, %1904, %1992 : vector<8x1xi32>
    %1994 = arith.andi %1991, %1993 : vector<8x1xi1>
    %c7_i32_605 = arith.constant 7 : i32
    %1995 = vector.broadcast %c7_i32_605 : i32 to vector<8x1xi32>
    %1996 = arith.cmpi sle, %1904, %1995 : vector<8x1xi32>
    %1997 = arith.andi %1994, %1996 : vector<8x1xi1>
    %c8_i32_606 = arith.constant 8 : i32
    %1998 = vector.broadcast %c8_i32_606 : i32 to vector<8x1xi32>
    %1999 = arith.muli %1904, %1998 : vector<8x1xi32>
    %c0_i32_607 = arith.constant 0 : i32
    %2000 = vector.broadcast %c0_i32_607 : i32 to vector<8x1xi32>
    %2001 = arith.addi %2000, %1999 : vector<8x1xi32>
    %2002 = arith.addi %2001, %1902 : vector<8x1xi32>
    %c-1_i32_608 = arith.constant -1 : i32
    %2003 = vector.broadcast %c-1_i32_608 : i32 to vector<8x1xi32>
    %2004 = arith.select %1997, %2002, %2003 : vector<8x1xi1>, vector<8x1xi32>
    %2005 = vector.broadcast %2004 : vector<8x1xi32> to vector<8x128xi32>
    %2006 = arith.cmpi eq, %151, %2005 : vector<8x128xi32>
    %2007 = arith.mulf %1905, %1896 : vector<8x1xf32>
    %2008 = arith.mulf %2007, %1893 : vector<8x1xf32>
    %cst_609 = arith.constant 0.000000e+00 : f32
    %2009 = vector.shape_cast %2008 : vector<8x1xf32> to vector<8x1xf32>
    %2010 = vector.broadcast %2009 : vector<8x1xf32> to vector<8x128xf32>
    %2011 = vector.broadcast %cst_609 : f32 to vector<8x128xf32>
    %2012 = arith.select %2006, %2010, %2011 : vector<8x128xi1>, vector<8x128xf32>
    %2013 = arith.addf %1986, %2012 : vector<8x128xf32>
    %2014 = vector.extract_strided_slice %143 {offsets = [0, 28], sizes = [8, 1], strides = [1, 1]} : vector<8x32xf32> to vector<8x1xf32>
    %2015 = vector.extract_strided_slice %143 {offsets = [0, 29], sizes = [8, 1], strides = [1, 1]} : vector<8x32xf32> to vector<8x1xf32>
    %2016 = arith.addf %167, %2014 : vector<8x1xf32>
    %2017 = arith.addf %171, %2015 : vector<8x1xf32>
    %2018 = math.floor %2016 : vector<8x1xf32>
    %2019 = math.floor %2017 : vector<8x1xf32>
    %2020 = arith.subf %2016, %2018 : vector<8x1xf32>
    %cst_610 = arith.constant 1.000000e+00 : f32
    %2021 = vector.broadcast %cst_610 : f32 to vector<8x1xf32>
    %2022 = arith.subf %2021, %2020 : vector<8x1xf32>
    %2023 = arith.subf %2017, %2019 : vector<8x1xf32>
    %cst_611 = arith.constant 1.000000e+00 : f32
    %2024 = vector.broadcast %cst_611 : f32 to vector<8x1xf32>
    %2025 = arith.subf %2024, %2023 : vector<8x1xf32>
    %2026 = arith.fptosi %2018 : vector<8x1xf32> to vector<8x1xi32>
    %2027 = arith.fptosi %2019 : vector<8x1xf32> to vector<8x1xi32>
    %c1_i32_612 = arith.constant 1 : i32
    %2028 = vector.broadcast %c1_i32_612 : i32 to vector<8x1xi32>
    %2029 = arith.addi %2026, %2028 : vector<8x1xi32>
    %c1_i32_613 = arith.constant 1 : i32
    %2030 = vector.broadcast %c1_i32_613 : i32 to vector<8x1xi32>
    %2031 = arith.addi %2027, %2030 : vector<8x1xi32>
    %2032 = vector.extract_strided_slice %1758 {offsets = [0, 2], sizes = [8, 1], strides = [1, 1]} : vector<8x4xf32> to vector<8x1xf32>
    %c0_i32_614 = arith.constant 0 : i32
    %2033 = vector.broadcast %c0_i32_614 : i32 to vector<8x1xi32>
    %2034 = arith.cmpi sge, %2026, %2033 : vector<8x1xi32>
    %c3_i32_615 = arith.constant 3 : i32
    %2035 = vector.broadcast %c3_i32_615 : i32 to vector<8x1xi32>
    %2036 = arith.cmpi sle, %2026, %2035 : vector<8x1xi32>
    %2037 = arith.andi %2034, %2036 : vector<8x1xi1>
    %c0_i32_616 = arith.constant 0 : i32
    %2038 = vector.broadcast %c0_i32_616 : i32 to vector<8x1xi32>
    %2039 = arith.cmpi sge, %2027, %2038 : vector<8x1xi32>
    %2040 = arith.andi %2037, %2039 : vector<8x1xi1>
    %c3_i32_617 = arith.constant 3 : i32
    %2041 = vector.broadcast %c3_i32_617 : i32 to vector<8x1xi32>
    %2042 = arith.cmpi sle, %2027, %2041 : vector<8x1xi32>
    %2043 = arith.andi %2040, %2042 : vector<8x1xi1>
    %c4_i32_618 = arith.constant 4 : i32
    %2044 = vector.broadcast %c4_i32_618 : i32 to vector<8x1xi32>
    %2045 = arith.muli %2027, %2044 : vector<8x1xi32>
    %c64_i32_619 = arith.constant 64 : i32
    %2046 = vector.broadcast %c64_i32_619 : i32 to vector<8x1xi32>
    %2047 = arith.addi %2046, %2045 : vector<8x1xi32>
    %2048 = arith.addi %2047, %2026 : vector<8x1xi32>
    %c-1_i32_620 = arith.constant -1 : i32
    %2049 = vector.broadcast %c-1_i32_620 : i32 to vector<8x1xi32>
    %2050 = arith.select %2043, %2048, %2049 : vector<8x1xi1>, vector<8x1xi32>
    %2051 = vector.broadcast %2050 : vector<8x1xi32> to vector<8x128xi32>
    %2052 = arith.cmpi eq, %151, %2051 : vector<8x128xi32>
    %2053 = arith.mulf %2032, %2025 : vector<8x1xf32>
    %2054 = arith.mulf %2053, %2022 : vector<8x1xf32>
    %cst_621 = arith.constant 0.000000e+00 : f32
    %2055 = vector.shape_cast %2054 : vector<8x1xf32> to vector<8x1xf32>
    %2056 = vector.broadcast %2055 : vector<8x1xf32> to vector<8x128xf32>
    %2057 = vector.broadcast %cst_621 : f32 to vector<8x128xf32>
    %2058 = arith.select %2052, %2056, %2057 : vector<8x128xi1>, vector<8x128xf32>
    %2059 = arith.addf %2013, %2058 : vector<8x128xf32>
    %c0_i32_622 = arith.constant 0 : i32
    %2060 = vector.broadcast %c0_i32_622 : i32 to vector<8x1xi32>
    %2061 = arith.cmpi sge, %2029, %2060 : vector<8x1xi32>
    %c3_i32_623 = arith.constant 3 : i32
    %2062 = vector.broadcast %c3_i32_623 : i32 to vector<8x1xi32>
    %2063 = arith.cmpi sle, %2029, %2062 : vector<8x1xi32>
    %2064 = arith.andi %2061, %2063 : vector<8x1xi1>
    %c0_i32_624 = arith.constant 0 : i32
    %2065 = vector.broadcast %c0_i32_624 : i32 to vector<8x1xi32>
    %2066 = arith.cmpi sge, %2027, %2065 : vector<8x1xi32>
    %2067 = arith.andi %2064, %2066 : vector<8x1xi1>
    %c3_i32_625 = arith.constant 3 : i32
    %2068 = vector.broadcast %c3_i32_625 : i32 to vector<8x1xi32>
    %2069 = arith.cmpi sle, %2027, %2068 : vector<8x1xi32>
    %2070 = arith.andi %2067, %2069 : vector<8x1xi1>
    %c4_i32_626 = arith.constant 4 : i32
    %2071 = vector.broadcast %c4_i32_626 : i32 to vector<8x1xi32>
    %2072 = arith.muli %2027, %2071 : vector<8x1xi32>
    %c64_i32_627 = arith.constant 64 : i32
    %2073 = vector.broadcast %c64_i32_627 : i32 to vector<8x1xi32>
    %2074 = arith.addi %2073, %2072 : vector<8x1xi32>
    %2075 = arith.addi %2074, %2029 : vector<8x1xi32>
    %c-1_i32_628 = arith.constant -1 : i32
    %2076 = vector.broadcast %c-1_i32_628 : i32 to vector<8x1xi32>
    %2077 = arith.select %2070, %2075, %2076 : vector<8x1xi1>, vector<8x1xi32>
    %2078 = vector.broadcast %2077 : vector<8x1xi32> to vector<8x128xi32>
    %2079 = arith.cmpi eq, %151, %2078 : vector<8x128xi32>
    %2080 = arith.mulf %2032, %2025 : vector<8x1xf32>
    %2081 = arith.mulf %2080, %2020 : vector<8x1xf32>
    %cst_629 = arith.constant 0.000000e+00 : f32
    %2082 = vector.shape_cast %2081 : vector<8x1xf32> to vector<8x1xf32>
    %2083 = vector.broadcast %2082 : vector<8x1xf32> to vector<8x128xf32>
    %2084 = vector.broadcast %cst_629 : f32 to vector<8x128xf32>
    %2085 = arith.select %2079, %2083, %2084 : vector<8x128xi1>, vector<8x128xf32>
    %2086 = arith.addf %2059, %2085 : vector<8x128xf32>
    %c0_i32_630 = arith.constant 0 : i32
    %2087 = vector.broadcast %c0_i32_630 : i32 to vector<8x1xi32>
    %2088 = arith.cmpi sge, %2026, %2087 : vector<8x1xi32>
    %c3_i32_631 = arith.constant 3 : i32
    %2089 = vector.broadcast %c3_i32_631 : i32 to vector<8x1xi32>
    %2090 = arith.cmpi sle, %2026, %2089 : vector<8x1xi32>
    %2091 = arith.andi %2088, %2090 : vector<8x1xi1>
    %c0_i32_632 = arith.constant 0 : i32
    %2092 = vector.broadcast %c0_i32_632 : i32 to vector<8x1xi32>
    %2093 = arith.cmpi sge, %2031, %2092 : vector<8x1xi32>
    %2094 = arith.andi %2091, %2093 : vector<8x1xi1>
    %c3_i32_633 = arith.constant 3 : i32
    %2095 = vector.broadcast %c3_i32_633 : i32 to vector<8x1xi32>
    %2096 = arith.cmpi sle, %2031, %2095 : vector<8x1xi32>
    %2097 = arith.andi %2094, %2096 : vector<8x1xi1>
    %c4_i32_634 = arith.constant 4 : i32
    %2098 = vector.broadcast %c4_i32_634 : i32 to vector<8x1xi32>
    %2099 = arith.muli %2031, %2098 : vector<8x1xi32>
    %c64_i32_635 = arith.constant 64 : i32
    %2100 = vector.broadcast %c64_i32_635 : i32 to vector<8x1xi32>
    %2101 = arith.addi %2100, %2099 : vector<8x1xi32>
    %2102 = arith.addi %2101, %2026 : vector<8x1xi32>
    %c-1_i32_636 = arith.constant -1 : i32
    %2103 = vector.broadcast %c-1_i32_636 : i32 to vector<8x1xi32>
    %2104 = arith.select %2097, %2102, %2103 : vector<8x1xi1>, vector<8x1xi32>
    %2105 = vector.broadcast %2104 : vector<8x1xi32> to vector<8x128xi32>
    %2106 = arith.cmpi eq, %151, %2105 : vector<8x128xi32>
    %2107 = arith.mulf %2032, %2023 : vector<8x1xf32>
    %2108 = arith.mulf %2107, %2022 : vector<8x1xf32>
    %cst_637 = arith.constant 0.000000e+00 : f32
    %2109 = vector.shape_cast %2108 : vector<8x1xf32> to vector<8x1xf32>
    %2110 = vector.broadcast %2109 : vector<8x1xf32> to vector<8x128xf32>
    %2111 = vector.broadcast %cst_637 : f32 to vector<8x128xf32>
    %2112 = arith.select %2106, %2110, %2111 : vector<8x128xi1>, vector<8x128xf32>
    %2113 = arith.addf %2086, %2112 : vector<8x128xf32>
    %c0_i32_638 = arith.constant 0 : i32
    %2114 = vector.broadcast %c0_i32_638 : i32 to vector<8x1xi32>
    %2115 = arith.cmpi sge, %2029, %2114 : vector<8x1xi32>
    %c3_i32_639 = arith.constant 3 : i32
    %2116 = vector.broadcast %c3_i32_639 : i32 to vector<8x1xi32>
    %2117 = arith.cmpi sle, %2029, %2116 : vector<8x1xi32>
    %2118 = arith.andi %2115, %2117 : vector<8x1xi1>
    %c0_i32_640 = arith.constant 0 : i32
    %2119 = vector.broadcast %c0_i32_640 : i32 to vector<8x1xi32>
    %2120 = arith.cmpi sge, %2031, %2119 : vector<8x1xi32>
    %2121 = arith.andi %2118, %2120 : vector<8x1xi1>
    %c3_i32_641 = arith.constant 3 : i32
    %2122 = vector.broadcast %c3_i32_641 : i32 to vector<8x1xi32>
    %2123 = arith.cmpi sle, %2031, %2122 : vector<8x1xi32>
    %2124 = arith.andi %2121, %2123 : vector<8x1xi1>
    %c4_i32_642 = arith.constant 4 : i32
    %2125 = vector.broadcast %c4_i32_642 : i32 to vector<8x1xi32>
    %2126 = arith.muli %2031, %2125 : vector<8x1xi32>
    %c64_i32_643 = arith.constant 64 : i32
    %2127 = vector.broadcast %c64_i32_643 : i32 to vector<8x1xi32>
    %2128 = arith.addi %2127, %2126 : vector<8x1xi32>
    %2129 = arith.addi %2128, %2029 : vector<8x1xi32>
    %c-1_i32_644 = arith.constant -1 : i32
    %2130 = vector.broadcast %c-1_i32_644 : i32 to vector<8x1xi32>
    %2131 = arith.select %2124, %2129, %2130 : vector<8x1xi1>, vector<8x1xi32>
    %2132 = vector.broadcast %2131 : vector<8x1xi32> to vector<8x128xi32>
    %2133 = arith.cmpi eq, %151, %2132 : vector<8x128xi32>
    %2134 = arith.mulf %2032, %2023 : vector<8x1xf32>
    %2135 = arith.mulf %2134, %2020 : vector<8x1xf32>
    %cst_645 = arith.constant 0.000000e+00 : f32
    %2136 = vector.shape_cast %2135 : vector<8x1xf32> to vector<8x1xf32>
    %2137 = vector.broadcast %2136 : vector<8x1xf32> to vector<8x128xf32>
    %2138 = vector.broadcast %cst_645 : f32 to vector<8x128xf32>
    %2139 = arith.select %2133, %2137, %2138 : vector<8x128xi1>, vector<8x128xf32>
    %2140 = arith.addf %2113, %2139 : vector<8x128xf32>
    %2141 = vector.extract_strided_slice %143 {offsets = [0, 30], sizes = [8, 1], strides = [1, 1]} : vector<8x32xf32> to vector<8x1xf32>
    %2142 = vector.extract_strided_slice %143 {offsets = [0, 31], sizes = [8, 1], strides = [1, 1]} : vector<8x32xf32> to vector<8x1xf32>
    %2143 = arith.addf %167, %2141 : vector<8x1xf32>
    %2144 = arith.addf %171, %2142 : vector<8x1xf32>
    %2145 = math.floor %2143 : vector<8x1xf32>
    %2146 = math.floor %2144 : vector<8x1xf32>
    %2147 = arith.subf %2143, %2145 : vector<8x1xf32>
    %cst_646 = arith.constant 1.000000e+00 : f32
    %2148 = vector.broadcast %cst_646 : f32 to vector<8x1xf32>
    %2149 = arith.subf %2148, %2147 : vector<8x1xf32>
    %2150 = arith.subf %2144, %2146 : vector<8x1xf32>
    %cst_647 = arith.constant 1.000000e+00 : f32
    %2151 = vector.broadcast %cst_647 : f32 to vector<8x1xf32>
    %2152 = arith.subf %2151, %2150 : vector<8x1xf32>
    %2153 = arith.fptosi %2145 : vector<8x1xf32> to vector<8x1xi32>
    %2154 = arith.fptosi %2146 : vector<8x1xf32> to vector<8x1xi32>
    %c1_i32_648 = arith.constant 1 : i32
    %2155 = vector.broadcast %c1_i32_648 : i32 to vector<8x1xi32>
    %2156 = arith.addi %2153, %2155 : vector<8x1xi32>
    %c1_i32_649 = arith.constant 1 : i32
    %2157 = vector.broadcast %c1_i32_649 : i32 to vector<8x1xi32>
    %2158 = arith.addi %2154, %2157 : vector<8x1xi32>
    %2159 = vector.extract_strided_slice %1758 {offsets = [0, 3], sizes = [8, 1], strides = [1, 1]} : vector<8x4xf32> to vector<8x1xf32>
    %c0_i32_650 = arith.constant 0 : i32
    %2160 = vector.broadcast %c0_i32_650 : i32 to vector<8x1xi32>
    %2161 = arith.cmpi sge, %2153, %2160 : vector<8x1xi32>
    %c3_i32_651 = arith.constant 3 : i32
    %2162 = vector.broadcast %c3_i32_651 : i32 to vector<8x1xi32>
    %2163 = arith.cmpi sle, %2153, %2162 : vector<8x1xi32>
    %2164 = arith.andi %2161, %2163 : vector<8x1xi1>
    %c0_i32_652 = arith.constant 0 : i32
    %2165 = vector.broadcast %c0_i32_652 : i32 to vector<8x1xi32>
    %2166 = arith.cmpi sge, %2154, %2165 : vector<8x1xi32>
    %2167 = arith.andi %2164, %2166 : vector<8x1xi1>
    %c3_i32_653 = arith.constant 3 : i32
    %2168 = vector.broadcast %c3_i32_653 : i32 to vector<8x1xi32>
    %2169 = arith.cmpi sle, %2154, %2168 : vector<8x1xi32>
    %2170 = arith.andi %2167, %2169 : vector<8x1xi1>
    %c4_i32_654 = arith.constant 4 : i32
    %2171 = vector.broadcast %c4_i32_654 : i32 to vector<8x1xi32>
    %2172 = arith.muli %2154, %2171 : vector<8x1xi32>
    %c64_i32_655 = arith.constant 64 : i32
    %2173 = vector.broadcast %c64_i32_655 : i32 to vector<8x1xi32>
    %2174 = arith.addi %2173, %2172 : vector<8x1xi32>
    %2175 = arith.addi %2174, %2153 : vector<8x1xi32>
    %c-1_i32_656 = arith.constant -1 : i32
    %2176 = vector.broadcast %c-1_i32_656 : i32 to vector<8x1xi32>
    %2177 = arith.select %2170, %2175, %2176 : vector<8x1xi1>, vector<8x1xi32>
    %2178 = vector.broadcast %2177 : vector<8x1xi32> to vector<8x128xi32>
    %2179 = arith.cmpi eq, %151, %2178 : vector<8x128xi32>
    %2180 = arith.mulf %2159, %2152 : vector<8x1xf32>
    %2181 = arith.mulf %2180, %2149 : vector<8x1xf32>
    %cst_657 = arith.constant 0.000000e+00 : f32
    %2182 = vector.shape_cast %2181 : vector<8x1xf32> to vector<8x1xf32>
    %2183 = vector.broadcast %2182 : vector<8x1xf32> to vector<8x128xf32>
    %2184 = vector.broadcast %cst_657 : f32 to vector<8x128xf32>
    %2185 = arith.select %2179, %2183, %2184 : vector<8x128xi1>, vector<8x128xf32>
    %2186 = arith.addf %2140, %2185 : vector<8x128xf32>
    %c0_i32_658 = arith.constant 0 : i32
    %2187 = vector.broadcast %c0_i32_658 : i32 to vector<8x1xi32>
    %2188 = arith.cmpi sge, %2156, %2187 : vector<8x1xi32>
    %c3_i32_659 = arith.constant 3 : i32
    %2189 = vector.broadcast %c3_i32_659 : i32 to vector<8x1xi32>
    %2190 = arith.cmpi sle, %2156, %2189 : vector<8x1xi32>
    %2191 = arith.andi %2188, %2190 : vector<8x1xi1>
    %c0_i32_660 = arith.constant 0 : i32
    %2192 = vector.broadcast %c0_i32_660 : i32 to vector<8x1xi32>
    %2193 = arith.cmpi sge, %2154, %2192 : vector<8x1xi32>
    %2194 = arith.andi %2191, %2193 : vector<8x1xi1>
    %c3_i32_661 = arith.constant 3 : i32
    %2195 = vector.broadcast %c3_i32_661 : i32 to vector<8x1xi32>
    %2196 = arith.cmpi sle, %2154, %2195 : vector<8x1xi32>
    %2197 = arith.andi %2194, %2196 : vector<8x1xi1>
    %c4_i32_662 = arith.constant 4 : i32
    %2198 = vector.broadcast %c4_i32_662 : i32 to vector<8x1xi32>
    %2199 = arith.muli %2154, %2198 : vector<8x1xi32>
    %c64_i32_663 = arith.constant 64 : i32
    %2200 = vector.broadcast %c64_i32_663 : i32 to vector<8x1xi32>
    %2201 = arith.addi %2200, %2199 : vector<8x1xi32>
    %2202 = arith.addi %2201, %2156 : vector<8x1xi32>
    %c-1_i32_664 = arith.constant -1 : i32
    %2203 = vector.broadcast %c-1_i32_664 : i32 to vector<8x1xi32>
    %2204 = arith.select %2197, %2202, %2203 : vector<8x1xi1>, vector<8x1xi32>
    %2205 = vector.broadcast %2204 : vector<8x1xi32> to vector<8x128xi32>
    %2206 = arith.cmpi eq, %151, %2205 : vector<8x128xi32>
    %2207 = arith.mulf %2159, %2152 : vector<8x1xf32>
    %2208 = arith.mulf %2207, %2147 : vector<8x1xf32>
    %cst_665 = arith.constant 0.000000e+00 : f32
    %2209 = vector.shape_cast %2208 : vector<8x1xf32> to vector<8x1xf32>
    %2210 = vector.broadcast %2209 : vector<8x1xf32> to vector<8x128xf32>
    %2211 = vector.broadcast %cst_665 : f32 to vector<8x128xf32>
    %2212 = arith.select %2206, %2210, %2211 : vector<8x128xi1>, vector<8x128xf32>
    %2213 = arith.addf %2186, %2212 : vector<8x128xf32>
    %c0_i32_666 = arith.constant 0 : i32
    %2214 = vector.broadcast %c0_i32_666 : i32 to vector<8x1xi32>
    %2215 = arith.cmpi sge, %2153, %2214 : vector<8x1xi32>
    %c3_i32_667 = arith.constant 3 : i32
    %2216 = vector.broadcast %c3_i32_667 : i32 to vector<8x1xi32>
    %2217 = arith.cmpi sle, %2153, %2216 : vector<8x1xi32>
    %2218 = arith.andi %2215, %2217 : vector<8x1xi1>
    %c0_i32_668 = arith.constant 0 : i32
    %2219 = vector.broadcast %c0_i32_668 : i32 to vector<8x1xi32>
    %2220 = arith.cmpi sge, %2158, %2219 : vector<8x1xi32>
    %2221 = arith.andi %2218, %2220 : vector<8x1xi1>
    %c3_i32_669 = arith.constant 3 : i32
    %2222 = vector.broadcast %c3_i32_669 : i32 to vector<8x1xi32>
    %2223 = arith.cmpi sle, %2158, %2222 : vector<8x1xi32>
    %2224 = arith.andi %2221, %2223 : vector<8x1xi1>
    %c4_i32_670 = arith.constant 4 : i32
    %2225 = vector.broadcast %c4_i32_670 : i32 to vector<8x1xi32>
    %2226 = arith.muli %2158, %2225 : vector<8x1xi32>
    %c64_i32_671 = arith.constant 64 : i32
    %2227 = vector.broadcast %c64_i32_671 : i32 to vector<8x1xi32>
    %2228 = arith.addi %2227, %2226 : vector<8x1xi32>
    %2229 = arith.addi %2228, %2153 : vector<8x1xi32>
    %c-1_i32_672 = arith.constant -1 : i32
    %2230 = vector.broadcast %c-1_i32_672 : i32 to vector<8x1xi32>
    %2231 = arith.select %2224, %2229, %2230 : vector<8x1xi1>, vector<8x1xi32>
    %2232 = vector.broadcast %2231 : vector<8x1xi32> to vector<8x128xi32>
    %2233 = arith.cmpi eq, %151, %2232 : vector<8x128xi32>
    %2234 = arith.mulf %2159, %2150 : vector<8x1xf32>
    %2235 = arith.mulf %2234, %2149 : vector<8x1xf32>
    %cst_673 = arith.constant 0.000000e+00 : f32
    %2236 = vector.shape_cast %2235 : vector<8x1xf32> to vector<8x1xf32>
    %2237 = vector.broadcast %2236 : vector<8x1xf32> to vector<8x128xf32>
    %2238 = vector.broadcast %cst_673 : f32 to vector<8x128xf32>
    %2239 = arith.select %2233, %2237, %2238 : vector<8x128xi1>, vector<8x128xf32>
    %2240 = arith.addf %2213, %2239 : vector<8x128xf32>
    %c0_i32_674 = arith.constant 0 : i32
    %2241 = vector.broadcast %c0_i32_674 : i32 to vector<8x1xi32>
    %2242 = arith.cmpi sge, %2156, %2241 : vector<8x1xi32>
    %c3_i32_675 = arith.constant 3 : i32
    %2243 = vector.broadcast %c3_i32_675 : i32 to vector<8x1xi32>
    %2244 = arith.cmpi sle, %2156, %2243 : vector<8x1xi32>
    %2245 = arith.andi %2242, %2244 : vector<8x1xi1>
    %c0_i32_676 = arith.constant 0 : i32
    %2246 = vector.broadcast %c0_i32_676 : i32 to vector<8x1xi32>
    %2247 = arith.cmpi sge, %2158, %2246 : vector<8x1xi32>
    %2248 = arith.andi %2245, %2247 : vector<8x1xi1>
    %c3_i32_677 = arith.constant 3 : i32
    %2249 = vector.broadcast %c3_i32_677 : i32 to vector<8x1xi32>
    %2250 = arith.cmpi sle, %2158, %2249 : vector<8x1xi32>
    %2251 = arith.andi %2248, %2250 : vector<8x1xi1>
    %c4_i32_678 = arith.constant 4 : i32
    %2252 = vector.broadcast %c4_i32_678 : i32 to vector<8x1xi32>
    %2253 = arith.muli %2158, %2252 : vector<8x1xi32>
    %c64_i32_679 = arith.constant 64 : i32
    %2254 = vector.broadcast %c64_i32_679 : i32 to vector<8x1xi32>
    %2255 = arith.addi %2254, %2253 : vector<8x1xi32>
    %2256 = arith.addi %2255, %2156 : vector<8x1xi32>
    %c-1_i32_680 = arith.constant -1 : i32
    %2257 = vector.broadcast %c-1_i32_680 : i32 to vector<8x1xi32>
    %2258 = arith.select %2251, %2256, %2257 : vector<8x1xi1>, vector<8x1xi32>
    %2259 = vector.broadcast %2258 : vector<8x1xi32> to vector<8x128xi32>
    %2260 = arith.cmpi eq, %151, %2259 : vector<8x128xi32>
    %2261 = arith.mulf %2159, %2150 : vector<8x1xf32>
    %2262 = arith.mulf %2261, %2147 : vector<8x1xf32>
    %cst_681 = arith.constant 0.000000e+00 : f32
    %2263 = vector.shape_cast %2262 : vector<8x1xf32> to vector<8x1xf32>
    %2264 = vector.broadcast %2263 : vector<8x1xf32> to vector<8x128xf32>
    %2265 = vector.broadcast %cst_681 : f32 to vector<8x128xf32>
    %2266 = arith.select %2260, %2264, %2265 : vector<8x128xi1>, vector<8x128xf32>
    %2267 = arith.addf %2240, %2266 : vector<8x128xf32>
    %2268 = vector.extract_strided_slice %138 {offsets = [0, 24], sizes = [128, 8], strides = [1, 1]} : vector<128x32xf32> to vector<128x8xf32>
    %cst_682 = arith.constant dense<0.000000e+00> : vector<8x8xf32>
    %2269 = tpu.matmul %2267, %2268, %cst_682 {dimension_numbers = #tpu.dot_dimension_numbers<[1], [0], [0], [1], [0, 0, 1, 1], [], []>} : vector<8x128xf32>, vector<128x8xf32>, vector<8x8xf32> -> vector<8x8xf32>
    %c24_683 = arith.constant 24 : index
    %c0_684 = arith.constant 0 : index
    %2270 = vector.load %arg21[%c24_683, %c0_684] : memref<32x32xf32, #tpu.memory_space<vmem>>, vector<8x32xf32>
    %cst_685 = arith.constant dense<0.000000e+00> : vector<8x32xf32>
    %2271 = tpu.matmul %2269, %2270, %cst_685 {dimension_numbers = #tpu.dot_dimension_numbers<[1], [0], [0], [1], [0, 0, 1, 1], [], []>} : vector<8x8xf32>, vector<8x32xf32>, vector<8x32xf32> -> vector<8x32xf32>
    %2272 = arith.addf %1747, %2271 : vector<8x32xf32>
    %c0_686 = arith.constant 0 : index
    %c0_687 = arith.constant 0 : index
    %2273 = vector.load %arg22[%c0_686, %c0_687] : memref<1x32xf32, #tpu.memory_space<vmem>>, vector<1x32xf32>
    %2274 = vector.broadcast %2273 : vector<1x32xf32> to vector<8x32xf32>
    %2275 = arith.addf %2272, %2274 : vector<8x32xf32>
    %2276 = arith.addf %130, %2275 : vector<8x32xf32>
    %c0_688 = arith.constant 0 : index
    %c0_689 = arith.constant 0 : index
    %2277 = vector.load %arg23[%c0_688, %c0_689] : memref<1x32xf32, #tpu.memory_space<vmem>>, vector<1x32xf32>
    %c0_690 = arith.constant 0 : index
    %c0_691 = arith.constant 0 : index
    %2278 = vector.load %arg24[%c0_690, %c0_691] : memref<1x32xf32, #tpu.memory_space<vmem>>, vector<1x32xf32>
    %cst_692 = arith.constant dense<0.000000e+00> : vector<8xf32>
    %2279 = vector.multi_reduction <add>, %2276, %cst_692 [1] : vector<8x32xf32> to vector<8xf32>
    %2280 = vector.shape_cast %2279 : vector<8xf32> to vector<8x1xf32>
    %cst_693 = arith.constant 3.200000e+01 : f32
    %2281 = vector.broadcast %cst_693 : f32 to vector<8x1xf32>
    %2282 = arith.divf %2280, %2281 : vector<8x1xf32>
    %2283 = vector.broadcast %2282 : vector<8x1xf32> to vector<8x32xf32>
    %2284 = arith.subf %2276, %2283 : vector<8x32xf32>
    %2285 = arith.mulf %2284, %2284 : vector<8x32xf32>
    %cst_694 = arith.constant dense<0.000000e+00> : vector<8xf32>
    %2286 = vector.multi_reduction <add>, %2285, %cst_694 [1] : vector<8x32xf32> to vector<8xf32>
    %2287 = vector.shape_cast %2286 : vector<8xf32> to vector<8x1xf32>
    %cst_695 = arith.constant 3.200000e+01 : f32
    %2288 = vector.broadcast %cst_695 : f32 to vector<8x1xf32>
    %2289 = arith.divf %2287, %2288 : vector<8x1xf32>
    %cst_696 = arith.constant 9.99999974E-6 : f32
    %2290 = vector.broadcast %cst_696 : f32 to vector<8x1xf32>
    %2291 = arith.addf %2289, %2290 : vector<8x1xf32>
    %2292 = math.rsqrt %2291 : vector<8x1xf32>
    %2293 = vector.broadcast %2292 : vector<8x1xf32> to vector<8x32xf32>
    %2294 = arith.mulf %2284, %2293 : vector<8x32xf32>
    %2295 = vector.broadcast %2277 : vector<1x32xf32> to vector<8x32xf32>
    %2296 = arith.mulf %2294, %2295 : vector<8x32xf32>
    %2297 = vector.broadcast %2278 : vector<1x32xf32> to vector<8x32xf32>
    %2298 = arith.addf %2296, %2297 : vector<8x32xf32>
    %c0_697 = arith.constant 0 : index
    %c0_698 = arith.constant 0 : index
    %2299 = vector.load %arg25[%c0_697, %c0_698] : memref<32x64xf32, #tpu.memory_space<vmem>>, vector<32x64xf32>
    %cst_699 = arith.constant dense<0.000000e+00> : vector<8x64xf32>
    %2300 = tpu.matmul %2298, %2299, %cst_699 {dimension_numbers = #tpu.dot_dimension_numbers<[1], [0], [0], [1], [0, 0, 1, 1], [], []>} : vector<8x32xf32>, vector<32x64xf32>, vector<8x64xf32> -> vector<8x64xf32>
    %c0_700 = arith.constant 0 : index
    %c0_701 = arith.constant 0 : index
    %2301 = vector.load %arg26[%c0_700, %c0_701] : memref<1x64xf32, #tpu.memory_space<vmem>>, vector<1x64xf32>
    %2302 = vector.broadcast %2301 : vector<1x64xf32> to vector<8x64xf32>
    %2303 = arith.addf %2300, %2302 : vector<8x64xf32>
    %cst_702 = arith.constant 0.000000e+00 : f32
    %2304 = vector.broadcast %cst_702 : f32 to vector<8x64xf32>
    %2305 = arith.maximumf %2303, %2304 : vector<8x64xf32>
    %c0_703 = arith.constant 0 : index
    %c0_704 = arith.constant 0 : index
    %2306 = vector.load %arg27[%c0_703, %c0_704] : memref<64x32xf32, #tpu.memory_space<vmem>>, vector<64x32xf32>
    %cst_705 = arith.constant dense<0.000000e+00> : vector<8x32xf32>
    %2307 = tpu.matmul %2305, %2306, %cst_705 {dimension_numbers = #tpu.dot_dimension_numbers<[1], [0], [0], [1], [0, 0, 1, 1], [], []>} : vector<8x64xf32>, vector<64x32xf32>, vector<8x32xf32> -> vector<8x32xf32>
    %c0_706 = arith.constant 0 : index
    %c0_707 = arith.constant 0 : index
    %2308 = vector.load %arg28[%c0_706, %c0_707] : memref<1x32xf32, #tpu.memory_space<vmem>>, vector<1x32xf32>
    %2309 = vector.broadcast %2308 : vector<1x32xf32> to vector<8x32xf32>
    %2310 = arith.addf %2307, %2309 : vector<8x32xf32>
    %2311 = arith.addf %2298, %2310 : vector<8x32xf32>
    %c0_708 = arith.constant 0 : index
    %c0_709 = arith.constant 0 : index
    %2312 = vector.load %arg29[%c0_708, %c0_709] : memref<1x32xf32, #tpu.memory_space<vmem>>, vector<1x32xf32>
    %c0_710 = arith.constant 0 : index
    %c0_711 = arith.constant 0 : index
    %2313 = vector.load %arg30[%c0_710, %c0_711] : memref<1x32xf32, #tpu.memory_space<vmem>>, vector<1x32xf32>
    %cst_712 = arith.constant dense<0.000000e+00> : vector<8xf32>
    %2314 = vector.multi_reduction <add>, %2311, %cst_712 [1] : vector<8x32xf32> to vector<8xf32>
    %2315 = vector.shape_cast %2314 : vector<8xf32> to vector<8x1xf32>
    %cst_713 = arith.constant 3.200000e+01 : f32
    %2316 = vector.broadcast %cst_713 : f32 to vector<8x1xf32>
    %2317 = arith.divf %2315, %2316 : vector<8x1xf32>
    %2318 = vector.broadcast %2317 : vector<8x1xf32> to vector<8x32xf32>
    %2319 = arith.subf %2311, %2318 : vector<8x32xf32>
    %2320 = arith.mulf %2319, %2319 : vector<8x32xf32>
    %cst_714 = arith.constant dense<0.000000e+00> : vector<8xf32>
    %2321 = vector.multi_reduction <add>, %2320, %cst_714 [1] : vector<8x32xf32> to vector<8xf32>
    %2322 = vector.shape_cast %2321 : vector<8xf32> to vector<8x1xf32>
    %cst_715 = arith.constant 3.200000e+01 : f32
    %2323 = vector.broadcast %cst_715 : f32 to vector<8x1xf32>
    %2324 = arith.divf %2322, %2323 : vector<8x1xf32>
    %cst_716 = arith.constant 9.99999974E-6 : f32
    %2325 = vector.broadcast %cst_716 : f32 to vector<8x1xf32>
    %2326 = arith.addf %2324, %2325 : vector<8x1xf32>
    %2327 = math.rsqrt %2326 : vector<8x1xf32>
    %2328 = vector.broadcast %2327 : vector<8x1xf32> to vector<8x32xf32>
    %2329 = arith.mulf %2319, %2328 : vector<8x32xf32>
    %2330 = vector.broadcast %2312 : vector<1x32xf32> to vector<8x32xf32>
    %2331 = arith.mulf %2329, %2330 : vector<8x32xf32>
    %2332 = vector.broadcast %2313 : vector<1x32xf32> to vector<8x32xf32>
    %2333 = arith.addf %2331, %2332 : vector<8x32xf32>
    %c0_717 = arith.constant 0 : index
    %c0_718 = arith.constant 0 : index
    %c0_719 = arith.constant 0 : index
    %2334 = vector.load %arg31[%c0_717, %c0_718, %c0_719] : memref<1x8x32xf32, #tpu.memory_space<vmem>>, vector<1x8x32xf32>
    %2335 = vector.shape_cast %2334 : vector<1x8x32xf32> to vector<8x32xf32>
    %2336 = vector.shape_cast %2333 : vector<8x32xf32> to vector<1x8x32xf32>
    tpu.vector_store %arg31[%c0_717, %c0_718, %c0_719], %2336 {strides = array<i32>} : memref<1x8x32xf32, #tpu.memory_space<vmem>>, vector<1x8x32xf32>,
    return
  }
  func.func @transform_0(%arg0: i32) -> (i32, i32, i32) {
    %c0_i32 = arith.constant 0 : i32
    %c0_i32_0 = arith.constant 0 : i32
    %c0_i32_1 = arith.constant 0 : i32
    return %arg0, %c0_i32, %c0_i32_0 : i32, i32, i32
  }
  func.func @transform_1(%arg0: i32) -> (i32, i32, i32) {
    %c0_i32 = arith.constant 0 : i32
    %c0_i32_0 = arith.constant 0 : i32
    %c0_i32_1 = arith.constant 0 : i32
    return %arg0, %c0_i32, %c0_i32_0 : i32, i32, i32
  }
  func.func @transform_2(%arg0: i32) -> (i32, i32, i32) {
    %c0_i32 = arith.constant 0 : i32
    %c0_i32_0 = arith.constant 0 : i32
    %c0_i32_1 = arith.constant 0 : i32
    return %arg0, %c0_i32, %c0_i32_0 : i32, i32, i32
  }
  func.func @transform_3(%arg0: i32) -> (i32, i32, i32) {
    %c0_i32 = arith.constant 0 : i32
    %c0_i32_0 = arith.constant 0 : i32
    %c0_i32_1 = arith.constant 0 : i32
    return %arg0, %c0_i32, %c0_i32_0 : i32, i32, i32
  }
  func.func @transform_4(%arg0: i32) -> (i32, i32) {
    %c0_i32 = arith.constant 0 : i32
    %c0_i32_0 = arith.constant 0 : i32
    %c0_i32_1 = arith.constant 0 : i32
    return %c0_i32, %c0_i32_0 : i32, i32
  }
  func.func @transform_5(%arg0: i32) -> (i32, i32) {
    %c0_i32 = arith.constant 0 : i32
    %c0_i32_0 = arith.constant 0 : i32
    %c0_i32_1 = arith.constant 0 : i32
    return %c0_i32, %c0_i32_0 : i32, i32
  }
  func.func @transform_6(%arg0: i32) -> (i32, i32) {
    %c0_i32 = arith.constant 0 : i32
    %c0_i32_0 = arith.constant 0 : i32
    %c0_i32_1 = arith.constant 0 : i32
    return %c0_i32, %c0_i32_0 : i32, i32
  }
  func.func @transform_7(%arg0: i32) -> (i32, i32) {
    %c0_i32 = arith.constant 0 : i32
    %c0_i32_0 = arith.constant 0 : i32
    %c0_i32_1 = arith.constant 0 : i32
    return %c0_i32, %c0_i32_0 : i32, i32
  }
  func.func @transform_8(%arg0: i32) -> (i32, i32) {
    %c0_i32 = arith.constant 0 : i32
    %c0_i32_0 = arith.constant 0 : i32
    %c0_i32_1 = arith.constant 0 : i32
    return %c0_i32, %c0_i32_0 : i32, i32
  }
  func.func @transform_9(%arg0: i32) -> (i32, i32) {
    %c0_i32 = arith.constant 0 : i32
    %c0_i32_0 = arith.constant 0 : i32
    %c0_i32_1 = arith.constant 0 : i32
    return %c0_i32, %c0_i32_0 : i32, i32
  }
  func.func @transform_10(%arg0: i32) -> (i32, i32) {
    %c0_i32 = arith.constant 0 : i32
    %c0_i32_0 = arith.constant 0 : i32
    %c0_i32_1 = arith.constant 0 : i32
    return %c0_i32, %c0_i32_0 : i32, i32
  }
  func.func @transform_11(%arg0: i32) -> (i32, i32) {
    %c0_i32 = arith.constant 0 : i32
    %c0_i32_0 = arith.constant 0 : i32
    %c0_i32_1 = arith.constant 0 : i32
    return %c0_i32, %c0_i32_0 : i32, i32
  }
  func.func @transform_12(%arg0: i32) -> (i32, i32) {
    %c0_i32 = arith.constant 0 : i32
    %c0_i32_0 = arith.constant 0 : i32
    %c0_i32_1 = arith.constant 0 : i32
    return %c0_i32, %c0_i32_0 : i32, i32
  }
  func.func @transform_13(%arg0: i32) -> (i32, i32) {
    %c0_i32 = arith.constant 0 : i32
    %c0_i32_0 = arith.constant 0 : i32
    %c0_i32_1 = arith.constant 0 : i32
    return %c0_i32, %c0_i32_0 : i32, i32
  }
  func.func @transform_14(%arg0: i32) -> (i32, i32) {
    %c0_i32 = arith.constant 0 : i32
    %c0_i32_0 = arith.constant 0 : i32
    %c0_i32_1 = arith.constant 0 : i32
    return %c0_i32, %c0_i32_0 : i32, i32
  }
  func.func @transform_15(%arg0: i32) -> (i32, i32) {
    %c0_i32 = arith.constant 0 : i32
    %c0_i32_0 = arith.constant 0 : i32
    %c0_i32_1 = arith.constant 0 : i32
    return %c0_i32, %c0_i32_0 : i32, i32
  }
  func.func @transform_16(%arg0: i32) -> (i32, i32) {
    %c0_i32 = arith.constant 0 : i32
    %c0_i32_0 = arith.constant 0 : i32
    %c0_i32_1 = arith.constant 0 : i32
    return %c0_i32, %c0_i32_0 : i32, i32
  }
  func.func @transform_17(%arg0: i32) -> (i32, i32) {
    %c0_i32 = arith.constant 0 : i32
    %c0_i32_0 = arith.constant 0 : i32
    %c0_i32_1 = arith.constant 0 : i32
    return %c0_i32, %c0_i32_0 : i32, i32
  }
  func.func @transform_18(%arg0: i32) -> (i32, i32) {
    %c0_i32 = arith.constant 0 : i32
    %c0_i32_0 = arith.constant 0 : i32
    %c0_i32_1 = arith.constant 0 : i32
    return %c0_i32, %c0_i32_0 : i32, i32
  }
  func.func @transform_19(%arg0: i32) -> (i32, i32) {
    %c0_i32 = arith.constant 0 : i32
    %c0_i32_0 = arith.constant 0 : i32
    %c0_i32_1 = arith.constant 0 : i32
    return %c0_i32, %c0_i32_0 : i32, i32
  }
  func.func @transform_20(%arg0: i32) -> (i32, i32) {
    %c0_i32 = arith.constant 0 : i32
    %c0_i32_0 = arith.constant 0 : i32
    %c0_i32_1 = arith.constant 0 : i32
    return %c0_i32, %c0_i32_0 : i32, i32
  }
  func.func @transform_21(%arg0: i32) -> (i32, i32) {
    %c0_i32 = arith.constant 0 : i32
    %c0_i32_0 = arith.constant 0 : i32
    %c0_i32_1 = arith.constant 0 : i32
    return %c0_i32, %c0_i32_0 : i32, i32
  }
  func.func @transform_22(%arg0: i32) -> (i32, i32) {
    %c0_i32 = arith.constant 0 : i32
    %c0_i32_0 = arith.constant 0 : i32
    %c0_i32_1 = arith.constant 0 : i32
    return %c0_i32, %c0_i32_0 : i32, i32
  }
  func.func @transform_23(%arg0: i32) -> (i32, i32) {
    %c0_i32 = arith.constant 0 : i32
    %c0_i32_0 = arith.constant 0 : i32
    %c0_i32_1 = arith.constant 0 : i32
    return %c0_i32, %c0_i32_0 : i32, i32
  }
  func.func @transform_24(%arg0: i32) -> (i32, i32) {
    %c0_i32 = arith.constant 0 : i32
    %c0_i32_0 = arith.constant 0 : i32
    %c0_i32_1 = arith.constant 0 : i32
    return %c0_i32, %c0_i32_0 : i32, i32
  }
  func.func @transform_25(%arg0: i32) -> (i32, i32) {
    %c0_i32 = arith.constant 0 : i32
    %c0_i32_0 = arith.constant 0 : i32
    %c0_i32_1 = arith.constant 0 : i32
    return %c0_i32, %c0_i32_0 : i32, i32
  }
  func.func @transform_26(%arg0: i32) -> (i32, i32) {
    %c0_i32 = arith.constant 0 : i32
    %c0_i32_0 = arith.constant 0 : i32
    %c0_i32_1 = arith.constant 0 : i32
    return %c0_i32, %c0_i32_0 : i32, i32
  }
  func.func @transform_27(%arg0: i32) -> (i32, i32) {
    %c0_i32 = arith.constant 0 : i32
    %c0_i32_0 = arith.constant 0 : i32
    %c0_i32_1 = arith.constant 0 : i32
    return %c0_i32, %c0_i32_0 : i32, i32
  }
  func.func @transform_28(%arg0: i32) -> (i32, i32) {
    %c0_i32 = arith.constant 0 : i32
    %c0_i32_0 = arith.constant 0 : i32
    %c0_i32_1 = arith.constant 0 : i32
    return %c0_i32, %c0_i32_0 : i32, i32
  }
  func.func @transform_29(%arg0: i32) -> (i32, i32) {
    %c0_i32 = arith.constant 0 : i32
    %c0_i32_0 = arith.constant 0 : i32
    %c0_i32_1 = arith.constant 0 : i32
    return %c0_i32, %c0_i32_0 : i32, i32
  }
  func.func @transform_30(%arg0: i32) -> (i32, i32, i32) {
    %c0_i32 = arith.constant 0 : i32
    %c0_i32_0 = arith.constant 0 : i32
    %c0_i32_1 = arith.constant 0 : i32
    return %arg0, %c0_i32, %c0_i32_0 : i32, i32, i32
  }
}

</mosaic_0001>

<llo_original>
// kernel: decoder_layer_forward.1
$region0: #{decoder_layer_forward.1}
  #allocation0 [shape = 'u32[]', space=smem, size = 0x4, offset = 0x4, fixed_abs, tag = 'smem constant byte address 0x4 - core index']
  #allocation1 [shape = 'u32[144,128]{1,0:T(1,128)}', space=vmem, size = 0x12000, scoped, tag = 'internal scratch']
  %s0 = inlined_call_operand.smem [shape: u32[31], index: -1, kind: input, shape index: {}]
  %s1 = sld [smem:[%s0]]
  %s2 = scalar_lea.smem %s0, 1
  %s3 = sld [smem:[%s2]]
  %s4 = scalar_lea.smem %s0, 2
  %s5 = sld [smem:[%s4]]
  %s6 = scalar_lea.smem %s0, 3
  %s7 = sld [smem:[%s6]]
  %s8 = scalar_lea.smem %s0, 4
  %s9 = sld [smem:[%s8]]
  %s10 = scalar_lea.smem %s0, 5
  %s11 = sld [smem:[%s10]]
  %s12 = scalar_lea.smem %s0, 6
  %s13 = sld [smem:[%s12]]
  %s14 = scalar_lea.smem %s0, 7
  %s15 = sld [smem:[%s14]]
  %s16 = scalar_lea.smem %s0, 8
  %s17 = sld [smem:[%s16]]
  %s18 = scalar_lea.smem %s0, 9
  %s19 = sld [smem:[%s18]]
  %s20 = scalar_lea.smem %s0, 10
  %s21 = sld [smem:[%s20]]
  %s22 = scalar_lea.smem %s0, 11
  %s23 = sld [smem:[%s22]]
  %s24 = scalar_lea.smem %s0, 12
  %s25 = sld [smem:[%s24]]
  %s26 = scalar_lea.smem %s0, 13
  %s27 = sld [smem:[%s26]]
  %s28 = scalar_lea.smem %s0, 14
  %s29 = sld [smem:[%s28]]
  %s30 = scalar_lea.smem %s0, 15
  %s31 = sld [smem:[%s30]]
  %s32 = scalar_lea.smem %s0, 16
  %s33 = sld [smem:[%s32]]
  %s34 = scalar_lea.smem %s0, 17
  %s35 = sld [smem:[%s34]]
  %s36 = scalar_lea.smem %s0, 18
  %s37 = sld [smem:[%s36]]
  %s38 = scalar_lea.smem %s0, 19
  %s39 = sld [smem:[%s38]]
  %s40 = scalar_lea.smem %s0, 20
  %s41 = sld [smem:[%s40]]
  %s42 = scalar_lea.smem %s0, 21
  %s43 = sld [smem:[%s42]]
  %s44 = scalar_lea.smem %s0, 22
  %s45 = sld [smem:[%s44]]
  %s46 = scalar_lea.smem %s0, 23
  %s47 = sld [smem:[%s46]]
  %s48 = scalar_lea.smem %s0, 24
  %s49 = sld [smem:[%s48]]
  %s50 = scalar_lea.smem %s0, 25
  %s51 = sld [smem:[%s50]]
  %s52 = scalar_lea.smem %s0, 26
  %s53 = sld [smem:[%s52]]
  %s54 = scalar_lea.smem %s0, 27
  %s55 = sld [smem:[%s54]]
  %s56 = scalar_lea.smem %s0, 28
  %s57 = sld [smem:[%s56]]
  %s58 = scalar_lea.smem %s0, 29
  %s59 = sld [smem:[%s58]]
  %s60 = scalar_lea.smem %s0, 30
  %s61 = sld [smem:[%s60]]
  %s62 = sld [smem:[#allocation0]]
  $region153: #{decoder_layer_forward.1} parent=0
    _
  %s64 = ssub.s32 1, %s62
  %s65 = scalar_select 0, %s64, %s62
  $region1: #{decoder_layer_forward.1} parent=0
    #allocation2 [shape = 'u8[8192]{0}', space=vmem, size = 0x2000, scoped, tag = 'output window, operand 0']
    #allocation3 [shape = 's32[2]{0}', space=sflag, size = 0x8, scoped, tag = 'scoped memory for decoder_layer_forward.1']
    %66 = vsyncpa [#allocation3], 0
    %s67 = scalar_lea.sflag [#allocation3], 1
    %68 = vsyncpa %s67, 0
    loop: start=0, step=1, limit=4
    $region2: #{decoder_layer_forward.1} parent=1 // loop_pre_header
      _
    $region3: #{decoder_layer_forward.1} parent=1 // loop_header
      %s70 = sphi 0, %s74
      %p71 = scmp.ge.s32.totalorder %s70, 4
      %s80 = sphi 0, %s82
      %s83 = sphi 0, %s80
      %s84 = sphi 0, %s83
      %s100 = sphi 0, %s84
      %s106 = sphi 0, %s108
      %s109 = sphi 0, %s106
      %s110 = sphi 0, %s109
      %s126 = sphi 0, %s110
      %s132 = sphi 0, %s134
      %s135 = sphi 0, %s132
      %s136 = sphi 0, %s135
      %s152 = sphi 0, %s136
      %s158 = sphi 0, %s160
      %s161 = sphi 0, %s158
      %s162 = sphi 0, %s161
      %s178 = sphi 0, %s162
      %s182 = sphi 0, %s182
      %s184 = sphi 0, %s182
      %s185 = sphi 0, %s184
      %s199 = sphi 0, %s185
      %s203 = sphi 0, %s203
      %s205 = sphi 0, %s203
      %s206 = sphi 0, %s205
      %s220 = sphi 0, %s206
      %s224 = sphi 0, %s224
      %s226 = sphi 0, %s224
      %s227 = sphi 0, %s226
      %s241 = sphi 0, %s227
      %s245 = sphi 0, %s245
      %s247 = sphi 0, %s245
      %s248 = sphi 0, %s247
      %s262 = sphi 0, %s248
      %s266 = sphi 0, %s266
      %s268 = sphi 0, %s266
      %s269 = sphi 0, %s268
      %s283 = sphi 0, %s269
      %s287 = sphi 0, %s287
      %s289 = sphi 0, %s287
      %s290 = sphi 0, %s289
      %s304 = sphi 0, %s290
      %s308 = sphi 0, %s308
      %s310 = sphi 0, %s308
      %s311 = sphi 0, %s310
      %s325 = sphi 0, %s311
      %s329 = sphi 0, %s329
      %s331 = sphi 0, %s329
      %s332 = sphi 0, %s331
      %s346 = sphi 0, %s332
      %s350 = sphi 0, %s350
      %s352 = sphi 0, %s350
      %s353 = sphi 0, %s352
      %s367 = sphi 0, %s353
      %s371 = sphi 0, %s371
      %s373 = sphi 0, %s371
      %s374 = sphi 0, %s373
      %s388 = sphi 0, %s374
      %s392 = sphi 0, %s392
      %s394 = sphi 0, %s392
      %s395 = sphi 0, %s394
      %s409 = sphi 0, %s395
      %s413 = sphi 0, %s413
      %s415 = sphi 0, %s413
      %s416 = sphi 0, %s415
      %s430 = sphi 0, %s416
      %s434 = sphi 0, %s434
      %s436 = sphi 0, %s434
      %s437 = sphi 0, %s436
      %s451 = sphi 0, %s437
      %s455 = sphi 0, %s455
      %s457 = sphi 0, %s455
      %s458 = sphi 0, %s457
      %s472 = sphi 0, %s458
      %s476 = sphi 0, %s476
      %s478 = sphi 0, %s476
      %s479 = sphi 0, %s478
      %s493 = sphi 0, %s479
      %s497 = sphi 0, %s497
      %s499 = sphi 0, %s497
      %s500 = sphi 0, %s499
      %s514 = sphi 0, %s500
      %s518 = sphi 0, %s518
      %s520 = sphi 0, %s518
      %s521 = sphi 0, %s520
      %s535 = sphi 0, %s521
      %s539 = sphi 0, %s539
      %s541 = sphi 0, %s539
      %s542 = sphi 0, %s541
      %s556 = sphi 0, %s542
      %s560 = sphi 0, %s560
      %s562 = sphi 0, %s560
      %s563 = sphi 0, %s562
      %s577 = sphi 0, %s563
      %s581 = sphi 0, %s581
      %s583 = sphi 0, %s581
      %s584 = sphi 0, %s583
      %s598 = sphi 0, %s584
      %s602 = sphi 0, %s602
      %s604 = sphi 0, %s602
      %s605 = sphi 0, %s604
      %s619 = sphi 0, %s605
      %s623 = sphi 0, %s623
      %s625 = sphi 0, %s623
      %s626 = sphi 0, %s625
      %s640 = sphi 0, %s626
      %s644 = sphi 0, %s644
      %s646 = sphi 0, %s644
      %s647 = sphi 0, %s646
      %s661 = sphi 0, %s647
      %s665 = sphi 0, %s665
      %s667 = sphi 0, %s665
      %s668 = sphi 0, %s667
      %s682 = sphi 0, %s668
      %s686 = sphi 0, %s686
      %s688 = sphi 0, %s686
      %s689 = sphi 0, %s688
      %s703 = sphi 0, %s689
      %s707 = sphi 0, %s707
      %s709 = sphi 0, %s707
      %s710 = sphi 0, %s709
      %s724 = sphi 0, %s710
      %s730 = sphi 0, %s732
      %s733 = sphi 0, %s730
      %s734 = sphi 0, %s733
      %s750 = sphi 0, %s734
    $region4: #{decoder_layer_forward.1} parent=1 // loop_header_branch
      %73 = sbr.rel (%p71) target = $region8
    $region5: #{decoder_layer_forward.1} parent=1 // loop_body
      %s75 = ssub.s32 %s70, 1
      %s76 = ssub.s32 %s70, 2
      %s77 = sadd.s32 %s70, 1
      %s78 = ssub.s32 %s70, %s77
      %p79 = scmp.eq.s32.totalorder %s78, 0
      %s81 = sadd.s32 %s80, 1
      %s82 = scalar_select %p79, %s80, %s81
      %p85 = pneg %p79
      %p86 = scmp.eq.s32.totalorder %s70, 1
      %p87 = por %p85, %p86
      %p88 = scmp.ne.s32.totalorder %s80, %s83
      %p89 = scmp.eq.s32.totalorder %s70, 0
      %p90 = por %p88, %p89
      %p91 = scmp.ne.s32.totalorder %s80, %s83
      %p92 = scmp.eq.s32.totalorder %s75, 1
      %p93 = por %p91, %p92
      %p94 = scmp.ne.s32.totalorder %s83, %s84
      %p95 = scmp.eq.s32.totalorder %s75, 0
      %p96 = por %p94, %p95
      %p97 = scmp.ne.s32.totalorder %s83, %s84
      %p98 = scmp.eq.s32.totalorder %s76, 1
      %p99 = por %p97, %p98
      %p101 = scmp.ne.s32.totalorder %s84, %s100
      %p102 = scmp.eq.s32.totalorder %s76, 0
      %p103 = por %p101, %p102
      %s104 = ssub.s32 %s70, %s77
      %p105 = scmp.eq.s32.totalorder %s104, 0
      %s107 = sadd.s32 %s106, 1
      %s108 = scalar_select %p105, %s106, %s107
      %p111 = pneg %p105
      %p112 = scmp.eq.s32.totalorder %s70, 1
      %p113 = por %p111, %p112
      %p114 = scmp.ne.s32.totalorder %s106, %s109
      %p115 = scmp.eq.s32.totalorder %s70, 0
      %p116 = por %p114, %p115
      %p117 = scmp.ne.s32.totalorder %s106, %s109
      %p118 = scmp.eq.s32.totalorder %s75, 1
      %p119 = por %p117, %p118
      %p120 = scmp.ne.s32.totalorder %s109, %s110
      %p121 = scmp.eq.s32.totalorder %s75, 0
      %p122 = por %p120, %p121
      %p123 = scmp.ne.s32.totalorder %s109, %s110
      %p124 = scmp.eq.s32.totalorder %s76, 1
      %p125 = por %p123, %p124
      %p127 = scmp.ne.s32.totalorder %s110, %s126
      %p128 = scmp.eq.s32.totalorder %s76, 0
      %p129 = por %p127, %p128
      %s130 = ssub.s32 %s70, %s77
      %p131 = scmp.eq.s32.totalorder %s130, 0
      %s133 = sadd.s32 %s132, 1
      %s134 = scalar_select %p131, %s132, %s133
      %p137 = pneg %p131
      %p138 = scmp.eq.s32.totalorder %s70, 1
      %p139 = por %p137, %p138
      %p140 = scmp.ne.s32.totalorder %s132, %s135
      %p141 = scmp.eq.s32.totalorder %s70, 0
      %p142 = por %p140, %p141
      %p143 = scmp.ne.s32.totalorder %s132, %s135
      %p144 = scmp.eq.s32.totalorder %s75, 1
      %p145 = por %p143, %p144
      %p146 = scmp.ne.s32.totalorder %s135, %s136
      %p147 = scmp.eq.s32.totalorder %s75, 0
      %p148 = por %p146, %p147
      %p149 = scmp.ne.s32.totalorder %s135, %s136
      %p150 = scmp.eq.s32.totalorder %s76, 1
      %p151 = por %p149, %p150
      %p153 = scmp.ne.s32.totalorder %s136, %s152
      %p154 = scmp.eq.s32.totalorder %s76, 0
      %p155 = por %p153, %p154
      %s156 = ssub.s32 %s70, %s77
      %p157 = scmp.eq.s32.totalorder %s156, 0
      %s159 = sadd.s32 %s158, 1
      %s160 = scalar_select %p157, %s158, %s159
      %p163 = pneg %p157
      %p164 = scmp.eq.s32.totalorder %s70, 1
      %p165 = por %p163, %p164
      %p166 = scmp.ne.s32.totalorder %s158, %s161
      %p167 = scmp.eq.s32.totalorder %s70, 0
      %p168 = por %p166, %p167
      %p169 = scmp.ne.s32.totalorder %s158, %s161
      %p170 = scmp.eq.s32.totalorder %s75, 1
      %p171 = por %p169, %p170
      %p172 = scmp.ne.s32.totalorder %s161, %s162
      %p173 = scmp.eq.s32.totalorder %s75, 0
      %p174 = por %p172, %p173
      %p175 = scmp.ne.s32.totalorder %s161, %s162
      %p176 = scmp.eq.s32.totalorder %s76, 1
      %p177 = por %p175, %p176
      %p179 = scmp.ne.s32.totalorder %s162, %s178
      %p180 = scmp.eq.s32.totalorder %s76, 0
      %p181 = por %p179, %p180
      %s183 = sadd.s32 %s182, 1
      %p186 = scmp.eq.s32.totalorder %s70, 1
      %p187 = scmp.ne.s32.totalorder %s182, %s184
      %p188 = scmp.eq.s32.totalorder %s70, 0
      %p189 = por %p187, %p188
      %p190 = scmp.ne.s32.totalorder %s182, %s184
      %p191 = scmp.eq.s32.totalorder %s75, 1
      %p192 = por %p190, %p191
      %p193 = scmp.ne.s32.totalorder %s184, %s185
      %p194 = scmp.eq.s32.totalorder %s75, 0
      %p195 = por %p193, %p194
      %p196 = scmp.ne.s32.totalorder %s184, %s185
      %p197 = scmp.eq.s32.totalorder %s76, 1
      %p198 = por %p196, %p197
      %p200 = scmp.ne.s32.totalorder %s185, %s199
      %p201 = scmp.eq.s32.totalorder %s76, 0
      %p202 = por %p200, %p201
      %s204 = sadd.s32 %s203, 1
      %p207 = scmp.eq.s32.totalorder %s70, 1
      %p208 = scmp.ne.s32.totalorder %s203, %s205
      %p209 = scmp.eq.s32.totalorder %s70, 0
      %p210 = por %p208, %p209
      %p211 = scmp.ne.s32.totalorder %s203, %s205
      %p212 = scmp.eq.s32.totalorder %s75, 1
      %p213 = por %p211, %p212
      %p214 = scmp.ne.s32.totalorder %s205, %s206
      %p215 = scmp.eq.s32.totalorder %s75, 0
      %p216 = por %p214, %p215
      %p217 = scmp.ne.s32.totalorder %s205, %s206
      %p218 = scmp.eq.s32.totalorder %s76, 1
      %p219 = por %p217, %p218
      %p221 = scmp.ne.s32.totalorder %s206, %s220
      %p222 = scmp.eq.s32.totalorder %s76, 0
      %p223 = por %p221, %p222
      %s225 = sadd.s32 %s224, 1
      %p228 = scmp.eq.s32.totalorder %s70, 1
      %p229 = scmp.ne.s32.totalorder %s224, %s226
      %p230 = scmp.eq.s32.totalorder %s70, 0
      %p231 = por %p229, %p230
      %p232 = scmp.ne.s32.totalorder %s224, %s226
      %p233 = scmp.eq.s32.totalorder %s75, 1
      %p234 = por %p232, %p233
      %p235 = scmp.ne.s32.totalorder %s226, %s227
      %p236 = scmp.eq.s32.totalorder %s75, 0
      %p237 = por %p235, %p236
      %p238 = scmp.ne.s32.totalorder %s226, %s227
      %p239 = scmp.eq.s32.totalorder %s76, 1
      %p240 = por %p238, %p239
      %p242 = scmp.ne.s32.totalorder %s227, %s241
      %p243 = scmp.eq.s32.totalorder %s76, 0
      %p244 = por %p242, %p243
      %s246 = sadd.s32 %s245, 1
      %p249 = scmp.eq.s32.totalorder %s70, 1
      %p250 = scmp.ne.s32.totalorder %s245, %s247
      %p251 = scmp.eq.s32.totalorder %s70, 0
      %p252 = por %p250, %p251
      %p253 = scmp.ne.s32.totalorder %s245, %s247
      %p254 = scmp.eq.s32.totalorder %s75, 1
      %p255 = por %p253, %p254
      %p256 = scmp.ne.s32.totalorder %s247, %s248
      %p257 = scmp.eq.s32.totalorder %s75, 0
      %p258 = por %p256, %p257
      %p259 = scmp.ne.s32.totalorder %s247, %s248
      %p260 = scmp.eq.s32.totalorder %s76, 1
      %p261 = por %p259, %p260
      %p263 = scmp.ne.s32.totalorder %s248, %s262
      %p264 = scmp.eq.s32.totalorder %s76, 0
      %p265 = por %p263, %p264
      %s267 = sadd.s32 %s266, 1
      %p270 = scmp.eq.s32.totalorder %s70, 1
      %p271 = scmp.ne.s32.totalorder %s266, %s268
      %p272 = scmp.eq.s32.totalorder %s70, 0
      %p273 = por %p271, %p272
      %p274 = scmp.ne.s32.totalorder %s266, %s268
      %p275 = scmp.eq.s32.totalorder %s75, 1
      %p276 = por %p274, %p275
      %p277 = scmp.ne.s32.totalorder %s268, %s269
      %p278 = scmp.eq.s32.totalorder %s75, 0
      %p279 = por %p277, %p278
      %p280 = scmp.ne.s32.totalorder %s268, %s269
      %p281 = scmp.eq.s32.totalorder %s76, 1
      %p282 = por %p280, %p281
      %p284 = scmp.ne.s32.totalorder %s269, %s283
      %p285 = scmp.eq.s32.totalorder %s76, 0
      %p286 = por %p284, %p285
      %s288 = sadd.s32 %s287, 1
      %p291 = scmp.eq.s32.totalorder %s70, 1
      %p292 = scmp.ne.s32.totalorder %s287, %s289
      %p293 = scmp.eq.s32.totalorder %s70, 0
      %p294 = por %p292, %p293
      %p295 = scmp.ne.s32.totalorder %s287, %s289
      %p296 = scmp.eq.s32.totalorder %s75, 1
      %p297 = por %p295, %p296
      %p298 = scmp.ne.s32.totalorder %s289, %s290
      %p299 = scmp.eq.s32.totalorder %s75, 0
      %p300 = por %p298, %p299
      %p301 = scmp.ne.s32.totalorder %s289, %s290
      %p302 = scmp.eq.s32.totalorder %s76, 1
      %p303 = por %p301, %p302
      %p305 = scmp.ne.s32.totalorder %s290, %s304
      %p306 = scmp.eq.s32.totalorder %s76, 0
      %p307 = por %p305, %p306
      %s309 = sadd.s32 %s308, 1
      %p312 = scmp.eq.s32.totalorder %s70, 1
      %p313 = scmp.ne.s32.totalorder %s308, %s310
      %p314 = scmp.eq.s32.totalorder %s70, 0
      %p315 = por %p313, %p314
      %p316 = scmp.ne.s32.totalorder %s308, %s310
      %p317 = scmp.eq.s32.totalorder %s75, 1
      %p318 = por %p316, %p317
      %p319 = scmp.ne.s32.totalorder %s310, %s311
      %p320 = scmp.eq.s32.totalorder %s75, 0
      %p321 = por %p319, %p320
      %p322 = scmp.ne.s32.totalorder %s310, %s311
      %p323 = scmp.eq.s32.totalorder %s76, 1
      %p324 = por %p322, %p323
      %p326 = scmp.ne.s32.totalorder %s311, %s325
      %p327 = scmp.eq.s32.totalorder %s76, 0
      %p328 = por %p326, %p327
      %s330 = sadd.s32 %s329, 1
      %p333 = scmp.eq.s32.totalorder %s70, 1
      %p334 = scmp.ne.s32.totalorder %s329, %s331
      %p335 = scmp.eq.s32.totalorder %s70, 0
      %p336 = por %p334, %p335
      %p337 = scmp.ne.s32.totalorder %s329, %s331
      %p338 = scmp.eq.s32.totalorder %s75, 1
      %p339 = por %p337, %p338
      %p340 = scmp.ne.s32.totalorder %s331, %s332
      %p341 = scmp.eq.s32.totalorder %s75, 0
      %p342 = por %p340, %p341
      %p343 = scmp.ne.s32.totalorder %s331, %s332
      %p344 = scmp.eq.s32.totalorder %s76, 1
      %p345 = por %p343, %p344
      %p347 = scmp.ne.s32.totalorder %s332, %s346
      %p348 = scmp.eq.s32.totalorder %s76, 0
      %p349 = por %p347, %p348
      %s351 = sadd.s32 %s350, 1
      %p354 = scmp.eq.s32.totalorder %s70, 1
      %p355 = scmp.ne.s32.totalorder %s350, %s352
      %p356 = scmp.eq.s32.totalorder %s70, 0
      %p357 = por %p355, %p356
      %p358 = scmp.ne.s32.totalorder %s350, %s352
      %p359 = scmp.eq.s32.totalorder %s75, 1
      %p360 = por %p358, %p359
      %p361 = scmp.ne.s32.totalorder %s352, %s353
      %p362 = scmp.eq.s32.totalorder %s75, 0
      %p363 = por %p361, %p362
      %p364 = scmp.ne.s32.totalorder %s352, %s353
      %p365 = scmp.eq.s32.totalorder %s76, 1
      %p366 = por %p364, %p365
      %p368 = scmp.ne.s32.totalorder %s353, %s367
      %p369 = scmp.eq.s32.totalorder %s76, 0
      %p370 = por %p368, %p369
      %s372 = sadd.s32 %s371, 1
      %p375 = scmp.eq.s32.totalorder %s70, 1
      %p376 = scmp.ne.s32.totalorder %s371, %s373
      %p377 = scmp.eq.s32.totalorder %s70, 0
      %p378 = por %p376, %p377
      %p379 = scmp.ne.s32.totalorder %s371, %s373
      %p380 = scmp.eq.s32.totalorder %s75, 1
      %p381 = por %p379, %p380
      %p382 = scmp.ne.s32.totalorder %s373, %s374
      %p383 = scmp.eq.s32.totalorder %s75, 0
      %p384 = por %p382, %p383
      %p385 = scmp.ne.s32.totalorder %s373, %s374
      %p386 = scmp.eq.s32.totalorder %s76, 1
      %p387 = por %p385, %p386
      %p389 = scmp.ne.s32.totalorder %s374, %s388
      %p390 = scmp.eq.s32.totalorder %s76, 0
      %p391 = por %p389, %p390
      %s393 = sadd.s32 %s392, 1
      %p396 = scmp.eq.s32.totalorder %s70, 1
      %p397 = scmp.ne.s32.totalorder %s392, %s394
      %p398 = scmp.eq.s32.totalorder %s70, 0
      %p399 = por %p397, %p398
      %p400 = scmp.ne.s32.totalorder %s392, %s394
      %p401 = scmp.eq.s32.totalorder %s75, 1
      %p402 = por %p400, %p401
      %p403 = scmp.ne.s32.totalorder %s394, %s395
      %p404 = scmp.eq.s32.totalorder %s75, 0
      %p405 = por %p403, %p404
      %p406 = scmp.ne.s32.totalorder %s394, %s395
      %p407 = scmp.eq.s32.totalorder %s76, 1
      %p408 = por %p406, %p407
      %p410 = scmp.ne.s32.totalorder %s395, %s409
      %p411 = scmp.eq.s32.totalorder %s76, 0
      %p412 = por %p410, %p411
      %s414 = sadd.s32 %s413, 1
      %p417 = scmp.eq.s32.totalorder %s70, 1
      %p418 = scmp.ne.s32.totalorder %s413, %s415
      %p419 = scmp.eq.s32.totalorder %s70, 0
      %p420 = por %p418, %p419
      %p421 = scmp.ne.s32.totalorder %s413, %s415
      %p422 = scmp.eq.s32.totalorder %s75, 1
      %p423 = por %p421, %p422
      %p424 = scmp.ne.s32.totalorder %s415, %s416
      %p425 = scmp.eq.s32.totalorder %s75, 0
      %p426 = por %p424, %p425
      %p427 = scmp.ne.s32.totalorder %s415, %s416
      %p428 = scmp.eq.s32.totalorder %s76, 1
      %p429 = por %p427, %p428
      %p431 = scmp.ne.s32.totalorder %s416, %s430
      %p432 = scmp.eq.s32.totalorder %s76, 0
      %p433 = por %p431, %p432
      %s435 = sadd.s32 %s434, 1
      %p438 = scmp.eq.s32.totalorder %s70, 1
      %p439 = scmp.ne.s32.totalorder %s434, %s436
      %p440 = scmp.eq.s32.totalorder %s70, 0
      %p441 = por %p439, %p440
      %p442 = scmp.ne.s32.totalorder %s434, %s436
      %p443 = scmp.eq.s32.totalorder %s75, 1
      %p444 = por %p442, %p443
      %p445 = scmp.ne.s32.totalorder %s436, %s437
      %p446 = scmp.eq.s32.totalorder %s75, 0
      %p447 = por %p445, %p446
      %p448 = scmp.ne.s32.totalorder %s436, %s437
      %p449 = scmp.eq.s32.totalorder %s76, 1
      %p450 = por %p448, %p449
      %p452 = scmp.ne.s32.totalorder %s437, %s451
      %p453 = scmp.eq.s32.totalorder %s76, 0
      %p454 = por %p452, %p453
      %s456 = sadd.s32 %s455, 1
      %p459 = scmp.eq.s32.totalorder %s70, 1
      %p460 = scmp.ne.s32.totalorder %s455, %s457
      %p461 = scmp.eq.s32.totalorder %s70, 0
      %p462 = por %p460, %p461
      %p463 = scmp.ne.s32.totalorder %s455, %s457
      %p464 = scmp.eq.s32.totalorder %s75, 1
      %p465 = por %p463, %p464
      %p466 = scmp.ne.s32.totalorder %s457, %s458
      %p467 = scmp.eq.s32.totalorder %s75, 0
      %p468 = por %p466, %p467
      %p469 = scmp.ne.s32.totalorder %s457, %s458
      %p470 = scmp.eq.s32.totalorder %s76, 1
      %p471 = por %p469, %p470
      %p473 = scmp.ne.s32.totalorder %s458, %s472
      %p474 = scmp.eq.s32.totalorder %s76, 0
      %p475 = por %p473, %p474
      %s477 = sadd.s32 %s476, 1
      %p480 = scmp.eq.s32.totalorder %s70, 1
      %p481 = scmp.ne.s32.totalorder %s476, %s478
      %p482 = scmp.eq.s32.totalorder %s70, 0
      %p483 = por %p481, %p482
      %p484 = scmp.ne.s32.totalorder %s476, %s478
      %p485 = scmp.eq.s32.totalorder %s75, 1
      %p486 = por %p484, %p485
      %p487 = scmp.ne.s32.totalorder %s478, %s479
      %p488 = scmp.eq.s32.totalorder %s75, 0
      %p489 = por %p487, %p488
      %p490 = scmp.ne.s32.totalorder %s478, %s479
      %p491 = scmp.eq.s32.totalorder %s76, 1
      %p492 = por %p490, %p491
      %p494 = scmp.ne.s32.totalorder %s479, %s493
      %p495 = scmp.eq.s32.totalorder %s76, 0
      %p496 = por %p494, %p495
      %s498 = sadd.s32 %s497, 1
      %p501 = scmp.eq.s32.totalorder %s70, 1
      %p502 = scmp.ne.s32.totalorder %s497, %s499
      %p503 = scmp.eq.s32.totalorder %s70, 0
      %p504 = por %p502, %p503
      %p505 = scmp.ne.s32.totalorder %s497, %s499
      %p506 = scmp.eq.s32.totalorder %s75, 1
      %p507 = por %p505, %p506
      %p508 = scmp.ne.s32.totalorder %s499, %s500
      %p509 = scmp.eq.s32.totalorder %s75, 0
      %p510 = por %p508, %p509
      %p511 = scmp.ne.s32.totalorder %s499, %s500
      %p512 = scmp.eq.s32.totalorder %s76, 1
      %p513 = por %p511, %p512
      %p515 = scmp.ne.s32.totalorder %s500, %s514
      %p516 = scmp.eq.s32.totalorder %s76, 0
      %p517 = por %p515, %p516
      %s519 = sadd.s32 %s518, 1
      %p522 = scmp.eq.s32.totalorder %s70, 1
      %p523 = scmp.ne.s32.totalorder %s518, %s520
      %p524 = scmp.eq.s32.totalorder %s70, 0
      %p525 = por %p523, %p524
      %p526 = scmp.ne.s32.totalorder %s518, %s520
      %p527 = scmp.eq.s32.totalorder %s75, 1
      %p528 = por %p526, %p527
      %p529 = scmp.ne.s32.totalorder %s520, %s521
      %p530 = scmp.eq.s32.totalorder %s75, 0
      %p531 = por %p529, %p530
      %p532 = scmp.ne.s32.totalorder %s520, %s521
      %p533 = scmp.eq.s32.totalorder %s76, 1
      %p534 = por %p532, %p533
      %p536 = scmp.ne.s32.totalorder %s521, %s535
      %p537 = scmp.eq.s32.totalorder %s76, 0
      %p538 = por %p536, %p537
      %s540 = sadd.s32 %s539, 1
      %p543 = scmp.eq.s32.totalorder %s70, 1
      %p544 = scmp.ne.s32.totalorder %s539, %s541
      %p545 = scmp.eq.s32.totalorder %s70, 0
      %p546 = por %p544, %p545
      %p547 = scmp.ne.s32.totalorder %s539, %s541
      %p548 = scmp.eq.s32.totalorder %s75, 1
      %p549 = por %p547, %p548
      %p550 = scmp.ne.s32.totalorder %s541, %s542
      %p551 = scmp.eq.s32.totalorder %s75, 0
      %p552 = por %p550, %p551
      %p553 = scmp.ne.s32.totalorder %s541, %s542
      %p554 = scmp.eq.s32.totalorder %s76, 1
      %p555 = por %p553, %p554
      %p557 = scmp.ne.s32.totalorder %s542, %s556
      %p558 = scmp.eq.s32.totalorder %s76, 0
      %p559 = por %p557, %p558
      %s561 = sadd.s32 %s560, 1
      %p564 = scmp.eq.s32.totalorder %s70, 1
      %p565 = scmp.ne.s32.totalorder %s560, %s562
      %p566 = scmp.eq.s32.totalorder %s70, 0
      %p567 = por %p565, %p566
      %p568 = scmp.ne.s32.totalorder %s560, %s562
      %p569 = scmp.eq.s32.totalorder %s75, 1
      %p570 = por %p568, %p569
      %p571 = scmp.ne.s32.totalorder %s562, %s563
      %p572 = scmp.eq.s32.totalorder %s75, 0
      %p573 = por %p571, %p572
      %p574 = scmp.ne.s32.totalorder %s562, %s563
      %p575 = scmp.eq.s32.totalorder %s76, 1
      %p576 = por %p574, %p575
      %p578 = scmp.ne.s32.totalorder %s563, %s577
      %p579 = scmp.eq.s32.totalorder %s76, 0
      %p580 = por %p578, %p579
      %s582 = sadd.s32 %s581, 1
      %p585 = scmp.eq.s32.totalorder %s70, 1
      %p586 = scmp.ne.s32.totalorder %s581, %s583
      %p587 = scmp.eq.s32.totalorder %s70, 0
      %p588 = por %p586, %p587
      %p589 = scmp.ne.s32.totalorder %s581, %s583
      %p590 = scmp.eq.s32.totalorder %s75, 1
      %p591 = por %p589, %p590
      %p592 = scmp.ne.s32.totalorder %s583, %s584
      %p593 = scmp.eq.s32.totalorder %s75, 0
      %p594 = por %p592, %p593
      %p595 = scmp.ne.s32.totalorder %s583, %s584
      %p596 = scmp.eq.s32.totalorder %s76, 1
      %p597 = por %p595, %p596
      %p599 = scmp.ne.s32.totalorder %s584, %s598
      %p600 = scmp.eq.s32.totalorder %s76, 0
      %p601 = por %p599, %p600
      %s603 = sadd.s32 %s602, 1
      %p606 = scmp.eq.s32.totalorder %s70, 1
      %p607 = scmp.ne.s32.totalorder %s602, %s604
      %p608 = scmp.eq.s32.totalorder %s70, 0
      %p609 = por %p607, %p608
      %p610 = scmp.ne.s32.totalorder %s602, %s604
      %p611 = scmp.eq.s32.totalorder %s75, 1
      %p612 = por %p610, %p611
      %p613 = scmp.ne.s32.totalorder %s604, %s605
      %p614 = scmp.eq.s32.totalorder %s75, 0
      %p615 = por %p613, %p614
      %p616 = scmp.ne.s32.totalorder %s604, %s605
      %p617 = scmp.eq.s32.totalorder %s76, 1
      %p618 = por %p616, %p617
      %p620 = scmp.ne.s32.totalorder %s605, %s619
      %p621 = scmp.eq.s32.totalorder %s76, 0
      %p622 = por %p620, %p621
      %s624 = sadd.s32 %s623, 1
      %p627 = scmp.eq.s32.totalorder %s70, 1
      %p628 = scmp.ne.s32.totalorder %s623, %s625
      %p629 = scmp.eq.s32.totalorder %s70, 0
      %p630 = por %p628, %p629
      %p631 = scmp.ne.s32.totalorder %s623, %s625
      %p632 = scmp.eq.s32.totalorder %s75, 1
      %p633 = por %p631, %p632
      %p634 = scmp.ne.s32.totalorder %s625, %s626
      %p635 = scmp.eq.s32.totalorder %s75, 0
      %p636 = por %p634, %p635
      %p637 = scmp.ne.s32.totalorder %s625, %s626
      %p638 = scmp.eq.s32.totalorder %s76, 1
      %p639 = por %p637, %p638
      %p641 = scmp.ne.s32.totalorder %s626, %s640
      %p642 = scmp.eq.s32.totalorder %s76, 0
      %p643 = por %p641, %p642
      %s645 = sadd.s32 %s644, 1
      %p648 = scmp.eq.s32.totalorder %s70, 1
      %p649 = scmp.ne.s32.totalorder %s644, %s646
      %p650 = scmp.eq.s32.totalorder %s70, 0
      %p651 = por %p649, %p650
      %p652 = scmp.ne.s32.totalorder %s644, %s646
      %p653 = scmp.eq.s32.totalorder %s75, 1
      %p654 = por %p652, %p653
      %p655 = scmp.ne.s32.totalorder %s646, %s647
      %p656 = scmp.eq.s32.totalorder %s75, 0
      %p657 = por %p655, %p656
      %p658 = scmp.ne.s32.totalorder %s646, %s647
      %p659 = scmp.eq.s32.totalorder %s76, 1
      %p660 = por %p658, %p659
      %p662 = scmp.ne.s32.totalorder %s647, %s661
      %p663 = scmp.eq.s32.totalorder %s76, 0
      %p664 = por %p662, %p663
      %s666 = sadd.s32 %s665, 1
      %p669 = scmp.eq.s32.totalorder %s70, 1
      %p670 = scmp.ne.s32.totalorder %s665, %s667
      %p671 = scmp.eq.s32.totalorder %s70, 0
      %p672 = por %p670, %p671
      %p673 = scmp.ne.s32.totalorder %s665, %s667
      %p674 = scmp.eq.s32.totalorder %s75, 1
      %p675 = por %p673, %p674
      %p676 = scmp.ne.s32.totalorder %s667, %s668
      %p677 = scmp.eq.s32.totalorder %s75, 0
      %p678 = por %p676, %p677
      %p679 = scmp.ne.s32.totalorder %s667, %s668
      %p680 = scmp.eq.s32.totalorder %s76, 1
      %p681 = por %p679, %p680
      %p683 = scmp.ne.s32.totalorder %s668, %s682
      %p684 = scmp.eq.s32.totalorder %s76, 0
      %p685 = por %p683, %p684
      %s687 = sadd.s32 %s686, 1
      %p690 = scmp.eq.s32.totalorder %s70, 1
      %p691 = scmp.ne.s32.totalorder %s686, %s688
      %p692 = scmp.eq.s32.totalorder %s70, 0
      %p693 = por %p691, %p692
      %p694 = scmp.ne.s32.totalorder %s686, %s688
      %p695 = scmp.eq.s32.totalorder %s75, 1
      %p696 = por %p694, %p695
      %p697 = scmp.ne.s32.totalorder %s688, %s689
      %p698 = scmp.eq.s32.totalorder %s75, 0
      %p699 = por %p697, %p698
      %p700 = scmp.ne.s32.totalorder %s688, %s689
      %p701 = scmp.eq.s32.totalorder %s76, 1
      %p702 = por %p700, %p701
      %p704 = scmp.ne.s32.totalorder %s689, %s703
      %p705 = scmp.eq.s32.totalorder %s76, 0
      %p706 = por %p704, %p705
      %s708 = sadd.s32 %s707, 1
      %p711 = scmp.eq.s32.totalorder %s70, 1
      %p712 = scmp.ne.s32.totalorder %s707, %s709
      %p713 = scmp.eq.s32.totalorder %s70, 0
      %p714 = por %p712, %p713
      %p715 = scmp.ne.s32.totalorder %s707, %s709
      %p716 = scmp.eq.s32.totalorder %s75, 1
      %p717 = por %p715, %p716
      %p718 = scmp.ne.s32.totalorder %s709, %s710
      %p719 = scmp.eq.s32.totalorder %s75, 0
      %p720 = por %p718, %p719
      %p721 = scmp.ne.s32.totalorder %s709, %s710
      %p722 = scmp.eq.s32.totalorder %s76, 1
      %p723 = por %p721, %p722
      %p725 = scmp.ne.s32.totalorder %s710, %s724
      %p726 = scmp.eq.s32.totalorder %s76, 0
      %p727 = por %p725, %p726
      %s728 = ssub.s32 %s70, %s77
      %p729 = scmp.eq.s32.totalorder %s728, 0
      %s731 = sadd.s32 %s730, 1
      %s732 = scalar_select %p729, %s730, %s731
      %p735 = pneg %p729
      %p736 = scmp.eq.s32.totalorder %s70, 1
      %p737 = por %p735, %p736
      %p738 = scmp.ne.s32.totalorder %s730, %s733
      %p739 = scmp.eq.s32.totalorder %s70, 0
      %p740 = por %p738, %p739
      %p741 = scmp.ne.s32.totalorder %s730, %s733
      %p742 = scmp.eq.s32.totalorder %s75, 1
      %p743 = por %p741, %p742
      %p744 = scmp.ne.s32.totalorder %s733, %s734
      %p745 = scmp.eq.s32.totalorder %s75, 0
      %p746 = por %p744, %p745
      %p747 = scmp.ne.s32.totalorder %s733, %s734
      %p748 = scmp.eq.s32.totalorder %s76, 1
      %p749 = por %p747, %p748
      %p751 = scmp.ne.s32.totalorder %s734, %s750
      %p752 = scmp.eq.s32.totalorder %s76, 0
      %p753 = por %p751, %p752
      %p754 = scmp.le.s32.totalorder 1, %s70
      %p755 = scmp.lt.s32.totalorder %s70, 3
      %p756 = pnand %p754, %p755
      %p757 = pneg %p756
      // Predicated region
      $region9: #{decoder_layer_forward.1} parent=5 // pred_check
        _
      $region10: #{decoder_layer_forward.1} parent=5 // pred_check_branch
        %759 = sbr.rel (%p756) target = $region12
      $region11: #{decoder_layer_forward.1} parent=5 // pred_region
        %s760 = ssub.s32 %s70, 1
        // Predicated region
        $region13: #{decoder_layer_forward.1} parent=11 // pred_check
          %p761 = pneg %p195
        $region14: #{decoder_layer_forward.1} parent=11 // pred_check_branch
          %763 = sbr.rel (%p761) target = $region16
        $region15: #{decoder_layer_forward.1} parent=11 // pred_region
          _
        $region16: #{decoder_layer_forward.1} parent=11 // pred_fallthru
          _
        // Predicated region
        $region17: #{decoder_layer_forward.1} parent=11 // pred_check
          %p764 = pneg %p216
        $region18: #{decoder_layer_forward.1} parent=11 // pred_check_branch
          %766 = sbr.rel (%p764) target = $region20
        $region19: #{decoder_layer_forward.1} parent=11 // pred_region
          _
        $region20: #{decoder_layer_forward.1} parent=11 // pred_fallthru
          _
        // Predicated region
        $region21: #{decoder_layer_forward.1} parent=11 // pred_check
          %p767 = pneg %p237
        $region22: #{decoder_layer_forward.1} parent=11 // pred_check_branch
          %769 = sbr.rel (%p767) target = $region24
        $region23: #{decoder_layer_forward.1} parent=11 // pred_region
          _
        $region24: #{decoder_layer_forward.1} parent=11 // pred_fallthru
          _
        // Predicated region
        $region25: #{decoder_layer_forward.1} parent=11 // pred_check
          %p770 = pneg %p258
        $region26: #{decoder_layer_forward.1} parent=11 // pred_check_branch
          %772 = sbr.rel (%p770) target = $region28
        $region27: #{decoder_layer_forward.1} parent=11 // pred_region
          _
        $region28: #{decoder_layer_forward.1} parent=11 // pred_fallthru
          _
        // Predicated region
        $region29: #{decoder_layer_forward.1} parent=11 // pred_check
          %p773 = pneg %p279
        $region30: #{decoder_layer_forward.1} parent=11 // pred_check_branch
          %775 = sbr.rel (%p773) target = $region32
        $region31: #{decoder_layer_forward.1} parent=11 // pred_region
          _
        $region32: #{decoder_layer_forward.1} parent=11 // pred_fallthru
          _
        // Predicated region
        $region33: #{decoder_layer_forward.1} parent=11 // pred_check
          %p776 = pneg %p300
        $region34: #{decoder_layer_forward.1} parent=11 // pred_check_branch
          %778 = sbr.rel (%p776) target = $region36
        $region35: #{decoder_layer_forward.1} parent=11 // pred_region
          _
        $region36: #{decoder_layer_forward.1} parent=11 // pred_fallthru
          _
        // Predicated region
        $region37: #{decoder_layer_forward.1} parent=11 // pred_check
          %p779 = pneg %p321
        $region38: #{decoder_layer_forward.1} parent=11 // pred_check_branch
          %781 = sbr.rel (%p779) target = $region40
        $region39: #{decoder_layer_forward.1} parent=11 // pred_region
          _
        $region40: #{decoder_layer_forward.1} parent=11 // pred_fallthru
          _
        // Predicated region
        $region41: #{decoder_layer_forward.1} parent=11 // pred_check
          %p782 = pneg %p342
        $region42: #{decoder_layer_forward.1} parent=11 // pred_check_branch
          %784 = sbr.rel (%p782) target = $region44
        $region43: #{decoder_layer_forward.1} parent=11 // pred_region
          _
        $region44: #{decoder_layer_forward.1} parent=11 // pred_fallthru
          _
        // Predicated region
        $region45: #{decoder_layer_forward.1} parent=11 // pred_check
          %p785 = pneg %p363
        $region46: #{decoder_layer_forward.1} parent=11 // pred_check_branch
          %787 = sbr.rel (%p785) target = $region48
        $region47: #{decoder_layer_forward.1} parent=11 // pred_region
          _
        $region48: #{decoder_layer_forward.1} parent=11 // pred_fallthru
          _
        // Predicated region
        $region49: #{decoder_layer_forward.1} parent=11 // pred_check
          %p788 = pneg %p384
        $region50: #{decoder_layer_forward.1} parent=11 // pred_check_branch
          %790 = sbr.rel (%p788) target = $region52
        $region51: #{decoder_layer_forward.1} parent=11 // pred_region
          _
        $region52: #{decoder_layer_forward.1} parent=11 // pred_fallthru
          _
        // Predicated region
        $region53: #{decoder_layer_forward.1} parent=11 // pred_check
          %p791 = pneg %p405
        $region54: #{decoder_layer_forward.1} parent=11 // pred_check_branch
          %793 = sbr.rel (%p791) target = $region56
        $region55: #{decoder_layer_forward.1} parent=11 // pred_region
          _
        $region56: #{decoder_layer_forward.1} parent=11 // pred_fallthru
          _
        // Predicated region
        $region57: #{decoder_layer_forward.1} parent=11 // pred_check
          %p794 = pneg %p426
        $region58: #{decoder_layer_forward.1} parent=11 // pred_check_branch
          %796 = sbr.rel (%p794) target = $region60
        $region59: #{decoder_layer_forward.1} parent=11 // pred_region
          _
        $region60: #{decoder_layer_forward.1} parent=11 // pred_fallthru
          _
        // Predicated region
        $region61: #{decoder_layer_forward.1} parent=11 // pred_check
          %p797 = pneg %p447
        $region62: #{decoder_layer_forward.1} parent=11 // pred_check_branch
          %799 = sbr.rel (%p797) target = $region64
        $region63: #{decoder_layer_forward.1} parent=11 // pred_region
          _
        $region64: #{decoder_layer_forward.1} parent=11 // pred_fallthru
          _
        // Predicated region
        $region65: #{decoder_layer_forward.1} parent=11 // pred_check
          %p800 = pneg %p468
        $region66: #{decoder_layer_forward.1} parent=11 // pred_check_branch
          %802 = sbr.rel (%p800) target = $region68
        $region67: #{decoder_layer_forward.1} parent=11 // pred_region
          _
        $region68: #{decoder_layer_forward.1} parent=11 // pred_fallthru
          _
        // Predicated region
        $region69: #{decoder_layer_forward.1} parent=11 // pred_check
          %p803 = pneg %p489
        $region70: #{decoder_layer_forward.1} parent=11 // pred_check_branch
          %805 = sbr.rel (%p803) target = $region72
        $region71: #{decoder_layer_forward.1} parent=11 // pred_region
          _
        $region72: #{decoder_layer_forward.1} parent=11 // pred_fallthru
          _
        // Predicated region
        $region73: #{decoder_layer_forward.1} parent=11 // pred_check
          %p806 = pneg %p510
        $region74: #{decoder_layer_forward.1} parent=11 // pred_check_branch
          %808 = sbr.rel (%p806) target = $region76
        $region75: #{decoder_layer_forward.1} parent=11 // pred_region
          _
        $region76: #{decoder_layer_forward.1} parent=11 // pred_fallthru
          _
        // Predicated region
        $region77: #{decoder_layer_forward.1} parent=11 // pred_check
          %p809 = pneg %p531
        $region78: #{decoder_layer_forward.1} parent=11 // pred_check_branch
          %811 = sbr.rel (%p809) target = $region80
        $region79: #{decoder_layer_forward.1} parent=11 // pred_region
          _
        $region80: #{decoder_layer_forward.1} parent=11 // pred_fallthru
          _
        // Predicated region
        $region81: #{decoder_layer_forward.1} parent=11 // pred_check
          %p812 = pneg %p552
        $region82: #{decoder_layer_forward.1} parent=11 // pred_check_branch
          %814 = sbr.rel (%p812) target = $region84
        $region83: #{decoder_layer_forward.1} parent=11 // pred_region
          _
        $region84: #{decoder_layer_forward.1} parent=11 // pred_fallthru
          _
        // Predicated region
        $region85: #{decoder_layer_forward.1} parent=11 // pred_check
          %p815 = pneg %p573
        $region86: #{decoder_layer_forward.1} parent=11 // pred_check_branch
          %817 = sbr.rel (%p815) target = $region88
        $region87: #{decoder_layer_forward.1} parent=11 // pred_region
          _
        $region88: #{decoder_layer_forward.1} parent=11 // pred_fallthru
          _
        // Predicated region
        $region89: #{decoder_layer_forward.1} parent=11 // pred_check
          %p818 = pneg %p594
        $region90: #{decoder_layer_forward.1} parent=11 // pred_check_branch
          %820 = sbr.rel (%p818) target = $region92
        $region91: #{decoder_layer_forward.1} parent=11 // pred_region
          _
        $region92: #{decoder_layer_forward.1} parent=11 // pred_fallthru
          _
        // Predicated region
        $region93: #{decoder_layer_forward.1} parent=11 // pred_check
          %p821 = pneg %p615
        $region94: #{decoder_layer_forward.1} parent=11 // pred_check_branch
          %823 = sbr.rel (%p821) target = $region96
        $region95: #{decoder_layer_forward.1} parent=11 // pred_region
          _
        $region96: #{decoder_layer_forward.1} parent=11 // pred_fallthru
          _
        // Predicated region
        $region97: #{decoder_layer_forward.1} parent=11 // pred_check
          %p824 = pneg %p636
        $region98: #{decoder_layer_forward.1} parent=11 // pred_check_branch
          %826 = sbr.rel (%p824) target = $region100
        $region99: #{decoder_layer_forward.1} parent=11 // pred_region
          _
        $region100: #{decoder_layer_forward.1} parent=11 // pred_fallthru
          _
        // Predicated region
        $region101: #{decoder_layer_forward.1} parent=11 // pred_check
          %p827 = pneg %p657
        $region102: #{decoder_layer_forward.1} parent=11 // pred_check_branch
          %829 = sbr.rel (%p827) target = $region104
        $region103: #{decoder_layer_forward.1} parent=11 // pred_region
          _
        $region104: #{decoder_layer_forward.1} parent=11 // pred_fallthru
          _
        // Predicated region
        $region105: #{decoder_layer_forward.1} parent=11 // pred_check
          %p830 = pneg %p678
        $region106: #{decoder_layer_forward.1} parent=11 // pred_check_branch
          %832 = sbr.rel (%p830) target = $region108
        $region107: #{decoder_layer_forward.1} parent=11 // pred_region
          _
        $region108: #{decoder_layer_forward.1} parent=11 // pred_fallthru
          _
        // Predicated region
        $region109: #{decoder_layer_forward.1} parent=11 // pred_check
          %p833 = pneg %p699
        $region110: #{decoder_layer_forward.1} parent=11 // pred_check_branch
          %835 = sbr.rel (%p833) target = $region112
        $region111: #{decoder_layer_forward.1} parent=11 // pred_region
          _
        $region112: #{decoder_layer_forward.1} parent=11 // pred_fallthru
          _
        // Predicated region
        $region113: #{decoder_layer_forward.1} parent=11 // pred_check
          %p836 = pneg %p720
        $region114: #{decoder_layer_forward.1} parent=11 // pred_check_branch
          %838 = sbr.rel (%p836) target = $region116
        $region115: #{decoder_layer_forward.1} parent=11 // pred_region
          _
        $region116: #{decoder_layer_forward.1} parent=11 // pred_fallthru
          _
      $region12: #{decoder_layer_forward.1} parent=5 // pred_fallthru
        _
      %p839 = scmp.lt.s32.totalorder %s70, 2
      // Predicated region
      $region117: #{decoder_layer_forward.1} parent=5 // pred_check
        %p840 = pneg %p839
      $region118: #{decoder_layer_forward.1} parent=5 // pred_check_branch
        %842 = sbr.rel (%p840) target = $region120
      $region119: #{decoder_layer_forward.1} parent=5 // pred_region
        // Predicated region
        $region121: #{decoder_layer_forward.1} parent=119 // pred_check
          %p843 = pneg %p90
        $region122: #{decoder_layer_forward.1} parent=119 // pred_check_branch
          %845 = sbr.rel (%p843) target = $region124
        $region123: #{decoder_layer_forward.1} parent=119 // pred_region
          %p846 = scmp.lt.s32.totalorder %s70, 1
          %s847 = scalar_select %p846, %s70, 1
          %s848 = smul.addr %s847, 8
          %s849 = scalar_lea.vmem %s1, %s848
        $region124: #{decoder_layer_forward.1} parent=119 // pred_fallthru
          _
        // Predicated region
        $region125: #{decoder_layer_forward.1} parent=119 // pred_check
          %p850 = pneg %p116
        $region126: #{decoder_layer_forward.1} parent=119 // pred_check_branch
          %852 = sbr.rel (%p850) target = $region128
        $region127: #{decoder_layer_forward.1} parent=119 // pred_region
          %p853 = scmp.lt.s32.totalorder %s70, 1
          %s854 = scalar_select %p853, %s70, 1
          %s855 = smul.addr %s854, 8
          %s856 = scalar_lea.vmem %s3, %s855
        $region128: #{decoder_layer_forward.1} parent=119 // pred_fallthru
          _
        // Predicated region
        $region129: #{decoder_layer_forward.1} parent=119 // pred_check
          %p857 = pneg %p142
        $region130: #{decoder_layer_forward.1} parent=119 // pred_check_branch
          %859 = sbr.rel (%p857) target = $region132
        $region131: #{decoder_layer_forward.1} parent=119 // pred_region
          %p860 = scmp.lt.s32.totalorder %s70, 1
          %s861 = scalar_select %p860, %s70, 1
          %s862 = smul.addr %s861, 8
          %s863 = scalar_lea.vmem %s5, %s862
        $region132: #{decoder_layer_forward.1} parent=119 // pred_fallthru
          _
        // Predicated region
        $region133: #{decoder_layer_forward.1} parent=119 // pred_check
          %p864 = pneg %p168
        $region134: #{decoder_layer_forward.1} parent=119 // pred_check_branch
          %866 = sbr.rel (%p864) target = $region136
        $region135: #{decoder_layer_forward.1} parent=119 // pred_region
          %p867 = scmp.lt.s32.totalorder %s70, 1
          %s868 = scalar_select %p867, %s70, 1
          %s869 = smul.addr %s868, 16
          %s870 = smul.addr %s869, 8
          %s871 = scalar_lea.vmem %s7, %s870
        $region136: #{decoder_layer_forward.1} parent=119 // pred_fallthru
          _
      $region120: #{decoder_layer_forward.1} parent=5 // pred_fallthru
        _
      %p872 = scmp.le.s32.totalorder 1, %s70
      %p873 = scmp.lt.s32.totalorder %s70, 3
      %p874 = pnand %p872, %p873
      %p875 = pneg %p874
      // Predicated region
      $region137: #{decoder_layer_forward.1} parent=5 // pred_check
        _
      $region138: #{decoder_layer_forward.1} parent=5 // pred_check_branch
        %877 = sbr.rel (%p874) target = $region140
      $region139: #{decoder_layer_forward.1} parent=5 // pred_region
        %s878 = ssub.s32 %s70, 1
        %p879 = scmp.lt.s32.totalorder %s75, 1
        %s880 = scalar_select %p879, %s75, 1
        %s881 = smul.addr %s880, 8
        %s882 = scalar_lea.vmem %s1, %s881
        %p883 = pneg %p96
        %p884 = pneg %p93
        %p885 = scmp.lt.s32.totalorder %s75, 1
        %s886 = scalar_select %p885, %s75, 1
        %s887 = smul.addr %s886, 8
        %s888 = scalar_lea.vmem %s3, %s887
        %p889 = pneg %p122
        %p890 = pneg %p119
        %p891 = scmp.lt.s32.totalorder %s75, 1
        %s892 = scalar_select %p891, %s75, 1
        %s893 = smul.addr %s892, 8
        %s894 = scalar_lea.vmem %s5, %s893
        %p895 = pneg %p148
        %p896 = pneg %p145
        %p897 = scmp.lt.s32.totalorder %s75, 1
        %s898 = scalar_select %p897, %s75, 1
        %s899 = smul.addr %s898, 16
        %s900 = smul.addr %s899, 8
        %s901 = scalar_lea.vmem %s7, %s900
        %p902 = pneg %p174
        %p903 = pneg %p171
        %p904 = pneg %p195
        %p905 = pneg %p192
        %p906 = pneg %p216
        %p907 = pneg %p213
        %p908 = pneg %p237
        %p909 = pneg %p234
        %p910 = pneg %p258
        %p911 = pneg %p255
        %p912 = pneg %p279
        %p913 = pneg %p276
        %p914 = pneg %p300
        %p915 = pneg %p297
        %p916 = pneg %p321
        %p917 = pneg %p318
        %p918 = pneg %p342
        %p919 = pneg %p339
        %p920 = pneg %p363
        %p921 = pneg %p360
        %p922 = pneg %p384
        %p923 = pneg %p381
        %p924 = pneg %p405
        %p925 = pneg %p402
        %p926 = pneg %p426
        %p927 = pneg %p423
        %p928 = pneg %p447
        %p929 = pneg %p444
        %p930 = pneg %p468
        %p931 = pneg %p465
        %p932 = pneg %p489
        %p933 = pneg %p486
        %p934 = pneg %p510
        %p935 = pneg %p507
        %p936 = pneg %p531
        %p937 = pneg %p528
        %p938 = pneg %p552
        %p939 = pneg %p549
        %p940 = pneg %p573
        %p941 = pneg %p570
        %p942 = pneg %p594
        %p943 = pneg %p591
        %p944 = pneg %p615
        %p945 = pneg %p612
        %p946 = pneg %p636
        %p947 = pneg %p633
        %p948 = pneg %p657
        %p949 = pneg %p654
        %p950 = pneg %p678
        %p951 = pneg %p675
        %p952 = pneg %p699
        %p953 = pneg %p696
        %p954 = pneg %p720
        %p955 = pneg %p717
        %p956 = pneg %p746
        %p957 = pneg %p743
        %s958 = sand.u32 %s733, 1
        %s959 = scalar_lea.sflag [#allocation3], %s958
        %s960 = sand.u32 %s733, 1
        %s961 = smul.addr %s960, 8
        %s962 = scalar_lea.vmem [#allocation2], %s961
        %p963 = scmp.lt.s32.totalorder %s75, 1
        %s964 = scalar_select %p963, %s75, 1
        %s965 = smul.addr %s964, 8
        %s966 = scalar_lea.vmem %s1, %s965
        %p967 = scmp.lt.s32.totalorder %s75, 1
        %s968 = scalar_select %p967, %s75, 1
        %s969 = smul.addr %s968, 8
        %s970 = scalar_lea.vmem %s3, %s969
        %p971 = scmp.lt.s32.totalorder %s75, 1
        %s972 = scalar_select %p971, %s75, 1
        %s973 = smul.addr %s972, 8
        %s974 = scalar_lea.vmem %s5, %s973
        %p975 = scmp.lt.s32.totalorder %s75, 1
        %s976 = scalar_select %p975, %s75, 1
        %s977 = smul.addr %s976, 16
        %s978 = smul.addr %s977, 8
        %s979 = scalar_lea.vmem %s7, %s978
        %v980 = vld [vmem:[%s966] sm:$0xff]
        %v981 = vld [vmem:[%s970] sm:$0xff]
        %v982 = vadd.f32 %v980, %v981
        %v983 = vld [vmem:[%s9] sm:$0xff]
        %v984 = vld [vmem:[%s9 + $0x8] sm:$0xff]
        %v985 = vld [vmem:[%s9 + $0x10] sm:$0xff]
        %v986 = vld [vmem:[%s9 + $0x18] sm:$0xff]
        %v987 = vld [vmem:[%s15] sm:$0x1]
        %v989 = vlaneseq
        %v990 = vshrl.u32 %v989, 7
        %v991 = vsub.s32 0, %v990
        %v992 = vrot.slane %v987, %v991
        %vm994 = vcmask 261120
        %v996 = vsel %vm994, %v982, 0
        %998 = vmatprep.subr.mxu0 0.0
        %999 = vmatpush1.msra.mxu0 0.0
        %1000 = vmatprep.subr.mxu0 0.0
        %1001 = vmatpush1.msra.mxu0 0.0
        %1002 = vmatprep.subr.mxu0 0.0
        %1003 = vmatpush1.msra.mxu0 0.0
        %1004 = vmatprep.subr.mxu0 0.0
        %1005 = vmatpush1.msra.mxu0 0.0
        %1006 = vmatprep.subr.mxu0 0.0
        %1007 = vmatpush1.msra.mxu0 0.0
        %1008 = vmatprep.subr.mxu0 0.0
        %1009 = vmatpush1.msra.mxu0 0.0
        %1010 = vmatprep.subr.mxu0 0.0
        %1011 = vmatpush1.msra.mxu0 0.0
        %1012 = vmatprep.subr.mxu0 0.0
        %1013 = vmatpush1.msra.mxu0 0.0
        %1014 = vmatprep.subr.mxu0 0.0
        %1015 = vmatpush1.msra.mxu0 0.0
        %1016 = vmatprep.subr.mxu0 0.0
        %1017 = vmatpush1.msra.mxu0 0.0
        %1018 = vmatprep.subr.mxu0 0.0
        %1019 = vmatpush1.msra.mxu0 0.0
        %1020 = vmatprep.subr.mxu0 0.0
        %1021 = vmatpush1.msra.mxu0 0.0
        %1022 = vmatprep.subr.mxu0 0.0
        %1023 = vmatpush1.msra.mxu0 %v986
        %1024 = vmatprep.subr.mxu0 0.0
        %1025 = vmatpush1.msra.mxu0 %v985
        %1026 = vmatprep.subr.mxu0 0.0
        %1027 = vmatpush1.msra.mxu0 %v984
        %1028 = vmatprep.subr.mxu0 0.0
        %1029 = vmatpush1.msra.mxu0 %v983
        %1030 = vmatprep.subr.mxu0 0.0
        %1031 = vmatpush2.msra.mxu0 0.0
        %1032 = vmatprep.subr.mxu0 0.0
        %1033 = vmatpush2.msra.mxu0 0.0
        %1034 = vmatprep.subr.mxu0 0.0
        %1035 = vmatpush2.msra.mxu0 0.0
        %1036 = vmatprep.subr.mxu0 0.0
        %1037 = vmatpush2.msra.mxu0 0.0
        %1038 = vmatprep.subr.mxu0 0.0
        %1039 = vmatpush2.msra.mxu0 0.0
        %1040 = vmatprep.subr.mxu0 0.0
        %1041 = vmatpush2.msra.mxu0 0.0
        %1042 = vmatprep.subr.mxu0 0.0
        %1043 = vmatpush2.msra.mxu0 0.0
        %1044 = vmatprep.subr.mxu0 0.0
        %1045 = vmatpush2.msra.mxu0 0.0
        %1046 = vmatprep.subr.mxu0 0.0
        %1047 = vmatpush2.msra.mxu0 0.0
        %1048 = vmatprep.subr.mxu0 0.0
        %1049 = vmatpush2.msra.mxu0 0.0
        %1050 = vmatprep.subr.mxu0 0.0
        %1051 = vmatpush2.msra.mxu0 0.0
        %1052 = vmatprep.subr.mxu0 0.0
        %1053 = vmatpush2.msra.mxu0 0.0
        %1054 = vmatprep.subr.mxu0 0.0
        %1055 = vmatpush2.msra.mxu0 0.0
        %1056 = vmatprep.subr.mxu0 0.0
        %1057 = vmatpush2.msra.mxu0 0.0
        %1058 = vmatprep.subr.mxu0 0.0
        %1059 = vmatpush2.msra.mxu0 0.0
        %1060 = vmatprep.subr.mxu0 0.0
        %1061 = vmatpush2.msra.mxu0 0.0
        %1062 = vmatprep.mubr.f32.mxu0 0.0
        %1063 = vmatmul.mubr.f32.gmra.mxu0 %v996
        %v1064 = vpop.f32.mrf.mxu0
        %v1065 = vadd.f32 %v992, %v1064
        %v1066 = vpop.f32.mrf.mxu0
        %1067 = vdwg.mxu0
        %v1068 = vld [vmem:[%s11] sm:$0xff]
        %v1069 = vld [vmem:[%s11 + $0x8] sm:$0xff]
        %v1070 = vld [vmem:[%s11 + $0x10] sm:$0xff]
        %v1071 = vld [vmem:[%s11 + $0x18] sm:$0xff]
        %v1072 = vld [vmem:[%s17] sm:$0x1]
        %v1074 = vlaneseq
        %v1075 = vshrl.u32 %v1074, 7
        %v1076 = vsub.s32 0, %v1075
        %v1077 = vrot.slane %v1072, %v1076
        %1079 = vmatprep.subr.mxu0 0.0
        %1080 = vmatpush1.msra.mxu0 0.0
        %1081 = vmatprep.subr.mxu0 0.0
        %1082 = vmatpush1.msra.mxu0 0.0
        %1083 = vmatprep.subr.mxu0 0.0
        %1084 = vmatpush1.msra.mxu0 0.0
        %1085 = vmatprep.subr.mxu0 0.0
        %1086 = vmatpush1.msra.mxu0 0.0
        %1087 = vmatprep.subr.mxu0 0.0
        %1088 = vmatpush1.msra.mxu0 0.0
        %1089 = vmatprep.subr.mxu0 0.0
        %1090 = vmatpush1.msra.mxu0 0.0
        %1091 = vmatprep.subr.mxu0 0.0
        %1092 = vmatpush1.msra.mxu0 0.0
        %1093 = vmatprep.subr.mxu0 0.0
        %1094 = vmatpush1.msra.mxu0 0.0
        %1095 = vmatprep.subr.mxu0 0.0
        %1096 = vmatpush1.msra.mxu0 0.0
        %1097 = vmatprep.subr.mxu0 0.0
        %1098 = vmatpush1.msra.mxu0 0.0
        %1099 = vmatprep.subr.mxu0 0.0
        %1100 = vmatpush1.msra.mxu0 0.0
        %1101 = vmatprep.subr.mxu0 0.0
        %1102 = vmatpush1.msra.mxu0 0.0
        %1103 = vmatprep.subr.mxu0 0.0
        %1104 = vmatpush1.msra.mxu0 %v1071
        %1105 = vmatprep.subr.mxu0 0.0
        %1106 = vmatpush1.msra.mxu0 %v1070
        %1107 = vmatprep.subr.mxu0 0.0
        %1108 = vmatpush1.msra.mxu0 %v1069
        %1109 = vmatprep.subr.mxu0 0.0
        %1110 = vmatpush1.msra.mxu0 %v1068
        %1111 = vmatprep.subr.mxu0 0.0
        %1112 = vmatpush2.msra.mxu0 0.0
        %1113 = vmatprep.subr.mxu0 0.0
        %1114 = vmatpush2.msra.mxu0 0.0
        %1115 = vmatprep.subr.mxu0 0.0
        %1116 = vmatpush2.msra.mxu0 0.0
        %1117 = vmatprep.subr.mxu0 0.0
        %1118 = vmatpush2.msra.mxu0 0.0
        %1119 = vmatprep.subr.mxu0 0.0
        %1120 = vmatpush2.msra.mxu0 0.0
        %1121 = vmatprep.subr.mxu0 0.0
        %1122 = vmatpush2.msra.mxu0 0.0
        %1123 = vmatprep.subr.mxu0 0.0
        %1124 = vmatpush2.msra.mxu0 0.0
        %1125 = vmatprep.subr.mxu0 0.0
        %1126 = vmatpush2.msra.mxu0 0.0
        %1127 = vmatprep.subr.mxu0 0.0
        %1128 = vmatpush2.msra.mxu0 0.0
        %1129 = vmatprep.subr.mxu0 0.0
        %1130 = vmatpush2.msra.mxu0 0.0
        %1131 = vmatprep.subr.mxu0 0.0
        %1132 = vmatpush2.msra.mxu0 0.0
        %1133 = vmatprep.subr.mxu0 0.0
        %1134 = vmatpush2.msra.mxu0 0.0
        %1135 = vmatprep.subr.mxu0 0.0
        %1136 = vmatpush2.msra.mxu0 0.0
        %1137 = vmatprep.subr.mxu0 0.0
        %1138 = vmatpush2.msra.mxu0 0.0
        %1139 = vmatprep.subr.mxu0 0.0
        %1140 = vmatpush2.msra.mxu0 0.0
        %1141 = vmatprep.subr.mxu0 0.0
        %1142 = vmatpush2.msra.mxu0 0.0
        %1143 = vmatprep.mubr.f32.mxu0 0.0
        %1144 = vmatmul.mubr.f32.gmra.mxu0 %v996
        %v1145 = vpop.f32.mrf.mxu0
        %v1146 = vadd.f32 %v1077, %v1145
        %v1147 = vpop.f32.mrf.mxu0
        %1148 = vdwg.mxu0
        %v1149 = vld [vmem:[%s13] sm:$0xff]
        %v1150 = vld [vmem:[%s13 + $0x8] sm:$0xff]
        %v1151 = vld [vmem:[%s13 + $0x10] sm:$0xff]
        %v1152 = vld [vmem:[%s13 + $0x18] sm:$0xff]
        %v1153 = vld [vmem:[%s19] sm:$0x1]
        %v1155 = vlaneseq
        %v1156 = vshrl.u32 %v1155, 7
        %v1157 = vsub.s32 0, %v1156
        %v1158 = vrot.slane %v1153, %v1157
        %v1161 = vsel %vm994, %v980, 0
        %1163 = vmatprep.subr.mxu0 0.0
        %1164 = vmatpush1.msra.mxu0 0.0
        %1165 = vmatprep.subr.mxu0 0.0
        %1166 = vmatpush1.msra.mxu0 0.0
        %1167 = vmatprep.subr.mxu0 0.0
        %1168 = vmatpush1.msra.mxu0 0.0
        %1169 = vmatprep.subr.mxu0 0.0
        %1170 = vmatpush1.msra.mxu0 0.0
        %1171 = vmatprep.subr.mxu0 0.0
        %1172 = vmatpush1.msra.mxu0 0.0
        %1173 = vmatprep.subr.mxu0 0.0
        %1174 = vmatpush1.msra.mxu0 0.0
        %1175 = vmatprep.subr.mxu0 0.0
        %1176 = vmatpush1.msra.mxu0 0.0
        %1177 = vmatprep.subr.mxu0 0.0
        %1178 = vmatpush1.msra.mxu0 0.0
        %1179 = vmatprep.subr.mxu0 0.0
        %1180 = vmatpush1.msra.mxu0 0.0
        %1181 = vmatprep.subr.mxu0 0.0
        %1182 = vmatpush1.msra.mxu0 0.0
        %1183 = vmatprep.subr.mxu0 0.0
        %1184 = vmatpush1.msra.mxu0 0.0
        %1185 = vmatprep.subr.mxu0 0.0
        %1186 = vmatpush1.msra.mxu0 0.0
        %1187 = vmatprep.subr.mxu0 0.0
        %1188 = vmatpush1.msra.mxu0 %v1152
        %1189 = vmatprep.subr.mxu0 0.0
        %1190 = vmatpush1.msra.mxu0 %v1151
        %1191 = vmatprep.subr.mxu0 0.0
        %1192 = vmatpush1.msra.mxu0 %v1150
        %1193 = vmatprep.subr.mxu0 0.0
        %1194 = vmatpush1.msra.mxu0 %v1149
        %1195 = vmatprep.subr.mxu0 0.0
        %1196 = vmatpush2.msra.mxu0 0.0
        %1197 = vmatprep.subr.mxu0 0.0
        %1198 = vmatpush2.msra.mxu0 0.0
        %1199 = vmatprep.subr.mxu0 0.0
        %1200 = vmatpush2.msra.mxu0 0.0
        %1201 = vmatprep.subr.mxu0 0.0
        %1202 = vmatpush2.msra.mxu0 0.0
        %1203 = vmatprep.subr.mxu0 0.0
        %1204 = vmatpush2.msra.mxu0 0.0
        %1205 = vmatprep.subr.mxu0 0.0
        %1206 = vmatpush2.msra.mxu0 0.0
        %1207 = vmatprep.subr.mxu0 0.0
        %1208 = vmatpush2.msra.mxu0 0.0
        %1209 = vmatprep.subr.mxu0 0.0
        %1210 = vmatpush2.msra.mxu0 0.0
        %1211 = vmatprep.subr.mxu0 0.0
        %1212 = vmatpush2.msra.mxu0 0.0
        %1213 = vmatprep.subr.mxu0 0.0
        %1214 = vmatpush2.msra.mxu0 0.0
        %1215 = vmatprep.subr.mxu0 0.0
        %1216 = vmatpush2.msra.mxu0 0.0
        %1217 = vmatprep.subr.mxu0 0.0
        %1218 = vmatpush2.msra.mxu0 0.0
        %1219 = vmatprep.subr.mxu0 0.0
        %1220 = vmatpush2.msra.mxu0 0.0
        %1221 = vmatprep.subr.mxu0 0.0
        %1222 = vmatpush2.msra.mxu0 0.0
        %1223 = vmatprep.subr.mxu0 0.0
        %1224 = vmatpush2.msra.mxu0 0.0
        %1225 = vmatprep.subr.mxu0 0.0
        %1226 = vmatpush2.msra.mxu0 0.0
        %1227 = vmatprep.mubr.f32.mxu0 0.0
        %1228 = vmatmul.mubr.f32.gmra.mxu0 %v1161
        %v1229 = vpop.f32.mrf.mxu0
        %v1230 = vadd.f32 %v1158, %v1229
        %v1231 = vpop.f32.mrf.mxu0
        %1232 = vdwg.mxu0
        %v1233 = vmul.f32 %v1065, 0.35355338
        %vm1234 = vcmask 64512
        %v1236 = vsel %vm1234, %v1233, 0
        %v1239 = vsel %vm1234, %v1146, 0
        %1241 = vmatprep.subr.mxu0 0.0
        %1242 = vmatpush1.xpose.msra.mxu0 0.0
        %1243 = vmatprep.subr.mxu0 0.0
        %1244 = vmatpush1.xpose.msra.mxu0 0.0
        %1245 = vmatprep.subr.mxu0 0.0
        %1246 = vmatpush1.xpose.msra.mxu0 0.0
        %1247 = vmatprep.subr.mxu0 0.0
        %1248 = vmatpush1.xpose.msra.mxu0 0.0
        %1249 = vmatprep.subr.mxu0 0.0
        %1250 = vmatpush1.xpose.msra.mxu0 0.0
        %1251 = vmatprep.subr.mxu0 0.0
        %1252 = vmatpush1.xpose.msra.mxu0 0.0
        %1253 = vmatprep.subr.mxu0 0.0
        %1254 = vmatpush1.xpose.msra.mxu0 0.0
        %1255 = vmatprep.subr.mxu0 0.0
        %1256 = vmatpush1.xpose.msra.mxu0 0.0
        %1257 = vmatprep.subr.mxu0 0.0
        %1258 = vmatpush1.xpose.msra.mxu0 0.0
        %1259 = vmatprep.subr.mxu0 0.0
        %1260 = vmatpush1.xpose.msra.mxu0 0.0
        %1261 = vmatprep.subr.mxu0 0.0
        %1262 = vmatpush1.xpose.msra.mxu0 0.0
        %1263 = vmatprep.subr.mxu0 0.0
        %1264 = vmatpush1.xpose.msra.mxu0 0.0
        %1265 = vmatprep.subr.mxu0 0.0
        %1266 = vmatpush1.xpose.msra.mxu0 0.0
        %1267 = vmatprep.subr.mxu0 0.0
        %1268 = vmatpush1.xpose.msra.mxu0 0.0
        %1269 = vmatprep.subr.mxu0 0.0
        %1270 = vmatpush1.xpose.msra.mxu0 0.0
        %1271 = vmatprep.subr.mxu0 0.0
        %1272 = vmatpush1.xpose.msra.mxu0 %v1239
        %1273 = vmatprep.subr.mxu0 0.0
        %1274 = vmatpush2.xpose.msra.mxu0 0.0
        %1275 = vmatprep.subr.mxu0 0.0
        %1276 = vmatpush2.xpose.msra.mxu0 0.0
        %1277 = vmatprep.subr.mxu0 0.0
        %1278 = vmatpush2.xpose.msra.mxu0 0.0
        %1279 = vmatprep.subr.mxu0 0.0
        %1280 = vmatpush2.xpose.msra.mxu0 0.0
        %1281 = vmatprep.subr.mxu0 0.0
        %1282 = vmatpush2.xpose.msra.mxu0 0.0
        %1283 = vmatprep.subr.mxu0 0.0
        %1284 = vmatpush2.xpose.msra.mxu0 0.0
        %1285 = vmatprep.subr.mxu0 0.0
        %1286 = vmatpush2.xpose.msra.mxu0 0.0
        %1287 = vmatprep.subr.mxu0 0.0
        %1288 = vmatpush2.xpose.msra.mxu0 0.0
        %1289 = vmatprep.subr.mxu0 0.0
        %1290 = vmatpush2.xpose.msra.mxu0 0.0
        %1291 = vmatprep.subr.mxu0 0.0
        %1292 = vmatpush2.xpose.msra.mxu0 0.0
        %1293 = vmatprep.subr.mxu0 0.0
        %1294 = vmatpush2.xpose.msra.mxu0 0.0
        %1295 = vmatprep.subr.mxu0 0.0
        %1296 = vmatpush2.xpose.msra.mxu0 0.0
        %1297 = vmatprep.subr.mxu0 0.0
        %1298 = vmatpush2.xpose.msra.mxu0 0.0
        %1299 = vmatprep.subr.mxu0 0.0
        %1300 = vmatpush2.xpose.msra.mxu0 0.0
        %1301 = vmatprep.subr.mxu0 0.0
        %1302 = vmatpush2.xpose.msra.mxu0 0.0
        %1303 = vmatprep.subr.mxu0 0.0
        %1304 = vmatpush2.xpose.msra.mxu0 0.0
        %1305 = vmatprep.mubr.f32.mxu0 0.0
        %1306 = vmatmul.mubr.f32.gmra.mxu0 %v1236
        %v1307 = vpop.f32.mrf.mxu0
        %v1308 = vadd.f32 0.0, %v1307
        %v1309 = vpop.f32.mrf.mxu0
        %1310 = vdwg.mxu0
        %v1311 = vsel %vm1234, %v1308, -inf
        %1312 = vmax.xlane.f32.xlu0 %v1311
        %v1313 = vpop.xlane.xlu0 %1312
        %v1314 = vsub.f32 %v1308, %v1313
        %v1315 = vmul.f32 %v1314, 1.442695
        %v1316 = vpow.pop %v1315
        %v1317 = vsel %vm1234, %v1316, 0.0
        %1318 = vadd.xlane.f32.xlu0 %v1317
        %v1319 = vpop.xlane.xlu0 %1318
        %v1320 = vrcp.pop %v1319
        %v1321 = vmul.f32 %v1316, %v1320
        %v1323 = vsel %vm1234, %v1321, 0
        %1325 = vmatprep.subr.mxu0 0.0
        %1326 = vmatpush1.msra.mxu0 0.0
        %1327 = vmatprep.subr.mxu0 0.0
        %1328 = vmatpush1.msra.mxu0 0.0
        %1329 = vmatprep.subr.mxu0 0.0
        %1330 = vmatpush1.msra.mxu0 0.0
        %1331 = vmatprep.subr.mxu0 0.0
        %1332 = vmatpush1.msra.mxu0 0.0
        %1333 = vmatprep.subr.mxu0 0.0
        %1334 = vmatpush1.msra.mxu0 0.0
        %1335 = vmatprep.subr.mxu0 0.0
        %1336 = vmatpush1.msra.mxu0 0.0
        %1337 = vmatprep.subr.mxu0 0.0
        %1338 = vmatpush1.msra.mxu0 0.0
        %1339 = vmatprep.subr.mxu0 0.0
        %1340 = vmatpush1.msra.mxu0 0.0
        %1341 = vmatprep.subr.mxu0 0.0
        %1342 = vmatpush1.msra.mxu0 0.0
        %1343 = vmatprep.subr.mxu0 0.0
        %1344 = vmatpush1.msra.mxu0 0.0
        %1345 = vmatprep.subr.mxu0 0.0
        %1346 = vmatpush1.msra.mxu0 0.0
        %1347 = vmatprep.subr.mxu0 0.0
        %1348 = vmatpush1.msra.mxu0 0.0
        %1349 = vmatprep.subr.mxu0 0.0
        %1350 = vmatpush1.msra.mxu0 0.0
        %1351 = vmatprep.subr.mxu0 0.0
        %1352 = vmatpush1.msra.mxu0 0.0
        %1353 = vmatprep.subr.mxu0 0.0
        %1354 = vmatpush1.msra.mxu0 0.0
        %1355 = vmatprep.subr.mxu0 0.0
        %1356 = vmatpush1.msra.mxu0 %v1230
        %1357 = vmatprep.subr.mxu0 0.0
        %1358 = vmatpush2.msra.mxu0 0.0
        %1359 = vmatprep.subr.mxu0 0.0
        %1360 = vmatpush2.msra.mxu0 0.0
        %1361 = vmatprep.subr.mxu0 0.0
        %1362 = vmatpush2.msra.mxu0 0.0
        %1363 = vmatprep.subr.mxu0 0.0
        %1364 = vmatpush2.msra.mxu0 0.0
        %1365 = vmatprep.subr.mxu0 0.0
        %1366 = vmatpush2.msra.mxu0 0.0
        %1367 = vmatprep.subr.mxu0 0.0
        %1368 = vmatpush2.msra.mxu0 0.0
        %1369 = vmatprep.subr.mxu0 0.0
        %1370 = vmatpush2.msra.mxu0 0.0
        %1371 = vmatprep.subr.mxu0 0.0
        %1372 = vmatpush2.msra.mxu0 0.0
        %1373 = vmatprep.subr.mxu0 0.0
        %1374 = vmatpush2.msra.mxu0 0.0
        %1375 = vmatprep.subr.mxu0 0.0
        %1376 = vmatpush2.msra.mxu0 0.0
        %1377 = vmatprep.subr.mxu0 0.0
        %1378 = vmatpush2.msra.mxu0 0.0
        %1379 = vmatprep.subr.mxu0 0.0
        %1380 = vmatpush2.msra.mxu0 0.0
        %1381 = vmatprep.subr.mxu0 0.0
        %1382 = vmatpush2.msra.mxu0 0.0
        %1383 = vmatprep.subr.mxu0 0.0
        %1384 = vmatpush2.msra.mxu0 0.0
        %1385 = vmatprep.subr.mxu0 0.0
        %1386 = vmatpush2.msra.mxu0 0.0
        %1387 = vmatprep.subr.mxu0 0.0
        %1388 = vmatpush2.msra.mxu0 0.0
        %1389 = vmatprep.mubr.f32.mxu0 0.0
        %1390 = vmatmul.mubr.f32.gmra.mxu0 %v1323
        %v1391 = vpop.f32.mrf.mxu0
        %v1392 = vadd.f32 0.0, %v1391
        %v1393 = vpop.f32.mrf.mxu0
        %1394 = vdwg.mxu0
        %v1395 = vld [vmem:[%s21] sm:$0xff]
        %1396 = vrot.lane.b32.xlu0 %v1233, 120
        %v1397 = vpop.permute.xlu0 %1396
        %1398 = vrot.lane.b32.xlu0 %v1146, 120
        %v1399 = vpop.permute.xlu0 %1398
        %v1400 = vsel %vm1234, %v1397, 0
        %v1402 = vsel %vm1234, %v1399, 0
        %1404 = vmatprep.subr.mxu0 0.0
        %1405 = vmatpush1.xpose.msra.mxu0 0.0
        %1406 = vmatprep.subr.mxu0 0.0
        %1407 = vmatpush1.xpose.msra.mxu0 0.0
        %1408 = vmatprep.subr.mxu0 0.0
        %1409 = vmatpush1.xpose.msra.mxu0 0.0
        %1410 = vmatprep.subr.mxu0 0.0
        %1411 = vmatpush1.xpose.msra.mxu0 0.0
        %1412 = vmatprep.subr.mxu0 0.0
        %1413 = vmatpush1.xpose.msra.mxu0 0.0
        %1414 = vmatprep.subr.mxu0 0.0
        %1415 = vmatpush1.xpose.msra.mxu0 0.0
        %1416 = vmatprep.subr.mxu0 0.0
        %1417 = vmatpush1.xpose.msra.mxu0 0.0
        %1418 = vmatprep.subr.mxu0 0.0
        %1419 = vmatpush1.xpose.msra.mxu0 0.0
        %1420 = vmatprep.subr.mxu0 0.0
        %1421 = vmatpush1.xpose.msra.mxu0 0.0
        %1422 = vmatprep.subr.mxu0 0.0
        %1423 = vmatpush1.xpose.msra.mxu0 0.0
        %1424 = vmatprep.subr.mxu0 0.0
        %1425 = vmatpush1.xpose.msra.mxu0 0.0
        %1426 = vmatprep.subr.mxu0 0.0
        %1427 = vmatpush1.xpose.msra.mxu0 0.0
        %1428 = vmatprep.subr.mxu0 0.0
        %1429 = vmatpush1.xpose.msra.mxu0 0.0
        %1430 = vmatprep.subr.mxu0 0.0
        %1431 = vmatpush1.xpose.msra.mxu0 0.0
        %1432 = vmatprep.subr.mxu0 0.0
        %1433 = vmatpush1.xpose.msra.mxu0 0.0
        %1434 = vmatprep.subr.mxu0 0.0
        %1435 = vmatpush1.xpose.msra.mxu0 %v1402
        %1436 = vmatprep.subr.mxu0 0.0
        %1437 = vmatpush2.xpose.msra.mxu0 0.0
        %1438 = vmatprep.subr.mxu0 0.0
        %1439 = vmatpush2.xpose.msra.mxu0 0.0
        %1440 = vmatprep.subr.mxu0 0.0
        %1441 = vmatpush2.xpose.msra.mxu0 0.0
        %1442 = vmatprep.subr.mxu0 0.0
        %1443 = vmatpush2.xpose.msra.mxu0 0.0
        %1444 = vmatprep.subr.mxu0 0.0
        %1445 = vmatpush2.xpose.msra.mxu0 0.0
        %1446 = vmatprep.subr.mxu0 0.0
        %1447 = vmatpush2.xpose.msra.mxu0 0.0
        %1448 = vmatprep.subr.mxu0 0.0
        %1449 = vmatpush2.xpose.msra.mxu0 0.0
        %1450 = vmatprep.subr.mxu0 0.0
        %1451 = vmatpush2.xpose.msra.mxu0 0.0
        %1452 = vmatprep.subr.mxu0 0.0
        %1453 = vmatpush2.xpose.msra.mxu0 0.0
        %1454 = vmatprep.subr.mxu0 0.0
        %1455 = vmatpush2.xpose.msra.mxu0 0.0
        %1456 = vmatprep.subr.mxu0 0.0
        %1457 = vmatpush2.xpose.msra.mxu0 0.0
        %1458 = vmatprep.subr.mxu0 0.0
        %1459 = vmatpush2.xpose.msra.mxu0 0.0
        %1460 = vmatprep.subr.mxu0 0.0
        %1461 = vmatpush2.xpose.msra.mxu0 0.0
        %1462 = vmatprep.subr.mxu0 0.0
        %1463 = vmatpush2.xpose.msra.mxu0 0.0
        %1464 = vmatprep.subr.mxu0 0.0
        %1465 = vmatpush2.xpose.msra.mxu0 0.0
        %1466 = vmatprep.subr.mxu0 0.0
        %1467 = vmatpush2.xpose.msra.mxu0 0.0
        %1468 = vmatprep.mubr.f32.mxu0 0.0
        %1469 = vmatmul.mubr.f32.gmra.mxu0 %v1400
        %v1470 = vpop.f32.mrf.mxu0
        %v1471 = vadd.f32 0.0, %v1470
        %v1472 = vpop.f32.mrf.mxu0
        %1473 = vdwg.mxu0
        %v1474 = vsel %vm1234, %v1471, -inf
        %1475 = vmax.xlane.f32.xlu0 %v1474
        %v1476 = vpop.xlane.xlu0 %1475
        %v1477 = vsub.f32 %v1471, %v1476
        %v1478 = vmul.f32 %v1477, 1.442695
        %v1479 = vpow.pop %v1478
        %v1480 = vsel %vm1234, %v1479, 0.0
        %1481 = vadd.xlane.f32.xlu0 %v1480
        %v1482 = vpop.xlane.xlu0 %1481
        %v1483 = vrcp.pop %v1482
        %v1484 = vmul.f32 %v1479, %v1483
        %1486 = vrot.lane.b32.xlu0 %v1230, 120
        %v1487 = vpop.permute.xlu0 %1486
        %v1490 = vsel %vm1234, %v1484, 0
        %1492 = vmatprep.subr.mxu0 0.0
        %1493 = vmatpush1.msra.mxu0 0.0
        %1494 = vmatprep.subr.mxu0 0.0
        %1495 = vmatpush1.msra.mxu0 0.0
        %1496 = vmatprep.subr.mxu0 0.0
        %1497 = vmatpush1.msra.mxu0 0.0
        %1498 = vmatprep.subr.mxu0 0.0
        %1499 = vmatpush1.msra.mxu0 0.0
        %1500 = vmatprep.subr.mxu0 0.0
        %1501 = vmatpush1.msra.mxu0 0.0
        %1502 = vmatprep.subr.mxu0 0.0
        %1503 = vmatpush1.msra.mxu0 0.0
        %1504 = vmatprep.subr.mxu0 0.0
        %1505 = vmatpush1.msra.mxu0 0.0
        %1506 = vmatprep.subr.mxu0 0.0
        %1507 = vmatpush1.msra.mxu0 0.0
        %1508 = vmatprep.subr.mxu0 0.0
        %1509 = vmatpush1.msra.mxu0 0.0
        %1510 = vmatprep.subr.mxu0 0.0
        %1511 = vmatpush1.msra.mxu0 0.0
        %1512 = vmatprep.subr.mxu0 0.0
        %1513 = vmatpush1.msra.mxu0 0.0
        %1514 = vmatprep.subr.mxu0 0.0
        %1515 = vmatpush1.msra.mxu0 0.0
        %1516 = vmatprep.subr.mxu0 0.0
        %1517 = vmatpush1.msra.mxu0 0.0
        %1518 = vmatprep.subr.mxu0 0.0
        %1519 = vmatpush1.msra.mxu0 0.0
        %1520 = vmatprep.subr.mxu0 0.0
        %1521 = vmatpush1.msra.mxu0 0.0
        %1522 = vmatprep.subr.mxu0 0.0
        %1523 = vmatpush1.msra.mxu0 %v1487
        %1524 = vmatprep.subr.mxu0 0.0
        %1525 = vmatpush2.msra.mxu0 0.0
        %1526 = vmatprep.subr.mxu0 0.0
        %1527 = vmatpush2.msra.mxu0 0.0
        %1528 = vmatprep.subr.mxu0 0.0
        %1529 = vmatpush2.msra.mxu0 0.0
        %1530 = vmatprep.subr.mxu0 0.0
        %1531 = vmatpush2.msra.mxu0 0.0
        %1532 = vmatprep.subr.mxu0 0.0
        %1533 = vmatpush2.msra.mxu0 0.0
        %1534 = vmatprep.subr.mxu0 0.0
        %1535 = vmatpush2.msra.mxu0 0.0
        %1536 = vmatprep.subr.mxu0 0.0
        %1537 = vmatpush2.msra.mxu0 0.0
        %1538 = vmatprep.subr.mxu0 0.0
        %1539 = vmatpush2.msra.mxu0 0.0
        %1540 = vmatprep.subr.mxu0 0.0
        %1541 = vmatpush2.msra.mxu0 0.0
        %1542 = vmatprep.subr.mxu0 0.0
        %1543 = vmatpush2.msra.mxu0 0.0
        %1544 = vmatprep.subr.mxu0 0.0
        %1545 = vmatpush2.msra.mxu0 0.0
        %1546 = vmatprep.subr.mxu0 0.0
        %1547 = vmatpush2.msra.mxu0 0.0
        %1548 = vmatprep.subr.mxu0 0.0
        %1549 = vmatpush2.msra.mxu0 0.0
        %1550 = vmatprep.subr.mxu0 0.0
        %1551 = vmatpush2.msra.mxu0 0.0
        %1552 = vmatprep.subr.mxu0 0.0
        %1553 = vmatpush2.msra.mxu0 0.0
        %1554 = vmatprep.subr.mxu0 0.0
        %1555 = vmatpush2.msra.mxu0 0.0
        %1556 = vmatprep.mubr.f32.mxu0 0.0
        %1557 = vmatmul.mubr.f32.gmra.mxu0 %v1490
        %v1558 = vpop.f32.mrf.mxu0
        %v1559 = vadd.f32 0.0, %v1558
        %v1560 = vpop.f32.mrf.mxu0
        %1561 = vdwg.mxu0
        %v1562 = vld [vmem:[%s21 + $0x8] sm:$0xff]
        %v1564 = vsel %vm1234, %v1559, 0
        %1566 = vmatprep.subr.mxu0 0.0
        %1567 = vmatpush1.msra.mxu0 0.0
        %1568 = vmatprep.subr.mxu0 0.0
        %1569 = vmatpush1.msra.mxu0 0.0
        %1570 = vmatprep.subr.mxu0 0.0
        %1571 = vmatpush1.msra.mxu0 0.0
        %1572 = vmatprep.subr.mxu0 0.0
        %1573 = vmatpush1.msra.mxu0 0.0
        %1574 = vmatprep.subr.mxu0 0.0
        %1575 = vmatpush1.msra.mxu0 0.0
        %1576 = vmatprep.subr.mxu0 0.0
        %1577 = vmatpush1.msra.mxu0 0.0
        %1578 = vmatprep.subr.mxu0 0.0
        %1579 = vmatpush1.msra.mxu0 0.0
        %1580 = vmatprep.subr.mxu0 0.0
        %1581 = vmatpush1.msra.mxu0 0.0
        %1582 = vmatprep.subr.mxu0 0.0
        %1583 = vmatpush1.msra.mxu0 0.0
        %1584 = vmatprep.subr.mxu0 0.0
        %1585 = vmatpush1.msra.mxu0 0.0
        %1586 = vmatprep.subr.mxu0 0.0
        %1587 = vmatpush1.msra.mxu0 0.0
        %1588 = vmatprep.subr.mxu0 0.0
        %1589 = vmatpush1.msra.mxu0 0.0
        %1590 = vmatprep.subr.mxu0 0.0
        %1591 = vmatpush1.msra.mxu0 0.0
        %1592 = vmatprep.subr.mxu0 0.0
        %1593 = vmatpush1.msra.mxu0 0.0
        %1594 = vmatprep.subr.mxu0 0.0
        %1595 = vmatpush1.msra.mxu0 0.0
        %1596 = vmatprep.subr.mxu0 0.0
        %1597 = vmatpush1.msra.mxu0 %v1562
        %1598 = vmatprep.subr.mxu0 0.0
        %1599 = vmatpush2.msra.mxu0 0.0
        %1600 = vmatprep.subr.mxu0 0.0
        %1601 = vmatpush2.msra.mxu0 0.0
        %1602 = vmatprep.subr.mxu0 0.0
        %1603 = vmatpush2.msra.mxu0 0.0
        %1604 = vmatprep.subr.mxu0 0.0
        %1605 = vmatpush2.msra.mxu0 0.0
        %1606 = vmatprep.subr.mxu0 0.0
        %1607 = vmatpush2.msra.mxu0 0.0
        %1608 = vmatprep.subr.mxu0 0.0
        %1609 = vmatpush2.msra.mxu0 0.0
        %1610 = vmatprep.subr.mxu0 0.0
        %1611 = vmatpush2.msra.mxu0 0.0
        %1612 = vmatprep.subr.mxu0 0.0
        %1613 = vmatpush2.msra.mxu0 0.0
        %1614 = vmatprep.subr.mxu0 0.0
        %1615 = vmatpush2.msra.mxu0 0.0
        %1616 = vmatprep.subr.mxu0 0.0
        %1617 = vmatpush2.msra.mxu0 0.0
        %1618 = vmatprep.subr.mxu0 0.0
        %1619 = vmatpush2.msra.mxu0 0.0
        %1620 = vmatprep.subr.mxu0 0.0
        %1621 = vmatpush2.msra.mxu0 0.0
        %1622 = vmatprep.subr.mxu0 0.0
        %1623 = vmatpush2.msra.mxu0 0.0
        %1624 = vmatprep.subr.mxu0 0.0
        %1625 = vmatpush2.msra.mxu0 0.0
        %1626 = vmatprep.subr.mxu0 0.0
        %1627 = vmatpush2.msra.mxu0 0.0
        %1628 = vmatprep.subr.mxu0 0.0
        %1629 = vmatpush2.msra.mxu0 0.0
        %1630 = vmatprep.mubr.f32.mxu0 0.0
        %1631 = vmatmul.mubr.f32.gmra.mxu0 %v1564
        %v1632 = vpop.f32.mrf.mxu0
        %v1633 = vadd.f32 0.0, %v1632
        %v1634 = vpop.f32.mrf.mxu0
        %1635 = vdwg.mxu0
        %v1637 = vsel %vm1234, %v1392, 0
        %1639 = vmatprep.subr.mxu0 0.0
        %1640 = vmatpush1.msra.mxu0 0.0
        %1641 = vmatprep.subr.mxu0 0.0
        %1642 = vmatpush1.msra.mxu0 0.0
        %1643 = vmatprep.subr.mxu0 0.0
        %1644 = vmatpush1.msra.mxu0 0.0
        %1645 = vmatprep.subr.mxu0 0.0
        %1646 = vmatpush1.msra.mxu0 0.0
        %1647 = vmatprep.subr.mxu0 0.0
        %1648 = vmatpush1.msra.mxu0 0.0
        %1649 = vmatprep.subr.mxu0 0.0
        %1650 = vmatpush1.msra.mxu0 0.0
        %1651 = vmatprep.subr.mxu0 0.0
        %1652 = vmatpush1.msra.mxu0 0.0
        %1653 = vmatprep.subr.mxu0 0.0
        %1654 = vmatpush1.msra.mxu0 0.0
        %1655 = vmatprep.subr.mxu0 0.0
        %1656 = vmatpush1.msra.mxu0 0.0
        %1657 = vmatprep.subr.mxu0 0.0
        %1658 = vmatpush1.msra.mxu0 0.0
        %1659 = vmatprep.subr.mxu0 0.0
        %1660 = vmatpush1.msra.mxu0 0.0
        %1661 = vmatprep.subr.mxu0 0.0
        %1662 = vmatpush1.msra.mxu0 0.0
        %1663 = vmatprep.subr.mxu0 0.0
        %1664 = vmatpush1.msra.mxu0 0.0
        %1665 = vmatprep.subr.mxu0 0.0
        %1666 = vmatpush1.msra.mxu0 0.0
        %1667 = vmatprep.subr.mxu0 0.0
        %1668 = vmatpush1.msra.mxu0 0.0
        %1669 = vmatprep.subr.mxu0 0.0
        %1670 = vmatpush1.msra.mxu0 %v1395
        %1671 = vmatprep.subr.mxu0 0.0
        %1672 = vmatpush2.msra.mxu0 0.0
        %1673 = vmatprep.subr.mxu0 0.0
        %1674 = vmatpush2.msra.mxu0 0.0
        %1675 = vmatprep.subr.mxu0 0.0
        %1676 = vmatpush2.msra.mxu0 0.0
        %1677 = vmatprep.subr.mxu0 0.0
        %1678 = vmatpush2.msra.mxu0 0.0
        %1679 = vmatprep.subr.mxu0 0.0
        %1680 = vmatpush2.msra.mxu0 0.0
        %1681 = vmatprep.subr.mxu0 0.0
        %1682 = vmatpush2.msra.mxu0 0.0
        %1683 = vmatprep.subr.mxu0 0.0
        %1684 = vmatpush2.msra.mxu0 0.0
        %1685 = vmatprep.subr.mxu0 0.0
        %1686 = vmatpush2.msra.mxu0 0.0
        %1687 = vmatprep.subr.mxu0 0.0
        %1688 = vmatpush2.msra.mxu0 0.0
        %1689 = vmatprep.subr.mxu0 0.0
        %1690 = vmatpush2.msra.mxu0 0.0
        %1691 = vmatprep.subr.mxu0 0.0
        %1692 = vmatpush2.msra.mxu0 0.0
        %1693 = vmatprep.subr.mxu0 0.0
        %1694 = vmatpush2.msra.mxu0 0.0
        %1695 = vmatprep.subr.mxu0 0.0
        %1696 = vmatpush2.msra.mxu0 0.0
        %1697 = vmatprep.subr.mxu0 0.0
        %1698 = vmatpush2.msra.mxu0 0.0
        %1699 = vmatprep.subr.mxu0 0.0
        %1700 = vmatpush2.msra.mxu0 0.0
        %1701 = vmatprep.subr.mxu0 0.0
        %1702 = vmatpush2.msra.mxu0 0.0
        %1703 = vmatprep.mubr.f32.mxu0 0.0
        %1704 = vmatmul.mubr.f32.gmra.mxu0 %v1637
        %v1705 = vpop.f32.mrf.mxu0
        %v1706 = vadd.f32 %v1633, %v1705
        %v1707 = vpop.f32.mrf.mxu0
        %1708 = vdwg.mxu0
        %1709 = vrot.lane.b32.xlu0 %v1233, 112
        %v1710 = vpop.permute.xlu0 %1709
        %1711 = vrot.lane.b32.xlu0 %v1146, 112
        %v1712 = vpop.permute.xlu0 %1711
        %v1713 = vsel %vm1234, %v1710, 0
        %v1715 = vsel %vm1234, %v1712, 0
        %1717 = vmatprep.subr.mxu0 0.0
        %1718 = vmatpush1.xpose.msra.mxu0 0.0
        %1719 = vmatprep.subr.mxu0 0.0
        %1720 = vmatpush1.xpose.msra.mxu0 0.0
        %1721 = vmatprep.subr.mxu0 0.0
        %1722 = vmatpush1.xpose.msra.mxu0 0.0
        %1723 = vmatprep.subr.mxu0 0.0
        %1724 = vmatpush1.xpose.msra.mxu0 0.0
        %1725 = vmatprep.subr.mxu0 0.0
        %1726 = vmatpush1.xpose.msra.mxu0 0.0
        %1727 = vmatprep.subr.mxu0 0.0
        %1728 = vmatpush1.xpose.msra.mxu0 0.0
        %1729 = vmatprep.subr.mxu0 0.0
        %1730 = vmatpush1.xpose.msra.mxu0 0.0
        %1731 = vmatprep.subr.mxu0 0.0
        %1732 = vmatpush1.xpose.msra.mxu0 0.0
        %1733 = vmatprep.subr.mxu0 0.0
        %1734 = vmatpush1.xpose.msra.mxu0 0.0
        %1735 = vmatprep.subr.mxu0 0.0
        %1736 = vmatpush1.xpose.msra.mxu0 0.0
        %1737 = vmatprep.subr.mxu0 0.0
        %1738 = vmatpush1.xpose.msra.mxu0 0.0
        %1739 = vmatprep.subr.mxu0 0.0
        %1740 = vmatpush1.xpose.msra.mxu0 0.0
        %1741 = vmatprep.subr.mxu0 0.0
        %1742 = vmatpush1.xpose.msra.mxu0 0.0
        %1743 = vmatprep.subr.mxu0 0.0
        %1744 = vmatpush1.xpose.msra.mxu0 0.0
        %1745 = vmatprep.subr.mxu0 0.0
        %1746 = vmatpush1.xpose.msra.mxu0 0.0
        %1747 = vmatprep.subr.mxu0 0.0
        %1748 = vmatpush1.xpose.msra.mxu0 %v1715
        %1749 = vmatprep.subr.mxu0 0.0
        %1750 = vmatpush2.xpose.msra.mxu0 0.0
        %1751 = vmatprep.subr.mxu0 0.0
        %1752 = vmatpush2.xpose.msra.mxu0 0.0
        %1753 = vmatprep.subr.mxu0 0.0
        %1754 = vmatpush2.xpose.msra.mxu0 0.0
        %1755 = vmatprep.subr.mxu0 0.0
        %1756 = vmatpush2.xpose.msra.mxu0 0.0
        %1757 = vmatprep.subr.mxu0 0.0
        %1758 = vmatpush2.xpose.msra.mxu0 0.0
        %1759 = vmatprep.subr.mxu0 0.0
        %1760 = vmatpush2.xpose.msra.mxu0 0.0
        %1761 = vmatprep.subr.mxu0 0.0
        %1762 = vmatpush2.xpose.msra.mxu0 0.0
        %1763 = vmatprep.subr.mxu0 0.0
        %1764 = vmatpush2.xpose.msra.mxu0 0.0
        %1765 = vmatprep.subr.mxu0 0.0
        %1766 = vmatpush2.xpose.msra.mxu0 0.0
        %1767 = vmatprep.subr.mxu0 0.0
        %1768 = vmatpush2.xpose.msra.mxu0 0.0
        %1769 = vmatprep.subr.mxu0 0.0
        %1770 = vmatpush2.xpose.msra.mxu0 0.0
        %1771 = vmatprep.subr.mxu0 0.0
        %1772 = vmatpush2.xpose.msra.mxu0 0.0
        %1773 = vmatprep.subr.mxu0 0.0
        %1774 = vmatpush2.xpose.msra.mxu0 0.0
        %1775 = vmatprep.subr.mxu0 0.0
        %1776 = vmatpush2.xpose.msra.mxu0 0.0
        %1777 = vmatprep.subr.mxu0 0.0
        %1778 = vmatpush2.xpose.msra.mxu0 0.0
        %1779 = vmatprep.subr.mxu0 0.0
        %1780 = vmatpush2.xpose.msra.mxu0 0.0
        %1781 = vmatprep.mubr.f32.mxu0 0.0
        %1782 = vmatmul.mubr.f32.gmra.mxu0 %v1713
        %v1783 = vpop.f32.mrf.mxu0
        %v1784 = vadd.f32 0.0, %v1783
        %v1785 = vpop.f32.mrf.mxu0
        %1786 = vdwg.mxu0
        %v1787 = vsel %vm1234, %v1784, -inf
        %1788 = vmax.xlane.f32.xlu0 %v1787
        %v1789 = vpop.xlane.xlu0 %1788
        %v1790 = vsub.f32 %v1784, %v1789
        %v1791 = vmul.f32 %v1790, 1.442695
        %v1792 = vpow.pop %v1791
        %v1793 = vsel %vm1234, %v1792, 0.0
        %1794 = vadd.xlane.f32.xlu0 %v1793
        %v1795 = vpop.xlane.xlu0 %1794
        %v1796 = vrcp.pop %v1795
        %v1797 = vmul.f32 %v1792, %v1796
        %1798 = vrot.lane.b32.xlu0 %v1230, 112
        %v1799 = vpop.permute.xlu0 %1798
        %v1802 = vsel %vm1234, %v1797, 0
        %1804 = vmatprep.subr.mxu0 0.0
        %1805 = vmatpush1.msra.mxu0 0.0
        %1806 = vmatprep.subr.mxu0 0.0
        %1807 = vmatpush1.msra.mxu0 0.0
        %1808 = vmatprep.subr.mxu0 0.0
        %1809 = vmatpush1.msra.mxu0 0.0
        %1810 = vmatprep.subr.mxu0 0.0
        %1811 = vmatpush1.msra.mxu0 0.0
        %1812 = vmatprep.subr.mxu0 0.0
        %1813 = vmatpush1.msra.mxu0 0.0
        %1814 = vmatprep.subr.mxu0 0.0
        %1815 = vmatpush1.msra.mxu0 0.0
        %1816 = vmatprep.subr.mxu0 0.0
        %1817 = vmatpush1.msra.mxu0 0.0
        %1818 = vmatprep.subr.mxu0 0.0
        %1819 = vmatpush1.msra.mxu0 0.0
        %1820 = vmatprep.subr.mxu0 0.0
        %1821 = vmatpush1.msra.mxu0 0.0
        %1822 = vmatprep.subr.mxu0 0.0
        %1823 = vmatpush1.msra.mxu0 0.0
        %1824 = vmatprep.subr.mxu0 0.0
        %1825 = vmatpush1.msra.mxu0 0.0
        %1826 = vmatprep.subr.mxu0 0.0
        %1827 = vmatpush1.msra.mxu0 0.0
        %1828 = vmatprep.subr.mxu0 0.0
        %1829 = vmatpush1.msra.mxu0 0.0
        %1830 = vmatprep.subr.mxu0 0.0
        %1831 = vmatpush1.msra.mxu0 0.0
        %1832 = vmatprep.subr.mxu0 0.0
        %1833 = vmatpush1.msra.mxu0 0.0
        %1834 = vmatprep.subr.mxu0 0.0
        %1835 = vmatpush1.msra.mxu0 %v1799
        %1836 = vmatprep.subr.mxu0 0.0
        %1837 = vmatpush2.msra.mxu0 0.0
        %1838 = vmatprep.subr.mxu0 0.0
        %1839 = vmatpush2.msra.mxu0 0.0
        %1840 = vmatprep.subr.mxu0 0.0
        %1841 = vmatpush2.msra.mxu0 0.0
        %1842 = vmatprep.subr.mxu0 0.0
        %1843 = vmatpush2.msra.mxu0 0.0
        %1844 = vmatprep.subr.mxu0 0.0
        %1845 = vmatpush2.msra.mxu0 0.0
        %1846 = vmatprep.subr.mxu0 0.0
        %1847 = vmatpush2.msra.mxu0 0.0
        %1848 = vmatprep.subr.mxu0 0.0
        %1849 = vmatpush2.msra.mxu0 0.0
        %1850 = vmatprep.subr.mxu0 0.0
        %1851 = vmatpush2.msra.mxu0 0.0
        %1852 = vmatprep.subr.mxu0 0.0
        %1853 = vmatpush2.msra.mxu0 0.0
        %1854 = vmatprep.subr.mxu0 0.0
        %1855 = vmatpush2.msra.mxu0 0.0
        %1856 = vmatprep.subr.mxu0 0.0
        %1857 = vmatpush2.msra.mxu0 0.0
        %1858 = vmatprep.subr.mxu0 0.0
        %1859 = vmatpush2.msra.mxu0 0.0
        %1860 = vmatprep.subr.mxu0 0.0
        %1861 = vmatpush2.msra.mxu0 0.0
        %1862 = vmatprep.subr.mxu0 0.0
        %1863 = vmatpush2.msra.mxu0 0.0
        %1864 = vmatprep.subr.mxu0 0.0
        %1865 = vmatpush2.msra.mxu0 0.0
        %1866 = vmatprep.subr.mxu0 0.0
        %1867 = vmatpush2.msra.mxu0 0.0
        %1868 = vmatprep.mubr.f32.mxu0 0.0
        %1869 = vmatmul.mubr.f32.gmra.mxu0 %v1802
        %v1870 = vpop.f32.mrf.mxu0
        %v1871 = vadd.f32 0.0, %v1870
        %v1872 = vpop.f32.mrf.mxu0
        %1873 = vdwg.mxu0
        %v1874 = vld [vmem:[%s21 + $0x10] sm:$0xff]
        %v1876 = vsel %vm1234, %v1871, 0
        %1878 = vmatprep.subr.mxu0 0.0
        %1879 = vmatpush1.msra.mxu0 0.0
        %1880 = vmatprep.subr.mxu0 0.0
        %1881 = vmatpush1.msra.mxu0 0.0
        %1882 = vmatprep.subr.mxu0 0.0
        %1883 = vmatpush1.msra.mxu0 0.0
        %1884 = vmatprep.subr.mxu0 0.0
        %1885 = vmatpush1.msra.mxu0 0.0
        %1886 = vmatprep.subr.mxu0 0.0
        %1887 = vmatpush1.msra.mxu0 0.0
        %1888 = vmatprep.subr.mxu0 0.0
        %1889 = vmatpush1.msra.mxu0 0.0
        %1890 = vmatprep.subr.mxu0 0.0
        %1891 = vmatpush1.msra.mxu0 0.0
        %1892 = vmatprep.subr.mxu0 0.0
        %1893 = vmatpush1.msra.mxu0 0.0
        %1894 = vmatprep.subr.mxu0 0.0
        %1895 = vmatpush1.msra.mxu0 0.0
        %1896 = vmatprep.subr.mxu0 0.0
        %1897 = vmatpush1.msra.mxu0 0.0
        %1898 = vmatprep.subr.mxu0 0.0
        %1899 = vmatpush1.msra.mxu0 0.0
        %1900 = vmatprep.subr.mxu0 0.0
        %1901 = vmatpush1.msra.mxu0 0.0
        %1902 = vmatprep.subr.mxu0 0.0
        %1903 = vmatpush1.msra.mxu0 0.0
        %1904 = vmatprep.subr.mxu0 0.0
        %1905 = vmatpush1.msra.mxu0 0.0
        %1906 = vmatprep.subr.mxu0 0.0
        %1907 = vmatpush1.msra.mxu0 0.0
        %1908 = vmatprep.subr.mxu0 0.0
        %1909 = vmatpush1.msra.mxu0 %v1874
        %1910 = vmatprep.subr.mxu0 0.0
        %1911 = vmatpush2.msra.mxu0 0.0
        %1912 = vmatprep.subr.mxu0 0.0
        %1913 = vmatpush2.msra.mxu0 0.0
        %1914 = vmatprep.subr.mxu0 0.0
        %1915 = vmatpush2.msra.mxu0 0.0
        %1916 = vmatprep.subr.mxu0 0.0
        %1917 = vmatpush2.msra.mxu0 0.0
        %1918 = vmatprep.subr.mxu0 0.0
        %1919 = vmatpush2.msra.mxu0 0.0
        %1920 = vmatprep.subr.mxu0 0.0
        %1921 = vmatpush2.msra.mxu0 0.0
        %1922 = vmatprep.subr.mxu0 0.0
        %1923 = vmatpush2.msra.mxu0 0.0
        %1924 = vmatprep.subr.mxu0 0.0
        %1925 = vmatpush2.msra.mxu0 0.0
        %1926 = vmatprep.subr.mxu0 0.0
        %1927 = vmatpush2.msra.mxu0 0.0
        %1928 = vmatprep.subr.mxu0 0.0
        %1929 = vmatpush2.msra.mxu0 0.0
        %1930 = vmatprep.subr.mxu0 0.0
        %1931 = vmatpush2.msra.mxu0 0.0
        %1932 = vmatprep.subr.mxu0 0.0
        %1933 = vmatpush2.msra.mxu0 0.0
        %1934 = vmatprep.subr.mxu0 0.0
        %1935 = vmatpush2.msra.mxu0 0.0
        %1936 = vmatprep.subr.mxu0 0.0
        %1937 = vmatpush2.msra.mxu0 0.0
        %1938 = vmatprep.subr.mxu0 0.0
        %1939 = vmatpush2.msra.mxu0 0.0
        %1940 = vmatprep.subr.mxu0 0.0
        %1941 = vmatpush2.msra.mxu0 0.0
        %1942 = vmatprep.mubr.f32.mxu0 0.0
        %1943 = vmatmul.mubr.f32.gmra.mxu0 %v1876
        %v1944 = vpop.f32.mrf.mxu0
        %v1945 = vadd.f32 0.0, %v1944
        %v1946 = vpop.f32.mrf.mxu0
        %1947 = vdwg.mxu0
        %v1948 = vadd.f32 %v1706, %v1945
        %1949 = vrot.lane.b32.xlu0 %v1233, 104
        %v1950 = vpop.permute.xlu0 %1949
        %1951 = vrot.lane.b32.xlu0 %v1146, 104
        %v1952 = vpop.permute.xlu0 %1951
        %v1953 = vsel %vm1234, %v1950, 0
        %v1955 = vsel %vm1234, %v1952, 0
        %1957 = vmatprep.subr.mxu0 0.0
        %1958 = vmatpush1.xpose.msra.mxu0 0.0
        %1959 = vmatprep.subr.mxu0 0.0
        %1960 = vmatpush1.xpose.msra.mxu0 0.0
        %1961 = vmatprep.subr.mxu0 0.0
        %1962 = vmatpush1.xpose.msra.mxu0 0.0
        %1963 = vmatprep.subr.mxu0 0.0
        %1964 = vmatpush1.xpose.msra.mxu0 0.0
        %1965 = vmatprep.subr.mxu0 0.0
        %1966 = vmatpush1.xpose.msra.mxu0 0.0
        %1967 = vmatprep.subr.mxu0 0.0
        %1968 = vmatpush1.xpose.msra.mxu0 0.0
        %1969 = vmatprep.subr.mxu0 0.0
        %1970 = vmatpush1.xpose.msra.mxu0 0.0
        %1971 = vmatprep.subr.mxu0 0.0
        %1972 = vmatpush1.xpose.msra.mxu0 0.0
        %1973 = vmatprep.subr.mxu0 0.0
        %1974 = vmatpush1.xpose.msra.mxu0 0.0
        %1975 = vmatprep.subr.mxu0 0.0
        %1976 = vmatpush1.xpose.msra.mxu0 0.0
        %1977 = vmatprep.subr.mxu0 0.0
        %1978 = vmatpush1.xpose.msra.mxu0 0.0
        %1979 = vmatprep.subr.mxu0 0.0
        %1980 = vmatpush1.xpose.msra.mxu0 0.0
        %1981 = vmatprep.subr.mxu0 0.0
        %1982 = vmatpush1.xpose.msra.mxu0 0.0
        %1983 = vmatprep.subr.mxu0 0.0
        %1984 = vmatpush1.xpose.msra.mxu0 0.0
        %1985 = vmatprep.subr.mxu0 0.0
        %1986 = vmatpush1.xpose.msra.mxu0 0.0
        %1987 = vmatprep.subr.mxu0 0.0
        %1988 = vmatpush1.xpose.msra.mxu0 %v1955
        %1989 = vmatprep.subr.mxu0 0.0
        %1990 = vmatpush2.xpose.msra.mxu0 0.0
        %1991 = vmatprep.subr.mxu0 0.0
        %1992 = vmatpush2.xpose.msra.mxu0 0.0
        %1993 = vmatprep.subr.mxu0 0.0
        %1994 = vmatpush2.xpose.msra.mxu0 0.0
        %1995 = vmatprep.subr.mxu0 0.0
        %1996 = vmatpush2.xpose.msra.mxu0 0.0
        %1997 = vmatprep.subr.mxu0 0.0
        %1998 = vmatpush2.xpose.msra.mxu0 0.0
        %1999 = vmatprep.subr.mxu0 0.0
        %2000 = vmatpush2.xpose.msra.mxu0 0.0
        %2001 = vmatprep.subr.mxu0 0.0
        %2002 = vmatpush2.xpose.msra.mxu0 0.0
        %2003 = vmatprep.subr.mxu0 0.0
        %2004 = vmatpush2.xpose.msra.mxu0 0.0
        %2005 = vmatprep.subr.mxu0 0.0
        %2006 = vmatpush2.xpose.msra.mxu0 0.0
        %2007 = vmatprep.subr.mxu0 0.0
        %2008 = vmatpush2.xpose.msra.mxu0 0.0
        %2009 = vmatprep.subr.mxu0 0.0
        %2010 = vmatpush2.xpose.msra.mxu0 0.0
        %2011 = vmatprep.subr.mxu0 0.0
        %2012 = vmatpush2.xpose.msra.mxu0 0.0
        %2013 = vmatprep.subr.mxu0 0.0
        %2014 = vmatpush2.xpose.msra.mxu0 0.0
        %2015 = vmatprep.subr.mxu0 0.0
        %2016 = vmatpush2.xpose.msra.mxu0 0.0
        %2017 = vmatprep.subr.mxu0 0.0
        %2018 = vmatpush2.xpose.msra.mxu0 0.0
        %2019 = vmatprep.subr.mxu0 0.0
        %2020 = vmatpush2.xpose.msra.mxu0 0.0
        %2021 = vmatprep.mubr.f32.mxu0 0.0
        %2022 = vmatmul.mubr.f32.gmra.mxu0 %v1953
        %v2023 = vpop.f32.mrf.mxu0
        %v2024 = vadd.f32 0.0, %v2023
        %v2025 = vpop.f32.mrf.mxu0
        %2026 = vdwg.mxu0
        %v2027 = vsel %vm1234, %v2024, -inf
        %2028 = vmax.xlane.f32.xlu0 %v2027
        %v2029 = vpop.xlane.xlu0 %2028
        %v2030 = vsub.f32 %v2024, %v2029
        %v2031 = vmul.f32 %v2030, 1.442695
        %v2032 = vpow.pop %v2031
        %v2033 = vsel %vm1234, %v2032, 0.0
        %2034 = vadd.xlane.f32.xlu0 %v2033
        %v2035 = vpop.xlane.xlu0 %2034
        %v2036 = vrcp.pop %v2035
        %v2037 = vmul.f32 %v2032, %v2036
        %2038 = vrot.lane.b32.xlu0 %v1230, 104
        %v2039 = vpop.permute.xlu0 %2038
        %v2042 = vsel %vm1234, %v2037, 0
        %2044 = vmatprep.subr.mxu0 0.0
        %2045 = vmatpush1.msra.mxu0 0.0
        %2046 = vmatprep.subr.mxu0 0.0
        %2047 = vmatpush1.msra.mxu0 0.0
        %2048 = vmatprep.subr.mxu0 0.0
        %2049 = vmatpush1.msra.mxu0 0.0
        %2050 = vmatprep.subr.mxu0 0.0
        %2051 = vmatpush1.msra.mxu0 0.0
        %2052 = vmatprep.subr.mxu0 0.0
        %2053 = vmatpush1.msra.mxu0 0.0
        %2054 = vmatprep.subr.mxu0 0.0
        %2055 = vmatpush1.msra.mxu0 0.0
        %2056 = vmatprep.subr.mxu0 0.0
        %2057 = vmatpush1.msra.mxu0 0.0
        %2058 = vmatprep.subr.mxu0 0.0
        %2059 = vmatpush1.msra.mxu0 0.0
        %2060 = vmatprep.subr.mxu0 0.0
        %2061 = vmatpush1.msra.mxu0 0.0
        %2062 = vmatprep.subr.mxu0 0.0
        %2063 = vmatpush1.msra.mxu0 0.0
        %2064 = vmatprep.subr.mxu0 0.0
        %2065 = vmatpush1.msra.mxu0 0.0
        %2066 = vmatprep.subr.mxu0 0.0
        %2067 = vmatpush1.msra.mxu0 0.0
        %2068 = vmatprep.subr.mxu0 0.0
        %2069 = vmatpush1.msra.mxu0 0.0
        %2070 = vmatprep.subr.mxu0 0.0
        %2071 = vmatpush1.msra.mxu0 0.0
        %2072 = vmatprep.subr.mxu0 0.0
        %2073 = vmatpush1.msra.mxu0 0.0
        %2074 = vmatprep.subr.mxu0 0.0
        %2075 = vmatpush1.msra.mxu0 %v2039
        %2076 = vmatprep.subr.mxu0 0.0
        %2077 = vmatpush2.msra.mxu0 0.0
        %2078 = vmatprep.subr.mxu0 0.0
        %2079 = vmatpush2.msra.mxu0 0.0
        %2080 = vmatprep.subr.mxu0 0.0
        %2081 = vmatpush2.msra.mxu0 0.0
        %2082 = vmatprep.subr.mxu0 0.0
        %2083 = vmatpush2.msra.mxu0 0.0
        %2084 = vmatprep.subr.mxu0 0.0
        %2085 = vmatpush2.msra.mxu0 0.0
        %2086 = vmatprep.subr.mxu0 0.0
        %2087 = vmatpush2.msra.mxu0 0.0
        %2088 = vmatprep.subr.mxu0 0.0
        %2089 = vmatpush2.msra.mxu0 0.0
        %2090 = vmatprep.subr.mxu0 0.0
        %2091 = vmatpush2.msra.mxu0 0.0
        %2092 = vmatprep.subr.mxu0 0.0
        %2093 = vmatpush2.msra.mxu0 0.0
        %2094 = vmatprep.subr.mxu0 0.0
        %2095 = vmatpush2.msra.mxu0 0.0
        %2096 = vmatprep.subr.mxu0 0.0
        %2097 = vmatpush2.msra.mxu0 0.0
        %2098 = vmatprep.subr.mxu0 0.0
        %2099 = vmatpush2.msra.mxu0 0.0
        %2100 = vmatprep.subr.mxu0 0.0
        %2101 = vmatpush2.msra.mxu0 0.0
        %2102 = vmatprep.subr.mxu0 0.0
        %2103 = vmatpush2.msra.mxu0 0.0
        %2104 = vmatprep.subr.mxu0 0.0
        %2105 = vmatpush2.msra.mxu0 0.0
        %2106 = vmatprep.subr.mxu0 0.0
        %2107 = vmatpush2.msra.mxu0 0.0
        %2108 = vmatprep.mubr.f32.mxu0 0.0
        %2109 = vmatmul.mubr.f32.gmra.mxu0 %v2042
        %v2110 = vpop.f32.mrf.mxu0
        %v2111 = vadd.f32 0.0, %v2110
        %v2112 = vpop.f32.mrf.mxu0
        %2113 = vdwg.mxu0
        %v2114 = vld [vmem:[%s21 + $0x18] sm:$0xff]
        %v2116 = vsel %vm1234, %v2111, 0
        %2118 = vmatprep.subr.mxu0 0.0
        %2119 = vmatpush1.msra.mxu0 0.0
        %2120 = vmatprep.subr.mxu0 0.0
        %2121 = vmatpush1.msra.mxu0 0.0
        %2122 = vmatprep.subr.mxu0 0.0
        %2123 = vmatpush1.msra.mxu0 0.0
        %2124 = vmatprep.subr.mxu0 0.0
        %2125 = vmatpush1.msra.mxu0 0.0
        %2126 = vmatprep.subr.mxu0 0.0
        %2127 = vmatpush1.msra.mxu0 0.0
        %2128 = vmatprep.subr.mxu0 0.0
        %2129 = vmatpush1.msra.mxu0 0.0
        %2130 = vmatprep.subr.mxu0 0.0
        %2131 = vmatpush1.msra.mxu0 0.0
        %2132 = vmatprep.subr.mxu0 0.0
        %2133 = vmatpush1.msra.mxu0 0.0
        %2134 = vmatprep.subr.mxu0 0.0
        %2135 = vmatpush1.msra.mxu0 0.0
        %2136 = vmatprep.subr.mxu0 0.0
        %2137 = vmatpush1.msra.mxu0 0.0
        %2138 = vmatprep.subr.mxu0 0.0
        %2139 = vmatpush1.msra.mxu0 0.0
        %2140 = vmatprep.subr.mxu0 0.0
        %2141 = vmatpush1.msra.mxu0 0.0
        %2142 = vmatprep.subr.mxu0 0.0
        %2143 = vmatpush1.msra.mxu0 0.0
        %2144 = vmatprep.subr.mxu0 0.0
        %2145 = vmatpush1.msra.mxu0 0.0
        %2146 = vmatprep.subr.mxu0 0.0
        %2147 = vmatpush1.msra.mxu0 0.0
        %2148 = vmatprep.subr.mxu0 0.0
        %2149 = vmatpush1.msra.mxu0 %v2114
        %2150 = vmatprep.subr.mxu0 0.0
        %2151 = vmatpush2.msra.mxu0 0.0
        %2152 = vmatprep.subr.mxu0 0.0
        %2153 = vmatpush2.msra.mxu0 0.0
        %2154 = vmatprep.subr.mxu0 0.0
        %2155 = vmatpush2.msra.mxu0 0.0
        %2156 = vmatprep.subr.mxu0 0.0
        %2157 = vmatpush2.msra.mxu0 0.0
        %2158 = vmatprep.subr.mxu0 0.0
        %2159 = vmatpush2.msra.mxu0 0.0
        %2160 = vmatprep.subr.mxu0 0.0
        %2161 = vmatpush2.msra.mxu0 0.0
        %2162 = vmatprep.subr.mxu0 0.0
        %2163 = vmatpush2.msra.mxu0 0.0
        %2164 = vmatprep.subr.mxu0 0.0
        %2165 = vmatpush2.msra.mxu0 0.0
        %2166 = vmatprep.subr.mxu0 0.0
        %2167 = vmatpush2.msra.mxu0 0.0
        %2168 = vmatprep.subr.mxu0 0.0
        %2169 = vmatpush2.msra.mxu0 0.0
        %2170 = vmatprep.subr.mxu0 0.0
        %2171 = vmatpush2.msra.mxu0 0.0
        %2172 = vmatprep.subr.mxu0 0.0
        %2173 = vmatpush2.msra.mxu0 0.0
        %2174 = vmatprep.subr.mxu0 0.0
        %2175 = vmatpush2.msra.mxu0 0.0
        %2176 = vmatprep.subr.mxu0 0.0
        %2177 = vmatpush2.msra.mxu0 0.0
        %2178 = vmatprep.subr.mxu0 0.0
        %2179 = vmatpush2.msra.mxu0 0.0
        %2180 = vmatprep.subr.mxu0 0.0
        %2181 = vmatpush2.msra.mxu0 0.0
        %2182 = vmatprep.mubr.f32.mxu0 0.0
        %2183 = vmatmul.mubr.f32.gmra.mxu0 %v2116
        %v2184 = vpop.f32.mrf.mxu0
        %v2185 = vadd.f32 0.0, %v2184
        %v2186 = vpop.f32.mrf.mxu0
        %2187 = vdwg.mxu0
        %v2188 = vadd.f32 %v1948, %v2185
        %v2189 = vld [vmem:[%s23] sm:$0x1]
        %v2191 = vlaneseq
        %v2192 = vshrl.u32 %v2191, 7
        %v2193 = vsub.s32 0, %v2192
        %v2194 = vrot.slane %v2189, %v2193
        %v2196 = vadd.f32 %v2188, %v2194
        %v2197 = vadd.f32 %v980, %v2196
        %v2198 = vld [vmem:[%s25] sm:$0x1]
        %v2199 = vld [vmem:[%s27] sm:$0x1]
        %v2200 = vsel %vm994, %v2197, 0.0
        %2201 = vadd.xlane.f32.xlu0 %v2200
        %v2202 = vpop.xlane.xlu0 %2201
        %v2203 = vrcp.pop 32.0
        %v2204 = vmul.f32 %v2202, %v2203
        %v2205 = vsub.f32 %v2197, %v2204
        %v2206 = vmul.f32 %v2205, %v2205
        %v2207 = vsel %vm994, %v2206, 0.0
        %2208 = vadd.xlane.f32.xlu0 %v2207
        %v2209 = vpop.xlane.xlu0 %2208
        %v2210 = vmul.f32 %v2209, %v2203
        %v2211 = vadd.f32 %v2210, 1e-05
        %v2212 = vrsqrt.pop %v2211
        %v2213 = vmul.f32 %v2205, %v2212
        %v2215 = vlaneseq
        %v2216 = vshrl.u32 %v2215, 7
        %v2217 = vsub.s32 0, %v2216
        %v2218 = vrot.slane %v2198, %v2217
        %v2220 = vmul.f32 %v2213, %v2218
        %v2222 = vlaneseq
        %v2223 = vshrl.u32 %v2222, 7
        %v2224 = vsub.s32 0, %v2223
        %v2225 = vrot.slane %v2199, %v2224
        %v2227 = vadd.f32 %v2220, %v2225
        %v2228 = vadd.f32 %v2227, %v981
        %v2229 = vld [vmem:[%s979] sm:$0xff]
        %v2230 = vld [vmem:[%s979 + $0x8] sm:$0xff]
        %v2231 = vld [vmem:[%s979 + $0x10] sm:$0xff]
        %v2232 = vld [vmem:[%s979 + $0x18] sm:$0xff]
        %v2233 = vld [vmem:[%s979 + $0x20] sm:$0xff]
        %v2234 = vld [vmem:[%s979 + $0x28] sm:$0xff]
        %v2235 = vld [vmem:[%s979 + $0x30] sm:$0xff]
        %v2236 = vld [vmem:[%s979 + $0x38] sm:$0xff]
        %v2237 = vld [vmem:[%s979 + $0x40] sm:$0xff]
        %v2238 = vld [vmem:[%s979 + $0x48] sm:$0xff]
        %v2239 = vld [vmem:[%s979 + $0x50] sm:$0xff]
        %v2240 = vld [vmem:[%s979 + $0x58] sm:$0xff]
        %v2241 = vld [vmem:[%s979 + $0x60] sm:$0xff]
        %v2242 = vld [vmem:[%s979 + $0x68] sm:$0xff]
        %v2243 = vld [vmem:[%s979 + $0x70] sm:$0xff]
        %v2244 = vld [vmem:[%s979 + $0x78] sm:$0xff]
        %v2245 = vld [vmem:[%s29] sm:$0xff]
        %v2246 = vld [vmem:[%s29 + $0x8] sm:$0xff]
        %v2247 = vld [vmem:[%s29 + $0x10] sm:$0xff]
        %v2248 = vld [vmem:[%s29 + $0x18] sm:$0xff]
        %v2249 = vld [vmem:[%s31] sm:$0x1]
        %v2251 = vlaneseq
        %v2252 = vshrl.u32 %v2251, 7
        %v2253 = vsub.s32 0, %v2252
        %v2254 = vrot.slane %v2249, %v2253
        %v2257 = vsel %vm994, %v2229, 0
        %v2260 = vsel %vm994, %v2230, 0
        %v2263 = vsel %vm994, %v2231, 0
        %v2266 = vsel %vm994, %v2232, 0
        %v2269 = vsel %vm994, %v2233, 0
        %v2272 = vsel %vm994, %v2234, 0
        %v2275 = vsel %vm994, %v2235, 0
        %v2278 = vsel %vm994, %v2236, 0
        %v2281 = vsel %vm994, %v2237, 0
        %v2284 = vsel %vm994, %v2238, 0
        %v2287 = vsel %vm994, %v2239, 0
        %v2290 = vsel %vm994, %v2240, 0
        %v2293 = vsel %vm994, %v2241, 0
        %v2296 = vsel %vm994, %v2242, 0
        %v2299 = vsel %vm994, %v2243, 0
        %v2302 = vsel %vm994, %v2244, 0
        %2304 = vmatprep.subr.mxu0 0.0
        %2305 = vmatpush1.msra.mxu0 0.0
        %2306 = vmatprep.subr.mxu0 0.0
        %2307 = vmatpush1.msra.mxu0 0.0
        %2308 = vmatprep.subr.mxu0 0.0
        %2309 = vmatpush1.msra.mxu0 0.0
        %2310 = vmatprep.subr.mxu0 0.0
        %2311 = vmatpush1.msra.mxu0 0.0
        %2312 = vmatprep.subr.mxu0 0.0
        %2313 = vmatpush1.msra.mxu0 0.0
        %2314 = vmatprep.subr.mxu0 0.0
        %2315 = vmatpush1.msra.mxu0 0.0
        %2316 = vmatprep.subr.mxu0 0.0
        %2317 = vmatpush1.msra.mxu0 0.0
        %2318 = vmatprep.subr.mxu0 0.0
        %2319 = vmatpush1.msra.mxu0 0.0
        %2320 = vmatprep.subr.mxu0 0.0
        %2321 = vmatpush1.msra.mxu0 0.0
        %2322 = vmatprep.subr.mxu0 0.0
        %2323 = vmatpush1.msra.mxu0 0.0
        %2324 = vmatprep.subr.mxu0 0.0
        %2325 = vmatpush1.msra.mxu0 0.0
        %2326 = vmatprep.subr.mxu0 0.0
        %2327 = vmatpush1.msra.mxu0 0.0
        %2328 = vmatprep.subr.mxu0 0.0
        %2329 = vmatpush1.msra.mxu0 %v2248
        %2330 = vmatprep.subr.mxu0 0.0
        %2331 = vmatpush1.msra.mxu0 %v2247
        %2332 = vmatprep.subr.mxu0 0.0
        %2333 = vmatpush1.msra.mxu0 %v2246
        %2334 = vmatprep.subr.mxu0 0.0
        %2335 = vmatpush1.msra.mxu0 %v2245
        %2336 = vmatprep.subr.mxu0 0.0
        %2337 = vmatpush2.msra.mxu0 0.0
        %2338 = vmatprep.subr.mxu0 0.0
        %2339 = vmatpush2.msra.mxu0 0.0
        %2340 = vmatprep.subr.mxu0 0.0
        %2341 = vmatpush2.msra.mxu0 0.0
        %2342 = vmatprep.subr.mxu0 0.0
        %2343 = vmatpush2.msra.mxu0 0.0
        %2344 = vmatprep.subr.mxu0 0.0
        %2345 = vmatpush2.msra.mxu0 0.0
        %2346 = vmatprep.subr.mxu0 0.0
        %2347 = vmatpush2.msra.mxu0 0.0
        %2348 = vmatprep.subr.mxu0 0.0
        %2349 = vmatpush2.msra.mxu0 0.0
        %2350 = vmatprep.subr.mxu0 0.0
        %2351 = vmatpush2.msra.mxu0 0.0
        %2352 = vmatprep.subr.mxu0 0.0
        %2353 = vmatpush2.msra.mxu0 0.0
        %2354 = vmatprep.subr.mxu0 0.0
        %2355 = vmatpush2.msra.mxu0 0.0
        %2356 = vmatprep.subr.mxu0 0.0
        %2357 = vmatpush2.msra.mxu0 0.0
        %2358 = vmatprep.subr.mxu0 0.0
        %2359 = vmatpush2.msra.mxu0 0.0
        %2360 = vmatprep.subr.mxu0 0.0
        %2361 = vmatpush2.msra.mxu0 0.0
        %2362 = vmatprep.subr.mxu0 0.0
        %2363 = vmatpush2.msra.mxu0 0.0
        %2364 = vmatprep.subr.mxu0 0.0
        %2365 = vmatpush2.msra.mxu0 0.0
        %2366 = vmatprep.subr.mxu0 0.0
        %2367 = vmatpush2.msra.mxu0 0.0
        %2368 = vmatprep.mubr.f32.mxu0 0.0
        %2369 = vmatmul.mubr.f32.gmra.mxu0 %v2257
        %v2370 = vpop.f32.mrf.mxu0
        %v2371 = vadd.f32 %v2254, %v2370
        %v2372 = vpop.f32.mrf.mxu0
        %2373 = vmatprep.mubr.f32.mxu0 0.0
        %2374 = vmatmul.mubr.f32.gmra.mxu0 %v2260
        %v2375 = vpop.f32.mrf.mxu0
        %v2376 = vadd.f32 %v2254, %v2375
        %v2377 = vpop.f32.mrf.mxu0
        %2378 = vmatprep.mubr.f32.mxu0 0.0
        %2379 = vmatmul.mubr.f32.gmra.mxu0 %v2263
        %v2380 = vpop.f32.mrf.mxu0
        %v2381 = vadd.f32 %v2254, %v2380
        %v2382 = vpop.f32.mrf.mxu0
        %2383 = vmatprep.mubr.f32.mxu0 0.0
        %2384 = vmatmul.mubr.f32.gmra.mxu0 %v2266
        %v2385 = vpop.f32.mrf.mxu0
        %v2386 = vadd.f32 %v2254, %v2385
        %v2387 = vpop.f32.mrf.mxu0
        %2388 = vmatprep.mubr.f32.mxu0 0.0
        %2389 = vmatmul.mubr.f32.gmra.mxu0 %v2269
        %v2390 = vpop.f32.mrf.mxu0
        %v2391 = vadd.f32 %v2254, %v2390
        %v2392 = vpop.f32.mrf.mxu0
        %2393 = vmatprep.mubr.f32.mxu0 0.0
        %2394 = vmatmul.mubr.f32.gmra.mxu0 %v2272
        %v2395 = vpop.f32.mrf.mxu0
        %v2396 = vadd.f32 %v2254, %v2395
        %v2397 = vpop.f32.mrf.mxu0
        %2398 = vmatprep.mubr.f32.mxu0 0.0
        %2399 = vmatmul.mubr.f32.gmra.mxu0 %v2275
        %v2400 = vpop.f32.mrf.mxu0
        %v2401 = vadd.f32 %v2254, %v2400
        %v2402 = vpop.f32.mrf.mxu0
        %2403 = vmatprep.mubr.f32.mxu0 0.0
        %2404 = vmatmul.mubr.f32.gmra.mxu0 %v2278
        %v2405 = vpop.f32.mrf.mxu0
        %v2406 = vadd.f32 %v2254, %v2405
        %v2407 = vpop.f32.mrf.mxu0
        %2408 = vmatprep.mubr.f32.mxu0 0.0
        %2409 = vmatmul.mubr.f32.gmra.mxu0 %v2281
        %v2410 = vpop.f32.mrf.mxu0
        %v2411 = vadd.f32 %v2254, %v2410
        %v2412 = vpop.f32.mrf.mxu0
        %2413 = vmatprep.mubr.f32.mxu0 0.0
        %2414 = vmatmul.mubr.f32.gmra.mxu0 %v2284
        %v2415 = vpop.f32.mrf.mxu0
        %v2416 = vadd.f32 %v2254, %v2415
        %v2417 = vpop.f32.mrf.mxu0
        %2418 = vmatprep.mubr.f32.mxu0 0.0
        %2419 = vmatmul.mubr.f32.gmra.mxu0 %v2287
        %v2420 = vpop.f32.mrf.mxu0
        %v2421 = vadd.f32 %v2254, %v2420
        %v2422 = vpop.f32.mrf.mxu0
        %2423 = vmatprep.mubr.f32.mxu0 0.0
        %2424 = vmatmul.mubr.f32.gmra.mxu0 %v2290
        %v2425 = vpop.f32.mrf.mxu0
        %v2426 = vadd.f32 %v2254, %v2425
        %v2427 = vpop.f32.mrf.mxu0
        %2428 = vmatprep.mubr.f32.mxu0 0.0
        %2429 = vmatmul.mubr.f32.gmra.mxu0 %v2293
        %v2430 = vpop.f32.mrf.mxu0
        %v2431 = vadd.f32 %v2254, %v2430
        %v2432 = vpop.f32.mrf.mxu0
        %2433 = vmatprep.mubr.f32.mxu0 0.0
        %2434 = vmatmul.mubr.f32.gmra.mxu0 %v2296
        %v2435 = vpop.f32.mrf.mxu0
        %v2436 = vadd.f32 %v2254, %v2435
        %v2437 = vpop.f32.mrf.mxu0
        %2438 = vmatprep.mubr.f32.mxu0 0.0
        %2439 = vmatmul.mubr.f32.gmra.mxu0 %v2299
        %v2440 = vpop.f32.mrf.mxu0
        %v2441 = vadd.f32 %v2254, %v2440
        %v2442 = vpop.f32.mrf.mxu0
        %2443 = vmatprep.mubr.f32.mxu0 0.0
        %2444 = vmatmul.mubr.f32.gmra.mxu0 %v2302
        %v2445 = vpop.f32.mrf.mxu0
        %v2446 = vadd.f32 %v2254, %v2445
        %v2447 = vpop.f32.mrf.mxu0
        %2448 = vdwg.mxu0
        %v2449 = vld [vmem:[%s33] sm:$0xff]
        %v2450 = vld [vmem:[%s33 + $0x8] sm:$0xff]
        %v2451 = vld [vmem:[%s33 + $0x10] sm:$0xff]
        %v2452 = vld [vmem:[%s33 + $0x18] sm:$0xff]
        %v2453 = vld [vmem:[%s35] sm:$0x1]
        %v2455 = vlaneseq
        %v2456 = vshrl.u32 %v2455, 7
        %v2457 = vsub.s32 0, %v2456
        %v2458 = vrot.slane %v2453, %v2457
        %v2461 = vsel %vm994, %v2228, 0
        %2463 = vmatprep.subr.mxu0 0.0
        %2464 = vmatpush1.msra.mxu0 0.0
        %2465 = vmatprep.subr.mxu0 0.0
        %2466 = vmatpush1.msra.mxu0 0.0
        %2467 = vmatprep.subr.mxu0 0.0
        %2468 = vmatpush1.msra.mxu0 0.0
        %2469 = vmatprep.subr.mxu0 0.0
        %2470 = vmatpush1.msra.mxu0 0.0
        %2471 = vmatprep.subr.mxu0 0.0
        %2472 = vmatpush1.msra.mxu0 0.0
        %2473 = vmatprep.subr.mxu0 0.0
        %2474 = vmatpush1.msra.mxu0 0.0
        %2475 = vmatprep.subr.mxu0 0.0
        %2476 = vmatpush1.msra.mxu0 0.0
        %2477 = vmatprep.subr.mxu0 0.0
        %2478 = vmatpush1.msra.mxu0 0.0
        %2479 = vmatprep.subr.mxu0 0.0
        %2480 = vmatpush1.msra.mxu0 0.0
        %2481 = vmatprep.subr.mxu0 0.0
        %2482 = vmatpush1.msra.mxu0 0.0
        %2483 = vmatprep.subr.mxu0 0.0
        %2484 = vmatpush1.msra.mxu0 0.0
        %2485 = vmatprep.subr.mxu0 0.0
        %2486 = vmatpush1.msra.mxu0 0.0
        %2487 = vmatprep.subr.mxu0 0.0
        %2488 = vmatpush1.msra.mxu0 %v2452
        %2489 = vmatprep.subr.mxu0 0.0
        %2490 = vmatpush1.msra.mxu0 %v2451
        %2491 = vmatprep.subr.mxu0 0.0
        %2492 = vmatpush1.msra.mxu0 %v2450
        %2493 = vmatprep.subr.mxu0 0.0
        %2494 = vmatpush1.msra.mxu0 %v2449
        %2495 = vmatprep.subr.mxu0 0.0
        %2496 = vmatpush2.msra.mxu0 0.0
        %2497 = vmatprep.subr.mxu0 0.0
        %2498 = vmatpush2.msra.mxu0 0.0
        %2499 = vmatprep.subr.mxu0 0.0
        %2500 = vmatpush2.msra.mxu0 0.0
        %2501 = vmatprep.subr.mxu0 0.0
        %2502 = vmatpush2.msra.mxu0 0.0
        %2503 = vmatprep.subr.mxu0 0.0
        %2504 = vmatpush2.msra.mxu0 0.0
        %2505 = vmatprep.subr.mxu0 0.0
        %2506 = vmatpush2.msra.mxu0 0.0
        %2507 = vmatprep.subr.mxu0 0.0
        %2508 = vmatpush2.msra.mxu0 0.0
        %2509 = vmatprep.subr.mxu0 0.0
        %2510 = vmatpush2.msra.mxu0 0.0
        %2511 = vmatprep.subr.mxu0 0.0
        %2512 = vmatpush2.msra.mxu0 0.0
        %2513 = vmatprep.subr.mxu0 0.0
        %2514 = vmatpush2.msra.mxu0 0.0
        %2515 = vmatprep.subr.mxu0 0.0
        %2516 = vmatpush2.msra.mxu0 0.0
        %2517 = vmatprep.subr.mxu0 0.0
        %2518 = vmatpush2.msra.mxu0 0.0
        %2519 = vmatprep.subr.mxu0 0.0
        %2520 = vmatpush2.msra.mxu0 0.0
        %2521 = vmatprep.subr.mxu0 0.0
        %2522 = vmatpush2.msra.mxu0 0.0
        %2523 = vmatprep.subr.mxu0 0.0
        %2524 = vmatpush2.msra.mxu0 0.0
        %2525 = vmatprep.subr.mxu0 0.0
        %2526 = vmatpush2.msra.mxu0 0.0
        %2527 = vmatprep.mubr.f32.mxu0 0.0
        %2528 = vmatmul.mubr.f32.gmra.mxu0 %v2461
        %v2529 = vpop.f32.mrf.mxu0
        %v2530 = vadd.f32 %v2458, %v2529
        %v2531 = vpop.f32.mrf.mxu0
        %2532 = vdwg.mxu0
        %v2533 = vld [vmem:[%s37] sm:$0xff]
        %v2534 = vld [vmem:[%s37 + $0x8] sm:$0xff]
        %v2535 = vld [vmem:[%s37 + $0x10] sm:$0xff]
        %v2536 = vld [vmem:[%s37 + $0x18] sm:$0xff]
        %v2537 = vld [vmem:[%s39] sm:$0x1]
        %v2539 = vlaneseq
        %v2540 = vshrl.u32 %v2539, 7
        %v2541 = vsub.s32 0, %v2540
        %v2542 = vrot.slane %v2537, %v2541
        %2544 = vmatprep.subr.mxu0 0.0
        %2545 = vmatpush1.msra.mxu0 0.0
        %2546 = vmatprep.subr.mxu0 0.0
        %2547 = vmatpush1.msra.mxu0 0.0
        %2548 = vmatprep.subr.mxu0 0.0
        %2549 = vmatpush1.msra.mxu0 0.0
        %2550 = vmatprep.subr.mxu0 0.0
        %2551 = vmatpush1.msra.mxu0 0.0
        %2552 = vmatprep.subr.mxu0 0.0
        %2553 = vmatpush1.msra.mxu0 0.0
        %2554 = vmatprep.subr.mxu0 0.0
        %2555 = vmatpush1.msra.mxu0 0.0
        %2556 = vmatprep.subr.mxu0 0.0
        %2557 = vmatpush1.msra.mxu0 0.0
        %2558 = vmatprep.subr.mxu0 0.0
        %2559 = vmatpush1.msra.mxu0 0.0
        %2560 = vmatprep.subr.mxu0 0.0
        %2561 = vmatpush1.msra.mxu0 0.0
        %2562 = vmatprep.subr.mxu0 0.0
        %2563 = vmatpush1.msra.mxu0 0.0
        %2564 = vmatprep.subr.mxu0 0.0
        %2565 = vmatpush1.msra.mxu0 0.0
        %2566 = vmatprep.subr.mxu0 0.0
        %2567 = vmatpush1.msra.mxu0 0.0
        %2568 = vmatprep.subr.mxu0 0.0
        %2569 = vmatpush1.msra.mxu0 %v2536
        %2570 = vmatprep.subr.mxu0 0.0
        %2571 = vmatpush1.msra.mxu0 %v2535
        %2572 = vmatprep.subr.mxu0 0.0
        %2573 = vmatpush1.msra.mxu0 %v2534
        %2574 = vmatprep.subr.mxu0 0.0
        %2575 = vmatpush1.msra.mxu0 %v2533
        %2576 = vmatprep.subr.mxu0 0.0
        %2577 = vmatpush2.msra.mxu0 0.0
        %2578 = vmatprep.subr.mxu0 0.0
        %2579 = vmatpush2.msra.mxu0 0.0
        %2580 = vmatprep.subr.mxu0 0.0
        %2581 = vmatpush2.msra.mxu0 0.0
        %2582 = vmatprep.subr.mxu0 0.0
        %2583 = vmatpush2.msra.mxu0 0.0
        %2584 = vmatprep.subr.mxu0 0.0
        %2585 = vmatpush2.msra.mxu0 0.0
        %2586 = vmatprep.subr.mxu0 0.0
        %2587 = vmatpush2.msra.mxu0 0.0
        %2588 = vmatprep.subr.mxu0 0.0
        %2589 = vmatpush2.msra.mxu0 0.0
        %2590 = vmatprep.subr.mxu0 0.0
        %2591 = vmatpush2.msra.mxu0 0.0
        %2592 = vmatprep.subr.mxu0 0.0
        %2593 = vmatpush2.msra.mxu0 0.0
        %2594 = vmatprep.subr.mxu0 0.0
        %2595 = vmatpush2.msra.mxu0 0.0
        %2596 = vmatprep.subr.mxu0 0.0
        %2597 = vmatpush2.msra.mxu0 0.0
        %2598 = vmatprep.subr.mxu0 0.0
        %2599 = vmatpush2.msra.mxu0 0.0
        %2600 = vmatprep.subr.mxu0 0.0
        %2601 = vmatpush2.msra.mxu0 0.0
        %2602 = vmatprep.subr.mxu0 0.0
        %2603 = vmatpush2.msra.mxu0 0.0
        %2604 = vmatprep.subr.mxu0 0.0
        %2605 = vmatpush2.msra.mxu0 0.0
        %2606 = vmatprep.subr.mxu0 0.0
        %2607 = vmatpush2.msra.mxu0 0.0
        %2608 = vmatprep.mubr.f32.mxu0 0.0
        %2609 = vmatmul.mubr.f32.gmra.mxu0 %v2461
        %v2610 = vpop.f32.mrf.mxu0
        %v2611 = vadd.f32 %v2542, %v2610
        %v2612 = vpop.f32.mrf.mxu0
        %2613 = vdwg.mxu0
        %v2614 = vld [vmem:[%s974] sm:$0xff]
        %v2615 = vlaneseq
        %v2616 = vand.u32 %v2615, 127
        %v2617 = vmul.f32 %v2614, 8.0
        %v2618 = vsub.f32 %v2617, 0.5
        %v2619 = vmul.f32 %v2614, 4.0
        %v2620 = vsub.f32 %v2619, 0.5
        %vm2621 = vcmask 31744
        %v2622 = vsel %vm2621, %v2611, -inf
        %2623 = vmax.xlane.f32.xlu0 %v2622
        %v2624 = vpop.xlane.xlu0 %2623
        %v2625 = vsub.f32 %v2611, %v2624
        %v2626 = vmul.f32 %v2625, 1.442695
        %v2627 = vpow.pop %v2626
        %v2628 = vsel %vm2621, %v2627, 0.0
        %2629 = vadd.xlane.f32.xlu0 %v2628
        %v2630 = vpop.xlane.xlu0 %2629
        %v2631 = vrcp.pop %v2630
        %v2632 = vmul.f32 %v2627, %v2631
        %v2633 = vadd.f32 %v2618, %v2530
        %v2634 = vfloor.f32 %v2633
        %v2635 = vsub.f32 %v2633, %v2634
        %v2636 = vsub.f32 1.0, %v2635
        %v2637 = vcvt.f32.s32.to.zero.pseudo %v2634
        %v2638 = vadd.s32 %v2637, 1
        %vm2639 = vcmp.ge.s32.totalorder %v2637, 0
        %vm2640 = vcmp.le.s32.totalorder %v2637, 7
        %vm2641 = vmand %vm2639, %vm2640
        %v2642 = vsel %vm2639, 1, 0
        %2643 = vrot.lane.b32.xlu0 %v2642, 127
        %v2644 = vpop.permute.xlu0 %2643
        %vm2645 = vcmp.ne.s32.totalorder %v2644, 0
        %vm2646 = vmand %vm2641, %vm2645
        %v2647 = vsel %vm2640, 1, 0
        %2648 = vrot.lane.b32.xlu0 %v2647, 127
        %v2649 = vpop.permute.xlu0 %2648
        %vm2650 = vcmp.ne.s32.totalorder %v2649, 0
        %vm2651 = vmand %vm2646, %vm2650
        %v2652 = vmul.u32 %v2637, 8
        %2653 = vrot.lane.b32.xlu0 %v2637, 1
        %v2654 = vpop.permute.xlu0 %2653
        %v2655 = vadd.s32 %v2652, %v2654
        %2656 = vrot.lane.b32.xlu0 %v2655, 127
        %v2657 = vpop.permute.xlu0 %2656
        %v2658 = vsel %vm2651, %v2657, 4294967295
        %2659 = vset.pattern.permute.xlu0 0
        %2660 = vperm.xlu0 %2659, %v2658
        %v2661 = vpop.permute.xlu0 %2660
        %vm2662 = vcmp.eq.s32.totalorder %v2616, %v2661
        %2664 = vrot.lane.b32.xlu0 %v2636, 127
        %v2665 = vpop.permute.xlu0 %2664
        %v2667 = vmul.f32 %v2632, %v2665
        %v2668 = vmul.f32 %v2667, %v2636
        %2670 = vset.pattern.permute.xlu0 0
        %2671 = vperm.xlu0 %2670, %v2668
        %v2672 = vpop.permute.xlu0 %2671
        %v2674 = vsel %vm2662, %v2672, 0.0
        %v2675 = vadd.f32 %v2674, 0.0
        %vm2676 = vcmp.ge.s32.totalorder %v2638, 0
        %vm2677 = vcmp.le.s32.totalorder %v2638, 7
        %vm2678 = vmand %vm2676, %vm2677
        %vm2679 = vmand %vm2678, %vm2645
        %vm2680 = vmand %vm2679, %vm2650
        %2681 = vrot.lane.b32.xlu0 %v2638, 1
        %v2682 = vpop.permute.xlu0 %2681
        %v2683 = vadd.s32 %v2652, %v2682
        %2684 = vrot.lane.b32.xlu0 %v2683, 127
        %v2685 = vpop.permute.xlu0 %2684
        %v2686 = vsel %vm2680, %v2685, 4294967295
        %2687 = vset.pattern.permute.xlu0 0
        %2688 = vperm.xlu0 %2687, %v2686
        %v2689 = vpop.permute.xlu0 %2688
        %vm2690 = vcmp.eq.s32.totalorder %v2616, %v2689
        %v2691 = vmul.f32 %v2667, %v2635
        %2693 = vset.pattern.permute.xlu0 0
        %2694 = vperm.xlu0 %2693, %v2691
        %v2695 = vpop.permute.xlu0 %2694
        %v2697 = vsel %vm2690, %v2695, 0.0
        %v2698 = vadd.f32 %v2675, %v2697
        %v2699 = vsel %vm2676, 1, 0
        %2700 = vrot.lane.b32.xlu0 %v2699, 127
        %v2701 = vpop.permute.xlu0 %2700
        %vm2702 = vcmp.ne.s32.totalorder %v2701, 0
        %vm2703 = vmand %vm2641, %vm2702
        %v2704 = vsel %vm2677, 1, 0
        %2705 = vrot.lane.b32.xlu0 %v2704, 127
        %v2706 = vpop.permute.xlu0 %2705
        %vm2707 = vcmp.ne.s32.totalorder %v2706, 0
        %vm2708 = vmand %vm2703, %vm2707
        %v2709 = vmul.u32 %v2638, 8
        %v2710 = vadd.s32 %v2709, %v2654
        %2711 = vrot.lane.b32.xlu0 %v2710, 127
        %v2712 = vpop.permute.xlu0 %2711
        %v2713 = vsel %vm2708, %v2712, 4294967295
        %2714 = vset.pattern.permute.xlu0 0
        %2715 = vperm.xlu0 %2714, %v2713
        %v2716 = vpop.permute.xlu0 %2715
        %vm2717 = vcmp.eq.s32.totalorder %v2616, %v2716
        %2719 = vrot.lane.b32.xlu0 %v2635, 127
        %v2720 = vpop.permute.xlu0 %2719
        %v2722 = vmul.f32 %v2632, %v2720
        %v2723 = vmul.f32 %v2722, %v2636
        %2725 = vset.pattern.permute.xlu0 0
        %2726 = vperm.xlu0 %2725, %v2723
        %v2727 = vpop.permute.xlu0 %2726
        %v2729 = vsel %vm2717, %v2727, 0.0
        %v2730 = vadd.f32 %v2698, %v2729
        %vm2731 = vmand %vm2678, %vm2702
        %vm2732 = vmand %vm2731, %vm2707
        %v2733 = vadd.s32 %v2709, %v2682
        %2734 = vrot.lane.b32.xlu0 %v2733, 127
        %v2735 = vpop.permute.xlu0 %2734
        %v2736 = vsel %vm2732, %v2735, 4294967295
        %2737 = vset.pattern.permute.xlu0 0
        %2738 = vperm.xlu0 %2737, %v2736
        %v2739 = vpop.permute.xlu0 %2738
        %vm2740 = vcmp.eq.s32.totalorder %v2616, %v2739
        %v2741 = vmul.f32 %v2722, %v2635
        %2743 = vset.pattern.permute.xlu0 0
        %2744 = vperm.xlu0 %2743, %v2741
        %v2745 = vpop.permute.xlu0 %2744
        %v2747 = vsel %vm2740, %v2745, 0.0
        %v2748 = vadd.f32 %v2730, %v2747
        %2750 = vrot.lane.b32.xlu0 %v2530, 126
        %v2751 = vpop.permute.xlu0 %2750
        %v2753 = vadd.f32 %v2618, %v2751
        %v2754 = vfloor.f32 %v2753
        %v2755 = vsub.f32 %v2753, %v2754
        %v2756 = vsub.f32 1.0, %v2755
        %v2757 = vcvt.f32.s32.to.zero.pseudo %v2754
        %v2758 = vadd.s32 %v2757, 1
        %vm2759 = vcmp.ge.s32.totalorder %v2757, 0
        %vm2760 = vcmp.le.s32.totalorder %v2757, 7
        %vm2761 = vmand %vm2759, %vm2760
        %v2762 = vsel %vm2759, 1, 0
        %2763 = vrot.lane.b32.xlu0 %v2762, 127
        %v2764 = vpop.permute.xlu0 %2763
        %vm2765 = vcmp.ne.s32.totalorder %v2764, 0
        %vm2766 = vmand %vm2761, %vm2765
        %v2767 = vsel %vm2760, 1, 0
        %2768 = vrot.lane.b32.xlu0 %v2767, 127
        %v2769 = vpop.permute.xlu0 %2768
        %vm2770 = vcmp.ne.s32.totalorder %v2769, 0
        %vm2771 = vmand %vm2766, %vm2770
        %v2772 = vmul.u32 %v2757, 8
        %2773 = vrot.lane.b32.xlu0 %v2757, 1
        %v2774 = vpop.permute.xlu0 %2773
        %v2775 = vadd.s32 %v2772, %v2774
        %2776 = vrot.lane.b32.xlu0 %v2775, 127
        %v2777 = vpop.permute.xlu0 %2776
        %v2778 = vsel %vm2771, %v2777, 4294967295
        %2779 = vset.pattern.permute.xlu0 0
        %2780 = vperm.xlu0 %2779, %v2778
        %v2781 = vpop.permute.xlu0 %2780
        %vm2782 = vcmp.eq.s32.totalorder %v2616, %v2781
        %v2783 = vmul.f32 %v2632, %v2756
        %2785 = vrot.lane.b32.xlu0 %v2756, 1
        %v2786 = vpop.permute.xlu0 %2785
        %v2788 = vmul.f32 %v2783, %v2786
        %2790 = vset.pattern.permute.xlu0 1
        %2791 = vperm.xlu0 %2790, %v2788
        %v2792 = vpop.permute.xlu0 %2791
        %v2794 = vsel %vm2782, %v2792, 0.0
        %v2795 = vadd.f32 %v2748, %v2794
        %vm2796 = vcmp.ge.s32.totalorder %v2758, 0
        %vm2797 = vcmp.le.s32.totalorder %v2758, 7
        %vm2798 = vmand %vm2796, %vm2797
        %vm2799 = vmand %vm2798, %vm2765
        %vm2800 = vmand %vm2799, %vm2770
        %2801 = vrot.lane.b32.xlu0 %v2758, 1
        %v2802 = vpop.permute.xlu0 %2801
        %v2803 = vadd.s32 %v2772, %v2802
        %2804 = vrot.lane.b32.xlu0 %v2803, 127
        %v2805 = vpop.permute.xlu0 %2804
        %v2806 = vsel %vm2800, %v2805, 4294967295
        %2807 = vset.pattern.permute.xlu0 0
        %2808 = vperm.xlu0 %2807, %v2806
        %v2809 = vpop.permute.xlu0 %2808
        %vm2810 = vcmp.eq.s32.totalorder %v2616, %v2809
        %2812 = vrot.lane.b32.xlu0 %v2755, 1
        %v2813 = vpop.permute.xlu0 %2812
        %v2815 = vmul.f32 %v2783, %v2813
        %2817 = vset.pattern.permute.xlu0 1
        %2818 = vperm.xlu0 %2817, %v2815
        %v2819 = vpop.permute.xlu0 %2818
        %v2821 = vsel %vm2810, %v2819, 0.0
        %v2822 = vadd.f32 %v2795, %v2821
        %v2823 = vsel %vm2796, 1, 0
        %2824 = vrot.lane.b32.xlu0 %v2823, 127
        %v2825 = vpop.permute.xlu0 %2824
        %vm2826 = vcmp.ne.s32.totalorder %v2825, 0
        %vm2827 = vmand %vm2761, %vm2826
        %v2828 = vsel %vm2797, 1, 0
        %2829 = vrot.lane.b32.xlu0 %v2828, 127
        %v2830 = vpop.permute.xlu0 %2829
        %vm2831 = vcmp.ne.s32.totalorder %v2830, 0
        %vm2832 = vmand %vm2827, %vm2831
        %v2833 = vmul.u32 %v2758, 8
        %v2834 = vadd.s32 %v2833, %v2774
        %2835 = vrot.lane.b32.xlu0 %v2834, 127
        %v2836 = vpop.permute.xlu0 %2835
        %v2837 = vsel %vm2832, %v2836, 4294967295
        %2838 = vset.pattern.permute.xlu0 0
        %2839 = vperm.xlu0 %2838, %v2837
        %v2840 = vpop.permute.xlu0 %2839
        %vm2841 = vcmp.eq.s32.totalorder %v2616, %v2840
        %v2842 = vmul.f32 %v2632, %v2755
        %v2843 = vmul.f32 %v2842, %v2786
        %2845 = vset.pattern.permute.xlu0 1
        %2846 = vperm.xlu0 %2845, %v2843
        %v2847 = vpop.permute.xlu0 %2846
        %v2849 = vsel %vm2841, %v2847, 0.0
        %v2850 = vadd.f32 %v2822, %v2849
        %vm2851 = vmand %vm2798, %vm2826
        %vm2852 = vmand %vm2851, %vm2831
        %v2853 = vadd.s32 %v2833, %v2802
        %2854 = vrot.lane.b32.xlu0 %v2853, 127
        %v2855 = vpop.permute.xlu0 %2854
        %v2856 = vsel %vm2852, %v2855, 4294967295
        %2857 = vset.pattern.permute.xlu0 0
        %2858 = vperm.xlu0 %2857, %v2856
        %v2859 = vpop.permute.xlu0 %2858
        %vm2860 = vcmp.eq.s32.totalorder %v2616, %v2859
        %v2861 = vmul.f32 %v2842, %v2813
        %2863 = vset.pattern.permute.xlu0 1
        %2864 = vperm.xlu0 %2863, %v2861
        %v2865 = vpop.permute.xlu0 %2864
        %v2867 = vsel %vm2860, %v2865, 0.0
        %v2868 = vadd.f32 %v2850, %v2867
        %v2869 = vadd.f32 %v2620, %v2751
        %v2870 = vfloor.f32 %v2869
        %v2871 = vsub.f32 %v2869, %v2870
        %v2872 = vsub.f32 1.0, %v2871
        %v2873 = vcvt.f32.s32.to.zero.pseudo %v2870
        %v2874 = vadd.s32 %v2873, 1
        %vm2875 = vcmp.ge.s32.totalorder %v2873, 0
        %vm2876 = vcmp.le.s32.totalorder %v2873, 3
        %vm2877 = vmand %vm2875, %vm2876
        %v2878 = vsel %vm2875, 1, 0
        %2879 = vrot.lane.b32.xlu0 %v2878, 127
        %v2880 = vpop.permute.xlu0 %2879
        %vm2881 = vcmp.ne.s32.totalorder %v2880, 0
        %vm2882 = vmand %vm2877, %vm2881
        %v2883 = vsel %vm2876, 1, 0
        %2884 = vrot.lane.b32.xlu0 %v2883, 127
        %v2885 = vpop.permute.xlu0 %2884
        %vm2886 = vcmp.ne.s32.totalorder %v2885, 0
        %vm2887 = vmand %vm2882, %vm2886
        %v2888 = vmul.u32 %v2873, 4
        %v2889 = vadd.s32 %v2888, 64
        %2890 = vrot.lane.b32.xlu0 %v2873, 1
        %v2891 = vpop.permute.xlu0 %2890
        %v2892 = vadd.s32 %v2889, %v2891
        %2893 = vrot.lane.b32.xlu0 %v2892, 127
        %v2894 = vpop.permute.xlu0 %2893
        %v2895 = vsel %vm2887, %v2894, 4294967295
        %2896 = vset.pattern.permute.xlu0 2
        %2897 = vperm.xlu0 %2896, %v2895
        %v2898 = vpop.permute.xlu0 %2897
        %vm2899 = vcmp.eq.s32.totalorder %v2616, %v2898
        %2901 = vrot.lane.b32.xlu0 %v2872, 127
        %v2902 = vpop.permute.xlu0 %2901
        %v2904 = vmul.f32 %v2632, %v2902
        %v2905 = vmul.f32 %v2904, %v2872
        %2907 = vset.pattern.permute.xlu0 2
        %2908 = vperm.xlu0 %2907, %v2905
        %v2909 = vpop.permute.xlu0 %2908
        %v2911 = vsel %vm2899, %v2909, 0.0
        %v2912 = vadd.f32 %v2868, %v2911
        %vm2913 = vcmp.ge.s32.totalorder %v2874, 0
        %vm2914 = vcmp.le.s32.totalorder %v2874, 3
        %vm2915 = vmand %vm2913, %vm2914
        %vm2916 = vmand %vm2915, %vm2881
        %vm2917 = vmand %vm2916, %vm2886
        %2918 = vrot.lane.b32.xlu0 %v2874, 1
        %v2919 = vpop.permute.xlu0 %2918
        %v2920 = vadd.s32 %v2889, %v2919
        %2921 = vrot.lane.b32.xlu0 %v2920, 127
        %v2922 = vpop.permute.xlu0 %2921
        %v2923 = vsel %vm2917, %v2922, 4294967295
        %2924 = vset.pattern.permute.xlu0 2
        %2925 = vperm.xlu0 %2924, %v2923
        %v2926 = vpop.permute.xlu0 %2925
        %vm2927 = vcmp.eq.s32.totalorder %v2616, %v2926
        %v2928 = vmul.f32 %v2904, %v2871
        %2930 = vset.pattern.permute.xlu0 2
        %2931 = vperm.xlu0 %2930, %v2928
        %v2932 = vpop.permute.xlu0 %2931
        %v2934 = vsel %vm2927, %v2932, 0.0
        %v2935 = vadd.f32 %v2912, %v2934
        %v2936 = vsel %vm2913, 1, 0
        %2937 = vrot.lane.b32.xlu0 %v2936, 127
        %v2938 = vpop.permute.xlu0 %2937
        %vm2939 = vcmp.ne.s32.totalorder %v2938, 0
        %vm2940 = vmand %vm2877, %vm2939
        %v2941 = vsel %vm2914, 1, 0
        %2942 = vrot.lane.b32.xlu0 %v2941, 127
        %v2943 = vpop.permute.xlu0 %2942
        %vm2944 = vcmp.ne.s32.totalorder %v2943, 0
        %vm2945 = vmand %vm2940, %vm2944
        %v2946 = vmul.u32 %v2874, 4
        %v2947 = vadd.s32 %v2946, 64
        %v2948 = vadd.s32 %v2947, %v2891
        %2949 = vrot.lane.b32.xlu0 %v2948, 127
        %v2950 = vpop.permute.xlu0 %2949
        %v2951 = vsel %vm2945, %v2950, 4294967295
        %2952 = vset.pattern.permute.xlu0 2
        %2953 = vperm.xlu0 %2952, %v2951
        %v2954 = vpop.permute.xlu0 %2953
        %vm2955 = vcmp.eq.s32.totalorder %v2616, %v2954
        %2957 = vrot.lane.b32.xlu0 %v2871, 127
        %v2958 = vpop.permute.xlu0 %2957
        %v2960 = vmul.f32 %v2632, %v2958
        %v2961 = vmul.f32 %v2960, %v2872
        %2963 = vset.pattern.permute.xlu0 2
        %2964 = vperm.xlu0 %2963, %v2961
        %v2965 = vpop.permute.xlu0 %2964
        %v2967 = vsel %vm2955, %v2965, 0.0
        %v2968 = vadd.f32 %v2935, %v2967
        %vm2969 = vmand %vm2915, %vm2939
        %vm2970 = vmand %vm2969, %vm2944
        %v2971 = vadd.s32 %v2947, %v2919
        %2972 = vrot.lane.b32.xlu0 %v2971, 127
        %v2973 = vpop.permute.xlu0 %2972
        %v2974 = vsel %vm2970, %v2973, 4294967295
        %2975 = vset.pattern.permute.xlu0 2
        %2976 = vperm.xlu0 %2975, %v2974
        %v2977 = vpop.permute.xlu0 %2976
        %vm2978 = vcmp.eq.s32.totalorder %v2616, %v2977
        %v2979 = vmul.f32 %v2960, %v2871
        %2981 = vset.pattern.permute.xlu0 2
        %2982 = vperm.xlu0 %2981, %v2979
        %v2983 = vpop.permute.xlu0 %2982
        %v2985 = vsel %vm2978, %v2983, 0.0
        %v2986 = vadd.f32 %v2968, %v2985
        %2987 = vrot.lane.b32.xlu0 %v2530, 124
        %v2988 = vpop.permute.xlu0 %2987
        %v2990 = vadd.f32 %v2620, %v2988
        %v2991 = vfloor.f32 %v2990
        %v2992 = vsub.f32 %v2990, %v2991
        %v2993 = vsub.f32 1.0, %v2992
        %v2994 = vcvt.f32.s32.to.zero.pseudo %v2991
        %v2995 = vadd.s32 %v2994, 1
        %vm2996 = vcmp.ge.s32.totalorder %v2994, 0
        %vm2997 = vcmp.le.s32.totalorder %v2994, 3
        %vm2998 = vmand %vm2996, %vm2997
        %v2999 = vsel %vm2996, 1, 0
        %3000 = vrot.lane.b32.xlu0 %v2999, 127
        %v3001 = vpop.permute.xlu0 %3000
        %vm3002 = vcmp.ne.s32.totalorder %v3001, 0
        %vm3003 = vmand %vm2998, %vm3002
        %v3004 = vsel %vm2997, 1, 0
        %3005 = vrot.lane.b32.xlu0 %v3004, 127
        %v3006 = vpop.permute.xlu0 %3005
        %vm3007 = vcmp.ne.s32.totalorder %v3006, 0
        %vm3008 = vmand %vm3003, %vm3007
        %v3009 = vmul.u32 %v2994, 4
        %v3010 = vadd.s32 %v3009, 64
        %3011 = vrot.lane.b32.xlu0 %v2994, 1
        %v3012 = vpop.permute.xlu0 %3011
        %v3013 = vadd.s32 %v3010, %v3012
        %3014 = vrot.lane.b32.xlu0 %v3013, 127
        %v3015 = vpop.permute.xlu0 %3014
        %v3016 = vsel %vm3008, %v3015, 4294967295
        %3017 = vset.pattern.permute.xlu0 2
        %3018 = vperm.xlu0 %3017, %v3016
        %v3019 = vpop.permute.xlu0 %3018
        %vm3020 = vcmp.eq.s32.totalorder %v2616, %v3019
        %v3021 = vmul.f32 %v2632, %v2993
        %3023 = vrot.lane.b32.xlu0 %v2993, 1
        %v3024 = vpop.permute.xlu0 %3023
        %v3026 = vmul.f32 %v3021, %v3024
        %3028 = vset.pattern.permute.xlu0 3
        %3029 = vperm.xlu0 %3028, %v3026
        %v3030 = vpop.permute.xlu0 %3029
        %v3032 = vsel %vm3020, %v3030, 0.0
        %v3033 = vadd.f32 %v2986, %v3032
        %vm3034 = vcmp.ge.s32.totalorder %v2995, 0
        %vm3035 = vcmp.le.s32.totalorder %v2995, 3
        %vm3036 = vmand %vm3034, %vm3035
        %vm3037 = vmand %vm3036, %vm3002
        %vm3038 = vmand %vm3037, %vm3007
        %3039 = vrot.lane.b32.xlu0 %v2995, 1
        %v3040 = vpop.permute.xlu0 %3039
        %v3041 = vadd.s32 %v3010, %v3040
        %3042 = vrot.lane.b32.xlu0 %v3041, 127
        %v3043 = vpop.permute.xlu0 %3042
        %v3044 = vsel %vm3038, %v3043, 4294967295
        %3045 = vset.pattern.permute.xlu0 2
        %3046 = vperm.xlu0 %3045, %v3044
        %v3047 = vpop.permute.xlu0 %3046
        %vm3048 = vcmp.eq.s32.totalorder %v2616, %v3047
        %3050 = vrot.lane.b32.xlu0 %v2992, 1
        %v3051 = vpop.permute.xlu0 %3050
        %v3053 = vmul.f32 %v3021, %v3051
        %3055 = vset.pattern.permute.xlu0 3
        %3056 = vperm.xlu0 %3055, %v3053
        %v3057 = vpop.permute.xlu0 %3056
        %v3059 = vsel %vm3048, %v3057, 0.0
        %v3060 = vadd.f32 %v3033, %v3059
        %v3061 = vsel %vm3034, 1, 0
        %3062 = vrot.lane.b32.xlu0 %v3061, 127
        %v3063 = vpop.permute.xlu0 %3062
        %vm3064 = vcmp.ne.s32.totalorder %v3063, 0
        %vm3065 = vmand %vm2998, %vm3064
        %v3066 = vsel %vm3035, 1, 0
        %3067 = vrot.lane.b32.xlu0 %v3066, 127
        %v3068 = vpop.permute.xlu0 %3067
        %vm3069 = vcmp.ne.s32.totalorder %v3068, 0
        %vm3070 = vmand %vm3065, %vm3069
        %v3071 = vmul.u32 %v2995, 4
        %v3072 = vadd.s32 %v3071, 64
        %v3073 = vadd.s32 %v3072, %v3012
        %3074 = vrot.lane.b32.xlu0 %v3073, 127
        %v3075 = vpop.permute.xlu0 %3074
        %v3076 = vsel %vm3070, %v3075, 4294967295
        %3077 = vset.pattern.permute.xlu0 2
        %3078 = vperm.xlu0 %3077, %v3076
        %v3079 = vpop.permute.xlu0 %3078
        %vm3080 = vcmp.eq.s32.totalorder %v2616, %v3079
        %v3081 = vmul.f32 %v2632, %v2992
        %v3082 = vmul.f32 %v3081, %v3024
        %3084 = vset.pattern.permute.xlu0 3
        %3085 = vperm.xlu0 %3084, %v3082
        %v3086 = vpop.permute.xlu0 %3085
        %v3088 = vsel %vm3080, %v3086, 0.0
        %v3089 = vadd.f32 %v3060, %v3088
        %vm3090 = vmand %vm3036, %vm3064
        %vm3091 = vmand %vm3090, %vm3069
        %v3092 = vadd.s32 %v3072, %v3040
        %3093 = vrot.lane.b32.xlu0 %v3092, 127
        %v3094 = vpop.permute.xlu0 %3093
        %v3095 = vsel %vm3091, %v3094, 4294967295
        %3096 = vset.pattern.permute.xlu0 2
        %3097 = vperm.xlu0 %3096, %v3095
        %v3098 = vpop.permute.xlu0 %3097
        %vm3099 = vcmp.eq.s32.totalorder %v2616, %v3098
        %v3100 = vmul.f32 %v3081, %v3051
        %3102 = vset.pattern.permute.xlu0 3
        %3103 = vperm.xlu0 %3102, %v3100
        %v3104 = vpop.permute.xlu0 %3103
        %v3106 = vsel %vm3099, %v3104, 0.0
        %v3107 = vadd.f32 %v3089, %v3106
        %3108 = vmatprep.subr.mxu0 0.0
        %3109 = vmatpush1.msra.mxu0 %v2446
        %3110 = vmatprep.subr.mxu0 0.0
        %3111 = vmatpush1.msra.mxu0 %v2441
        %3112 = vmatprep.subr.mxu0 0.0
        %3113 = vmatpush1.msra.mxu0 %v2436
        %3114 = vmatprep.subr.mxu0 0.0
        %3115 = vmatpush1.msra.mxu0 %v2431
        %3116 = vmatprep.subr.mxu0 0.0
        %3117 = vmatpush1.msra.mxu0 %v2426
        %3118 = vmatprep.subr.mxu0 0.0
        %3119 = vmatpush1.msra.mxu0 %v2421
        %3120 = vmatprep.subr.mxu0 0.0
        %3121 = vmatpush1.msra.mxu0 %v2416
        %3122 = vmatprep.subr.mxu0 0.0
        %3123 = vmatpush1.msra.mxu0 %v2411
        %3124 = vmatprep.subr.mxu0 0.0
        %3125 = vmatpush1.msra.mxu0 %v2406
        %3126 = vmatprep.subr.mxu0 0.0
        %3127 = vmatpush1.msra.mxu0 %v2401
        %3128 = vmatprep.subr.mxu0 0.0
        %3129 = vmatpush1.msra.mxu0 %v2396
        %3130 = vmatprep.subr.mxu0 0.0
        %3131 = vmatpush1.msra.mxu0 %v2391
        %3132 = vmatprep.subr.mxu0 0.0
        %3133 = vmatpush1.msra.mxu0 %v2386
        %3134 = vmatprep.subr.mxu0 0.0
        %3135 = vmatpush1.msra.mxu0 %v2381
        %3136 = vmatprep.subr.mxu0 0.0
        %3137 = vmatpush1.msra.mxu0 %v2376
        %3138 = vmatprep.subr.mxu0 0.0
        %3139 = vmatpush1.msra.mxu0 %v2371
        %3140 = vmatprep.subr.mxu0 0.0
        %3141 = vmatpush2.msra.mxu0 0.0
        %3142 = vmatprep.subr.mxu0 0.0
        %3143 = vmatpush2.msra.mxu0 0.0
        %3144 = vmatprep.subr.mxu0 0.0
        %3145 = vmatpush2.msra.mxu0 0.0
        %3146 = vmatprep.subr.mxu0 0.0
        %3147 = vmatpush2.msra.mxu0 0.0
        %3148 = vmatprep.subr.mxu0 0.0
        %3149 = vmatpush2.msra.mxu0 0.0
        %3150 = vmatprep.subr.mxu0 0.0
        %3151 = vmatpush2.msra.mxu0 0.0
        %3152 = vmatprep.subr.mxu0 0.0
        %3153 = vmatpush2.msra.mxu0 0.0
        %3154 = vmatprep.subr.mxu0 0.0
        %3155 = vmatpush2.msra.mxu0 0.0
        %3156 = vmatprep.subr.mxu0 0.0
        %3157 = vmatpush2.msra.mxu0 0.0
        %3158 = vmatprep.subr.mxu0 0.0
        %3159 = vmatpush2.msra.mxu0 0.0
        %3160 = vmatprep.subr.mxu0 0.0
        %3161 = vmatpush2.msra.mxu0 0.0
        %3162 = vmatprep.subr.mxu0 0.0
        %3163 = vmatpush2.msra.mxu0 0.0
        %3164 = vmatprep.subr.mxu0 0.0
        %3165 = vmatpush2.msra.mxu0 0.0
        %3166 = vmatprep.subr.mxu0 0.0
        %3167 = vmatpush2.msra.mxu0 0.0
        %3168 = vmatprep.subr.mxu0 0.0
        %3169 = vmatpush2.msra.mxu0 0.0
        %3170 = vmatprep.subr.mxu0 0.0
        %3171 = vmatpush2.msra.mxu0 0.0
        %3172 = vmatprep.mubr.f32.mxu0 0.0
        %3173 = vmatmul.mubr.f32.gmra.mxu0 %v3107
        %v3174 = vpop.f32.mrf.mxu0
        %v3175 = vadd.f32 0.0, %v3174
        %v3176 = vpop.f32.mrf.mxu0
        %3177 = vdwg.mxu0
        %v3178 = vld [vmem:[%s41] sm:$0xff]
        %vm3179 = vcmask 64544
        %v3180 = vsel %vm3179, %v2611, -inf
        %3181 = vmax.xlane.f32.xlu0 %v3180
        %v3182 = vpop.xlane.xlu0 %3181
        %v3183 = vsub.f32 %v2611, %v3182
        %v3184 = vmul.f32 %v3183, 1.442695
        %v3185 = vpow.pop %v3184
        %3187 = vrot.lane.b32.xlu0 %v3185, 124
        %v3188 = vpop.permute.xlu0 %3187
        %v3190 = vsel %vm2621, %v3188, 0.0
        %3191 = vadd.xlane.f32.xlu0 %v3190
        %v3192 = vpop.xlane.xlu0 %3191
        %v3193 = vrcp.pop %v3192
        %v3194 = vmul.f32 %v3185, %v3193
        %3195 = vrot.lane.b32.xlu0 %v2530, 120
        %v3196 = vpop.permute.xlu0 %3195
        %v3198 = vadd.f32 %v2618, %v3196
        %v3199 = vfloor.f32 %v3198
        %v3200 = vsub.f32 %v3198, %v3199
        %v3201 = vsub.f32 1.0, %v3200
        %v3202 = vcvt.f32.s32.to.zero.pseudo %v3199
        %v3203 = vadd.s32 %v3202, 1
        %vm3204 = vcmp.ge.s32.totalorder %v3202, 0
        %vm3205 = vcmp.le.s32.totalorder %v3202, 7
        %vm3206 = vmand %vm3204, %vm3205
        %v3207 = vsel %vm3204, 1, 0
        %3208 = vrot.lane.b32.xlu0 %v3207, 127
        %v3209 = vpop.permute.xlu0 %3208
        %vm3210 = vcmp.ne.s32.totalorder %v3209, 0
        %vm3211 = vmand %vm3206, %vm3210
        %v3212 = vsel %vm3205, 1, 0
        %3213 = vrot.lane.b32.xlu0 %v3212, 127
        %v3214 = vpop.permute.xlu0 %3213
        %vm3215 = vcmp.ne.s32.totalorder %v3214, 0
        %vm3216 = vmand %vm3211, %vm3215
        %v3217 = vmul.u32 %v3202, 8
        %3218 = vrot.lane.b32.xlu0 %v3202, 1
        %v3219 = vpop.permute.xlu0 %3218
        %v3220 = vadd.s32 %v3217, %v3219
        %3221 = vrot.lane.b32.xlu0 %v3220, 127
        %v3222 = vpop.permute.xlu0 %3221
        %v3223 = vsel %vm3216, %v3222, 4294967295
        %3224 = vset.pattern.permute.xlu0 0
        %3225 = vperm.xlu0 %3224, %v3223
        %v3226 = vpop.permute.xlu0 %3225
        %vm3227 = vcmp.eq.s32.totalorder %v2616, %v3226
        %3229 = vrot.lane.b32.xlu0 %v3201, 3
        %v3230 = vpop.permute.xlu0 %3229
        %v3232 = vmul.f32 %v3194, %v3230
        %3233 = vrot.lane.b32.xlu0 %v3201, 4
        %v3234 = vpop.permute.xlu0 %3233
        %v3236 = vmul.f32 %v3232, %v3234
        %3238 = vset.pattern.permute.xlu0 4
        %3239 = vperm.xlu0 %3238, %v3236
        %v3240 = vpop.permute.xlu0 %3239
        %v3242 = vsel %vm3227, %v3240, 0.0
        %v3243 = vadd.f32 %v3242, 0.0
        %vm3244 = vcmp.ge.s32.totalorder %v3203, 0
        %vm3245 = vcmp.le.s32.totalorder %v3203, 7
        %vm3246 = vmand %vm3244, %vm3245
        %vm3247 = vmand %vm3246, %vm3210
        %vm3248 = vmand %vm3247, %vm3215
        %3249 = vrot.lane.b32.xlu0 %v3203, 1
        %v3250 = vpop.permute.xlu0 %3249
        %v3251 = vadd.s32 %v3217, %v3250
        %3252 = vrot.lane.b32.xlu0 %v3251, 127
        %v3253 = vpop.permute.xlu0 %3252
        %v3254 = vsel %vm3248, %v3253, 4294967295
        %3255 = vset.pattern.permute.xlu0 0
        %3256 = vperm.xlu0 %3255, %v3254
        %v3257 = vpop.permute.xlu0 %3256
        %vm3258 = vcmp.eq.s32.totalorder %v2616, %v3257
        %3260 = vrot.lane.b32.xlu0 %v3200, 4
        %v3261 = vpop.permute.xlu0 %3260
        %v3263 = vmul.f32 %v3232, %v3261
        %3265 = vset.pattern.permute.xlu0 4
        %3266 = vperm.xlu0 %3265, %v3263
        %v3267 = vpop.permute.xlu0 %3266
        %v3269 = vsel %vm3258, %v3267, 0.0
        %v3270 = vadd.f32 %v3243, %v3269
        %v3271 = vsel %vm3244, 1, 0
        %3272 = vrot.lane.b32.xlu0 %v3271, 127
        %v3273 = vpop.permute.xlu0 %3272
        %vm3274 = vcmp.ne.s32.totalorder %v3273, 0
        %vm3275 = vmand %vm3206, %vm3274
        %v3276 = vsel %vm3245, 1, 0
        %3277 = vrot.lane.b32.xlu0 %v3276, 127
        %v3278 = vpop.permute.xlu0 %3277
        %vm3279 = vcmp.ne.s32.totalorder %v3278, 0
        %vm3280 = vmand %vm3275, %vm3279
        %v3281 = vmul.u32 %v3203, 8
        %v3282 = vadd.s32 %v3281, %v3219
        %3283 = vrot.lane.b32.xlu0 %v3282, 127
        %v3284 = vpop.permute.xlu0 %3283
        %v3285 = vsel %vm3280, %v3284, 4294967295
        %3286 = vset.pattern.permute.xlu0 0
        %3287 = vperm.xlu0 %3286, %v3285
        %v3288 = vpop.permute.xlu0 %3287
        %vm3289 = vcmp.eq.s32.totalorder %v2616, %v3288
        %3290 = vrot.lane.b32.xlu0 %v3200, 3
        %v3291 = vpop.permute.xlu0 %3290
        %v3293 = vmul.f32 %v3194, %v3291
        %v3294 = vmul.f32 %v3293, %v3234
        %3296 = vset.pattern.permute.xlu0 4
        %3297 = vperm.xlu0 %3296, %v3294
        %v3298 = vpop.permute.xlu0 %3297
        %v3300 = vsel %vm3289, %v3298, 0.0
        %v3301 = vadd.f32 %v3270, %v3300
        %vm3302 = vmand %vm3246, %vm3274
        %vm3303 = vmand %vm3302, %vm3279
        %v3304 = vadd.s32 %v3281, %v3250
        %3305 = vrot.lane.b32.xlu0 %v3304, 127
        %v3306 = vpop.permute.xlu0 %3305
        %v3307 = vsel %vm3303, %v3306, 4294967295
        %3308 = vset.pattern.permute.xlu0 0
        %3309 = vperm.xlu0 %3308, %v3307
        %v3310 = vpop.permute.xlu0 %3309
        %vm3311 = vcmp.eq.s32.totalorder %v2616, %v3310
        %v3312 = vmul.f32 %v3293, %v3261
        %3314 = vset.pattern.permute.xlu0 4
        %3315 = vperm.xlu0 %3314, %v3312
        %v3316 = vpop.permute.xlu0 %3315
        %v3318 = vsel %vm3311, %v3316, 0.0
        %v3319 = vadd.f32 %v3301, %v3318
        %3320 = vrot.lane.b32.xlu0 %v2530, 118
        %v3321 = vpop.permute.xlu0 %3320
        %v3323 = vadd.f32 %v2618, %v3321
        %v3324 = vfloor.f32 %v3323
        %v3325 = vsub.f32 %v3323, %v3324
        %v3326 = vsub.f32 1.0, %v3325
        %v3327 = vcvt.f32.s32.to.zero.pseudo %v3324
        %v3328 = vadd.s32 %v3327, 1
        %vm3329 = vcmp.ge.s32.totalorder %v3327, 0
        %vm3330 = vcmp.le.s32.totalorder %v3327, 7
        %vm3331 = vmand %vm3329, %vm3330
        %v3332 = vsel %vm3329, 1, 0
        %3333 = vrot.lane.b32.xlu0 %v3332, 127
        %v3334 = vpop.permute.xlu0 %3333
        %vm3335 = vcmp.ne.s32.totalorder %v3334, 0
        %vm3336 = vmand %vm3331, %vm3335
        %v3337 = vsel %vm3330, 1, 0
        %3338 = vrot.lane.b32.xlu0 %v3337, 127
        %v3339 = vpop.permute.xlu0 %3338
        %vm3340 = vcmp.ne.s32.totalorder %v3339, 0
        %vm3341 = vmand %vm3336, %vm3340
        %v3342 = vmul.u32 %v3327, 8
        %3343 = vrot.lane.b32.xlu0 %v3327, 1
        %v3344 = vpop.permute.xlu0 %3343
        %v3345 = vadd.s32 %v3342, %v3344
        %3346 = vrot.lane.b32.xlu0 %v3345, 127
        %v3347 = vpop.permute.xlu0 %3346
        %v3348 = vsel %vm3341, %v3347, 4294967295
        %3349 = vset.pattern.permute.xlu0 0
        %3350 = vperm.xlu0 %3349, %v3348
        %v3351 = vpop.permute.xlu0 %3350
        %vm3352 = vcmp.eq.s32.totalorder %v2616, %v3351
        %3354 = vrot.lane.b32.xlu0 %v3326, 4
        %v3355 = vpop.permute.xlu0 %3354
        %v3357 = vmul.f32 %v3194, %v3355
        %3358 = vrot.lane.b32.xlu0 %v3326, 5
        %v3359 = vpop.permute.xlu0 %3358
        %v3361 = vmul.f32 %v3357, %v3359
        %3363 = vset.pattern.permute.xlu0 5
        %3364 = vperm.xlu0 %3363, %v3361
        %v3365 = vpop.permute.xlu0 %3364
        %v3367 = vsel %vm3352, %v3365, 0.0
        %v3368 = vadd.f32 %v3319, %v3367
        %vm3369 = vcmp.ge.s32.totalorder %v3328, 0
        %vm3370 = vcmp.le.s32.totalorder %v3328, 7
        %vm3371 = vmand %vm3369, %vm3370
        %vm3372 = vmand %vm3371, %vm3335
        %vm3373 = vmand %vm3372, %vm3340
        %3374 = vrot.lane.b32.xlu0 %v3328, 1
        %v3375 = vpop.permute.xlu0 %3374
        %v3376 = vadd.s32 %v3342, %v3375
        %3377 = vrot.lane.b32.xlu0 %v3376, 127
        %v3378 = vpop.permute.xlu0 %3377
        %v3379 = vsel %vm3373, %v3378, 4294967295
        %3380 = vset.pattern.permute.xlu0 0
        %3381 = vperm.xlu0 %3380, %v3379
        %v3382 = vpop.permute.xlu0 %3381
        %vm3383 = vcmp.eq.s32.totalorder %v2616, %v3382
        %3385 = vrot.lane.b32.xlu0 %v3325, 5
        %v3386 = vpop.permute.xlu0 %3385
        %v3388 = vmul.f32 %v3357, %v3386
        %3390 = vset.pattern.permute.xlu0 5
        %3391 = vperm.xlu0 %3390, %v3388
        %v3392 = vpop.permute.xlu0 %3391
        %v3394 = vsel %vm3383, %v3392, 0.0
        %v3395 = vadd.f32 %v3368, %v3394
        %v3396 = vsel %vm3369, 1, 0
        %3397 = vrot.lane.b32.xlu0 %v3396, 127
        %v3398 = vpop.permute.xlu0 %3397
        %vm3399 = vcmp.ne.s32.totalorder %v3398, 0
        %vm3400 = vmand %vm3331, %vm3399
        %v3401 = vsel %vm3370, 1, 0
        %3402 = vrot.lane.b32.xlu0 %v3401, 127
        %v3403 = vpop.permute.xlu0 %3402
        %vm3404 = vcmp.ne.s32.totalorder %v3403, 0
        %vm3405 = vmand %vm3400, %vm3404
        %v3406 = vmul.u32 %v3328, 8
        %v3407 = vadd.s32 %v3406, %v3344
        %3408 = vrot.lane.b32.xlu0 %v3407, 127
        %v3409 = vpop.permute.xlu0 %3408
        %v3410 = vsel %vm3405, %v3409, 4294967295
        %3411 = vset.pattern.permute.xlu0 0
        %3412 = vperm.xlu0 %3411, %v3410
        %v3413 = vpop.permute.xlu0 %3412
        %vm3414 = vcmp.eq.s32.totalorder %v2616, %v3413
        %3415 = vrot.lane.b32.xlu0 %v3325, 4
        %v3416 = vpop.permute.xlu0 %3415
        %v3418 = vmul.f32 %v3194, %v3416
        %v3419 = vmul.f32 %v3418, %v3359
        %3421 = vset.pattern.permute.xlu0 5
        %3422 = vperm.xlu0 %3421, %v3419
        %v3423 = vpop.permute.xlu0 %3422
        %v3425 = vsel %vm3414, %v3423, 0.0
        %v3426 = vadd.f32 %v3395, %v3425
        %vm3427 = vmand %vm3371, %vm3399
        %vm3428 = vmand %vm3427, %vm3404
        %v3429 = vadd.s32 %v3406, %v3375
        %3430 = vrot.lane.b32.xlu0 %v3429, 127
        %v3431 = vpop.permute.xlu0 %3430
        %v3432 = vsel %vm3428, %v3431, 4294967295
        %3433 = vset.pattern.permute.xlu0 0
        %3434 = vperm.xlu0 %3433, %v3432
        %v3435 = vpop.permute.xlu0 %3434
        %vm3436 = vcmp.eq.s32.totalorder %v2616, %v3435
        %v3437 = vmul.f32 %v3418, %v3386
        %3439 = vset.pattern.permute.xlu0 5
        %3440 = vperm.xlu0 %3439, %v3437
        %v3441 = vpop.permute.xlu0 %3440
        %v3443 = vsel %vm3436, %v3441, 0.0
        %v3444 = vadd.f32 %v3426, %v3443
        %v3445 = vadd.f32 %v2620, %v3321
        %v3446 = vfloor.f32 %v3445
        %v3447 = vsub.f32 %v3445, %v3446
        %v3448 = vsub.f32 1.0, %v3447
        %v3449 = vcvt.f32.s32.to.zero.pseudo %v3446
        %v3450 = vadd.s32 %v3449, 1
        %vm3451 = vcmp.ge.s32.totalorder %v3449, 0
        %vm3452 = vcmp.le.s32.totalorder %v3449, 3
        %vm3453 = vmand %vm3451, %vm3452
        %v3454 = vsel %vm3451, 1, 0
        %3455 = vrot.lane.b32.xlu0 %v3454, 127
        %v3456 = vpop.permute.xlu0 %3455
        %vm3457 = vcmp.ne.s32.totalorder %v3456, 0
        %vm3458 = vmand %vm3453, %vm3457
        %v3459 = vsel %vm3452, 1, 0
        %3460 = vrot.lane.b32.xlu0 %v3459, 127
        %v3461 = vpop.permute.xlu0 %3460
        %vm3462 = vcmp.ne.s32.totalorder %v3461, 0
        %vm3463 = vmand %vm3458, %vm3462
        %v3464 = vmul.u32 %v3449, 4
        %v3465 = vadd.s32 %v3464, 64
        %3466 = vrot.lane.b32.xlu0 %v3449, 1
        %v3467 = vpop.permute.xlu0 %3466
        %v3468 = vadd.s32 %v3465, %v3467
        %3469 = vrot.lane.b32.xlu0 %v3468, 127
        %v3470 = vpop.permute.xlu0 %3469
        %v3471 = vsel %vm3463, %v3470, 4294967295
        %3472 = vset.pattern.permute.xlu0 2
        %3473 = vperm.xlu0 %3472, %v3471
        %v3474 = vpop.permute.xlu0 %3473
        %vm3475 = vcmp.eq.s32.totalorder %v2616, %v3474
        %3477 = vrot.lane.b32.xlu0 %v3448, 3
        %v3478 = vpop.permute.xlu0 %3477
        %v3480 = vmul.f32 %v3194, %v3478
        %3481 = vrot.lane.b32.xlu0 %v3448, 4
        %v3482 = vpop.permute.xlu0 %3481
        %v3484 = vmul.f32 %v3480, %v3482
        %3486 = vset.pattern.permute.xlu0 6
        %3487 = vperm.xlu0 %3486, %v3484
        %v3488 = vpop.permute.xlu0 %3487
        %v3490 = vsel %vm3475, %v3488, 0.0
        %v3491 = vadd.f32 %v3444, %v3490
        %vm3492 = vcmp.ge.s32.totalorder %v3450, 0
        %vm3493 = vcmp.le.s32.totalorder %v3450, 3
        %vm3494 = vmand %vm3492, %vm3493
        %vm3495 = vmand %vm3494, %vm3457
        %vm3496 = vmand %vm3495, %vm3462
        %3497 = vrot.lane.b32.xlu0 %v3450, 1
        %v3498 = vpop.permute.xlu0 %3497
        %v3499 = vadd.s32 %v3465, %v3498
        %3500 = vrot.lane.b32.xlu0 %v3499, 127
        %v3501 = vpop.permute.xlu0 %3500
        %v3502 = vsel %vm3496, %v3501, 4294967295
        %3503 = vset.pattern.permute.xlu0 2
        %3504 = vperm.xlu0 %3503, %v3502
        %v3505 = vpop.permute.xlu0 %3504
        %vm3506 = vcmp.eq.s32.totalorder %v2616, %v3505
        %3508 = vrot.lane.b32.xlu0 %v3447, 4
        %v3509 = vpop.permute.xlu0 %3508
        %v3511 = vmul.f32 %v3480, %v3509
        %3513 = vset.pattern.permute.xlu0 6
        %3514 = vperm.xlu0 %3513, %v3511
        %v3515 = vpop.permute.xlu0 %3514
        %v3517 = vsel %vm3506, %v3515, 0.0
        %v3518 = vadd.f32 %v3491, %v3517
        %v3519 = vsel %vm3492, 1, 0
        %3520 = vrot.lane.b32.xlu0 %v3519, 127
        %v3521 = vpop.permute.xlu0 %3520
        %vm3522 = vcmp.ne.s32.totalorder %v3521, 0
        %vm3523 = vmand %vm3453, %vm3522
        %v3524 = vsel %vm3493, 1, 0
        %3525 = vrot.lane.b32.xlu0 %v3524, 127
        %v3526 = vpop.permute.xlu0 %3525
        %vm3527 = vcmp.ne.s32.totalorder %v3526, 0
        %vm3528 = vmand %vm3523, %vm3527
        %v3529 = vmul.u32 %v3450, 4
        %v3530 = vadd.s32 %v3529, 64
        %v3531 = vadd.s32 %v3530, %v3467
        %3532 = vrot.lane.b32.xlu0 %v3531, 127
        %v3533 = vpop.permute.xlu0 %3532
        %v3534 = vsel %vm3528, %v3533, 4294967295
        %3535 = vset.pattern.permute.xlu0 2
        %3536 = vperm.xlu0 %3535, %v3534
        %v3537 = vpop.permute.xlu0 %3536
        %vm3538 = vcmp.eq.s32.totalorder %v2616, %v3537
        %3539 = vrot.lane.b32.xlu0 %v3447, 3
        %v3540 = vpop.permute.xlu0 %3539
        %v3542 = vmul.f32 %v3194, %v3540
        %v3543 = vmul.f32 %v3542, %v3482
        %3545 = vset.pattern.permute.xlu0 6
        %3546 = vperm.xlu0 %3545, %v3543
        %v3547 = vpop.permute.xlu0 %3546
        %v3549 = vsel %vm3538, %v3547, 0.0
        %v3550 = vadd.f32 %v3518, %v3549
        %vm3551 = vmand %vm3494, %vm3522
        %vm3552 = vmand %vm3551, %vm3527
        %v3553 = vadd.s32 %v3530, %v3498
        %3554 = vrot.lane.b32.xlu0 %v3553, 127
        %v3555 = vpop.permute.xlu0 %3554
        %v3556 = vsel %vm3552, %v3555, 4294967295
        %3557 = vset.pattern.permute.xlu0 2
        %3558 = vperm.xlu0 %3557, %v3556
        %v3559 = vpop.permute.xlu0 %3558
        %vm3560 = vcmp.eq.s32.totalorder %v2616, %v3559
        %v3561 = vmul.f32 %v3542, %v3509
        %3563 = vset.pattern.permute.xlu0 6
        %3564 = vperm.xlu0 %3563, %v3561
        %v3565 = vpop.permute.xlu0 %3564
        %v3567 = vsel %vm3560, %v3565, 0.0
        %v3568 = vadd.f32 %v3550, %v3567
        %3569 = vrot.lane.b32.xlu0 %v2530, 116
        %v3570 = vpop.permute.xlu0 %3569
        %v3572 = vadd.f32 %v2620, %v3570
        %v3573 = vfloor.f32 %v3572
        %v3574 = vsub.f32 %v3572, %v3573
        %v3575 = vsub.f32 1.0, %v3574
        %v3576 = vcvt.f32.s32.to.zero.pseudo %v3573
        %v3577 = vadd.s32 %v3576, 1
        %vm3578 = vcmp.ge.s32.totalorder %v3576, 0
        %vm3579 = vcmp.le.s32.totalorder %v3576, 3
        %vm3580 = vmand %vm3578, %vm3579
        %v3581 = vsel %vm3578, 1, 0
        %3582 = vrot.lane.b32.xlu0 %v3581, 127
        %v3583 = vpop.permute.xlu0 %3582
        %vm3584 = vcmp.ne.s32.totalorder %v3583, 0
        %vm3585 = vmand %vm3580, %vm3584
        %v3586 = vsel %vm3579, 1, 0
        %3587 = vrot.lane.b32.xlu0 %v3586, 127
        %v3588 = vpop.permute.xlu0 %3587
        %vm3589 = vcmp.ne.s32.totalorder %v3588, 0
        %vm3590 = vmand %vm3585, %vm3589
        %v3591 = vmul.u32 %v3576, 4
        %v3592 = vadd.s32 %v3591, 64
        %3593 = vrot.lane.b32.xlu0 %v3576, 1
        %v3594 = vpop.permute.xlu0 %3593
        %v3595 = vadd.s32 %v3592, %v3594
        %3596 = vrot.lane.b32.xlu0 %v3595, 127
        %v3597 = vpop.permute.xlu0 %3596
        %v3598 = vsel %vm3590, %v3597, 4294967295
        %3599 = vset.pattern.permute.xlu0 2
        %3600 = vperm.xlu0 %3599, %v3598
        %v3601 = vpop.permute.xlu0 %3600
        %vm3602 = vcmp.eq.s32.totalorder %v2616, %v3601
        %3604 = vrot.lane.b32.xlu0 %v3575, 4
        %v3605 = vpop.permute.xlu0 %3604
        %v3607 = vmul.f32 %v3194, %v3605
        %3608 = vrot.lane.b32.xlu0 %v3575, 5
        %v3609 = vpop.permute.xlu0 %3608
        %v3611 = vmul.f32 %v3607, %v3609
        %3613 = vset.pattern.permute.xlu0 7
        %3614 = vperm.xlu0 %3613, %v3611
        %v3615 = vpop.permute.xlu0 %3614
        %v3617 = vsel %vm3602, %v3615, 0.0
        %v3618 = vadd.f32 %v3568, %v3617
        %vm3619 = vcmp.ge.s32.totalorder %v3577, 0
        %vm3620 = vcmp.le.s32.totalorder %v3577, 3
        %vm3621 = vmand %vm3619, %vm3620
        %vm3622 = vmand %vm3621, %vm3584
        %vm3623 = vmand %vm3622, %vm3589
        %3624 = vrot.lane.b32.xlu0 %v3577, 1
        %v3625 = vpop.permute.xlu0 %3624
        %v3626 = vadd.s32 %v3592, %v3625
        %3627 = vrot.lane.b32.xlu0 %v3626, 127
        %v3628 = vpop.permute.xlu0 %3627
        %v3629 = vsel %vm3623, %v3628, 4294967295
        %3630 = vset.pattern.permute.xlu0 2
        %3631 = vperm.xlu0 %3630, %v3629
        %v3632 = vpop.permute.xlu0 %3631
        %vm3633 = vcmp.eq.s32.totalorder %v2616, %v3632
        %3635 = vrot.lane.b32.xlu0 %v3574, 5
        %v3636 = vpop.permute.xlu0 %3635
        %v3638 = vmul.f32 %v3607, %v3636
        %3640 = vset.pattern.permute.xlu0 7
        %3641 = vperm.xlu0 %3640, %v3638
        %v3642 = vpop.permute.xlu0 %3641
        %v3644 = vsel %vm3633, %v3642, 0.0
        %v3645 = vadd.f32 %v3618, %v3644
        %v3646 = vsel %vm3619, 1, 0
        %3647 = vrot.lane.b32.xlu0 %v3646, 127
        %v3648 = vpop.permute.xlu0 %3647
        %vm3649 = vcmp.ne.s32.totalorder %v3648, 0
        %vm3650 = vmand %vm3580, %vm3649
        %v3651 = vsel %vm3620, 1, 0
        %3652 = vrot.lane.b32.xlu0 %v3651, 127
        %v3653 = vpop.permute.xlu0 %3652
        %vm3654 = vcmp.ne.s32.totalorder %v3653, 0
        %vm3655 = vmand %vm3650, %vm3654
        %v3656 = vmul.u32 %v3577, 4
        %v3657 = vadd.s32 %v3656, 64
        %v3658 = vadd.s32 %v3657, %v3594
        %3659 = vrot.lane.b32.xlu0 %v3658, 127
        %v3660 = vpop.permute.xlu0 %3659
        %v3661 = vsel %vm3655, %v3660, 4294967295
        %3662 = vset.pattern.permute.xlu0 2
        %3663 = vperm.xlu0 %3662, %v3661
        %v3664 = vpop.permute.xlu0 %3663
        %vm3665 = vcmp.eq.s32.totalorder %v2616, %v3664
        %3666 = vrot.lane.b32.xlu0 %v3574, 4
        %v3667 = vpop.permute.xlu0 %3666
        %v3669 = vmul.f32 %v3194, %v3667
        %v3670 = vmul.f32 %v3669, %v3609
        %3672 = vset.pattern.permute.xlu0 7
        %3673 = vperm.xlu0 %3672, %v3670
        %v3674 = vpop.permute.xlu0 %3673
        %v3676 = vsel %vm3665, %v3674, 0.0
        %v3677 = vadd.f32 %v3645, %v3676
        %vm3678 = vmand %vm3621, %vm3649
        %vm3679 = vmand %vm3678, %vm3654
        %v3680 = vadd.s32 %v3657, %v3625
        %3681 = vrot.lane.b32.xlu0 %v3680, 127
        %v3682 = vpop.permute.xlu0 %3681
        %v3683 = vsel %vm3679, %v3682, 4294967295
        %3684 = vset.pattern.permute.xlu0 2
        %3685 = vperm.xlu0 %3684, %v3683
        %v3686 = vpop.permute.xlu0 %3685
        %vm3687 = vcmp.eq.s32.totalorder %v2616, %v3686
        %v3688 = vmul.f32 %v3669, %v3636
        %3690 = vset.pattern.permute.xlu0 7
        %3691 = vperm.xlu0 %3690, %v3688
        %v3692 = vpop.permute.xlu0 %3691
        %v3694 = vsel %vm3687, %v3692, 0.0
        %v3695 = vadd.f32 %v3677, %v3694
        %3712 = vrot.lane.b32.xlu0 %v2371, 120
        %v3713 = vpop.permute.xlu0 %3712
        %3714 = vrot.lane.b32.xlu0 %v2376, 120
        %v3715 = vpop.permute.xlu0 %3714
        %3716 = vrot.lane.b32.xlu0 %v2381, 120
        %v3717 = vpop.permute.xlu0 %3716
        %3718 = vrot.lane.b32.xlu0 %v2386, 120
        %v3719 = vpop.permute.xlu0 %3718
        %3720 = vrot.lane.b32.xlu0 %v2391, 120
        %v3721 = vpop.permute.xlu0 %3720
        %3722 = vrot.lane.b32.xlu0 %v2396, 120
        %v3723 = vpop.permute.xlu0 %3722
        %3724 = vrot.lane.b32.xlu0 %v2401, 120
        %v3725 = vpop.permute.xlu0 %3724
        %3726 = vrot.lane.b32.xlu0 %v2406, 120
        %v3727 = vpop.permute.xlu0 %3726
        %3728 = vrot.lane.b32.xlu0 %v2411, 120
        %v3729 = vpop.permute.xlu0 %3728
        %3730 = vrot.lane.b32.xlu0 %v2416, 120
        %v3731 = vpop.permute.xlu0 %3730
        %3732 = vrot.lane.b32.xlu0 %v2421, 120
        %v3733 = vpop.permute.xlu0 %3732
        %3734 = vrot.lane.b32.xlu0 %v2426, 120
        %v3735 = vpop.permute.xlu0 %3734
        %3736 = vrot.lane.b32.xlu0 %v2431, 120
        %v3737 = vpop.permute.xlu0 %3736
        %3738 = vrot.lane.b32.xlu0 %v2436, 120
        %v3739 = vpop.permute.xlu0 %3738
        %3740 = vrot.lane.b32.xlu0 %v2441, 120
        %v3741 = vpop.permute.xlu0 %3740
        %3742 = vrot.lane.b32.xlu0 %v2446, 120
        %v3743 = vpop.permute.xlu0 %3742
        %3760 = vmatprep.subr.mxu0 0.0
        %3761 = vmatpush1.msra.mxu0 %v3743
        %3762 = vmatprep.subr.mxu0 0.0
        %3763 = vmatpush1.msra.mxu0 %v3741
        %3764 = vmatprep.subr.mxu0 0.0
        %3765 = vmatpush1.msra.mxu0 %v3739
        %3766 = vmatprep.subr.mxu0 0.0
        %3767 = vmatpush1.msra.mxu0 %v3737
        %3768 = vmatprep.subr.mxu0 0.0
        %3769 = vmatpush1.msra.mxu0 %v3735
        %3770 = vmatprep.subr.mxu0 0.0
        %3771 = vmatpush1.msra.mxu0 %v3733
        %3772 = vmatprep.subr.mxu0 0.0
        %3773 = vmatpush1.msra.mxu0 %v3731
        %3774 = vmatprep.subr.mxu0 0.0
        %3775 = vmatpush1.msra.mxu0 %v3729
        %3776 = vmatprep.subr.mxu0 0.0
        %3777 = vmatpush1.msra.mxu0 %v3727
        %3778 = vmatprep.subr.mxu0 0.0
        %3779 = vmatpush1.msra.mxu0 %v3725
        %3780 = vmatprep.subr.mxu0 0.0
        %3781 = vmatpush1.msra.mxu0 %v3723
        %3782 = vmatprep.subr.mxu0 0.0
        %3783 = vmatpush1.msra.mxu0 %v3721
        %3784 = vmatprep.subr.mxu0 0.0
        %3785 = vmatpush1.msra.mxu0 %v3719
        %3786 = vmatprep.subr.mxu0 0.0
        %3787 = vmatpush1.msra.mxu0 %v3717
        %3788 = vmatprep.subr.mxu0 0.0
        %3789 = vmatpush1.msra.mxu0 %v3715
        %3790 = vmatprep.subr.mxu0 0.0
        %3791 = vmatpush1.msra.mxu0 %v3713
        %3792 = vmatprep.subr.mxu0 0.0
        %3793 = vmatpush2.msra.mxu0 0.0
        %3794 = vmatprep.subr.mxu0 0.0
        %3795 = vmatpush2.msra.mxu0 0.0
        %3796 = vmatprep.subr.mxu0 0.0
        %3797 = vmatpush2.msra.mxu0 0.0
        %3798 = vmatprep.subr.mxu0 0.0
        %3799 = vmatpush2.msra.mxu0 0.0
        %3800 = vmatprep.subr.mxu0 0.0
        %3801 = vmatpush2.msra.mxu0 0.0
        %3802 = vmatprep.subr.mxu0 0.0
        %3803 = vmatpush2.msra.mxu0 0.0
        %3804 = vmatprep.subr.mxu0 0.0
        %3805 = vmatpush2.msra.mxu0 0.0
        %3806 = vmatprep.subr.mxu0 0.0
        %3807 = vmatpush2.msra.mxu0 0.0
        %3808 = vmatprep.subr.mxu0 0.0
        %3809 = vmatpush2.msra.mxu0 0.0
        %3810 = vmatprep.subr.mxu0 0.0
        %3811 = vmatpush2.msra.mxu0 0.0
        %3812 = vmatprep.subr.mxu0 0.0
        %3813 = vmatpush2.msra.mxu0 0.0
        %3814 = vmatprep.subr.mxu0 0.0
        %3815 = vmatpush2.msra.mxu0 0.0
        %3816 = vmatprep.subr.mxu0 0.0
        %3817 = vmatpush2.msra.mxu0 0.0
        %3818 = vmatprep.subr.mxu0 0.0
        %3819 = vmatpush2.msra.mxu0 0.0
        %3820 = vmatprep.subr.mxu0 0.0
        %3821 = vmatpush2.msra.mxu0 0.0
        %3822 = vmatprep.subr.mxu0 0.0
        %3823 = vmatpush2.msra.mxu0 0.0
        %3824 = vmatprep.mubr.f32.mxu0 0.0
        %3825 = vmatmul.mubr.f32.gmra.mxu0 %v3695
        %v3826 = vpop.f32.mrf.mxu0
        %v3827 = vadd.f32 0.0, %v3826
        %v3828 = vpop.f32.mrf.mxu0
        %3829 = vdwg.mxu0
        %v3830 = vld [vmem:[%s41 + $0x8] sm:$0xff]
        %v3832 = vsel %vm1234, %v3827, 0
        %3834 = vmatprep.subr.mxu0 0.0
        %3835 = vmatpush1.msra.mxu0 0.0
        %3836 = vmatprep.subr.mxu0 0.0
        %3837 = vmatpush1.msra.mxu0 0.0
        %3838 = vmatprep.subr.mxu0 0.0
        %3839 = vmatpush1.msra.mxu0 0.0
        %3840 = vmatprep.subr.mxu0 0.0
        %3841 = vmatpush1.msra.mxu0 0.0
        %3842 = vmatprep.subr.mxu0 0.0
        %3843 = vmatpush1.msra.mxu0 0.0
        %3844 = vmatprep.subr.mxu0 0.0
        %3845 = vmatpush1.msra.mxu0 0.0
        %3846 = vmatprep.subr.mxu0 0.0
        %3847 = vmatpush1.msra.mxu0 0.0
        %3848 = vmatprep.subr.mxu0 0.0
        %3849 = vmatpush1.msra.mxu0 0.0
        %3850 = vmatprep.subr.mxu0 0.0
        %3851 = vmatpush1.msra.mxu0 0.0
        %3852 = vmatprep.subr.mxu0 0.0
        %3853 = vmatpush1.msra.mxu0 0.0
        %3854 = vmatprep.subr.mxu0 0.0
        %3855 = vmatpush1.msra.mxu0 0.0
        %3856 = vmatprep.subr.mxu0 0.0
        %3857 = vmatpush1.msra.mxu0 0.0
        %3858 = vmatprep.subr.mxu0 0.0
        %3859 = vmatpush1.msra.mxu0 0.0
        %3860 = vmatprep.subr.mxu0 0.0
        %3861 = vmatpush1.msra.mxu0 0.0
        %3862 = vmatprep.subr.mxu0 0.0
        %3863 = vmatpush1.msra.mxu0 0.0
        %3864 = vmatprep.subr.mxu0 0.0
        %3865 = vmatpush1.msra.mxu0 %v3830
        %3866 = vmatprep.subr.mxu0 0.0
        %3867 = vmatpush2.msra.mxu0 0.0
        %3868 = vmatprep.subr.mxu0 0.0
        %3869 = vmatpush2.msra.mxu0 0.0
        %3870 = vmatprep.subr.mxu0 0.0
        %3871 = vmatpush2.msra.mxu0 0.0
        %3872 = vmatprep.subr.mxu0 0.0
        %3873 = vmatpush2.msra.mxu0 0.0
        %3874 = vmatprep.subr.mxu0 0.0
        %3875 = vmatpush2.msra.mxu0 0.0
        %3876 = vmatprep.subr.mxu0 0.0
        %3877 = vmatpush2.msra.mxu0 0.0
        %3878 = vmatprep.subr.mxu0 0.0
        %3879 = vmatpush2.msra.mxu0 0.0
        %3880 = vmatprep.subr.mxu0 0.0
        %3881 = vmatpush2.msra.mxu0 0.0
        %3882 = vmatprep.subr.mxu0 0.0
        %3883 = vmatpush2.msra.mxu0 0.0
        %3884 = vmatprep.subr.mxu0 0.0
        %3885 = vmatpush2.msra.mxu0 0.0
        %3886 = vmatprep.subr.mxu0 0.0
        %3887 = vmatpush2.msra.mxu0 0.0
        %3888 = vmatprep.subr.mxu0 0.0
        %3889 = vmatpush2.msra.mxu0 0.0
        %3890 = vmatprep.subr.mxu0 0.0
        %3891 = vmatpush2.msra.mxu0 0.0
        %3892 = vmatprep.subr.mxu0 0.0
        %3893 = vmatpush2.msra.mxu0 0.0
        %3894 = vmatprep.subr.mxu0 0.0
        %3895 = vmatpush2.msra.mxu0 0.0
        %3896 = vmatprep.subr.mxu0 0.0
        %3897 = vmatpush2.msra.mxu0 0.0
        %3898 = vmatprep.mubr.f32.mxu0 0.0
        %3899 = vmatmul.mubr.f32.gmra.mxu0 %v3832
        %v3900 = vpop.f32.mrf.mxu0
        %v3901 = vadd.f32 0.0, %v3900
        %v3902 = vpop.f32.mrf.mxu0
        %3903 = vdwg.mxu0
        %v3905 = vsel %vm1234, %v3175, 0
        %3907 = vmatprep.subr.mxu0 0.0
        %3908 = vmatpush1.msra.mxu0 0.0
        %3909 = vmatprep.subr.mxu0 0.0
        %3910 = vmatpush1.msra.mxu0 0.0
        %3911 = vmatprep.subr.mxu0 0.0
        %3912 = vmatpush1.msra.mxu0 0.0
        %3913 = vmatprep.subr.mxu0 0.0
        %3914 = vmatpush1.msra.mxu0 0.0
        %3915 = vmatprep.subr.mxu0 0.0
        %3916 = vmatpush1.msra.mxu0 0.0
        %3917 = vmatprep.subr.mxu0 0.0
        %3918 = vmatpush1.msra.mxu0 0.0
        %3919 = vmatprep.subr.mxu0 0.0
        %3920 = vmatpush1.msra.mxu0 0.0
        %3921 = vmatprep.subr.mxu0 0.0
        %3922 = vmatpush1.msra.mxu0 0.0
        %3923 = vmatprep.subr.mxu0 0.0
        %3924 = vmatpush1.msra.mxu0 0.0
        %3925 = vmatprep.subr.mxu0 0.0
        %3926 = vmatpush1.msra.mxu0 0.0
        %3927 = vmatprep.subr.mxu0 0.0
        %3928 = vmatpush1.msra.mxu0 0.0
        %3929 = vmatprep.subr.mxu0 0.0
        %3930 = vmatpush1.msra.mxu0 0.0
        %3931 = vmatprep.subr.mxu0 0.0
        %3932 = vmatpush1.msra.mxu0 0.0
        %3933 = vmatprep.subr.mxu0 0.0
        %3934 = vmatpush1.msra.mxu0 0.0
        %3935 = vmatprep.subr.mxu0 0.0
        %3936 = vmatpush1.msra.mxu0 0.0
        %3937 = vmatprep.subr.mxu0 0.0
        %3938 = vmatpush1.msra.mxu0 %v3178
        %3939 = vmatprep.subr.mxu0 0.0
        %3940 = vmatpush2.msra.mxu0 0.0
        %3941 = vmatprep.subr.mxu0 0.0
        %3942 = vmatpush2.msra.mxu0 0.0
        %3943 = vmatprep.subr.mxu0 0.0
        %3944 = vmatpush2.msra.mxu0 0.0
        %3945 = vmatprep.subr.mxu0 0.0
        %3946 = vmatpush2.msra.mxu0 0.0
        %3947 = vmatprep.subr.mxu0 0.0
        %3948 = vmatpush2.msra.mxu0 0.0
        %3949 = vmatprep.subr.mxu0 0.0
        %3950 = vmatpush2.msra.mxu0 0.0
        %3951 = vmatprep.subr.mxu0 0.0
        %3952 = vmatpush2.msra.mxu0 0.0
        %3953 = vmatprep.subr.mxu0 0.0
        %3954 = vmatpush2.msra.mxu0 0.0
        %3955 = vmatprep.subr.mxu0 0.0
        %3956 = vmatpush2.msra.mxu0 0.0
        %3957 = vmatprep.subr.mxu0 0.0
        %3958 = vmatpush2.msra.mxu0 0.0
        %3959 = vmatprep.subr.mxu0 0.0
        %3960 = vmatpush2.msra.mxu0 0.0
        %3961 = vmatprep.subr.mxu0 0.0
        %3962 = vmatpush2.msra.mxu0 0.0
        %3963 = vmatprep.subr.mxu0 0.0
        %3964 = vmatpush2.msra.mxu0 0.0
        %3965 = vmatprep.subr.mxu0 0.0
        %3966 = vmatpush2.msra.mxu0 0.0
        %3967 = vmatprep.subr.mxu0 0.0
        %3968 = vmatpush2.msra.mxu0 0.0
        %3969 = vmatprep.subr.mxu0 0.0
        %3970 = vmatpush2.msra.mxu0 0.0
        %3971 = vmatprep.mubr.f32.mxu0 0.0
        %3972 = vmatmul.mubr.f32.gmra.mxu0 %v3905
        %v3973 = vpop.f32.mrf.mxu0
        %v3974 = vadd.f32 %v3901, %v3973
        %v3975 = vpop.f32.mrf.mxu0
        %3976 = vdwg.mxu0
        %vm3977 = vcmask 97344
        %v3978 = vsel %vm3977, %v2611, -inf
        %3979 = vmax.xlane.f32.xlu0 %v3978
        %v3980 = vpop.xlane.xlu0 %3979
        %v3981 = vsub.f32 %v2611, %v3980
        %v3982 = vmul.f32 %v3981, 1.442695
        %v3983 = vpow.pop %v3982
        %3985 = vrot.lane.b32.xlu0 %v3983, 120
        %v3986 = vpop.permute.xlu0 %3985
        %v3988 = vsel %vm2621, %v3986, 0.0
        %3989 = vadd.xlane.f32.xlu0 %v3988
        %v3990 = vpop.xlane.xlu0 %3989
        %v3991 = vrcp.pop %v3990
        %v3992 = vmul.f32 %v3983, %v3991
        %3993 = vrot.lane.b32.xlu0 %v2530, 112
        %v3994 = vpop.permute.xlu0 %3993
        %v3996 = vadd.f32 %v2618, %v3994
        %v3997 = vfloor.f32 %v3996
        %v3998 = vsub.f32 %v3996, %v3997
        %v3999 = vsub.f32 1.0, %v3998
        %v4000 = vcvt.f32.s32.to.zero.pseudo %v3997
        %v4001 = vadd.s32 %v4000, 1
        %vm4002 = vcmp.ge.s32.totalorder %v4000, 0
        %vm4003 = vcmp.le.s32.totalorder %v4000, 7
        %vm4004 = vmand %vm4002, %vm4003
        %v4005 = vsel %vm4002, 1, 0
        %4006 = vrot.lane.b32.xlu0 %v4005, 127
        %v4007 = vpop.permute.xlu0 %4006
        %vm4008 = vcmp.ne.s32.totalorder %v4007, 0
        %vm4009 = vmand %vm4004, %vm4008
        %v4010 = vsel %vm4003, 1, 0
        %4011 = vrot.lane.b32.xlu0 %v4010, 127
        %v4012 = vpop.permute.xlu0 %4011
        %vm4013 = vcmp.ne.s32.totalorder %v4012, 0
        %vm4014 = vmand %vm4009, %vm4013
        %v4015 = vmul.u32 %v4000, 8
        %4016 = vrot.lane.b32.xlu0 %v4000, 1
        %v4017 = vpop.permute.xlu0 %4016
        %v4018 = vadd.s32 %v4015, %v4017
        %4019 = vrot.lane.b32.xlu0 %v4018, 127
        %v4020 = vpop.permute.xlu0 %4019
        %v4021 = vsel %vm4014, %v4020, 4294967295
        %4022 = vset.pattern.permute.xlu0 0
        %4023 = vperm.xlu0 %4022, %v4021
        %v4024 = vpop.permute.xlu0 %4023
        %vm4025 = vcmp.eq.s32.totalorder %v2616, %v4024
        %4027 = vrot.lane.b32.xlu0 %v3999, 7
        %v4028 = vpop.permute.xlu0 %4027
        %v4030 = vmul.f32 %v3992, %v4028
        %4031 = vrot.lane.b32.xlu0 %v3999, 8
        %v4032 = vpop.permute.xlu0 %4031
        %v4034 = vmul.f32 %v4030, %v4032
        %4036 = vset.pattern.permute.xlu0 8
        %4037 = vperm.xlu0 %4036, %v4034
        %v4038 = vpop.permute.xlu0 %4037
        %v4040 = vsel %vm4025, %v4038, 0.0
        %v4041 = vadd.f32 %v4040, 0.0
        %vm4042 = vcmp.ge.s32.totalorder %v4001, 0
        %vm4043 = vcmp.le.s32.totalorder %v4001, 7
        %vm4044 = vmand %vm4042, %vm4043
        %vm4045 = vmand %vm4044, %vm4008
        %vm4046 = vmand %vm4045, %vm4013
        %4047 = vrot.lane.b32.xlu0 %v4001, 1
        %v4048 = vpop.permute.xlu0 %4047
        %v4049 = vadd.s32 %v4015, %v4048
        %4050 = vrot.lane.b32.xlu0 %v4049, 127
        %v4051 = vpop.permute.xlu0 %4050
        %v4052 = vsel %vm4046, %v4051, 4294967295
        %4053 = vset.pattern.permute.xlu0 0
        %4054 = vperm.xlu0 %4053, %v4052
        %v4055 = vpop.permute.xlu0 %4054
        %vm4056 = vcmp.eq.s32.totalorder %v2616, %v4055
        %4058 = vrot.lane.b32.xlu0 %v3998, 8
        %v4059 = vpop.permute.xlu0 %4058
        %v4061 = vmul.f32 %v4030, %v4059
        %4063 = vset.pattern.permute.xlu0 8
        %4064 = vperm.xlu0 %4063, %v4061
        %v4065 = vpop.permute.xlu0 %4064
        %v4067 = vsel %vm4056, %v4065, 0.0
        %v4068 = vadd.f32 %v4041, %v4067
        %v4069 = vsel %vm4042, 1, 0
        %4070 = vrot.lane.b32.xlu0 %v4069, 127
        %v4071 = vpop.permute.xlu0 %4070
        %vm4072 = vcmp.ne.s32.totalorder %v4071, 0
        %vm4073 = vmand %vm4004, %vm4072
        %v4074 = vsel %vm4043, 1, 0
        %4075 = vrot.lane.b32.xlu0 %v4074, 127
        %v4076 = vpop.permute.xlu0 %4075
        %vm4077 = vcmp.ne.s32.totalorder %v4076, 0
        %vm4078 = vmand %vm4073, %vm4077
        %v4079 = vmul.u32 %v4001, 8
        %v4080 = vadd.s32 %v4079, %v4017
        %4081 = vrot.lane.b32.xlu0 %v4080, 127
        %v4082 = vpop.permute.xlu0 %4081
        %v4083 = vsel %vm4078, %v4082, 4294967295
        %4084 = vset.pattern.permute.xlu0 0
        %4085 = vperm.xlu0 %4084, %v4083
        %v4086 = vpop.permute.xlu0 %4085
        %vm4087 = vcmp.eq.s32.totalorder %v2616, %v4086
        %4088 = vrot.lane.b32.xlu0 %v3998, 7
        %v4089 = vpop.permute.xlu0 %4088
        %v4091 = vmul.f32 %v3992, %v4089
        %v4092 = vmul.f32 %v4091, %v4032
        %4094 = vset.pattern.permute.xlu0 8
        %4095 = vperm.xlu0 %4094, %v4092
        %v4096 = vpop.permute.xlu0 %4095
        %v4098 = vsel %vm4087, %v4096, 0.0
        %v4099 = vadd.f32 %v4068, %v4098
        %vm4100 = vmand %vm4044, %vm4072
        %vm4101 = vmand %vm4100, %vm4077
        %v4102 = vadd.s32 %v4079, %v4048
        %4103 = vrot.lane.b32.xlu0 %v4102, 127
        %v4104 = vpop.permute.xlu0 %4103
        %v4105 = vsel %vm4101, %v4104, 4294967295
        %4106 = vset.pattern.permute.xlu0 0
        %4107 = vperm.xlu0 %4106, %v4105
        %v4108 = vpop.permute.xlu0 %4107
        %vm4109 = vcmp.eq.s32.totalorder %v2616, %v4108
        %v4110 = vmul.f32 %v4091, %v4059
        %4112 = vset.pattern.permute.xlu0 8
        %4113 = vperm.xlu0 %4112, %v4110
        %v4114 = vpop.permute.xlu0 %4113
        %v4116 = vsel %vm4109, %v4114, 0.0
        %v4117 = vadd.f32 %v4099, %v4116
        %4118 = vrot.lane.b32.xlu0 %v2530, 110
        %v4119 = vpop.permute.xlu0 %4118
        %v4121 = vadd.f32 %v2618, %v4119
        %v4122 = vfloor.f32 %v4121
        %v4123 = vsub.f32 %v4121, %v4122
        %v4124 = vsub.f32 1.0, %v4123
        %v4125 = vcvt.f32.s32.to.zero.pseudo %v4122
        %v4126 = vadd.s32 %v4125, 1
        %vm4127 = vcmp.ge.s32.totalorder %v4125, 0
        %vm4128 = vcmp.le.s32.totalorder %v4125, 7
        %vm4129 = vmand %vm4127, %vm4128
        %v4130 = vsel %vm4127, 1, 0
        %4131 = vrot.lane.b32.xlu0 %v4130, 127
        %v4132 = vpop.permute.xlu0 %4131
        %vm4133 = vcmp.ne.s32.totalorder %v4132, 0
        %vm4134 = vmand %vm4129, %vm4133
        %v4135 = vsel %vm4128, 1, 0
        %4136 = vrot.lane.b32.xlu0 %v4135, 127
        %v4137 = vpop.permute.xlu0 %4136
        %vm4138 = vcmp.ne.s32.totalorder %v4137, 0
        %vm4139 = vmand %vm4134, %vm4138
        %v4140 = vmul.u32 %v4125, 8
        %4141 = vrot.lane.b32.xlu0 %v4125, 1
        %v4142 = vpop.permute.xlu0 %4141
        %v4143 = vadd.s32 %v4140, %v4142
        %4144 = vrot.lane.b32.xlu0 %v4143, 127
        %v4145 = vpop.permute.xlu0 %4144
        %v4146 = vsel %vm4139, %v4145, 4294967295
        %4147 = vset.pattern.permute.xlu0 0
        %4148 = vperm.xlu0 %4147, %v4146
        %v4149 = vpop.permute.xlu0 %4148
        %vm4150 = vcmp.eq.s32.totalorder %v2616, %v4149
        %4152 = vrot.lane.b32.xlu0 %v4124, 8
        %v4153 = vpop.permute.xlu0 %4152
        %v4155 = vmul.f32 %v3992, %v4153
        %4156 = vrot.lane.b32.xlu0 %v4124, 9
        %v4157 = vpop.permute.xlu0 %4156
        %v4159 = vmul.f32 %v4155, %v4157
        %4161 = vset.pattern.permute.xlu0 9
        %4162 = vperm.xlu0 %4161, %v4159
        %v4163 = vpop.permute.xlu0 %4162
        %v4165 = vsel %vm4150, %v4163, 0.0
        %v4166 = vadd.f32 %v4117, %v4165
        %vm4167 = vcmp.ge.s32.totalorder %v4126, 0
        %vm4168 = vcmp.le.s32.totalorder %v4126, 7
        %vm4169 = vmand %vm4167, %vm4168
        %vm4170 = vmand %vm4169, %vm4133
        %vm4171 = vmand %vm4170, %vm4138
        %4172 = vrot.lane.b32.xlu0 %v4126, 1
        %v4173 = vpop.permute.xlu0 %4172
        %v4174 = vadd.s32 %v4140, %v4173
        %4175 = vrot.lane.b32.xlu0 %v4174, 127
        %v4176 = vpop.permute.xlu0 %4175
        %v4177 = vsel %vm4171, %v4176, 4294967295
        %4178 = vset.pattern.permute.xlu0 0
        %4179 = vperm.xlu0 %4178, %v4177
        %v4180 = vpop.permute.xlu0 %4179
        %vm4181 = vcmp.eq.s32.totalorder %v2616, %v4180
        %4183 = vrot.lane.b32.xlu0 %v4123, 9
        %v4184 = vpop.permute.xlu0 %4183
        %v4186 = vmul.f32 %v4155, %v4184
        %4188 = vset.pattern.permute.xlu0 9
        %4189 = vperm.xlu0 %4188, %v4186
        %v4190 = vpop.permute.xlu0 %4189
        %v4192 = vsel %vm4181, %v4190, 0.0
        %v4193 = vadd.f32 %v4166, %v4192
        %v4194 = vsel %vm4167, 1, 0
        %4195 = vrot.lane.b32.xlu0 %v4194, 127
        %v4196 = vpop.permute.xlu0 %4195
        %vm4197 = vcmp.ne.s32.totalorder %v4196, 0
        %vm4198 = vmand %vm4129, %vm4197
        %v4199 = vsel %vm4168, 1, 0
        %4200 = vrot.lane.b32.xlu0 %v4199, 127
        %v4201 = vpop.permute.xlu0 %4200
        %vm4202 = vcmp.ne.s32.totalorder %v4201, 0
        %vm4203 = vmand %vm4198, %vm4202
        %v4204 = vmul.u32 %v4126, 8
        %v4205 = vadd.s32 %v4204, %v4142
        %4206 = vrot.lane.b32.xlu0 %v4205, 127
        %v4207 = vpop.permute.xlu0 %4206
        %v4208 = vsel %vm4203, %v4207, 4294967295
        %4209 = vset.pattern.permute.xlu0 0
        %4210 = vperm.xlu0 %4209, %v4208
        %v4211 = vpop.permute.xlu0 %4210
        %vm4212 = vcmp.eq.s32.totalorder %v2616, %v4211
        %4213 = vrot.lane.b32.xlu0 %v4123, 8
        %v4214 = vpop.permute.xlu0 %4213
        %v4216 = vmul.f32 %v3992, %v4214
        %v4217 = vmul.f32 %v4216, %v4157
        %4219 = vset.pattern.permute.xlu0 9
        %4220 = vperm.xlu0 %4219, %v4217
        %v4221 = vpop.permute.xlu0 %4220
        %v4223 = vsel %vm4212, %v4221, 0.0
        %v4224 = vadd.f32 %v4193, %v4223
        %vm4225 = vmand %vm4169, %vm4197
        %vm4226 = vmand %vm4225, %vm4202
        %v4227 = vadd.s32 %v4204, %v4173
        %4228 = vrot.lane.b32.xlu0 %v4227, 127
        %v4229 = vpop.permute.xlu0 %4228
        %v4230 = vsel %vm4226, %v4229, 4294967295
        %4231 = vset.pattern.permute.xlu0 0
        %4232 = vperm.xlu0 %4231, %v4230
        %v4233 = vpop.permute.xlu0 %4232
        %vm4234 = vcmp.eq.s32.totalorder %v2616, %v4233
        %v4235 = vmul.f32 %v4216, %v4184
        %4237 = vset.pattern.permute.xlu0 9
        %4238 = vperm.xlu0 %4237, %v4235
        %v4239 = vpop.permute.xlu0 %4238
        %v4241 = vsel %vm4234, %v4239, 0.0
        %v4242 = vadd.f32 %v4224, %v4241
        %v4243 = vadd.f32 %v2620, %v4119
        %v4244 = vfloor.f32 %v4243
        %v4245 = vsub.f32 %v4243, %v4244
        %v4246 = vsub.f32 1.0, %v4245
        %v4247 = vcvt.f32.s32.to.zero.pseudo %v4244
        %v4248 = vadd.s32 %v4247, 1
        %vm4249 = vcmp.ge.s32.totalorder %v4247, 0
        %vm4250 = vcmp.le.s32.totalorder %v4247, 3
        %vm4251 = vmand %vm4249, %vm4250
        %v4252 = vsel %vm4249, 1, 0
        %4253 = vrot.lane.b32.xlu0 %v4252, 127
        %v4254 = vpop.permute.xlu0 %4253
        %vm4255 = vcmp.ne.s32.totalorder %v4254, 0
        %vm4256 = vmand %vm4251, %vm4255
        %v4257 = vsel %vm4250, 1, 0
        %4258 = vrot.lane.b32.xlu0 %v4257, 127
        %v4259 = vpop.permute.xlu0 %4258
        %vm4260 = vcmp.ne.s32.totalorder %v4259, 0
        %vm4261 = vmand %vm4256, %vm4260
        %v4262 = vmul.u32 %v4247, 4
        %v4263 = vadd.s32 %v4262, 64
        %4264 = vrot.lane.b32.xlu0 %v4247, 1
        %v4265 = vpop.permute.xlu0 %4264
        %v4266 = vadd.s32 %v4263, %v4265
        %4267 = vrot.lane.b32.xlu0 %v4266, 127
        %v4268 = vpop.permute.xlu0 %4267
        %v4269 = vsel %vm4261, %v4268, 4294967295
        %4270 = vset.pattern.permute.xlu0 2
        %4271 = vperm.xlu0 %4270, %v4269
        %v4272 = vpop.permute.xlu0 %4271
        %vm4273 = vcmp.eq.s32.totalorder %v2616, %v4272
        %4275 = vrot.lane.b32.xlu0 %v4246, 7
        %v4276 = vpop.permute.xlu0 %4275
        %v4278 = vmul.f32 %v3992, %v4276
        %4279 = vrot.lane.b32.xlu0 %v4246, 8
        %v4280 = vpop.permute.xlu0 %4279
        %v4282 = vmul.f32 %v4278, %v4280
        %4284 = vset.pattern.permute.xlu0 10
        %4285 = vperm.xlu0 %4284, %v4282
        %v4286 = vpop.permute.xlu0 %4285
        %v4288 = vsel %vm4273, %v4286, 0.0
        %v4289 = vadd.f32 %v4242, %v4288
        %vm4290 = vcmp.ge.s32.totalorder %v4248, 0
        %vm4291 = vcmp.le.s32.totalorder %v4248, 3
        %vm4292 = vmand %vm4290, %vm4291
        %vm4293 = vmand %vm4292, %vm4255
        %vm4294 = vmand %vm4293, %vm4260
        %4295 = vrot.lane.b32.xlu0 %v4248, 1
        %v4296 = vpop.permute.xlu0 %4295
        %v4297 = vadd.s32 %v4263, %v4296
        %4298 = vrot.lane.b32.xlu0 %v4297, 127
        %v4299 = vpop.permute.xlu0 %4298
        %v4300 = vsel %vm4294, %v4299, 4294967295
        %4301 = vset.pattern.permute.xlu0 2
        %4302 = vperm.xlu0 %4301, %v4300
        %v4303 = vpop.permute.xlu0 %4302
        %vm4304 = vcmp.eq.s32.totalorder %v2616, %v4303
        %4306 = vrot.lane.b32.xlu0 %v4245, 8
        %v4307 = vpop.permute.xlu0 %4306
        %v4309 = vmul.f32 %v4278, %v4307
        %4311 = vset.pattern.permute.xlu0 10
        %4312 = vperm.xlu0 %4311, %v4309
        %v4313 = vpop.permute.xlu0 %4312
        %v4315 = vsel %vm4304, %v4313, 0.0
        %v4316 = vadd.f32 %v4289, %v4315
        %v4317 = vsel %vm4290, 1, 0
        %4318 = vrot.lane.b32.xlu0 %v4317, 127
        %v4319 = vpop.permute.xlu0 %4318
        %vm4320 = vcmp.ne.s32.totalorder %v4319, 0
        %vm4321 = vmand %vm4251, %vm4320
        %v4322 = vsel %vm4291, 1, 0
        %4323 = vrot.lane.b32.xlu0 %v4322, 127
        %v4324 = vpop.permute.xlu0 %4323
        %vm4325 = vcmp.ne.s32.totalorder %v4324, 0
        %vm4326 = vmand %vm4321, %vm4325
        %v4327 = vmul.u32 %v4248, 4
        %v4328 = vadd.s32 %v4327, 64
        %v4329 = vadd.s32 %v4328, %v4265
        %4330 = vrot.lane.b32.xlu0 %v4329, 127
        %v4331 = vpop.permute.xlu0 %4330
        %v4332 = vsel %vm4326, %v4331, 4294967295
        %4333 = vset.pattern.permute.xlu0 2
        %4334 = vperm.xlu0 %4333, %v4332
        %v4335 = vpop.permute.xlu0 %4334
        %vm4336 = vcmp.eq.s32.totalorder %v2616, %v4335
        %4337 = vrot.lane.b32.xlu0 %v4245, 7
        %v4338 = vpop.permute.xlu0 %4337
        %v4340 = vmul.f32 %v3992, %v4338
        %v4341 = vmul.f32 %v4340, %v4280
        %4343 = vset.pattern.permute.xlu0 10
        %4344 = vperm.xlu0 %4343, %v4341
        %v4345 = vpop.permute.xlu0 %4344
        %v4347 = vsel %vm4336, %v4345, 0.0
        %v4348 = vadd.f32 %v4316, %v4347
        %vm4349 = vmand %vm4292, %vm4320
        %vm4350 = vmand %vm4349, %vm4325
        %v4351 = vadd.s32 %v4328, %v4296
        %4352 = vrot.lane.b32.xlu0 %v4351, 127
        %v4353 = vpop.permute.xlu0 %4352
        %v4354 = vsel %vm4350, %v4353, 4294967295
        %4355 = vset.pattern.permute.xlu0 2
        %4356 = vperm.xlu0 %4355, %v4354
        %v4357 = vpop.permute.xlu0 %4356
        %vm4358 = vcmp.eq.s32.totalorder %v2616, %v4357
        %v4359 = vmul.f32 %v4340, %v4307
        %4361 = vset.pattern.permute.xlu0 10
        %4362 = vperm.xlu0 %4361, %v4359
        %v4363 = vpop.permute.xlu0 %4362
        %v4365 = vsel %vm4358, %v4363, 0.0
        %v4366 = vadd.f32 %v4348, %v4365
        %4367 = vrot.lane.b32.xlu0 %v2530, 108
        %v4368 = vpop.permute.xlu0 %4367
        %v4370 = vadd.f32 %v2620, %v4368
        %v4371 = vfloor.f32 %v4370
        %v4372 = vsub.f32 %v4370, %v4371
        %v4373 = vsub.f32 1.0, %v4372
        %v4374 = vcvt.f32.s32.to.zero.pseudo %v4371
        %v4375 = vadd.s32 %v4374, 1
        %vm4376 = vcmp.ge.s32.totalorder %v4374, 0
        %vm4377 = vcmp.le.s32.totalorder %v4374, 3
        %vm4378 = vmand %vm4376, %vm4377
        %v4379 = vsel %vm4376, 1, 0
        %4380 = vrot.lane.b32.xlu0 %v4379, 127
        %v4381 = vpop.permute.xlu0 %4380
        %vm4382 = vcmp.ne.s32.totalorder %v4381, 0
        %vm4383 = vmand %vm4378, %vm4382
        %v4384 = vsel %vm4377, 1, 0
        %4385 = vrot.lane.b32.xlu0 %v4384, 127
        %v4386 = vpop.permute.xlu0 %4385
        %vm4387 = vcmp.ne.s32.totalorder %v4386, 0
        %vm4388 = vmand %vm4383, %vm4387
        %v4389 = vmul.u32 %v4374, 4
        %v4390 = vadd.s32 %v4389, 64
        %4391 = vrot.lane.b32.xlu0 %v4374, 1
        %v4392 = vpop.permute.xlu0 %4391
        %v4393 = vadd.s32 %v4390, %v4392
        %4394 = vrot.lane.b32.xlu0 %v4393, 127
        %v4395 = vpop.permute.xlu0 %4394
        %v4396 = vsel %vm4388, %v4395, 4294967295
        %4397 = vset.pattern.permute.xlu0 2
        %4398 = vperm.xlu0 %4397, %v4396
        %v4399 = vpop.permute.xlu0 %4398
        %vm4400 = vcmp.eq.s32.totalorder %v2616, %v4399
        %4402 = vrot.lane.b32.xlu0 %v4373, 8
        %v4403 = vpop.permute.xlu0 %4402
        %v4405 = vmul.f32 %v3992, %v4403
        %4406 = vrot.lane.b32.xlu0 %v4373, 9
        %v4407 = vpop.permute.xlu0 %4406
        %v4409 = vmul.f32 %v4405, %v4407
        %4411 = vset.pattern.permute.xlu0 11
        %4412 = vperm.xlu0 %4411, %v4409
        %v4413 = vpop.permute.xlu0 %4412
        %v4415 = vsel %vm4400, %v4413, 0.0
        %v4416 = vadd.f32 %v4366, %v4415
        %vm4417 = vcmp.ge.s32.totalorder %v4375, 0
        %vm4418 = vcmp.le.s32.totalorder %v4375, 3
        %vm4419 = vmand %vm4417, %vm4418
        %vm4420 = vmand %vm4419, %vm4382
        %vm4421 = vmand %vm4420, %vm4387
        %4422 = vrot.lane.b32.xlu0 %v4375, 1
        %v4423 = vpop.permute.xlu0 %4422
        %v4424 = vadd.s32 %v4390, %v4423
        %4425 = vrot.lane.b32.xlu0 %v4424, 127
        %v4426 = vpop.permute.xlu0 %4425
        %v4427 = vsel %vm4421, %v4426, 4294967295
        %4428 = vset.pattern.permute.xlu0 2
        %4429 = vperm.xlu0 %4428, %v4427
        %v4430 = vpop.permute.xlu0 %4429
        %vm4431 = vcmp.eq.s32.totalorder %v2616, %v4430
        %4433 = vrot.lane.b32.xlu0 %v4372, 9
        %v4434 = vpop.permute.xlu0 %4433
        %v4436 = vmul.f32 %v4405, %v4434
        %4438 = vset.pattern.permute.xlu0 11
        %4439 = vperm.xlu0 %4438, %v4436
        %v4440 = vpop.permute.xlu0 %4439
        %v4442 = vsel %vm4431, %v4440, 0.0
        %v4443 = vadd.f32 %v4416, %v4442
        %v4444 = vsel %vm4417, 1, 0
        %4445 = vrot.lane.b32.xlu0 %v4444, 127
        %v4446 = vpop.permute.xlu0 %4445
        %vm4447 = vcmp.ne.s32.totalorder %v4446, 0
        %vm4448 = vmand %vm4378, %vm4447
        %v4449 = vsel %vm4418, 1, 0
        %4450 = vrot.lane.b32.xlu0 %v4449, 127
        %v4451 = vpop.permute.xlu0 %4450
        %vm4452 = vcmp.ne.s32.totalorder %v4451, 0
        %vm4453 = vmand %vm4448, %vm4452
        %v4454 = vmul.u32 %v4375, 4
        %v4455 = vadd.s32 %v4454, 64
        %v4456 = vadd.s32 %v4455, %v4392
        %4457 = vrot.lane.b32.xlu0 %v4456, 127
        %v4458 = vpop.permute.xlu0 %4457
        %v4459 = vsel %vm4453, %v4458, 4294967295
        %4460 = vset.pattern.permute.xlu0 2
        %4461 = vperm.xlu0 %4460, %v4459
        %v4462 = vpop.permute.xlu0 %4461
        %vm4463 = vcmp.eq.s32.totalorder %v2616, %v4462
        %4464 = vrot.lane.b32.xlu0 %v4372, 8
        %v4465 = vpop.permute.xlu0 %4464
        %v4467 = vmul.f32 %v3992, %v4465
        %v4468 = vmul.f32 %v4467, %v4407
        %4470 = vset.pattern.permute.xlu0 11
        %4471 = vperm.xlu0 %4470, %v4468
        %v4472 = vpop.permute.xlu0 %4471
        %v4474 = vsel %vm4463, %v4472, 0.0
        %v4475 = vadd.f32 %v4443, %v4474
        %vm4476 = vmand %vm4419, %vm4447
        %vm4477 = vmand %vm4476, %vm4452
        %v4478 = vadd.s32 %v4455, %v4423
        %4479 = vrot.lane.b32.xlu0 %v4478, 127
        %v4480 = vpop.permute.xlu0 %4479
        %v4481 = vsel %vm4477, %v4480, 4294967295
        %4482 = vset.pattern.permute.xlu0 2
        %4483 = vperm.xlu0 %4482, %v4481
        %v4484 = vpop.permute.xlu0 %4483
        %vm4485 = vcmp.eq.s32.totalorder %v2616, %v4484
        %v4486 = vmul.f32 %v4467, %v4434
        %4488 = vset.pattern.permute.xlu0 11
        %4489 = vperm.xlu0 %4488, %v4486
        %v4490 = vpop.permute.xlu0 %4489
        %v4492 = vsel %vm4485, %v4490, 0.0
        %v4493 = vadd.f32 %v4475, %v4492
        %4494 = vrot.lane.b32.xlu0 %v2371, 112
        %v4495 = vpop.permute.xlu0 %4494
        %4496 = vrot.lane.b32.xlu0 %v2376, 112
        %v4497 = vpop.permute.xlu0 %4496
        %4498 = vrot.lane.b32.xlu0 %v2381, 112
        %v4499 = vpop.permute.xlu0 %4498
        %4500 = vrot.lane.b32.xlu0 %v2386, 112
        %v4501 = vpop.permute.xlu0 %4500
        %4502 = vrot.lane.b32.xlu0 %v2391, 112
        %v4503 = vpop.permute.xlu0 %4502
        %4504 = vrot.lane.b32.xlu0 %v2396, 112
        %v4505 = vpop.permute.xlu0 %4504
        %4506 = vrot.lane.b32.xlu0 %v2401, 112
        %v4507 = vpop.permute.xlu0 %4506
        %4508 = vrot.lane.b32.xlu0 %v2406, 112
        %v4509 = vpop.permute.xlu0 %4508
        %4510 = vrot.lane.b32.xlu0 %v2411, 112
        %v4511 = vpop.permute.xlu0 %4510
        %4512 = vrot.lane.b32.xlu0 %v2416, 112
        %v4513 = vpop.permute.xlu0 %4512
        %4514 = vrot.lane.b32.xlu0 %v2421, 112
        %v4515 = vpop.permute.xlu0 %4514
        %4516 = vrot.lane.b32.xlu0 %v2426, 112
        %v4517 = vpop.permute.xlu0 %4516
        %4518 = vrot.lane.b32.xlu0 %v2431, 112
        %v4519 = vpop.permute.xlu0 %4518
        %4520 = vrot.lane.b32.xlu0 %v2436, 112
        %v4521 = vpop.permute.xlu0 %4520
        %4522 = vrot.lane.b32.xlu0 %v2441, 112
        %v4523 = vpop.permute.xlu0 %4522
        %4524 = vrot.lane.b32.xlu0 %v2446, 112
        %v4525 = vpop.permute.xlu0 %4524
        %4542 = vmatprep.subr.mxu0 0.0
        %4543 = vmatpush1.msra.mxu0 %v4525
        %4544 = vmatprep.subr.mxu0 0.0
        %4545 = vmatpush1.msra.mxu0 %v4523
        %4546 = vmatprep.subr.mxu0 0.0
        %4547 = vmatpush1.msra.mxu0 %v4521
        %4548 = vmatprep.subr.mxu0 0.0
        %4549 = vmatpush1.msra.mxu0 %v4519
        %4550 = vmatprep.subr.mxu0 0.0
        %4551 = vmatpush1.msra.mxu0 %v4517
        %4552 = vmatprep.subr.mxu0 0.0
        %4553 = vmatpush1.msra.mxu0 %v4515
        %4554 = vmatprep.subr.mxu0 0.0
        %4555 = vmatpush1.msra.mxu0 %v4513
        %4556 = vmatprep.subr.mxu0 0.0
        %4557 = vmatpush1.msra.mxu0 %v4511
        %4558 = vmatprep.subr.mxu0 0.0
        %4559 = vmatpush1.msra.mxu0 %v4509
        %4560 = vmatprep.subr.mxu0 0.0
        %4561 = vmatpush1.msra.mxu0 %v4507
        %4562 = vmatprep.subr.mxu0 0.0
        %4563 = vmatpush1.msra.mxu0 %v4505
        %4564 = vmatprep.subr.mxu0 0.0
        %4565 = vmatpush1.msra.mxu0 %v4503
        %4566 = vmatprep.subr.mxu0 0.0
        %4567 = vmatpush1.msra.mxu0 %v4501
        %4568 = vmatprep.subr.mxu0 0.0
        %4569 = vmatpush1.msra.mxu0 %v4499
        %4570 = vmatprep.subr.mxu0 0.0
        %4571 = vmatpush1.msra.mxu0 %v4497
        %4572 = vmatprep.subr.mxu0 0.0
        %4573 = vmatpush1.msra.mxu0 %v4495
        %4574 = vmatprep.subr.mxu0 0.0
        %4575 = vmatpush2.msra.mxu0 0.0
        %4576 = vmatprep.subr.mxu0 0.0
        %4577 = vmatpush2.msra.mxu0 0.0
        %4578 = vmatprep.subr.mxu0 0.0
        %4579 = vmatpush2.msra.mxu0 0.0
        %4580 = vmatprep.subr.mxu0 0.0
        %4581 = vmatpush2.msra.mxu0 0.0
        %4582 = vmatprep.subr.mxu0 0.0
        %4583 = vmatpush2.msra.mxu0 0.0
        %4584 = vmatprep.subr.mxu0 0.0
        %4585 = vmatpush2.msra.mxu0 0.0
        %4586 = vmatprep.subr.mxu0 0.0
        %4587 = vmatpush2.msra.mxu0 0.0
        %4588 = vmatprep.subr.mxu0 0.0
        %4589 = vmatpush2.msra.mxu0 0.0
        %4590 = vmatprep.subr.mxu0 0.0
        %4591 = vmatpush2.msra.mxu0 0.0
        %4592 = vmatprep.subr.mxu0 0.0
        %4593 = vmatpush2.msra.mxu0 0.0
        %4594 = vmatprep.subr.mxu0 0.0
        %4595 = vmatpush2.msra.mxu0 0.0
        %4596 = vmatprep.subr.mxu0 0.0
        %4597 = vmatpush2.msra.mxu0 0.0
        %4598 = vmatprep.subr.mxu0 0.0
        %4599 = vmatpush2.msra.mxu0 0.0
        %4600 = vmatprep.subr.mxu0 0.0
        %4601 = vmatpush2.msra.mxu0 0.0
        %4602 = vmatprep.subr.mxu0 0.0
        %4603 = vmatpush2.msra.mxu0 0.0
        %4604 = vmatprep.subr.mxu0 0.0
        %4605 = vmatpush2.msra.mxu0 0.0
        %4606 = vmatprep.mubr.f32.mxu0 0.0
        %4607 = vmatmul.mubr.f32.gmra.mxu0 %v4493
        %v4608 = vpop.f32.mrf.mxu0
        %v4609 = vadd.f32 0.0, %v4608
        %v4610 = vpop.f32.mrf.mxu0
        %4611 = vdwg.mxu0
        %v4612 = vld [vmem:[%s41 + $0x10] sm:$0xff]
        %v4614 = vsel %vm1234, %v4609, 0
        %4616 = vmatprep.subr.mxu0 0.0
        %4617 = vmatpush1.msra.mxu0 0.0
        %4618 = vmatprep.subr.mxu0 0.0
        %4619 = vmatpush1.msra.mxu0 0.0
        %4620 = vmatprep.subr.mxu0 0.0
        %4621 = vmatpush1.msra.mxu0 0.0
        %4622 = vmatprep.subr.mxu0 0.0
        %4623 = vmatpush1.msra.mxu0 0.0
        %4624 = vmatprep.subr.mxu0 0.0
        %4625 = vmatpush1.msra.mxu0 0.0
        %4626 = vmatprep.subr.mxu0 0.0
        %4627 = vmatpush1.msra.mxu0 0.0
        %4628 = vmatprep.subr.mxu0 0.0
        %4629 = vmatpush1.msra.mxu0 0.0
        %4630 = vmatprep.subr.mxu0 0.0
        %4631 = vmatpush1.msra.mxu0 0.0
        %4632 = vmatprep.subr.mxu0 0.0
        %4633 = vmatpush1.msra.mxu0 0.0
        %4634 = vmatprep.subr.mxu0 0.0
        %4635 = vmatpush1.msra.mxu0 0.0
        %4636 = vmatprep.subr.mxu0 0.0
        %4637 = vmatpush1.msra.mxu0 0.0
        %4638 = vmatprep.subr.mxu0 0.0
        %4639 = vmatpush1.msra.mxu0 0.0
        %4640 = vmatprep.subr.mxu0 0.0
        %4641 = vmatpush1.msra.mxu0 0.0
        %4642 = vmatprep.subr.mxu0 0.0
        %4643 = vmatpush1.msra.mxu0 0.0
        %4644 = vmatprep.subr.mxu0 0.0
        %4645 = vmatpush1.msra.mxu0 0.0
        %4646 = vmatprep.subr.mxu0 0.0
        %4647 = vmatpush1.msra.mxu0 %v4612
        %4648 = vmatprep.subr.mxu0 0.0
        %4649 = vmatpush2.msra.mxu0 0.0
        %4650 = vmatprep.subr.mxu0 0.0
        %4651 = vmatpush2.msra.mxu0 0.0
        %4652 = vmatprep.subr.mxu0 0.0
        %4653 = vmatpush2.msra.mxu0 0.0
        %4654 = vmatprep.subr.mxu0 0.0
        %4655 = vmatpush2.msra.mxu0 0.0
        %4656 = vmatprep.subr.mxu0 0.0
        %4657 = vmatpush2.msra.mxu0 0.0
        %4658 = vmatprep.subr.mxu0 0.0
        %4659 = vmatpush2.msra.mxu0 0.0
        %4660 = vmatprep.subr.mxu0 0.0
        %4661 = vmatpush2.msra.mxu0 0.0
        %4662 = vmatprep.subr.mxu0 0.0
        %4663 = vmatpush2.msra.mxu0 0.0
        %4664 = vmatprep.subr.mxu0 0.0
        %4665 = vmatpush2.msra.mxu0 0.0
        %4666 = vmatprep.subr.mxu0 0.0
        %4667 = vmatpush2.msra.mxu0 0.0
        %4668 = vmatprep.subr.mxu0 0.0
        %4669 = vmatpush2.msra.mxu0 0.0
        %4670 = vmatprep.subr.mxu0 0.0
        %4671 = vmatpush2.msra.mxu0 0.0
        %4672 = vmatprep.subr.mxu0 0.0
        %4673 = vmatpush2.msra.mxu0 0.0
        %4674 = vmatprep.subr.mxu0 0.0
        %4675 = vmatpush2.msra.mxu0 0.0
        %4676 = vmatprep.subr.mxu0 0.0
        %4677 = vmatpush2.msra.mxu0 0.0
        %4678 = vmatprep.subr.mxu0 0.0
        %4679 = vmatpush2.msra.mxu0 0.0
        %4680 = vmatprep.mubr.f32.mxu0 0.0
        %4681 = vmatmul.mubr.f32.gmra.mxu0 %v4614
        %v4682 = vpop.f32.mrf.mxu0
        %v4683 = vadd.f32 0.0, %v4682
        %v4684 = vpop.f32.mrf.mxu0
        %4685 = vdwg.mxu0
        %v4686 = vadd.f32 %v3974, %v4683
        %vm4687 = vcmask 130144
        %v4688 = vsel %vm4687, %v2611, -inf
        %4689 = vmax.xlane.f32.xlu0 %v4688
        %v4690 = vpop.xlane.xlu0 %4689
        %v4691 = vsub.f32 %v2611, %v4690
        %v4692 = vmul.f32 %v4691, 1.442695
        %v4693 = vpow.pop %v4692
        %4695 = vrot.lane.b32.xlu0 %v4693, 116
        %v4696 = vpop.permute.xlu0 %4695
        %v4698 = vsel %vm2621, %v4696, 0.0
        %4699 = vadd.xlane.f32.xlu0 %v4698
        %v4700 = vpop.xlane.xlu0 %4699
        %v4701 = vrcp.pop %v4700
        %v4702 = vmul.f32 %v4693, %v4701
        %4703 = vrot.lane.b32.xlu0 %v2530, 104
        %v4704 = vpop.permute.xlu0 %4703
        %v4706 = vadd.f32 %v2618, %v4704
        %v4707 = vfloor.f32 %v4706
        %v4708 = vsub.f32 %v4706, %v4707
        %v4709 = vsub.f32 1.0, %v4708
        %v4710 = vcvt.f32.s32.to.zero.pseudo %v4707
        %v4711 = vadd.s32 %v4710, 1
        %vm4712 = vcmp.ge.s32.totalorder %v4710, 0
        %vm4713 = vcmp.le.s32.totalorder %v4710, 7
        %vm4714 = vmand %vm4712, %vm4713
        %v4715 = vsel %vm4712, 1, 0
        %4716 = vrot.lane.b32.xlu0 %v4715, 127
        %v4717 = vpop.permute.xlu0 %4716
        %vm4718 = vcmp.ne.s32.totalorder %v4717, 0
        %vm4719 = vmand %vm4714, %vm4718
        %v4720 = vsel %vm4713, 1, 0
        %4721 = vrot.lane.b32.xlu0 %v4720, 127
        %v4722 = vpop.permute.xlu0 %4721
        %vm4723 = vcmp.ne.s32.totalorder %v4722, 0
        %vm4724 = vmand %vm4719, %vm4723
        %v4725 = vmul.u32 %v4710, 8
        %4726 = vrot.lane.b32.xlu0 %v4710, 1
        %v4727 = vpop.permute.xlu0 %4726
        %v4728 = vadd.s32 %v4725, %v4727
        %4729 = vrot.lane.b32.xlu0 %v4728, 127
        %v4730 = vpop.permute.xlu0 %4729
        %v4731 = vsel %vm4724, %v4730, 4294967295
        %4732 = vset.pattern.permute.xlu0 0
        %4733 = vperm.xlu0 %4732, %v4731
        %v4734 = vpop.permute.xlu0 %4733
        %vm4735 = vcmp.eq.s32.totalorder %v2616, %v4734
        %4737 = vrot.lane.b32.xlu0 %v4709, 11
        %v4738 = vpop.permute.xlu0 %4737
        %v4740 = vmul.f32 %v4702, %v4738
        %4741 = vrot.lane.b32.xlu0 %v4709, 12
        %v4742 = vpop.permute.xlu0 %4741
        %v4744 = vmul.f32 %v4740, %v4742
        %4746 = vset.pattern.permute.xlu0 12
        %4747 = vperm.xlu0 %4746, %v4744
        %v4748 = vpop.permute.xlu0 %4747
        %v4750 = vsel %vm4735, %v4748, 0.0
        %v4751 = vadd.f32 %v4750, 0.0
        %vm4752 = vcmp.ge.s32.totalorder %v4711, 0
        %vm4753 = vcmp.le.s32.totalorder %v4711, 7
        %vm4754 = vmand %vm4752, %vm4753
        %vm4755 = vmand %vm4754, %vm4718
        %vm4756 = vmand %vm4755, %vm4723
        %4757 = vrot.lane.b32.xlu0 %v4711, 1
        %v4758 = vpop.permute.xlu0 %4757
        %v4759 = vadd.s32 %v4725, %v4758
        %4760 = vrot.lane.b32.xlu0 %v4759, 127
        %v4761 = vpop.permute.xlu0 %4760
        %v4762 = vsel %vm4756, %v4761, 4294967295
        %4763 = vset.pattern.permute.xlu0 0
        %4764 = vperm.xlu0 %4763, %v4762
        %v4765 = vpop.permute.xlu0 %4764
        %vm4766 = vcmp.eq.s32.totalorder %v2616, %v4765
        %4768 = vrot.lane.b32.xlu0 %v4708, 12
        %v4769 = vpop.permute.xlu0 %4768
        %v4771 = vmul.f32 %v4740, %v4769
        %4773 = vset.pattern.permute.xlu0 12
        %4774 = vperm.xlu0 %4773, %v4771
        %v4775 = vpop.permute.xlu0 %4774
        %v4777 = vsel %vm4766, %v4775, 0.0
        %v4778 = vadd.f32 %v4751, %v4777
        %v4779 = vsel %vm4752, 1, 0
        %4780 = vrot.lane.b32.xlu0 %v4779, 127
        %v4781 = vpop.permute.xlu0 %4780
        %vm4782 = vcmp.ne.s32.totalorder %v4781, 0
        %vm4783 = vmand %vm4714, %vm4782
        %v4784 = vsel %vm4753, 1, 0
        %4785 = vrot.lane.b32.xlu0 %v4784, 127
        %v4786 = vpop.permute.xlu0 %4785
        %vm4787 = vcmp.ne.s32.totalorder %v4786, 0
        %vm4788 = vmand %vm4783, %vm4787
        %v4789 = vmul.u32 %v4711, 8
        %v4790 = vadd.s32 %v4789, %v4727
        %4791 = vrot.lane.b32.xlu0 %v4790, 127
        %v4792 = vpop.permute.xlu0 %4791
        %v4793 = vsel %vm4788, %v4792, 4294967295
        %4794 = vset.pattern.permute.xlu0 0
        %4795 = vperm.xlu0 %4794, %v4793
        %v4796 = vpop.permute.xlu0 %4795
        %vm4797 = vcmp.eq.s32.totalorder %v2616, %v4796
        %4798 = vrot.lane.b32.xlu0 %v4708, 11
        %v4799 = vpop.permute.xlu0 %4798
        %v4801 = vmul.f32 %v4702, %v4799
        %v4802 = vmul.f32 %v4801, %v4742
        %4804 = vset.pattern.permute.xlu0 12
        %4805 = vperm.xlu0 %4804, %v4802
        %v4806 = vpop.permute.xlu0 %4805
        %v4808 = vsel %vm4797, %v4806, 0.0
        %v4809 = vadd.f32 %v4778, %v4808
        %vm4810 = vmand %vm4754, %vm4782
        %vm4811 = vmand %vm4810, %vm4787
        %v4812 = vadd.s32 %v4789, %v4758
        %4813 = vrot.lane.b32.xlu0 %v4812, 127
        %v4814 = vpop.permute.xlu0 %4813
        %v4815 = vsel %vm4811, %v4814, 4294967295
        %4816 = vset.pattern.permute.xlu0 0
        %4817 = vperm.xlu0 %4816, %v4815
        %v4818 = vpop.permute.xlu0 %4817
        %vm4819 = vcmp.eq.s32.totalorder %v2616, %v4818
        %v4820 = vmul.f32 %v4801, %v4769
        %4822 = vset.pattern.permute.xlu0 12
        %4823 = vperm.xlu0 %4822, %v4820
        %v4824 = vpop.permute.xlu0 %4823
        %v4826 = vsel %vm4819, %v4824, 0.0
        %v4827 = vadd.f32 %v4809, %v4826
        %4828 = vrot.lane.b32.xlu0 %v2530, 102
        %v4829 = vpop.permute.xlu0 %4828
        %v4831 = vadd.f32 %v2618, %v4829
        %v4832 = vfloor.f32 %v4831
        %v4833 = vsub.f32 %v4831, %v4832
        %v4834 = vsub.f32 1.0, %v4833
        %v4835 = vcvt.f32.s32.to.zero.pseudo %v4832
        %v4836 = vadd.s32 %v4835, 1
        %vm4837 = vcmp.ge.s32.totalorder %v4835, 0
        %vm4838 = vcmp.le.s32.totalorder %v4835, 7
        %vm4839 = vmand %vm4837, %vm4838
        %v4840 = vsel %vm4837, 1, 0
        %4841 = vrot.lane.b32.xlu0 %v4840, 127
        %v4842 = vpop.permute.xlu0 %4841
        %vm4843 = vcmp.ne.s32.totalorder %v4842, 0
        %vm4844 = vmand %vm4839, %vm4843
        %v4845 = vsel %vm4838, 1, 0
        %4846 = vrot.lane.b32.xlu0 %v4845, 127
        %v4847 = vpop.permute.xlu0 %4846
        %vm4848 = vcmp.ne.s32.totalorder %v4847, 0
        %vm4849 = vmand %vm4844, %vm4848
        %v4850 = vmul.u32 %v4835, 8
        %4851 = vrot.lane.b32.xlu0 %v4835, 1
        %v4852 = vpop.permute.xlu0 %4851
        %v4853 = vadd.s32 %v4850, %v4852
        %4854 = vrot.lane.b32.xlu0 %v4853, 127
        %v4855 = vpop.permute.xlu0 %4854
        %v4856 = vsel %vm4849, %v4855, 4294967295
        %4857 = vset.pattern.permute.xlu0 0
        %4858 = vperm.xlu0 %4857, %v4856
        %v4859 = vpop.permute.xlu0 %4858
        %vm4860 = vcmp.eq.s32.totalorder %v2616, %v4859
        %4862 = vrot.lane.b32.xlu0 %v4834, 12
        %v4863 = vpop.permute.xlu0 %4862
        %v4865 = vmul.f32 %v4702, %v4863
        %4866 = vrot.lane.b32.xlu0 %v4834, 13
        %v4867 = vpop.permute.xlu0 %4866
        %v4869 = vmul.f32 %v4865, %v4867
        %4871 = vset.pattern.permute.xlu0 13
        %4872 = vperm.xlu0 %4871, %v4869
        %v4873 = vpop.permute.xlu0 %4872
        %v4875 = vsel %vm4860, %v4873, 0.0
        %v4876 = vadd.f32 %v4827, %v4875
        %vm4877 = vcmp.ge.s32.totalorder %v4836, 0
        %vm4878 = vcmp.le.s32.totalorder %v4836, 7
        %vm4879 = vmand %vm4877, %vm4878
        %vm4880 = vmand %vm4879, %vm4843
        %vm4881 = vmand %vm4880, %vm4848
        %4882 = vrot.lane.b32.xlu0 %v4836, 1
        %v4883 = vpop.permute.xlu0 %4882
        %v4884 = vadd.s32 %v4850, %v4883
        %4885 = vrot.lane.b32.xlu0 %v4884, 127
        %v4886 = vpop.permute.xlu0 %4885
        %v4887 = vsel %vm4881, %v4886, 4294967295
        %4888 = vset.pattern.permute.xlu0 0
        %4889 = vperm.xlu0 %4888, %v4887
        %v4890 = vpop.permute.xlu0 %4889
        %vm4891 = vcmp.eq.s32.totalorder %v2616, %v4890
        %4893 = vrot.lane.b32.xlu0 %v4833, 13
        %v4894 = vpop.permute.xlu0 %4893
        %v4896 = vmul.f32 %v4865, %v4894
        %4898 = vset.pattern.permute.xlu0 13
        %4899 = vperm.xlu0 %4898, %v4896
        %v4900 = vpop.permute.xlu0 %4899
        %v4902 = vsel %vm4891, %v4900, 0.0
        %v4903 = vadd.f32 %v4876, %v4902
        %v4904 = vsel %vm4877, 1, 0
        %4905 = vrot.lane.b32.xlu0 %v4904, 127
        %v4906 = vpop.permute.xlu0 %4905
        %vm4907 = vcmp.ne.s32.totalorder %v4906, 0
        %vm4908 = vmand %vm4839, %vm4907
        %v4909 = vsel %vm4878, 1, 0
        %4910 = vrot.lane.b32.xlu0 %v4909, 127
        %v4911 = vpop.permute.xlu0 %4910
        %vm4912 = vcmp.ne.s32.totalorder %v4911, 0
        %vm4913 = vmand %vm4908, %vm4912
        %v4914 = vmul.u32 %v4836, 8
        %v4915 = vadd.s32 %v4914, %v4852
        %4916 = vrot.lane.b32.xlu0 %v4915, 127
        %v4917 = vpop.permute.xlu0 %4916
        %v4918 = vsel %vm4913, %v4917, 4294967295
        %4919 = vset.pattern.permute.xlu0 0
        %4920 = vperm.xlu0 %4919, %v4918
        %v4921 = vpop.permute.xlu0 %4920
        %vm4922 = vcmp.eq.s32.totalorder %v2616, %v4921
        %4923 = vrot.lane.b32.xlu0 %v4833, 12
        %v4924 = vpop.permute.xlu0 %4923
        %v4926 = vmul.f32 %v4702, %v4924
        %v4927 = vmul.f32 %v4926, %v4867
        %4929 = vset.pattern.permute.xlu0 13
        %4930 = vperm.xlu0 %4929, %v4927
        %v4931 = vpop.permute.xlu0 %4930
        %v4933 = vsel %vm4922, %v4931, 0.0
        %v4934 = vadd.f32 %v4903, %v4933
        %vm4935 = vmand %vm4879, %vm4907
        %vm4936 = vmand %vm4935, %vm4912
        %v4937 = vadd.s32 %v4914, %v4883
        %4938 = vrot.lane.b32.xlu0 %v4937, 127
        %v4939 = vpop.permute.xlu0 %4938
        %v4940 = vsel %vm4936, %v4939, 4294967295
        %4941 = vset.pattern.permute.xlu0 0
        %4942 = vperm.xlu0 %4941, %v4940
        %v4943 = vpop.permute.xlu0 %4942
        %vm4944 = vcmp.eq.s32.totalorder %v2616, %v4943
        %v4945 = vmul.f32 %v4926, %v4894
        %4947 = vset.pattern.permute.xlu0 13
        %4948 = vperm.xlu0 %4947, %v4945
        %v4949 = vpop.permute.xlu0 %4948
        %v4951 = vsel %vm4944, %v4949, 0.0
        %v4952 = vadd.f32 %v4934, %v4951
        %v4953 = vadd.f32 %v2620, %v4829
        %v4954 = vfloor.f32 %v4953
        %v4955 = vsub.f32 %v4953, %v4954
        %v4956 = vsub.f32 1.0, %v4955
        %v4957 = vcvt.f32.s32.to.zero.pseudo %v4954
        %v4958 = vadd.s32 %v4957, 1
        %vm4959 = vcmp.ge.s32.totalorder %v4957, 0
        %vm4960 = vcmp.le.s32.totalorder %v4957, 3
        %vm4961 = vmand %vm4959, %vm4960
        %v4962 = vsel %vm4959, 1, 0
        %4963 = vrot.lane.b32.xlu0 %v4962, 127
        %v4964 = vpop.permute.xlu0 %4963
        %vm4965 = vcmp.ne.s32.totalorder %v4964, 0
        %vm4966 = vmand %vm4961, %vm4965
        %v4967 = vsel %vm4960, 1, 0
        %4968 = vrot.lane.b32.xlu0 %v4967, 127
        %v4969 = vpop.permute.xlu0 %4968
        %vm4970 = vcmp.ne.s32.totalorder %v4969, 0
        %vm4971 = vmand %vm4966, %vm4970
        %v4972 = vmul.u32 %v4957, 4
        %v4973 = vadd.s32 %v4972, 64
        %4974 = vrot.lane.b32.xlu0 %v4957, 1
        %v4975 = vpop.permute.xlu0 %4974
        %v4976 = vadd.s32 %v4973, %v4975
        %4977 = vrot.lane.b32.xlu0 %v4976, 127
        %v4978 = vpop.permute.xlu0 %4977
        %v4979 = vsel %vm4971, %v4978, 4294967295
        %4980 = vset.pattern.permute.xlu0 2
        %4981 = vperm.xlu0 %4980, %v4979
        %v4982 = vpop.permute.xlu0 %4981
        %vm4983 = vcmp.eq.s32.totalorder %v2616, %v4982
        %4985 = vrot.lane.b32.xlu0 %v4956, 11
        %v4986 = vpop.permute.xlu0 %4985
        %v4988 = vmul.f32 %v4702, %v4986
        %4989 = vrot.lane.b32.xlu0 %v4956, 12
        %v4990 = vpop.permute.xlu0 %4989
        %v4992 = vmul.f32 %v4988, %v4990
        %4994 = vset.pattern.permute.xlu0 14
        %4995 = vperm.xlu0 %4994, %v4992
        %v4996 = vpop.permute.xlu0 %4995
        %v4998 = vsel %vm4983, %v4996, 0.0
        %v4999 = vadd.f32 %v4952, %v4998
        %vm5000 = vcmp.ge.s32.totalorder %v4958, 0
        %vm5001 = vcmp.le.s32.totalorder %v4958, 3
        %vm5002 = vmand %vm5000, %vm5001
        %vm5003 = vmand %vm5002, %vm4965
        %vm5004 = vmand %vm5003, %vm4970
        %5005 = vrot.lane.b32.xlu0 %v4958, 1
        %v5006 = vpop.permute.xlu0 %5005
        %v5007 = vadd.s32 %v4973, %v5006
        %5008 = vrot.lane.b32.xlu0 %v5007, 127
        %v5009 = vpop.permute.xlu0 %5008
        %v5010 = vsel %vm5004, %v5009, 4294967295
        %5011 = vset.pattern.permute.xlu0 2
        %5012 = vperm.xlu0 %5011, %v5010
        %v5013 = vpop.permute.xlu0 %5012
        %vm5014 = vcmp.eq.s32.totalorder %v2616, %v5013
        %5016 = vrot.lane.b32.xlu0 %v4955, 12
        %v5017 = vpop.permute.xlu0 %5016
        %v5019 = vmul.f32 %v4988, %v5017
        %5021 = vset.pattern.permute.xlu0 14
        %5022 = vperm.xlu0 %5021, %v5019
        %v5023 = vpop.permute.xlu0 %5022
        %v5025 = vsel %vm5014, %v5023, 0.0
        %v5026 = vadd.f32 %v4999, %v5025
        %v5027 = vsel %vm5000, 1, 0
        %5028 = vrot.lane.b32.xlu0 %v5027, 127
        %v5029 = vpop.permute.xlu0 %5028
        %vm5030 = vcmp.ne.s32.totalorder %v5029, 0
        %vm5031 = vmand %vm4961, %vm5030
        %v5032 = vsel %vm5001, 1, 0
        %5033 = vrot.lane.b32.xlu0 %v5032, 127
        %v5034 = vpop.permute.xlu0 %5033
        %vm5035 = vcmp.ne.s32.totalorder %v5034, 0
        %vm5036 = vmand %vm5031, %vm5035
        %v5037 = vmul.u32 %v4958, 4
        %v5038 = vadd.s32 %v5037, 64
        %v5039 = vadd.s32 %v5038, %v4975
        %5040 = vrot.lane.b32.xlu0 %v5039, 127
        %v5041 = vpop.permute.xlu0 %5040
        %v5042 = vsel %vm5036, %v5041, 4294967295
        %5043 = vset.pattern.permute.xlu0 2
        %5044 = vperm.xlu0 %5043, %v5042
        %v5045 = vpop.permute.xlu0 %5044
        %vm5046 = vcmp.eq.s32.totalorder %v2616, %v5045
        %5047 = vrot.lane.b32.xlu0 %v4955, 11
        %v5048 = vpop.permute.xlu0 %5047
        %v5050 = vmul.f32 %v4702, %v5048
        %v5051 = vmul.f32 %v5050, %v4990
        %5053 = vset.pattern.permute.xlu0 14
        %5054 = vperm.xlu0 %5053, %v5051
        %v5055 = vpop.permute.xlu0 %5054
        %v5057 = vsel %vm5046, %v5055, 0.0
        %v5058 = vadd.f32 %v5026, %v5057
        %vm5059 = vmand %vm5002, %vm5030
        %vm5060 = vmand %vm5059, %vm5035
        %v5061 = vadd.s32 %v5038, %v5006
        %5062 = vrot.lane.b32.xlu0 %v5061, 127
        %v5063 = vpop.permute.xlu0 %5062
        %v5064 = vsel %vm5060, %v5063, 4294967295
        %5065 = vset.pattern.permute.xlu0 2
        %5066 = vperm.xlu0 %5065, %v5064
        %v5067 = vpop.permute.xlu0 %5066
        %vm5068 = vcmp.eq.s32.totalorder %v2616, %v5067
        %v5069 = vmul.f32 %v5050, %v5017
        %5071 = vset.pattern.permute.xlu0 14
        %5072 = vperm.xlu0 %5071, %v5069
        %v5073 = vpop.permute.xlu0 %5072
        %v5075 = vsel %vm5068, %v5073, 0.0
        %v5076 = vadd.f32 %v5058, %v5075
        %5077 = vrot.lane.b32.xlu0 %v2530, 100
        %v5078 = vpop.permute.xlu0 %5077
        %v5080 = vadd.f32 %v2620, %v5078
        %v5081 = vfloor.f32 %v5080
        %v5082 = vsub.f32 %v5080, %v5081
        %v5083 = vsub.f32 1.0, %v5082
        %v5084 = vcvt.f32.s32.to.zero.pseudo %v5081
        %v5085 = vadd.s32 %v5084, 1
        %vm5086 = vcmp.ge.s32.totalorder %v5084, 0
        %vm5087 = vcmp.le.s32.totalorder %v5084, 3
        %vm5088 = vmand %vm5086, %vm5087
        %v5089 = vsel %vm5086, 1, 0
        %5090 = vrot.lane.b32.xlu0 %v5089, 127
        %v5091 = vpop.permute.xlu0 %5090
        %vm5092 = vcmp.ne.s32.totalorder %v5091, 0
        %vm5093 = vmand %vm5088, %vm5092
        %v5094 = vsel %vm5087, 1, 0
        %5095 = vrot.lane.b32.xlu0 %v5094, 127
        %v5096 = vpop.permute.xlu0 %5095
        %vm5097 = vcmp.ne.s32.totalorder %v5096, 0
        %vm5098 = vmand %vm5093, %vm5097
        %v5099 = vmul.u32 %v5084, 4
        %v5100 = vadd.s32 %v5099, 64
        %5101 = vrot.lane.b32.xlu0 %v5084, 1
        %v5102 = vpop.permute.xlu0 %5101
        %v5103 = vadd.s32 %v5100, %v5102
        %5104 = vrot.lane.b32.xlu0 %v5103, 127
        %v5105 = vpop.permute.xlu0 %5104
        %v5106 = vsel %vm5098, %v5105, 4294967295
        %5107 = vset.pattern.permute.xlu0 2
        %5108 = vperm.xlu0 %5107, %v5106
        %v5109 = vpop.permute.xlu0 %5108
        %vm5110 = vcmp.eq.s32.totalorder %v2616, %v5109
        %5112 = vrot.lane.b32.xlu0 %v5083, 12
        %v5113 = vpop.permute.xlu0 %5112
        %v5115 = vmul.f32 %v4702, %v5113
        %5116 = vrot.lane.b32.xlu0 %v5083, 13
        %v5117 = vpop.permute.xlu0 %5116
        %v5119 = vmul.f32 %v5115, %v5117
        %5121 = vset.pattern.permute.xlu0 15
        %5122 = vperm.xlu0 %5121, %v5119
        %v5123 = vpop.permute.xlu0 %5122
        %v5125 = vsel %vm5110, %v5123, 0.0
        %v5126 = vadd.f32 %v5076, %v5125
        %vm5127 = vcmp.ge.s32.totalorder %v5085, 0
        %vm5128 = vcmp.le.s32.totalorder %v5085, 3
        %vm5129 = vmand %vm5127, %vm5128
        %vm5130 = vmand %vm5129, %vm5092
        %vm5131 = vmand %vm5130, %vm5097
        %5132 = vrot.lane.b32.xlu0 %v5085, 1
        %v5133 = vpop.permute.xlu0 %5132
        %v5134 = vadd.s32 %v5100, %v5133
        %5135 = vrot.lane.b32.xlu0 %v5134, 127
        %v5136 = vpop.permute.xlu0 %5135
        %v5137 = vsel %vm5131, %v5136, 4294967295
        %5138 = vset.pattern.permute.xlu0 2
        %5139 = vperm.xlu0 %5138, %v5137
        %v5140 = vpop.permute.xlu0 %5139
        %vm5141 = vcmp.eq.s32.totalorder %v2616, %v5140
        %5143 = vrot.lane.b32.xlu0 %v5082, 13
        %v5144 = vpop.permute.xlu0 %5143
        %v5146 = vmul.f32 %v5115, %v5144
        %5148 = vset.pattern.permute.xlu0 15
        %5149 = vperm.xlu0 %5148, %v5146
        %v5150 = vpop.permute.xlu0 %5149
        %v5152 = vsel %vm5141, %v5150, 0.0
        %v5153 = vadd.f32 %v5126, %v5152
        %v5154 = vsel %vm5127, 1, 0
        %5155 = vrot.lane.b32.xlu0 %v5154, 127
        %v5156 = vpop.permute.xlu0 %5155
        %vm5157 = vcmp.ne.s32.totalorder %v5156, 0
        %vm5158 = vmand %vm5088, %vm5157
        %v5159 = vsel %vm5128, 1, 0
        %5160 = vrot.lane.b32.xlu0 %v5159, 127
        %v5161 = vpop.permute.xlu0 %5160
        %vm5162 = vcmp.ne.s32.totalorder %v5161, 0
        %vm5163 = vmand %vm5158, %vm5162
        %v5164 = vmul.u32 %v5085, 4
        %v5165 = vadd.s32 %v5164, 64
        %v5166 = vadd.s32 %v5165, %v5102
        %5167 = vrot.lane.b32.xlu0 %v5166, 127
        %v5168 = vpop.permute.xlu0 %5167
        %v5169 = vsel %vm5163, %v5168, 4294967295
        %5170 = vset.pattern.permute.xlu0 2
        %5171 = vperm.xlu0 %5170, %v5169
        %v5172 = vpop.permute.xlu0 %5171
        %vm5173 = vcmp.eq.s32.totalorder %v2616, %v5172
        %5174 = vrot.lane.b32.xlu0 %v5082, 12
        %v5175 = vpop.permute.xlu0 %5174
        %v5177 = vmul.f32 %v4702, %v5175
        %v5178 = vmul.f32 %v5177, %v5117
        %5180 = vset.pattern.permute.xlu0 15
        %5181 = vperm.xlu0 %5180, %v5178
        %v5182 = vpop.permute.xlu0 %5181
        %v5184 = vsel %vm5173, %v5182, 0.0
        %v5185 = vadd.f32 %v5153, %v5184
        %vm5186 = vmand %vm5129, %vm5157
        %vm5187 = vmand %vm5186, %vm5162
        %v5188 = vadd.s32 %v5165, %v5133
        %5189 = vrot.lane.b32.xlu0 %v5188, 127
        %v5190 = vpop.permute.xlu0 %5189
        %v5191 = vsel %vm5187, %v5190, 4294967295
        %5192 = vset.pattern.permute.xlu0 2
        %5193 = vperm.xlu0 %5192, %v5191
        %v5194 = vpop.permute.xlu0 %5193
        %vm5195 = vcmp.eq.s32.totalorder %v2616, %v5194
        %v5196 = vmul.f32 %v5177, %v5144
        %5198 = vset.pattern.permute.xlu0 15
        %5199 = vperm.xlu0 %5198, %v5196
        %v5200 = vpop.permute.xlu0 %5199
        %v5202 = vsel %vm5195, %v5200, 0.0
        %v5203 = vadd.f32 %v5185, %v5202
        %5204 = vrot.lane.b32.xlu0 %v2371, 104
        %v5205 = vpop.permute.xlu0 %5204
        %5206 = vrot.lane.b32.xlu0 %v2376, 104
        %v5207 = vpop.permute.xlu0 %5206
        %5208 = vrot.lane.b32.xlu0 %v2381, 104
        %v5209 = vpop.permute.xlu0 %5208
        %5210 = vrot.lane.b32.xlu0 %v2386, 104
        %v5211 = vpop.permute.xlu0 %5210
        %5212 = vrot.lane.b32.xlu0 %v2391, 104
        %v5213 = vpop.permute.xlu0 %5212
        %5214 = vrot.lane.b32.xlu0 %v2396, 104
        %v5215 = vpop.permute.xlu0 %5214
        %5216 = vrot.lane.b32.xlu0 %v2401, 104
        %v5217 = vpop.permute.xlu0 %5216
        %5218 = vrot.lane.b32.xlu0 %v2406, 104
        %v5219 = vpop.permute.xlu0 %5218
        %5220 = vrot.lane.b32.xlu0 %v2411, 104
        %v5221 = vpop.permute.xlu0 %5220
        %5222 = vrot.lane.b32.xlu0 %v2416, 104
        %v5223 = vpop.permute.xlu0 %5222
        %5224 = vrot.lane.b32.xlu0 %v2421, 104
        %v5225 = vpop.permute.xlu0 %5224
        %5226 = vrot.lane.b32.xlu0 %v2426, 104
        %v5227 = vpop.permute.xlu0 %5226
        %5228 = vrot.lane.b32.xlu0 %v2431, 104
        %v5229 = vpop.permute.xlu0 %5228
        %5230 = vrot.lane.b32.xlu0 %v2436, 104
        %v5231 = vpop.permute.xlu0 %5230
        %5232 = vrot.lane.b32.xlu0 %v2441, 104
        %v5233 = vpop.permute.xlu0 %5232
        %5234 = vrot.lane.b32.xlu0 %v2446, 104
        %v5235 = vpop.permute.xlu0 %5234
        %5252 = vmatprep.subr.mxu0 0.0
        %5253 = vmatpush1.msra.mxu0 %v5235
        %5254 = vmatprep.subr.mxu0 0.0
        %5255 = vmatpush1.msra.mxu0 %v5233
        %5256 = vmatprep.subr.mxu0 0.0
        %5257 = vmatpush1.msra.mxu0 %v5231
        %5258 = vmatprep.subr.mxu0 0.0
        %5259 = vmatpush1.msra.mxu0 %v5229
        %5260 = vmatprep.subr.mxu0 0.0
        %5261 = vmatpush1.msra.mxu0 %v5227
        %5262 = vmatprep.subr.mxu0 0.0
        %5263 = vmatpush1.msra.mxu0 %v5225
        %5264 = vmatprep.subr.mxu0 0.0
        %5265 = vmatpush1.msra.mxu0 %v5223
        %5266 = vmatprep.subr.mxu0 0.0
        %5267 = vmatpush1.msra.mxu0 %v5221
        %5268 = vmatprep.subr.mxu0 0.0
        %5269 = vmatpush1.msra.mxu0 %v5219
        %5270 = vmatprep.subr.mxu0 0.0
        %5271 = vmatpush1.msra.mxu0 %v5217
        %5272 = vmatprep.subr.mxu0 0.0
        %5273 = vmatpush1.msra.mxu0 %v5215
        %5274 = vmatprep.subr.mxu0 0.0
        %5275 = vmatpush1.msra.mxu0 %v5213
        %5276 = vmatprep.subr.mxu0 0.0
        %5277 = vmatpush1.msra.mxu0 %v5211
        %5278 = vmatprep.subr.mxu0 0.0
        %5279 = vmatpush1.msra.mxu0 %v5209
        %5280 = vmatprep.subr.mxu0 0.0
        %5281 = vmatpush1.msra.mxu0 %v5207
        %5282 = vmatprep.subr.mxu0 0.0
        %5283 = vmatpush1.msra.mxu0 %v5205
        %5284 = vmatprep.subr.mxu0 0.0
        %5285 = vmatpush2.msra.mxu0 0.0
        %5286 = vmatprep.subr.mxu0 0.0
        %5287 = vmatpush2.msra.mxu0 0.0
        %5288 = vmatprep.subr.mxu0 0.0
        %5289 = vmatpush2.msra.mxu0 0.0
        %5290 = vmatprep.subr.mxu0 0.0
        %5291 = vmatpush2.msra.mxu0 0.0
        %5292 = vmatprep.subr.mxu0 0.0
        %5293 = vmatpush2.msra.mxu0 0.0
        %5294 = vmatprep.subr.mxu0 0.0
        %5295 = vmatpush2.msra.mxu0 0.0
        %5296 = vmatprep.subr.mxu0 0.0
        %5297 = vmatpush2.msra.mxu0 0.0
        %5298 = vmatprep.subr.mxu0 0.0
        %5299 = vmatpush2.msra.mxu0 0.0
        %5300 = vmatprep.subr.mxu0 0.0
        %5301 = vmatpush2.msra.mxu0 0.0
        %5302 = vmatprep.subr.mxu0 0.0
        %5303 = vmatpush2.msra.mxu0 0.0
        %5304 = vmatprep.subr.mxu0 0.0
        %5305 = vmatpush2.msra.mxu0 0.0
        %5306 = vmatprep.subr.mxu0 0.0
        %5307 = vmatpush2.msra.mxu0 0.0
        %5308 = vmatprep.subr.mxu0 0.0
        %5309 = vmatpush2.msra.mxu0 0.0
        %5310 = vmatprep.subr.mxu0 0.0
        %5311 = vmatpush2.msra.mxu0 0.0
        %5312 = vmatprep.subr.mxu0 0.0
        %5313 = vmatpush2.msra.mxu0 0.0
        %5314 = vmatprep.subr.mxu0 0.0
        %5315 = vmatpush2.msra.mxu0 0.0
        %5316 = vmatprep.mubr.f32.mxu0 0.0
        %5317 = vmatmul.mubr.f32.gmra.mxu0 %v5203
        %v5318 = vpop.f32.mrf.mxu0
        %v5319 = vadd.f32 0.0, %v5318
        %v5320 = vpop.f32.mrf.mxu0
        %5321 = vdwg.mxu0
        %v5322 = vld [vmem:[%s41 + $0x18] sm:$0xff]
        %v5324 = vsel %vm1234, %v5319, 0
        %5326 = vmatprep.subr.mxu0 0.0
        %5327 = vmatpush1.msra.mxu0 0.0
        %5328 = vmatprep.subr.mxu0 0.0
        %5329 = vmatpush1.msra.mxu0 0.0
        %5330 = vmatprep.subr.mxu0 0.0
        %5331 = vmatpush1.msra.mxu0 0.0
        %5332 = vmatprep.subr.mxu0 0.0
        %5333 = vmatpush1.msra.mxu0 0.0
        %5334 = vmatprep.subr.mxu0 0.0
        %5335 = vmatpush1.msra.mxu0 0.0
        %5336 = vmatprep.subr.mxu0 0.0
        %5337 = vmatpush1.msra.mxu0 0.0
        %5338 = vmatprep.subr.mxu0 0.0
        %5339 = vmatpush1.msra.mxu0 0.0
        %5340 = vmatprep.subr.mxu0 0.0
        %5341 = vmatpush1.msra.mxu0 0.0
        %5342 = vmatprep.subr.mxu0 0.0
        %5343 = vmatpush1.msra.mxu0 0.0
        %5344 = vmatprep.subr.mxu0 0.0
        %5345 = vmatpush1.msra.mxu0 0.0
        %5346 = vmatprep.subr.mxu0 0.0
        %5347 = vmatpush1.msra.mxu0 0.0
        %5348 = vmatprep.subr.mxu0 0.0
        %5349 = vmatpush1.msra.mxu0 0.0
        %5350 = vmatprep.subr.mxu0 0.0
        %5351 = vmatpush1.msra.mxu0 0.0
        %5352 = vmatprep.subr.mxu0 0.0
        %5353 = vmatpush1.msra.mxu0 0.0
        %5354 = vmatprep.subr.mxu0 0.0
        %5355 = vmatpush1.msra.mxu0 0.0
        %5356 = vmatprep.subr.mxu0 0.0
        %5357 = vmatpush1.msra.mxu0 %v5322
        %5358 = vmatprep.subr.mxu0 0.0
        %5359 = vmatpush2.msra.mxu0 0.0
        %5360 = vmatprep.subr.mxu0 0.0
        %5361 = vmatpush2.msra.mxu0 0.0
        %5362 = vmatprep.subr.mxu0 0.0
        %5363 = vmatpush2.msra.mxu0 0.0
        %5364 = vmatprep.subr.mxu0 0.0
        %5365 = vmatpush2.msra.mxu0 0.0
        %5366 = vmatprep.subr.mxu0 0.0
        %5367 = vmatpush2.msra.mxu0 0.0
        %5368 = vmatprep.subr.mxu0 0.0
        %5369 = vmatpush2.msra.mxu0 0.0
        %5370 = vmatprep.subr.mxu0 0.0
        %5371 = vmatpush2.msra.mxu0 0.0
        %5372 = vmatprep.subr.mxu0 0.0
        %5373 = vmatpush2.msra.mxu0 0.0
        %5374 = vmatprep.subr.mxu0 0.0
        %5375 = vmatpush2.msra.mxu0 0.0
        %5376 = vmatprep.subr.mxu0 0.0
        %5377 = vmatpush2.msra.mxu0 0.0
        %5378 = vmatprep.subr.mxu0 0.0
        %5379 = vmatpush2.msra.mxu0 0.0
        %5380 = vmatprep.subr.mxu0 0.0
        %5381 = vmatpush2.msra.mxu0 0.0
        %5382 = vmatprep.subr.mxu0 0.0
        %5383 = vmatpush2.msra.mxu0 0.0
        %5384 = vmatprep.subr.mxu0 0.0
        %5385 = vmatpush2.msra.mxu0 0.0
        %5386 = vmatprep.subr.mxu0 0.0
        %5387 = vmatpush2.msra.mxu0 0.0
        %5388 = vmatprep.subr.mxu0 0.0
        %5389 = vmatpush2.msra.mxu0 0.0
        %5390 = vmatprep.mubr.f32.mxu0 0.0
        %5391 = vmatmul.mubr.f32.gmra.mxu0 %v5324
        %v5392 = vpop.f32.mrf.mxu0
        %v5393 = vadd.f32 0.0, %v5392
        %v5394 = vpop.f32.mrf.mxu0
        %5395 = vdwg.mxu0
        %v5396 = vadd.f32 %v4686, %v5393
        %v5397 = vld [vmem:[%s43] sm:$0x1]
        %v5399 = vlaneseq
        %v5400 = vshrl.u32 %v5399, 7
        %v5401 = vsub.s32 0, %v5400
        %v5402 = vrot.slane %v5397, %v5401
        %v5404 = vadd.f32 %v5396, %v5402
        %v5405 = vadd.f32 %v2227, %v5404
        %v5406 = vld [vmem:[%s45] sm:$0x1]
        %v5407 = vld [vmem:[%s47] sm:$0x1]
        %v5408 = vsel %vm994, %v5405, 0.0
        %5409 = vadd.xlane.f32.xlu0 %v5408
        %v5410 = vpop.xlane.xlu0 %5409
        %v5411 = vmul.f32 %v5410, %v2203
        %v5412 = vsub.f32 %v5405, %v5411
        %v5413 = vmul.f32 %v5412, %v5412
        %v5414 = vsel %vm994, %v5413, 0.0
        %5415 = vadd.xlane.f32.xlu0 %v5414
        %v5416 = vpop.xlane.xlu0 %5415
        %v5417 = vmul.f32 %v5416, %v2203
        %v5418 = vadd.f32 %v5417, 1e-05
        %v5419 = vrsqrt.pop %v5418
        %v5420 = vmul.f32 %v5412, %v5419
        %v5422 = vlaneseq
        %v5423 = vshrl.u32 %v5422, 7
        %v5424 = vsub.s32 0, %v5423
        %v5425 = vrot.slane %v5406, %v5424
        %v5427 = vmul.f32 %v5420, %v5425
        %v5429 = vlaneseq
        %v5430 = vshrl.u32 %v5429, 7
        %v5431 = vsub.s32 0, %v5430
        %v5432 = vrot.slane %v5407, %v5431
        %v5434 = vadd.f32 %v5427, %v5432
        %v5435 = vld [vmem:[%s49] sm:$0xff]
        %v5436 = vld [vmem:[%s49 + $0x8] sm:$0xff]
        %v5437 = vld [vmem:[%s49 + $0x10] sm:$0xff]
        %v5438 = vld [vmem:[%s49 + $0x18] sm:$0xff]
        %v5439 = vld [vmem:[%s51] sm:$0x1]
        %v5441 = vlaneseq
        %v5442 = vshrl.u32 %v5441, 7
        %v5443 = vsub.s32 0, %v5442
        %v5444 = vrot.slane %v5439, %v5443
        %v5447 = vsel %vm994, %v5434, 0
        %5449 = vmatprep.subr.mxu0 0.0
        %5450 = vmatpush1.msra.mxu0 0.0
        %5451 = vmatprep.subr.mxu0 0.0
        %5452 = vmatpush1.msra.mxu0 0.0
        %5453 = vmatprep.subr.mxu0 0.0
        %5454 = vmatpush1.msra.mxu0 0.0
        %5455 = vmatprep.subr.mxu0 0.0
        %5456 = vmatpush1.msra.mxu0 0.0
        %5457 = vmatprep.subr.mxu0 0.0
        %5458 = vmatpush1.msra.mxu0 0.0
        %5459 = vmatprep.subr.mxu0 0.0
        %5460 = vmatpush1.msra.mxu0 0.0
        %5461 = vmatprep.subr.mxu0 0.0
        %5462 = vmatpush1.msra.mxu0 0.0
        %5463 = vmatprep.subr.mxu0 0.0
        %5464 = vmatpush1.msra.mxu0 0.0
        %5465 = vmatprep.subr.mxu0 0.0
        %5466 = vmatpush1.msra.mxu0 0.0
        %5467 = vmatprep.subr.mxu0 0.0
        %5468 = vmatpush1.msra.mxu0 0.0
        %5469 = vmatprep.subr.mxu0 0.0
        %5470 = vmatpush1.msra.mxu0 0.0
        %5471 = vmatprep.subr.mxu0 0.0
        %5472 = vmatpush1.msra.mxu0 0.0
        %5473 = vmatprep.subr.mxu0 0.0
        %5474 = vmatpush1.msra.mxu0 %v5438
        %5475 = vmatprep.subr.mxu0 0.0
        %5476 = vmatpush1.msra.mxu0 %v5437
        %5477 = vmatprep.subr.mxu0 0.0
        %5478 = vmatpush1.msra.mxu0 %v5436
        %5479 = vmatprep.subr.mxu0 0.0
        %5480 = vmatpush1.msra.mxu0 %v5435
        %5481 = vmatprep.subr.mxu0 0.0
        %5482 = vmatpush2.msra.mxu0 0.0
        %5483 = vmatprep.subr.mxu0 0.0
        %5484 = vmatpush2.msra.mxu0 0.0
        %5485 = vmatprep.subr.mxu0 0.0
        %5486 = vmatpush2.msra.mxu0 0.0
        %5487 = vmatprep.subr.mxu0 0.0
        %5488 = vmatpush2.msra.mxu0 0.0
        %5489 = vmatprep.subr.mxu0 0.0
        %5490 = vmatpush2.msra.mxu0 0.0
        %5491 = vmatprep.subr.mxu0 0.0
        %5492 = vmatpush2.msra.mxu0 0.0
        %5493 = vmatprep.subr.mxu0 0.0
        %5494 = vmatpush2.msra.mxu0 0.0
        %5495 = vmatprep.subr.mxu0 0.0
        %5496 = vmatpush2.msra.mxu0 0.0
        %5497 = vmatprep.subr.mxu0 0.0
        %5498 = vmatpush2.msra.mxu0 0.0
        %5499 = vmatprep.subr.mxu0 0.0
        %5500 = vmatpush2.msra.mxu0 0.0
        %5501 = vmatprep.subr.mxu0 0.0
        %5502 = vmatpush2.msra.mxu0 0.0
        %5503 = vmatprep.subr.mxu0 0.0
        %5504 = vmatpush2.msra.mxu0 0.0
        %5505 = vmatprep.subr.mxu0 0.0
        %5506 = vmatpush2.msra.mxu0 0.0
        %5507 = vmatprep.subr.mxu0 0.0
        %5508 = vmatpush2.msra.mxu0 0.0
        %5509 = vmatprep.subr.mxu0 0.0
        %5510 = vmatpush2.msra.mxu0 0.0
        %5511 = vmatprep.subr.mxu0 0.0
        %5512 = vmatpush2.msra.mxu0 0.0
        %5513 = vmatprep.mubr.f32.mxu0 0.0
        %5514 = vmatmul.mubr.f32.gmra.mxu0 %v5447
        %v5515 = vpop.f32.mrf.mxu0
        %v5516 = vadd.f32 %v5444, %v5515
        %v5517 = vpop.f32.mrf.mxu0
        %5518 = vdwg.mxu0
        %v5519 = vmax.f32 %v5516, 0.0
        %v5520 = vld [vmem:[%s53] sm:$0xff]
        %v5521 = vld [vmem:[%s53 + $0x8] sm:$0xff]
        %v5522 = vld [vmem:[%s53 + $0x10] sm:$0xff]
        %v5523 = vld [vmem:[%s53 + $0x18] sm:$0xff]
        %v5524 = vld [vmem:[%s53 + $0x20] sm:$0xff]
        %v5525 = vld [vmem:[%s53 + $0x28] sm:$0xff]
        %v5526 = vld [vmem:[%s53 + $0x30] sm:$0xff]
        %v5527 = vld [vmem:[%s53 + $0x38] sm:$0xff]
        %v5528 = vld [vmem:[%s55] sm:$0x1]
        %v5530 = vlaneseq
        %v5531 = vshrl.u32 %v5530, 7
        %v5532 = vsub.s32 0, %v5531
        %v5533 = vrot.slane %v5528, %v5532
        %vm5535 = vcmask 523264
        %v5537 = vsel %vm5535, %v5519, 0
        %5539 = vmatprep.subr.mxu0 0.0
        %5540 = vmatpush1.msra.mxu0 0.0
        %5541 = vmatprep.subr.mxu0 0.0
        %5542 = vmatpush1.msra.mxu0 0.0
        %5543 = vmatprep.subr.mxu0 0.0
        %5544 = vmatpush1.msra.mxu0 0.0
        %5545 = vmatprep.subr.mxu0 0.0
        %5546 = vmatpush1.msra.mxu0 0.0
        %5547 = vmatprep.subr.mxu0 0.0
        %5548 = vmatpush1.msra.mxu0 0.0
        %5549 = vmatprep.subr.mxu0 0.0
        %5550 = vmatpush1.msra.mxu0 0.0
        %5551 = vmatprep.subr.mxu0 0.0
        %5552 = vmatpush1.msra.mxu0 0.0
        %5553 = vmatprep.subr.mxu0 0.0
        %5554 = vmatpush1.msra.mxu0 0.0
        %5555 = vmatprep.subr.mxu0 0.0
        %5556 = vmatpush1.msra.mxu0 %v5527
        %5557 = vmatprep.subr.mxu0 0.0
        %5558 = vmatpush1.msra.mxu0 %v5526
        %5559 = vmatprep.subr.mxu0 0.0
        %5560 = vmatpush1.msra.mxu0 %v5525
        %5561 = vmatprep.subr.mxu0 0.0
        %5562 = vmatpush1.msra.mxu0 %v5524
        %5563 = vmatprep.subr.mxu0 0.0
        %5564 = vmatpush1.msra.mxu0 %v5523
        %5565 = vmatprep.subr.mxu0 0.0
        %5566 = vmatpush1.msra.mxu0 %v5522
        %5567 = vmatprep.subr.mxu0 0.0
        %5568 = vmatpush1.msra.mxu0 %v5521
        %5569 = vmatprep.subr.mxu0 0.0
        %5570 = vmatpush1.msra.mxu0 %v5520
        %5571 = vmatprep.subr.mxu0 0.0
        %5572 = vmatpush2.msra.mxu0 0.0
        %5573 = vmatprep.subr.mxu0 0.0
        %5574 = vmatpush2.msra.mxu0 0.0
        %5575 = vmatprep.subr.mxu0 0.0
        %5576 = vmatpush2.msra.mxu0 0.0
        %5577 = vmatprep.subr.mxu0 0.0
        %5578 = vmatpush2.msra.mxu0 0.0
        %5579 = vmatprep.subr.mxu0 0.0
        %5580 = vmatpush2.msra.mxu0 0.0
        %5581 = vmatprep.subr.mxu0 0.0
        %5582 = vmatpush2.msra.mxu0 0.0
        %5583 = vmatprep.subr.mxu0 0.0
        %5584 = vmatpush2.msra.mxu0 0.0
        %5585 = vmatprep.subr.mxu0 0.0
        %5586 = vmatpush2.msra.mxu0 0.0
        %5587 = vmatprep.subr.mxu0 0.0
        %5588 = vmatpush2.msra.mxu0 0.0
        %5589 = vmatprep.subr.mxu0 0.0
        %5590 = vmatpush2.msra.mxu0 0.0
        %5591 = vmatprep.subr.mxu0 0.0
        %5592 = vmatpush2.msra.mxu0 0.0
        %5593 = vmatprep.subr.mxu0 0.0
        %5594 = vmatpush2.msra.mxu0 0.0
        %5595 = vmatprep.subr.mxu0 0.0
        %5596 = vmatpush2.msra.mxu0 0.0
        %5597 = vmatprep.subr.mxu0 0.0
        %5598 = vmatpush2.msra.mxu0 0.0
        %5599 = vmatprep.subr.mxu0 0.0
        %5600 = vmatpush2.msra.mxu0 0.0
        %5601 = vmatprep.subr.mxu0 0.0
        %5602 = vmatpush2.msra.mxu0 0.0
        %5603 = vmatprep.mubr.f32.mxu0 0.0
        %5604 = vmatmul.mubr.f32.gmra.mxu0 %v5537
        %v5605 = vpop.f32.mrf.mxu0
        %v5606 = vadd.f32 %v5533, %v5605
        %v5607 = vpop.f32.mrf.mxu0
        %5608 = vdwg.mxu0
        %v5609 = vadd.f32 %v5434, %v5606
        %v5610 = vld [vmem:[%s57] sm:$0x1]
        %v5611 = vld [vmem:[%s59] sm:$0x1]
        %v5612 = vsel %vm994, %v5609, 0.0
        %5613 = vadd.xlane.f32.xlu0 %v5612
        %v5614 = vpop.xlane.xlu0 %5613
        %v5615 = vmul.f32 %v5614, %v2203
        %v5616 = vsub.f32 %v5609, %v5615
        %v5617 = vmul.f32 %v5616, %v5616
        %v5618 = vsel %vm994, %v5617, 0.0
        %5619 = vadd.xlane.f32.xlu0 %v5618
        %v5620 = vpop.xlane.xlu0 %5619
        %v5621 = vmul.f32 %v5620, %v2203
        %v5622 = vadd.f32 %v5621, 1e-05
        %v5623 = vrsqrt.pop %v5622
        %v5624 = vmul.f32 %v5616, %v5623
        %v5626 = vlaneseq
        %v5627 = vshrl.u32 %v5626, 7
        %v5628 = vsub.s32 0, %v5627
        %v5629 = vrot.slane %v5610, %v5628
        %v5631 = vmul.f32 %v5624, %v5629
        %v5633 = vlaneseq
        %v5634 = vshrl.u32 %v5633, 7
        %v5635 = vsub.s32 0, %v5634
        %v5636 = vrot.slane %v5611, %v5635
        %v5638 = vadd.f32 %v5631, %v5636
        %5639 = vst.msk [vmem:[%s962] sm:$0xff] %vm994, %v5638
        %s5640 = sand.u32 %s733, 1
        %s5641 = scalar_lea.sflag [#allocation3], %s5640
        %s5642 = sand.u32 %s733, 1
        %s5643 = smul.addr %s5642, 8
        %s5644 = scalar_lea.vmem [#allocation2], %s5643
        // Predicated region
        $region141: #{decoder_layer_forward.1} parent=139 // pred_check
          %p5645 = pneg %p743
        $region142: #{decoder_layer_forward.1} parent=139 // pred_check_branch
          %5647 = sbr.rel (%p5645) target = $region144
        $region143: #{decoder_layer_forward.1} parent=139 // pred_region
          %s5649 = ssub.s32 128, 128
          %5650 = vsyncadd %s5641, %s5649
          %s5651 = smul.addr %s75, 128
          %s5652 = scalar_lea.hbm %s61, %s5651
          %s5654 = sshll.u32 %s5644, 4
          %s5655 = int_to_ptr.vmem [resolvable:$true] %s5654
          %5657 = dma.vmem_to_hbm [thread:$0]  %s5655, 128, %s5652, %s5641
        $region144: #{decoder_layer_forward.1} parent=139 // pred_fallthru
          _
      $region140: #{decoder_layer_forward.1} parent=5 // pred_fallthru
        _
      %p5658 = scmp.le.s32.totalorder 2, %s70
      // Predicated region
      $region145: #{decoder_layer_forward.1} parent=5 // pred_check
        %p5659 = pneg %p5658
      $region146: #{decoder_layer_forward.1} parent=5 // pred_check_branch
        %5661 = sbr.rel (%p5659) target = $region148
      $region147: #{decoder_layer_forward.1} parent=5 // pred_region
        %s5662 = ssub.s32 %s70, 2
        // Predicated region
        $region149: #{decoder_layer_forward.1} parent=147 // pred_check
          %p5663 = pneg %p749
        $region150: #{decoder_layer_forward.1} parent=147 // pred_check_branch
          %5665 = sbr.rel (%p5663) target = $region152
        $region151: #{decoder_layer_forward.1} parent=147 // pred_region
          %s5666 = sand.u32 %s734, 1
          %s5667 = scalar_lea.sflag [#allocation3], %s5666
          %s5668 = sand.u32 %s734, 1
          %s5669 = smul.addr %s5668, 8
          %s5670 = scalar_lea.vmem [#allocation2], %s5669
          %5671 = dma.done %s5667, 128
        $region152: #{decoder_layer_forward.1} parent=147 // pred_fallthru
          _
      $region148: #{decoder_layer_forward.1} parent=5 // pred_fallthru
        _
    $region6: #{decoder_layer_forward.1} parent=1 // loop_footer
      %s74 = sadd.s32 1, %s70
    $region7: #{decoder_layer_forward.1} parent=1 // loop_footer_branch
      %69 = sbr.rel target = $region3
    $region8: #{decoder_layer_forward.1} parent=1 // loop_exit
      _
    %5672 = vsyncpa [#allocation3], 1
    %s5673 = scalar_lea.sflag [#allocation3], 1
    %5674 = vsyncpa %s5673, 1

</llo_original>
